<compile_context>
chip_gen: v7x
topology: tpu7x:2x2x1
jax: 0.10.0
libtpu: 0.0.40
codegen_flags: <defaults>
</compile_context>

<pallas_src>
import functools

import jax
import jax.numpy as jnp
from jax import lax
from jax.experimental import pallas as pl
from jax.experimental.pallas import tpu as pltpu

_MXU_DTYPE = jnp.bfloat16  # MXU operand / token-slab dtype (accumulation stays f32)

# Cross-scale pairing of the reference forward:
#   out0 = softmax(Q[2] K[1]^T) V[0]; out1 = softmax(Q[0] K[2]^T) V[1];
#   out2 = softmax(Q[1] K[0]^T) V[2]; out = cat([out0, out1, out2], C) -> to_out
_Q_SCALE = (2, 0, 1)
_K_SCALE = (1, 2, 0)
_V_SCALE = (0, 1, 2)


# ----------------------------------------------------------------------------
# Kernel 1: multi-scale token embedding (dilated depthwise + BN-fold + per-scale
#           1x1 projections; to_out folded into the V projection)
# ----------------------------------------------------------------------------

def _msc_embed_kernel(xp_ref, xph_ref, wq_dw_ref, wkv_dw_ref,
                      wq_pw_ref, bq_ref, wkv_pw_ref, bkv_ref,
                      q_ref, kv_ref, *, k, dils, maxpad, stride, H, W, Hk, Wk):
    C = xp_ref.shape[-1]
    n_q = H * W
    n_kv = Hk * Wk
    Hs = xph_ref.shape[1] // (stride * stride)  # rows per stride-phase slab

    q_blocks = []
    kv_blocks = []
    for i, d in enumerate(dils):
        # reference module uses padding == dilation == d for every scale
        off = maxpad - d

        # ---- q path: depthwise dilated conv, stride 1 ----------------------
        # kw outer / kh inner: the sublane-unaligned W shift is done once per
        # (scale, kw); the kh offsets land on a leading dim and are free.
        # TODO(synk): with C < 128, pack 128//C columns of W into the lane axis
        # (wrapper-side reshape) to fill the VPU; skipped for generality.
        acc = jnp.zeros((H, W, C), jnp.float32)
        for kw in range(k):
            c0 = off + kw * d
            col = xp_ref[0, :, c0:c0 + W, :]                       # (Hp2, W, C)
            for kh in range(k):
                t = i * k * k + kh * k + kw
                tap = wq_dw_ref[t:t + 1, :]                        # (1, C)
                r0 = off + kh * d
                acc = acc + col[r0:r0 + H, :, :] * tap
        q_blocks.append(
            jnp.dot(acc.reshape(n_q, C).astype(_MXU_DTYPE),
                    wq_pw_ref[i * C:(i + 1) * C, :],
                    preferred_element_type=jnp.float32))           # (Nq, inner)

        # ---- kv path: depthwise conv evaluated directly at the output stride
        acc = jnp.zeros((Hk, Wk, C), jnp.float32)
        for kw in range(k):
            ow = off + kw * d
            cb = ow // stride
            colslab = xph_ref[0, :, cb:cb + Wk, :]                 # (s*s*Hs, Wk, C)
            for kh in range(k):
                oh = off + kh * d
                pidx = (oh % stride) * stride + (ow % stride)      # phase slab
                rb = pidx * Hs + oh // stride
                t = i * k * k + kh * k + kw
                tap = wkv_dw_ref[t:t + 1, :]                       # (1, C)
                acc = acc + colslab[rb:rb + Hk, :, :] * tap
        kv_blocks.append(
            jnp.dot(acc.reshape(n_kv, C).astype(_MXU_DTYPE),
                    wkv_pw_ref[i * C:(i + 1) * C, :],
                    preferred_element_type=jnp.float32))           # (Nk, inner+h*C)

    # single lane-dense store per output slab (bias folded from BN / to_out chain)
    q_ref[0] = (jnp.concatenate(q_blocks, axis=-1) + bq_ref[...]).astype(q_ref.dtype)
    kv_ref[0] = (jnp.concatenate(kv_blocks, axis=-1) + bkv_ref[...]).astype(kv_ref.dtype)


# ----------------------------------------------------------------------------
# Kernel 2: 3 cross-scale attention pairs (to_out already folded into V')
# ----------------------------------------------------------------------------

def _attn_out_kernel(q_ref, kv_ref, bo_ref, o_ref, *, heads, dim_head, inner, dim,
                     scale):
    tq = q_ref.shape[1]
    sblk = inner + heads * dim       # per-scale kv block: [K (inner) | V' (heads*dim)]

    o_acc = jnp.zeros((tq, dim), jnp.float32)
    for m in range(3):
        q0 = _Q_SCALE[m] * inner
        k0 = _K_SCALE[m] * sblk
        v0 = _V_SCALE[m] * sblk + inner
        for g in range(heads):
            # slice operands directly from the Refs (no full-slab materialisation)
            qg = q_ref[0, :, q0 + g * dim_head:q0 + (g + 1) * dim_head]   # (TQ, dh)
            kg = kv_ref[0, :, k0 + g * dim_head:k0 + (g + 1) * dim_head]  # (Nk, dh)
            vg = kv_ref[0, :, v0 + g * dim:v0 + (g + 1) * dim]            # (Nk, dim)
            s = lax.dot_general(qg, kg, (((1,), (1,)), ((), ())),
                                preferred_element_type=jnp.float32) * scale
            s = s - jnp.max(s, axis=-1, keepdims=True)
            p = jnp.exp(s)                                                # f32 softmax
            p = p * pl.reciprocal(jnp.sum(p, axis=-1, keepdims=True), approx=False)
            # head-merge + to_out already folded into V' -> one lane-dense matmul
            o_acc = o_acc + jnp.dot(p.astype(_MXU_DTYPE), vg,
                                    preferred_element_type=jnp.float32)
    # TODO(synk): if dim < 128, pack 128//dim tokens per output row for unmasked vst.
    o_ref[0] = (o_acc + bo_ref[...]).astype(o_ref.dtype)


# ----------------------------------------------------------------------------
# Wrapper
# ----------------------------------------------------------------------------

def cs_attention(x_nchw, params, *, heads, dim_head, proj_kernel, kv_proj_stride,
                 scale_factors=(1, 2, 4), bn_eps=1e-5):
    B, C, H, W = x_nchw.shape
    k = proj_kernel
    n_s = len(scale_factors)
    assert n_s == 3, "CS_Attention pairs exactly three scales"
    inner = heads * dim_head
    dh = dim_head
    attn_scale = dim_head ** -0.5
    maxpad = max(scale_factors)
    s = kv_proj_stride
    f32 = jnp.float32

    # padding == dilation == scale_factor  (as in the reference __init__)
    kv_sizes = []
    for d in scale_factors:
        assert H + 2 * d - d * (k - 1) == H and W + 2 * d - d * (k - 1) == W, \
            "q path must preserve spatial size (proj_kernel must be 3)"
        kv_sizes.append(((H + 2 * d - d * (k - 1) - 1) // s + 1,
                         (W + 2 * d - d * (k - 1) - 1) // s + 1))
    Hk, Wk = kv_sizes[0]
    assert all(hw == (Hk, Wk) for hw in kv_sizes)
    Nq, Nk = H * W, Hk * Wk

    # --- fold eval-mode BatchNorm (PyTorch defaults) into the 1x1 projections ---
    bn_a = jnp.full((C,), (1.0 + bn_eps) ** -0.5, f32)   # weight=1, running_var=1
    bn_b = jnp.zeros((C,), f32)                          # bias=0,  running_mean=0
    q_pw = params['q_pw'].astype(f32)                    # (3, C, inner)
    kv_pw = params['kv_pw'].astype(f32)                  # (3, C, 2*inner)
    out_w = params['out_w'].astype(f32)                  # (3*inner, C)
    out_b = params['out_b'].astype(f32)                  # (C,)

    # q projection (per scale, stacked as rows [i*C:(i+1)*C])
    wq_all = jnp.concatenate([bn_a[:, None] * q_pw[i] for i in range(n_s)], axis=0)
    bq_blk = jnp.concatenate([bn_b @ q_pw[i] for i in range(n_s)])[None, :]

    # kv projection: K half BN-folded; V half additionally folded with to_out rows
    # V'_{scale i, head g} = V_{i,g} @ out_w[(i*heads+g)*dh : ...]  (pair m uses V[m])
    wkv_rows, bkv_rows = [], []
    for i in range(n_s):
        wk_i = bn_a[:, None] * kv_pw[i][:, :inner]                      # (C, inner)
        bk_i = bn_b @ kv_pw[i][:, :inner]                               # (inner,)
        wv_i = bn_a[:, None] * kv_pw[i][:, inner:]                      # (C, inner)
        bv_i = bn_b @ kv_pw[i][:, inner:]                               # (inner,)
        wvp, bvp = [], []
        for g in range(heads):
            w_rows = out_w[(i * heads + g) * dh:(i * heads + g + 1) * dh, :]  # (dh, C)
            wvp.append(wv_i[:, g * dh:(g + 1) * dh] @ w_rows)                 # (C, C)
            bvp.append(bv_i[g * dh:(g + 1) * dh] @ w_rows)                    # (C,)
        wkv_rows.append(jnp.concatenate([wk_i] + wvp, axis=1))   # (C, inner + heads*C)
        bkv_rows.append(jnp.concatenate([bk_i] + bvp))           # (inner + heads*C,)
    kvw = inner + heads * C
    wkv_all = jnp.concatenate(wkv_rows, axis=0)                  # (3*C, kvw)
    bkv_blk = jnp.concatenate(bkv_rows)[None, :]                 # (1, 3*kvw)

    wq_dw = params['q_dw'].reshape(n_s * k * k, C).astype(f32)
    wkv_dw = params['kv_dw'].reshape(n_s * k * k, C).astype(f32)

    # --- input prep: NCHW -> NHWC, shared max-dilation padding, stride phases ---
    # TODO(synk): xp2 + xph is ~2x input HBM read; could build phase slabs in-kernel
    # from the resident xp2 block (strided pl.ds) to halve it (mostly a v5e win).
    x = jnp.transpose(x_nchw, (0, 2, 3, 1)).astype(f32)
    xp = jnp.pad(x, ((0, 0), (maxpad, maxpad), (maxpad, maxpad), (0, 0)))
    Hp, Wp = H + 2 * maxpad, W + 2 * maxpad
    max_off = max((maxpad - d) + (k - 1) * d for d in scale_factors)
    Hs = max(-(-Hp // s), max_off // s + Hk)      # guarantee in-slab window fits
    Ws = max(-(-Wp // s), max_off // s + Wk)
    Hp2, Wp2 = Hs * s, Ws * s
    xp2 = jnp.pad(xp, ((0, 0), (0, Hp2 - Hp), (0, Wp2 - Wp), (0, 0)))
    # stride-phase split so the strided kv conv only needs contiguous reads
    xph = jnp.concatenate([xp2[:, p::s, q::s, :] for p in range(s) for q in range(s)],
                          axis=1)                                # (B, s*s*Hs, Ws, C)

    vmem_cap = 32 * 1024 * 1024
    tok_dt = _MXU_DTYPE
    q_tok, kv_tok = pl.pallas_call(
        functools.partial(_msc_embed_kernel, k=k, dils=tuple(scale_factors),
                          maxpad=maxpad, stride=s, H=H, W=W, Hk=Hk, Wk=Wk),
        out_shape=(jax.ShapeDtypeStruct((B, Nq, n_s * inner), tok_dt),
                   jax.ShapeDtypeStruct((B, Nk, n_s * kvw), tok_dt)),
        grid=(B,),
        in_specs=[
            pl.BlockSpec((1, Hp2, Wp2, C), lambda b: (b, 0, 0, 0)),
            pl.BlockSpec((1, s * s * Hs, Ws, C), lambda b: (b, 0, 0, 0)),
            pl.BlockSpec((n_s * k * k, C), lambda b: (0, 0)),
            pl.BlockSpec((n_s * k * k, C), lambda b: (0, 0)),
            pl.BlockSpec((n_s * C, inner), lambda b: (0, 0)),
            pl.BlockSpec((1, n_s * inner), lambda b: (0, 0)),
            pl.BlockSpec((n_s * C, kvw), lambda b: (0, 0)),
            pl.BlockSpec((1, n_s * kvw), lambda b: (0, 0)),
        ],
        out_specs=(pl.BlockSpec((1, Nq, n_s * inner), lambda b: (b, 0, 0)),
                   pl.BlockSpec((1, Nk, n_s * kvw), lambda b: (b, 0, 0))),
        compiler_params=pltpu.CompilerParams(dimension_semantics=("parallel",),
                                             vmem_limit_bytes=vmem_cap),
    )(xp2, xph, wq_dw, wkv_dw,
      wq_all.astype(_MXU_DTYPE), bq_blk, wkv_all.astype(_MXU_DTYPE), bkv_blk)

    # --- kernel 2: query-tile attention; ragged Nq handled by padding the slab ---
    TQ = 256 if Nq >= 256 else max(8, -(-Nq // 8) * 8)
    nq_pad = -(-Nq // TQ) * TQ
    q_in = q_tok if nq_pad == Nq else jnp.pad(
        q_tok, ((0, 0), (0, nq_pad - Nq), (0, 0)))

    out_tok = pl.pallas_call(
        functools.partial(_attn_out_kernel, heads=heads, dim_head=dim_head,
                          inner=inner, dim=C, scale=attn_scale),
        out_shape=jax.ShapeDtypeStruct((B, nq_pad, C), f32),
        grid=(B, nq_pad // TQ),
        in_specs=[
            pl.BlockSpec((1, TQ, n_s * inner), lambda b, t: (b, t, 0)),
            pl.BlockSpec((1, Nk, n_s * kvw), lambda b, t: (b, 0, 0)),
            pl.BlockSpec((1, C), lambda b, t: (0, 0)),
        ],
        out_specs=pl.BlockSpec((1, TQ, C), lambda b, t: (b, t, 0)),
        compiler_params=pltpu.CompilerParams(
            dimension_semantics=("parallel", "parallel"),
            vmem_limit_bytes=vmem_cap),
    )(q_in, kv_tok, out_b.reshape(1, C))

    out = out_tok[:, :Nq, :].reshape(B, H, W, C)
    return jnp.transpose(out, (0, 3, 1, 2))   # back to NCHW


# ----------------------------------------------------------------------------
# Deterministic synthetic parameters (shapes from CS_Attention.__init__)
# ----------------------------------------------------------------------------

def init_params(key, *, dim, proj_kernel, heads, dim_head, n_scales=3, std=0.05):
    inner = heads * dim_head
    k = proj_kernel
    ks = jax.random.split(key, 6)

    def rnd(kk, shape):
        return jax.random.normal(kk, shape, jnp.float32) * std

    return dict(
        q_dw=rnd(ks[0], (n_scales, k, k, dim)),          # depthwise taps, per scale
        q_pw=rnd(ks[1], (n_scales, dim, inner)),         # 1x1 conv (no bias)
        kv_dw=rnd(ks[2], (n_scales, k, k, dim)),
        kv_pw=rnd(ks[3], (n_scales, dim, 2 * inner)),    # [k | v] channel blocks
        out_w=rnd(ks[4], (n_scales * inner, dim)),       # to_out 1x1 conv
        out_b=rnd(ks[5], (dim,)),
    )


# ----------------------------------------------------------------------------

if __name__ == "__main__":
    key = jax.random.PRNGKey(0)
    kx, kp = jax.random.split(key)

    # Small shapes consistent with CS_Attention(dim, proj_kernel=3,
    # kv_proj_stride=2, heads=2, dim_head=16).
    B, dim, H, W = 2, 32, 16, 16
    heads, dim_head = 2, 16
    proj_kernel, kv_proj_stride = 3, 2

    x = jax.random.normal(kx, (B, dim, H, W), jnp.float32)    # NCHW like PyTorch
    params = init_params(kp, dim=dim, proj_kernel=proj_kernel,
                         heads=heads, dim_head=dim_head)

    @jax.jit
    def fwd(x_in, p):
        return cs_attention(x_in, p, heads=heads, dim_head=dim_head,
                            proj_kernel=proj_kernel,
                            kv_proj_stride=kv_proj_stride)

    out = fwd(x, params)
    jax.block_until_ready(out)
    assert out.shape == (B, dim, H, W)
    assert bool(jnp.all(jnp.isfinite(out)))
    print("KERNEL_OK")
</pallas_src>

<mosaic_0001>
module attributes {stable_mosaic.version = 11 : i64} {
  func.func @_msc_embed_kernel(%arg0: i32, %arg1: memref<1x24x24x32xf32, #tpu.memory_space<vmem>>, %arg2: memref<1x48x12x32xf32, #tpu.memory_space<vmem>>, %arg3: memref<27x32xf32, #tpu.memory_space<vmem>>, %arg4: memref<27x32xf32, #tpu.memory_space<vmem>>, %arg5: memref<96x32xbf16, #tpu.memory_space<vmem>>, %arg6: memref<1x96xf32, #tpu.memory_space<vmem>>, %arg7: memref<96x96xbf16, #tpu.memory_space<vmem>>, %arg8: memref<1x288xf32, #tpu.memory_space<vmem>>, %arg9: memref<1x256x96xbf16, #tpu.memory_space<vmem>>, %arg10: memref<1x64x288xbf16, #tpu.memory_space<vmem>>) attributes {dimension_semantics = [#tpu.dimension_semantics<parallel>], iteration_bounds = array<i64: 2>, scalar_prefetch = 0 : i64, scratch_operands = 0 : i64, tpu.core_type = #tpu.core_type<tc>, window_params = [{transform_indices = @transform_0, window_bounds = array<i64: 1, 24, 24, 32>}, {transform_indices = @transform_1, window_bounds = array<i64: 1, 48, 12, 32>}, {pipeline_mode = #tpu.pipeline_mode<synchronous>, transform_indices = @transform_2, window_bounds = array<i64: 27, 32>}, {pipeline_mode = #tpu.pipeline_mode<synchronous>, transform_indices = @transform_3, window_bounds = array<i64: 27, 32>}, {pipeline_mode = #tpu.pipeline_mode<synchronous>, transform_indices = @transform_4, window_bounds = array<i64: 96, 32>}, {pipeline_mode = #tpu.pipeline_mode<synchronous>, transform_indices = @transform_5, window_bounds = array<i64: 1, 96>}, {pipeline_mode = #tpu.pipeline_mode<synchronous>, transform_indices = @transform_6, window_bounds = array<i64: 96, 96>}, {pipeline_mode = #tpu.pipeline_mode<synchronous>, transform_indices = @transform_7, window_bounds = array<i64: 1, 288>}, {transform_indices = @transform_8, window_bounds = array<i64: 1, 256, 96>}, {transform_indices = @transform_9, window_bounds = array<i64: 1, 64, 288>}]} {
    %cst = arith.constant 0.000000e+00 : f32
    %0 = vector.broadcast %cst : f32 to vector<16x16x32xf32>
    %c0 = arith.constant 0 : index
    %c0_0 = arith.constant 0 : index
    %c3 = arith.constant 3 : index
    %c0_1 = arith.constant 0 : index
    %1 = vector.load %arg1[%c0, %c0_0, %c3, %c0_1] : memref<1x24x24x32xf32, #tpu.memory_space<vmem>>, vector<1x24x16x32xf32>
    %2 = vector.shape_cast %1 : vector<1x24x16x32xf32> to vector<24x16x32xf32>
    %c0_2 = arith.constant 0 : index
    %c0_3 = arith.constant 0 : index
    %3 = vector.load %arg3[%c0_2, %c0_3] : memref<27x32xf32, #tpu.memory_space<vmem>>, vector<1x32xf32>
    %4 = vector.extract_strided_slice %2 {offsets = [3, 0, 0], sizes = [16, 16, 32], strides = [1, 1, 1]} : vector<24x16x32xf32> to vector<16x16x32xf32>
    %5 = vector.shape_cast %3 : vector<1x32xf32> to vector<1x1x32xf32>
    %6 = vector.broadcast %5 : vector<1x1x32xf32> to vector<16x16x32xf32>
    %7 = arith.mulf %4, %6 : vector<16x16x32xf32>
    %8 = arith.addf %0, %7 : vector<16x16x32xf32>
    %c3_4 = arith.constant 3 : index
    %c0_5 = arith.constant 0 : index
    %9 = vector.load %arg3[%c3_4, %c0_5] : memref<27x32xf32, #tpu.memory_space<vmem>>, vector<1x32xf32>
    %10 = vector.extract_strided_slice %2 {offsets = [4, 0, 0], sizes = [16, 16, 32], strides = [1, 1, 1]} : vector<24x16x32xf32> to vector<16x16x32xf32>
    %11 = vector.shape_cast %9 : vector<1x32xf32> to vector<1x1x32xf32>
    %12 = vector.broadcast %11 : vector<1x1x32xf32> to vector<16x16x32xf32>
    %13 = arith.mulf %10, %12 : vector<16x16x32xf32>
    %14 = arith.addf %8, %13 : vector<16x16x32xf32>
    %c6 = arith.constant 6 : index
    %c0_6 = arith.constant 0 : index
    %15 = vector.load %arg3[%c6, %c0_6] : memref<27x32xf32, #tpu.memory_space<vmem>>, vector<1x32xf32>
    %16 = vector.extract_strided_slice %2 {offsets = [5, 0, 0], sizes = [16, 16, 32], strides = [1, 1, 1]} : vector<24x16x32xf32> to vector<16x16x32xf32>
    %17 = vector.shape_cast %15 : vector<1x32xf32> to vector<1x1x32xf32>
    %18 = vector.broadcast %17 : vector<1x1x32xf32> to vector<16x16x32xf32>
    %19 = arith.mulf %16, %18 : vector<16x16x32xf32>
    %20 = arith.addf %14, %19 : vector<16x16x32xf32>
    %c0_7 = arith.constant 0 : index
    %c0_8 = arith.constant 0 : index
    %c4 = arith.constant 4 : index
    %c0_9 = arith.constant 0 : index
    %21 = vector.load %arg1[%c0_7, %c0_8, %c4, %c0_9] : memref<1x24x24x32xf32, #tpu.memory_space<vmem>>, vector<1x24x16x32xf32>
    %22 = vector.shape_cast %21 : vector<1x24x16x32xf32> to vector<24x16x32xf32>
    %c1 = arith.constant 1 : index
    %c0_10 = arith.constant 0 : index
    %23 = vector.load %arg3[%c1, %c0_10] : memref<27x32xf32, #tpu.memory_space<vmem>>, vector<1x32xf32>
    %24 = vector.extract_strided_slice %22 {offsets = [3, 0, 0], sizes = [16, 16, 32], strides = [1, 1, 1]} : vector<24x16x32xf32> to vector<16x16x32xf32>
    %25 = vector.shape_cast %23 : vector<1x32xf32> to vector<1x1x32xf32>
    %26 = vector.broadcast %25 : vector<1x1x32xf32> to vector<16x16x32xf32>
    %27 = arith.mulf %24, %26 : vector<16x16x32xf32>
    %28 = arith.addf %20, %27 : vector<16x16x32xf32>
    %c4_11 = arith.constant 4 : index
    %c0_12 = arith.constant 0 : index
    %29 = vector.load %arg3[%c4_11, %c0_12] : memref<27x32xf32, #tpu.memory_space<vmem>>, vector<1x32xf32>
    %30 = vector.extract_strided_slice %22 {offsets = [4, 0, 0], sizes = [16, 16, 32], strides = [1, 1, 1]} : vector<24x16x32xf32> to vector<16x16x32xf32>
    %31 = vector.shape_cast %29 : vector<1x32xf32> to vector<1x1x32xf32>
    %32 = vector.broadcast %31 : vector<1x1x32xf32> to vector<16x16x32xf32>
    %33 = arith.mulf %30, %32 : vector<16x16x32xf32>
    %34 = arith.addf %28, %33 : vector<16x16x32xf32>
    %c7 = arith.constant 7 : index
    %c0_13 = arith.constant 0 : index
    %35 = vector.load %arg3[%c7, %c0_13] : memref<27x32xf32, #tpu.memory_space<vmem>>, vector<1x32xf32>
    %36 = vector.extract_strided_slice %22 {offsets = [5, 0, 0], sizes = [16, 16, 32], strides = [1, 1, 1]} : vector<24x16x32xf32> to vector<16x16x32xf32>
    %37 = vector.shape_cast %35 : vector<1x32xf32> to vector<1x1x32xf32>
    %38 = vector.broadcast %37 : vector<1x1x32xf32> to vector<16x16x32xf32>
    %39 = arith.mulf %36, %38 : vector<16x16x32xf32>
    %40 = arith.addf %34, %39 : vector<16x16x32xf32>
    %c0_14 = arith.constant 0 : index
    %c0_15 = arith.constant 0 : index
    %c5 = arith.constant 5 : index
    %c0_16 = arith.constant 0 : index
    %41 = vector.load %arg1[%c0_14, %c0_15, %c5, %c0_16] : memref<1x24x24x32xf32, #tpu.memory_space<vmem>>, vector<1x24x16x32xf32>
    %42 = vector.shape_cast %41 : vector<1x24x16x32xf32> to vector<24x16x32xf32>
    %c2 = arith.constant 2 : index
    %c0_17 = arith.constant 0 : index
    %43 = vector.load %arg3[%c2, %c0_17] : memref<27x32xf32, #tpu.memory_space<vmem>>, vector<1x32xf32>
    %44 = vector.extract_strided_slice %42 {offsets = [3, 0, 0], sizes = [16, 16, 32], strides = [1, 1, 1]} : vector<24x16x32xf32> to vector<16x16x32xf32>
    %45 = vector.shape_cast %43 : vector<1x32xf32> to vector<1x1x32xf32>
    %46 = vector.broadcast %45 : vector<1x1x32xf32> to vector<16x16x32xf32>
    %47 = arith.mulf %44, %46 : vector<16x16x32xf32>
    %48 = arith.addf %40, %47 : vector<16x16x32xf32>
    %c5_18 = arith.constant 5 : index
    %c0_19 = arith.constant 0 : index
    %49 = vector.load %arg3[%c5_18, %c0_19] : memref<27x32xf32, #tpu.memory_space<vmem>>, vector<1x32xf32>
    %50 = vector.extract_strided_slice %42 {offsets = [4, 0, 0], sizes = [16, 16, 32], strides = [1, 1, 1]} : vector<24x16x32xf32> to vector<16x16x32xf32>
    %51 = vector.shape_cast %49 : vector<1x32xf32> to vector<1x1x32xf32>
    %52 = vector.broadcast %51 : vector<1x1x32xf32> to vector<16x16x32xf32>
    %53 = arith.mulf %50, %52 : vector<16x16x32xf32>
    %54 = arith.addf %48, %53 : vector<16x16x32xf32>
    %c8 = arith.constant 8 : index
    %c0_20 = arith.constant 0 : index
    %55 = vector.load %arg3[%c8, %c0_20] : memref<27x32xf32, #tpu.memory_space<vmem>>, vector<1x32xf32>
    %56 = vector.extract_strided_slice %42 {offsets = [5, 0, 0], sizes = [16, 16, 32], strides = [1, 1, 1]} : vector<24x16x32xf32> to vector<16x16x32xf32>
    %57 = vector.shape_cast %55 : vector<1x32xf32> to vector<1x1x32xf32>
    %58 = vector.broadcast %57 : vector<1x1x32xf32> to vector<16x16x32xf32>
    %59 = arith.mulf %56, %58 : vector<16x16x32xf32>
    %60 = arith.addf %54, %59 : vector<16x16x32xf32>
    %61 = vector.shape_cast %60 : vector<16x16x32xf32> to vector<256x32xf32>
    %62 = arith.truncf %61 : vector<256x32xf32> to vector<256x32xbf16>
    %c0_21 = arith.constant 0 : index
    %c0_22 = arith.constant 0 : index
    %63 = vector.load %arg5[%c0_21, %c0_22] : memref<96x32xbf16, #tpu.memory_space<vmem>>, vector<32x32xbf16>
    %cst_23 = arith.constant dense<0.000000e+00> : vector<256x32xf32>
    %64 = tpu.matmul %62, %63, %cst_23 {dimension_numbers = #tpu.dot_dimension_numbers<[1], [0], [0], [1], [0, 0, 1, 1], [], []>} : vector<256x32xbf16>, vector<32x32xbf16>, vector<256x32xf32> -> vector<256x32xf32>
    %cst_24 = arith.constant 0.000000e+00 : f32
    %65 = vector.broadcast %cst_24 : f32 to vector<8x8x32xf32>
    %c0_25 = arith.constant 0 : index
    %c0_26 = arith.constant 0 : index
    %c1_27 = arith.constant 1 : index
    %c0_28 = arith.constant 0 : index
    %66 = vector.load %arg2[%c0_25, %c0_26, %c1_27, %c0_28] : memref<1x48x12x32xf32, #tpu.memory_space<vmem>>, vector<1x48x8x32xf32>
    %67 = vector.shape_cast %66 : vector<1x48x8x32xf32> to vector<48x8x32xf32>
    %c0_29 = arith.constant 0 : index
    %c0_30 = arith.constant 0 : index
    %68 = vector.load %arg4[%c0_29, %c0_30] : memref<27x32xf32, #tpu.memory_space<vmem>>, vector<1x32xf32>
    %69 = vector.extract_strided_slice %67 {offsets = [37, 0, 0], sizes = [8, 8, 32], strides = [1, 1, 1]} : vector<48x8x32xf32> to vector<8x8x32xf32>
    %70 = vector.shape_cast %68 : vector<1x32xf32> to vector<1x1x32xf32>
    %71 = vector.broadcast %70 : vector<1x1x32xf32> to vector<8x8x32xf32>
    %72 = arith.mulf %69, %71 : vector<8x8x32xf32>
    %73 = arith.addf %65, %72 : vector<8x8x32xf32>
    %c3_31 = arith.constant 3 : index
    %c0_32 = arith.constant 0 : index
    %74 = vector.load %arg4[%c3_31, %c0_32] : memref<27x32xf32, #tpu.memory_space<vmem>>, vector<1x32xf32>
    %75 = vector.extract_strided_slice %67 {offsets = [14, 0, 0], sizes = [8, 8, 32], strides = [1, 1, 1]} : vector<48x8x32xf32> to vector<8x8x32xf32>
    %76 = vector.shape_cast %74 : vector<1x32xf32> to vector<1x1x32xf32>
    %77 = vector.broadcast %76 : vector<1x1x32xf32> to vector<8x8x32xf32>
    %78 = arith.mulf %75, %77 : vector<8x8x32xf32>
    %79 = arith.addf %73, %78 : vector<8x8x32xf32>
    %c6_33 = arith.constant 6 : index
    %c0_34 = arith.constant 0 : index
    %80 = vector.load %arg4[%c6_33, %c0_34] : memref<27x32xf32, #tpu.memory_space<vmem>>, vector<1x32xf32>
    %81 = vector.extract_strided_slice %67 {offsets = [38, 0, 0], sizes = [8, 8, 32], strides = [1, 1, 1]} : vector<48x8x32xf32> to vector<8x8x32xf32>
    %82 = vector.shape_cast %80 : vector<1x32xf32> to vector<1x1x32xf32>
    %83 = vector.broadcast %82 : vector<1x1x32xf32> to vector<8x8x32xf32>
    %84 = arith.mulf %81, %83 : vector<8x8x32xf32>
    %85 = arith.addf %79, %84 : vector<8x8x32xf32>
    %c0_35 = arith.constant 0 : index
    %c0_36 = arith.constant 0 : index
    %c2_37 = arith.constant 2 : index
    %c0_38 = arith.constant 0 : index
    %86 = vector.load %arg2[%c0_35, %c0_36, %c2_37, %c0_38] : memref<1x48x12x32xf32, #tpu.memory_space<vmem>>, vector<1x48x8x32xf32>
    %87 = vector.shape_cast %86 : vector<1x48x8x32xf32> to vector<48x8x32xf32>
    %c1_39 = arith.constant 1 : index
    %c0_40 = arith.constant 0 : index
    %88 = vector.load %arg4[%c1_39, %c0_40] : memref<27x32xf32, #tpu.memory_space<vmem>>, vector<1x32xf32>
    %89 = vector.extract_strided_slice %87 {offsets = [25, 0, 0], sizes = [8, 8, 32], strides = [1, 1, 1]} : vector<48x8x32xf32> to vector<8x8x32xf32>
    %90 = vector.shape_cast %88 : vector<1x32xf32> to vector<1x1x32xf32>
    %91 = vector.broadcast %90 : vector<1x1x32xf32> to vector<8x8x32xf32>
    %92 = arith.mulf %89, %91 : vector<8x8x32xf32>
    %93 = arith.addf %85, %92 : vector<8x8x32xf32>
    %c4_41 = arith.constant 4 : index
    %c0_42 = arith.constant 0 : index
    %94 = vector.load %arg4[%c4_41, %c0_42] : memref<27x32xf32, #tpu.memory_space<vmem>>, vector<1x32xf32>
    %95 = vector.extract_strided_slice %87 {offsets = [2, 0, 0], sizes = [8, 8, 32], strides = [1, 1, 1]} : vector<48x8x32xf32> to vector<8x8x32xf32>
    %96 = vector.shape_cast %94 : vector<1x32xf32> to vector<1x1x32xf32>
    %97 = vector.broadcast %96 : vector<1x1x32xf32> to vector<8x8x32xf32>
    %98 = arith.mulf %95, %97 : vector<8x8x32xf32>
    %99 = arith.addf %93, %98 : vector<8x8x32xf32>
    %c7_43 = arith.constant 7 : index
    %c0_44 = arith.constant 0 : index
    %100 = vector.load %arg4[%c7_43, %c0_44] : memref<27x32xf32, #tpu.memory_space<vmem>>, vector<1x32xf32>
    %101 = vector.extract_strided_slice %87 {offsets = [26, 0, 0], sizes = [8, 8, 32], strides = [1, 1, 1]} : vector<48x8x32xf32> to vector<8x8x32xf32>
    %102 = vector.shape_cast %100 : vector<1x32xf32> to vector<1x1x32xf32>
    %103 = vector.broadcast %102 : vector<1x1x32xf32> to vector<8x8x32xf32>
    %104 = arith.mulf %101, %103 : vector<8x8x32xf32>
    %105 = arith.addf %99, %104 : vector<8x8x32xf32>
    %c0_45 = arith.constant 0 : index
    %c0_46 = arith.constant 0 : index
    %c2_47 = arith.constant 2 : index
    %c0_48 = arith.constant 0 : index
    %106 = vector.load %arg2[%c0_45, %c0_46, %c2_47, %c0_48] : memref<1x48x12x32xf32, #tpu.memory_space<vmem>>, vector<1x48x8x32xf32>
    %107 = vector.shape_cast %106 : vector<1x48x8x32xf32> to vector<48x8x32xf32>
    %c2_49 = arith.constant 2 : index
    %c0_50 = arith.constant 0 : index
    %108 = vector.load %arg4[%c2_49, %c0_50] : memref<27x32xf32, #tpu.memory_space<vmem>>, vector<1x32xf32>
    %109 = vector.extract_strided_slice %107 {offsets = [37, 0, 0], sizes = [8, 8, 32], strides = [1, 1, 1]} : vector<48x8x32xf32> to vector<8x8x32xf32>
    %110 = vector.shape_cast %108 : vector<1x32xf32> to vector<1x1x32xf32>
    %111 = vector.broadcast %110 : vector<1x1x32xf32> to vector<8x8x32xf32>
    %112 = arith.mulf %109, %111 : vector<8x8x32xf32>
    %113 = arith.addf %105, %112 : vector<8x8x32xf32>
    %c5_51 = arith.constant 5 : index
    %c0_52 = arith.constant 0 : index
    %114 = vector.load %arg4[%c5_51, %c0_52] : memref<27x32xf32, #tpu.memory_space<vmem>>, vector<1x32xf32>
    %115 = vector.extract_strided_slice %107 {offsets = [14, 0, 0], sizes = [8, 8, 32], strides = [1, 1, 1]} : vector<48x8x32xf32> to vector<8x8x32xf32>
    %116 = vector.shape_cast %114 : vector<1x32xf32> to vector<1x1x32xf32>
    %117 = vector.broadcast %116 : vector<1x1x32xf32> to vector<8x8x32xf32>
    %118 = arith.mulf %115, %117 : vector<8x8x32xf32>
    %119 = arith.addf %113, %118 : vector<8x8x32xf32>
    %c8_53 = arith.constant 8 : index
    %c0_54 = arith.constant 0 : index
    %120 = vector.load %arg4[%c8_53, %c0_54] : memref<27x32xf32, #tpu.memory_space<vmem>>, vector<1x32xf32>
    %121 = vector.extract_strided_slice %107 {offsets = [38, 0, 0], sizes = [8, 8, 32], strides = [1, 1, 1]} : vector<48x8x32xf32> to vector<8x8x32xf32>
    %122 = vector.shape_cast %120 : vector<1x32xf32> to vector<1x1x32xf32>
    %123 = vector.broadcast %122 : vector<1x1x32xf32> to vector<8x8x32xf32>
    %124 = arith.mulf %121, %123 : vector<8x8x32xf32>
    %125 = arith.addf %119, %124 : vector<8x8x32xf32>
    %126 = vector.shape_cast %125 : vector<8x8x32xf32> to vector<64x32xf32>
    %127 = arith.truncf %126 : vector<64x32xf32> to vector<64x32xbf16>
    %c0_55 = arith.constant 0 : index
    %c0_56 = arith.constant 0 : index
    %128 = vector.load %arg7[%c0_55, %c0_56] : memref<96x96xbf16, #tpu.memory_space<vmem>>, vector<32x96xbf16>
    %cst_57 = arith.constant dense<0.000000e+00> : vector<64x96xf32>
    %129 = tpu.matmul %127, %128, %cst_57 {dimension_numbers = #tpu.dot_dimension_numbers<[1], [0], [0], [1], [0, 0, 1, 1], [], []>} : vector<64x32xbf16>, vector<32x96xbf16>, vector<64x96xf32> -> vector<64x96xf32>
    %cst_58 = arith.constant 0.000000e+00 : f32
    %130 = vector.broadcast %cst_58 : f32 to vector<16x16x32xf32>
    %c0_59 = arith.constant 0 : index
    %c0_60 = arith.constant 0 : index
    %c2_61 = arith.constant 2 : index
    %c0_62 = arith.constant 0 : index
    %131 = vector.load %arg1[%c0_59, %c0_60, %c2_61, %c0_62] : memref<1x24x24x32xf32, #tpu.memory_space<vmem>>, vector<1x24x16x32xf32>
    %132 = vector.shape_cast %131 : vector<1x24x16x32xf32> to vector<24x16x32xf32>
    %c9 = arith.constant 9 : index
    %c0_63 = arith.constant 0 : index
    %133 = vector.load %arg3[%c9, %c0_63] : memref<27x32xf32, #tpu.memory_space<vmem>>, vector<1x32xf32>
    %134 = vector.extract_strided_slice %132 {offsets = [2, 0, 0], sizes = [16, 16, 32], strides = [1, 1, 1]} : vector<24x16x32xf32> to vector<16x16x32xf32>
    %135 = vector.shape_cast %133 : vector<1x32xf32> to vector<1x1x32xf32>
    %136 = vector.broadcast %135 : vector<1x1x32xf32> to vector<16x16x32xf32>
    %137 = arith.mulf %134, %136 : vector<16x16x32xf32>
    %138 = arith.addf %130, %137 : vector<16x16x32xf32>
    %c12 = arith.constant 12 : index
    %c0_64 = arith.constant 0 : index
    %139 = vector.load %arg3[%c12, %c0_64] : memref<27x32xf32, #tpu.memory_space<vmem>>, vector<1x32xf32>
    %140 = vector.extract_strided_slice %132 {offsets = [4, 0, 0], sizes = [16, 16, 32], strides = [1, 1, 1]} : vector<24x16x32xf32> to vector<16x16x32xf32>
    %141 = vector.shape_cast %139 : vector<1x32xf32> to vector<1x1x32xf32>
    %142 = vector.broadcast %141 : vector<1x1x32xf32> to vector<16x16x32xf32>
    %143 = arith.mulf %140, %142 : vector<16x16x32xf32>
    %144 = arith.addf %138, %143 : vector<16x16x32xf32>
    %c15 = arith.constant 15 : index
    %c0_65 = arith.constant 0 : index
    %145 = vector.load %arg3[%c15, %c0_65] : memref<27x32xf32, #tpu.memory_space<vmem>>, vector<1x32xf32>
    %146 = vector.extract_strided_slice %132 {offsets = [6, 0, 0], sizes = [16, 16, 32], strides = [1, 1, 1]} : vector<24x16x32xf32> to vector<16x16x32xf32>
    %147 = vector.shape_cast %145 : vector<1x32xf32> to vector<1x1x32xf32>
    %148 = vector.broadcast %147 : vector<1x1x32xf32> to vector<16x16x32xf32>
    %149 = arith.mulf %146, %148 : vector<16x16x32xf32>
    %150 = arith.addf %144, %149 : vector<16x16x32xf32>
    %c0_66 = arith.constant 0 : index
    %c0_67 = arith.constant 0 : index
    %c4_68 = arith.constant 4 : index
    %c0_69 = arith.constant 0 : index
    %151 = vector.load %arg1[%c0_66, %c0_67, %c4_68, %c0_69] : memref<1x24x24x32xf32, #tpu.memory_space<vmem>>, vector<1x24x16x32xf32>
    %152 = vector.shape_cast %151 : vector<1x24x16x32xf32> to vector<24x16x32xf32>
    %c10 = arith.constant 10 : index
    %c0_70 = arith.constant 0 : index
    %153 = vector.load %arg3[%c10, %c0_70] : memref<27x32xf32, #tpu.memory_space<vmem>>, vector<1x32xf32>
    %154 = vector.extract_strided_slice %152 {offsets = [2, 0, 0], sizes = [16, 16, 32], strides = [1, 1, 1]} : vector<24x16x32xf32> to vector<16x16x32xf32>
    %155 = vector.shape_cast %153 : vector<1x32xf32> to vector<1x1x32xf32>
    %156 = vector.broadcast %155 : vector<1x1x32xf32> to vector<16x16x32xf32>
    %157 = arith.mulf %154, %156 : vector<16x16x32xf32>
    %158 = arith.addf %150, %157 : vector<16x16x32xf32>
    %c13 = arith.constant 13 : index
    %c0_71 = arith.constant 0 : index
    %159 = vector.load %arg3[%c13, %c0_71] : memref<27x32xf32, #tpu.memory_space<vmem>>, vector<1x32xf32>
    %160 = vector.extract_strided_slice %152 {offsets = [4, 0, 0], sizes = [16, 16, 32], strides = [1, 1, 1]} : vector<24x16x32xf32> to vector<16x16x32xf32>
    %161 = vector.shape_cast %159 : vector<1x32xf32> to vector<1x1x32xf32>
    %162 = vector.broadcast %161 : vector<1x1x32xf32> to vector<16x16x32xf32>
    %163 = arith.mulf %160, %162 : vector<16x16x32xf32>
    %164 = arith.addf %158, %163 : vector<16x16x32xf32>
    %c16 = arith.constant 16 : index
    %c0_72 = arith.constant 0 : index
    %165 = vector.load %arg3[%c16, %c0_72] : memref<27x32xf32, #tpu.memory_space<vmem>>, vector<1x32xf32>
    %166 = vector.extract_strided_slice %152 {offsets = [6, 0, 0], sizes = [16, 16, 32], strides = [1, 1, 1]} : vector<24x16x32xf32> to vector<16x16x32xf32>
    %167 = vector.shape_cast %165 : vector<1x32xf32> to vector<1x1x32xf32>
    %168 = vector.broadcast %167 : vector<1x1x32xf32> to vector<16x16x32xf32>
    %169 = arith.mulf %166, %168 : vector<16x16x32xf32>
    %170 = arith.addf %164, %169 : vector<16x16x32xf32>
    %c0_73 = arith.constant 0 : index
    %c0_74 = arith.constant 0 : index
    %c6_75 = arith.constant 6 : index
    %c0_76 = arith.constant 0 : index
    %171 = vector.load %arg1[%c0_73, %c0_74, %c6_75, %c0_76] : memref<1x24x24x32xf32, #tpu.memory_space<vmem>>, vector<1x24x16x32xf32>
    %172 = vector.shape_cast %171 : vector<1x24x16x32xf32> to vector<24x16x32xf32>
    %c11 = arith.constant 11 : index
    %c0_77 = arith.constant 0 : index
    %173 = vector.load %arg3[%c11, %c0_77] : memref<27x32xf32, #tpu.memory_space<vmem>>, vector<1x32xf32>
    %174 = vector.extract_strided_slice %172 {offsets = [2, 0, 0], sizes = [16, 16, 32], strides = [1, 1, 1]} : vector<24x16x32xf32> to vector<16x16x32xf32>
    %175 = vector.shape_cast %173 : vector<1x32xf32> to vector<1x1x32xf32>
    %176 = vector.broadcast %175 : vector<1x1x32xf32> to vector<16x16x32xf32>
    %177 = arith.mulf %174, %176 : vector<16x16x32xf32>
    %178 = arith.addf %170, %177 : vector<16x16x32xf32>
    %c14 = arith.constant 14 : index
    %c0_78 = arith.constant 0 : index
    %179 = vector.load %arg3[%c14, %c0_78] : memref<27x32xf32, #tpu.memory_space<vmem>>, vector<1x32xf32>
    %180 = vector.extract_strided_slice %172 {offsets = [4, 0, 0], sizes = [16, 16, 32], strides = [1, 1, 1]} : vector<24x16x32xf32> to vector<16x16x32xf32>
    %181 = vector.shape_cast %179 : vector<1x32xf32> to vector<1x1x32xf32>
    %182 = vector.broadcast %181 : vector<1x1x32xf32> to vector<16x16x32xf32>
    %183 = arith.mulf %180, %182 : vector<16x16x32xf32>
    %184 = arith.addf %178, %183 : vector<16x16x32xf32>
    %c17 = arith.constant 17 : index
    %c0_79 = arith.constant 0 : index
    %185 = vector.load %arg3[%c17, %c0_79] : memref<27x32xf32, #tpu.memory_space<vmem>>, vector<1x32xf32>
    %186 = vector.extract_strided_slice %172 {offsets = [6, 0, 0], sizes = [16, 16, 32], strides = [1, 1, 1]} : vector<24x16x32xf32> to vector<16x16x32xf32>
    %187 = vector.shape_cast %185 : vector<1x32xf32> to vector<1x1x32xf32>
    %188 = vector.broadcast %187 : vector<1x1x32xf32> to vector<16x16x32xf32>
    %189 = arith.mulf %186, %188 : vector<16x16x32xf32>
    %190 = arith.addf %184, %189 : vector<16x16x32xf32>
    %191 = vector.shape_cast %190 : vector<16x16x32xf32> to vector<256x32xf32>
    %192 = arith.truncf %191 : vector<256x32xf32> to vector<256x32xbf16>
    %c32 = arith.constant 32 : index
    %c0_80 = arith.constant 0 : index
    %193 = vector.load %arg5[%c32, %c0_80] : memref<96x32xbf16, #tpu.memory_space<vmem>>, vector<32x32xbf16>
    %cst_81 = arith.constant dense<0.000000e+00> : vector<256x32xf32>
    %194 = tpu.matmul %192, %193, %cst_81 {dimension_numbers = #tpu.dot_dimension_numbers<[1], [0], [0], [1], [0, 0, 1, 1], [], []>} : vector<256x32xbf16>, vector<32x32xbf16>, vector<256x32xf32> -> vector<256x32xf32>
    %cst_82 = arith.constant 0.000000e+00 : f32
    %195 = vector.broadcast %cst_82 : f32 to vector<8x8x32xf32>
    %c0_83 = arith.constant 0 : index
    %c0_84 = arith.constant 0 : index
    %c1_85 = arith.constant 1 : index
    %c0_86 = arith.constant 0 : index
    %196 = vector.load %arg2[%c0_83, %c0_84, %c1_85, %c0_86] : memref<1x48x12x32xf32, #tpu.memory_space<vmem>>, vector<1x48x8x32xf32>
    %197 = vector.shape_cast %196 : vector<1x48x8x32xf32> to vector<48x8x32xf32>
    %c9_87 = arith.constant 9 : index
    %c0_88 = arith.constant 0 : index
    %198 = vector.load %arg4[%c9_87, %c0_88] : memref<27x32xf32, #tpu.memory_space<vmem>>, vector<1x32xf32>
    %199 = vector.extract_strided_slice %197 {offsets = [1, 0, 0], sizes = [8, 8, 32], strides = [1, 1, 1]} : vector<48x8x32xf32> to vector<8x8x32xf32>
    %200 = vector.shape_cast %198 : vector<1x32xf32> to vector<1x1x32xf32>
    %201 = vector.broadcast %200 : vector<1x1x32xf32> to vector<8x8x32xf32>
    %202 = arith.mulf %199, %201 : vector<8x8x32xf32>
    %203 = arith.addf %195, %202 : vector<8x8x32xf32>
    %c12_89 = arith.constant 12 : index
    %c0_90 = arith.constant 0 : index
    %204 = vector.load %arg4[%c12_89, %c0_90] : memref<27x32xf32, #tpu.memory_space<vmem>>, vector<1x32xf32>
    %205 = vector.extract_strided_slice %197 {offsets = [2, 0, 0], sizes = [8, 8, 32], strides = [1, 1, 1]} : vector<48x8x32xf32> to vector<8x8x32xf32>
    %206 = vector.shape_cast %204 : vector<1x32xf32> to vector<1x1x32xf32>
    %207 = vector.broadcast %206 : vector<1x1x32xf32> to vector<8x8x32xf32>
    %208 = arith.mulf %205, %207 : vector<8x8x32xf32>
    %209 = arith.addf %203, %208 : vector<8x8x32xf32>
    %c15_91 = arith.constant 15 : index
    %c0_92 = arith.constant 0 : index
    %210 = vector.load %arg4[%c15_91, %c0_92] : memref<27x32xf32, #tpu.memory_space<vmem>>, vector<1x32xf32>
    %211 = vector.extract_strided_slice %197 {offsets = [3, 0, 0], sizes = [8, 8, 32], strides = [1, 1, 1]} : vector<48x8x32xf32> to vector<8x8x32xf32>
    %212 = vector.shape_cast %210 : vector<1x32xf32> to vector<1x1x32xf32>
    %213 = vector.broadcast %212 : vector<1x1x32xf32> to vector<8x8x32xf32>
    %214 = arith.mulf %211, %213 : vector<8x8x32xf32>
    %215 = arith.addf %209, %214 : vector<8x8x32xf32>
    %c0_93 = arith.constant 0 : index
    %c0_94 = arith.constant 0 : index
    %c2_95 = arith.constant 2 : index
    %c0_96 = arith.constant 0 : index
    %216 = vector.load %arg2[%c0_93, %c0_94, %c2_95, %c0_96] : memref<1x48x12x32xf32, #tpu.memory_space<vmem>>, vector<1x48x8x32xf32>
    %217 = vector.shape_cast %216 : vector<1x48x8x32xf32> to vector<48x8x32xf32>
    %c10_97 = arith.constant 10 : index
    %c0_98 = arith.constant 0 : index
    %218 = vector.load %arg4[%c10_97, %c0_98] : memref<27x32xf32, #tpu.memory_space<vmem>>, vector<1x32xf32>
    %219 = vector.extract_strided_slice %217 {offsets = [1, 0, 0], sizes = [8, 8, 32], strides = [1, 1, 1]} : vector<48x8x32xf32> to vector<8x8x32xf32>
    %220 = vector.shape_cast %218 : vector<1x32xf32> to vector<1x1x32xf32>
    %221 = vector.broadcast %220 : vector<1x1x32xf32> to vector<8x8x32xf32>
    %222 = arith.mulf %219, %221 : vector<8x8x32xf32>
    %223 = arith.addf %215, %222 : vector<8x8x32xf32>
    %c13_99 = arith.constant 13 : index
    %c0_100 = arith.constant 0 : index
    %224 = vector.load %arg4[%c13_99, %c0_100] : memref<27x32xf32, #tpu.memory_space<vmem>>, vector<1x32xf32>
    %225 = vector.extract_strided_slice %217 {offsets = [2, 0, 0], sizes = [8, 8, 32], strides = [1, 1, 1]} : vector<48x8x32xf32> to vector<8x8x32xf32>
    %226 = vector.shape_cast %224 : vector<1x32xf32> to vector<1x1x32xf32>
    %227 = vector.broadcast %226 : vector<1x1x32xf32> to vector<8x8x32xf32>
    %228 = arith.mulf %225, %227 : vector<8x8x32xf32>
    %229 = arith.addf %223, %228 : vector<8x8x32xf32>
    %c16_101 = arith.constant 16 : index
    %c0_102 = arith.constant 0 : index
    %230 = vector.load %arg4[%c16_101, %c0_102] : memref<27x32xf32, #tpu.memory_space<vmem>>, vector<1x32xf32>
    %231 = vector.extract_strided_slice %217 {offsets = [3, 0, 0], sizes = [8, 8, 32], strides = [1, 1, 1]} : vector<48x8x32xf32> to vector<8x8x32xf32>
    %232 = vector.shape_cast %230 : vector<1x32xf32> to vector<1x1x32xf32>
    %233 = vector.broadcast %232 : vector<1x1x32xf32> to vector<8x8x32xf32>
    %234 = arith.mulf %231, %233 : vector<8x8x32xf32>
    %235 = arith.addf %229, %234 : vector<8x8x32xf32>
    %c0_103 = arith.constant 0 : index
    %c0_104 = arith.constant 0 : index
    %c3_105 = arith.constant 3 : index
    %c0_106 = arith.constant 0 : index
    %236 = vector.load %arg2[%c0_103, %c0_104, %c3_105, %c0_106] : memref<1x48x12x32xf32, #tpu.memory_space<vmem>>, vector<1x48x8x32xf32>
    %237 = vector.shape_cast %236 : vector<1x48x8x32xf32> to vector<48x8x32xf32>
    %c11_107 = arith.constant 11 : index
    %c0_108 = arith.constant 0 : index
    %238 = vector.load %arg4[%c11_107, %c0_108] : memref<27x32xf32, #tpu.memory_space<vmem>>, vector<1x32xf32>
    %239 = vector.extract_strided_slice %237 {offsets = [1, 0, 0], sizes = [8, 8, 32], strides = [1, 1, 1]} : vector<48x8x32xf32> to vector<8x8x32xf32>
    %240 = vector.shape_cast %238 : vector<1x32xf32> to vector<1x1x32xf32>
    %241 = vector.broadcast %240 : vector<1x1x32xf32> to vector<8x8x32xf32>
    %242 = arith.mulf %239, %241 : vector<8x8x32xf32>
    %243 = arith.addf %235, %242 : vector<8x8x32xf32>
    %c14_109 = arith.constant 14 : index
    %c0_110 = arith.constant 0 : index
    %244 = vector.load %arg4[%c14_109, %c0_110] : memref<27x32xf32, #tpu.memory_space<vmem>>, vector<1x32xf32>
    %245 = vector.extract_strided_slice %237 {offsets = [2, 0, 0], sizes = [8, 8, 32], strides = [1, 1, 1]} : vector<48x8x32xf32> to vector<8x8x32xf32>
    %246 = vector.shape_cast %244 : vector<1x32xf32> to vector<1x1x32xf32>
    %247 = vector.broadcast %246 : vector<1x1x32xf32> to vector<8x8x32xf32>
    %248 = arith.mulf %245, %247 : vector<8x8x32xf32>
    %249 = arith.addf %243, %248 : vector<8x8x32xf32>
    %c17_111 = arith.constant 17 : index
    %c0_112 = arith.constant 0 : index
    %250 = vector.load %arg4[%c17_111, %c0_112] : memref<27x32xf32, #tpu.memory_space<vmem>>, vector<1x32xf32>
    %251 = vector.extract_strided_slice %237 {offsets = [3, 0, 0], sizes = [8, 8, 32], strides = [1, 1, 1]} : vector<48x8x32xf32> to vector<8x8x32xf32>
    %252 = vector.shape_cast %250 : vector<1x32xf32> to vector<1x1x32xf32>
    %253 = vector.broadcast %252 : vector<1x1x32xf32> to vector<8x8x32xf32>
    %254 = arith.mulf %251, %253 : vector<8x8x32xf32>
    %255 = arith.addf %249, %254 : vector<8x8x32xf32>
    %256 = vector.shape_cast %255 : vector<8x8x32xf32> to vector<64x32xf32>
    %257 = arith.truncf %256 : vector<64x32xf32> to vector<64x32xbf16>
    %c32_113 = arith.constant 32 : index
    %c0_114 = arith.constant 0 : index
    %258 = vector.load %arg7[%c32_113, %c0_114] : memref<96x96xbf16, #tpu.memory_space<vmem>>, vector<32x96xbf16>
    %cst_115 = arith.constant dense<0.000000e+00> : vector<64x96xf32>
    %259 = tpu.matmul %257, %258, %cst_115 {dimension_numbers = #tpu.dot_dimension_numbers<[1], [0], [0], [1], [0, 0, 1, 1], [], []>} : vector<64x32xbf16>, vector<32x96xbf16>, vector<64x96xf32> -> vector<64x96xf32>
    %cst_116 = arith.constant 0.000000e+00 : f32
    %260 = vector.broadcast %cst_116 : f32 to vector<16x16x32xf32>
    %c0_117 = arith.constant 0 : index
    %c0_118 = arith.constant 0 : index
    %c0_119 = arith.constant 0 : index
    %c0_120 = arith.constant 0 : index
    %261 = vector.load %arg1[%c0_117, %c0_118, %c0_119, %c0_120] : memref<1x24x24x32xf32, #tpu.memory_space<vmem>>, vector<1x24x16x32xf32>
    %262 = vector.shape_cast %261 : vector<1x24x16x32xf32> to vector<24x16x32xf32>
    %c18 = arith.constant 18 : index
    %c0_121 = arith.constant 0 : index
    %263 = vector.load %arg3[%c18, %c0_121] : memref<27x32xf32, #tpu.memory_space<vmem>>, vector<1x32xf32>
    %264 = vector.extract_strided_slice %262 {offsets = [0, 0, 0], sizes = [16, 16, 32], strides = [1, 1, 1]} : vector<24x16x32xf32> to vector<16x16x32xf32>
    %265 = vector.shape_cast %263 : vector<1x32xf32> to vector<1x1x32xf32>
    %266 = vector.broadcast %265 : vector<1x1x32xf32> to vector<16x16x32xf32>
    %267 = arith.mulf %264, %266 : vector<16x16x32xf32>
    %268 = arith.addf %260, %267 : vector<16x16x32xf32>
    %c21 = arith.constant 21 : index
    %c0_122 = arith.constant 0 : index
    %269 = vector.load %arg3[%c21, %c0_122] : memref<27x32xf32, #tpu.memory_space<vmem>>, vector<1x32xf32>
    %270 = vector.extract_strided_slice %262 {offsets = [4, 0, 0], sizes = [16, 16, 32], strides = [1, 1, 1]} : vector<24x16x32xf32> to vector<16x16x32xf32>
    %271 = vector.shape_cast %269 : vector<1x32xf32> to vector<1x1x32xf32>
    %272 = vector.broadcast %271 : vector<1x1x32xf32> to vector<16x16x32xf32>
    %273 = arith.mulf %270, %272 : vector<16x16x32xf32>
    %274 = arith.addf %268, %273 : vector<16x16x32xf32>
    %c24 = arith.constant 24 : index
    %c0_123 = arith.constant 0 : index
    %275 = vector.load %arg3[%c24, %c0_123] : memref<27x32xf32, #tpu.memory_space<vmem>>, vector<1x32xf32>
    %276 = vector.extract_strided_slice %262 {offsets = [8, 0, 0], sizes = [16, 16, 32], strides = [1, 1, 1]} : vector<24x16x32xf32> to vector<16x16x32xf32>
    %277 = vector.shape_cast %275 : vector<1x32xf32> to vector<1x1x32xf32>
    %278 = vector.broadcast %277 : vector<1x1x32xf32> to vector<16x16x32xf32>
    %279 = arith.mulf %276, %278 : vector<16x16x32xf32>
    %280 = arith.addf %274, %279 : vector<16x16x32xf32>
    %c0_124 = arith.constant 0 : index
    %c0_125 = arith.constant 0 : index
    %c4_126 = arith.constant 4 : index
    %c0_127 = arith.constant 0 : index
    %281 = vector.load %arg1[%c0_124, %c0_125, %c4_126, %c0_127] : memref<1x24x24x32xf32, #tpu.memory_space<vmem>>, vector<1x24x16x32xf32>
    %282 = vector.shape_cast %281 : vector<1x24x16x32xf32> to vector<24x16x32xf32>
    %c19 = arith.constant 19 : index
    %c0_128 = arith.constant 0 : index
    %283 = vector.load %arg3[%c19, %c0_128] : memref<27x32xf32, #tpu.memory_space<vmem>>, vector<1x32xf32>
    %284 = vector.extract_strided_slice %282 {offsets = [0, 0, 0], sizes = [16, 16, 32], strides = [1, 1, 1]} : vector<24x16x32xf32> to vector<16x16x32xf32>
    %285 = vector.shape_cast %283 : vector<1x32xf32> to vector<1x1x32xf32>
    %286 = vector.broadcast %285 : vector<1x1x32xf32> to vector<16x16x32xf32>
    %287 = arith.mulf %284, %286 : vector<16x16x32xf32>
    %288 = arith.addf %280, %287 : vector<16x16x32xf32>
    %c22 = arith.constant 22 : index
    %c0_129 = arith.constant 0 : index
    %289 = vector.load %arg3[%c22, %c0_129] : memref<27x32xf32, #tpu.memory_space<vmem>>, vector<1x32xf32>
    %290 = vector.extract_strided_slice %282 {offsets = [4, 0, 0], sizes = [16, 16, 32], strides = [1, 1, 1]} : vector<24x16x32xf32> to vector<16x16x32xf32>
    %291 = vector.shape_cast %289 : vector<1x32xf32> to vector<1x1x32xf32>
    %292 = vector.broadcast %291 : vector<1x1x32xf32> to vector<16x16x32xf32>
    %293 = arith.mulf %290, %292 : vector<16x16x32xf32>
    %294 = arith.addf %288, %293 : vector<16x16x32xf32>
    %c25 = arith.constant 25 : index
    %c0_130 = arith.constant 0 : index
    %295 = vector.load %arg3[%c25, %c0_130] : memref<27x32xf32, #tpu.memory_space<vmem>>, vector<1x32xf32>
    %296 = vector.extract_strided_slice %282 {offsets = [8, 0, 0], sizes = [16, 16, 32], strides = [1, 1, 1]} : vector<24x16x32xf32> to vector<16x16x32xf32>
    %297 = vector.shape_cast %295 : vector<1x32xf32> to vector<1x1x32xf32>
    %298 = vector.broadcast %297 : vector<1x1x32xf32> to vector<16x16x32xf32>
    %299 = arith.mulf %296, %298 : vector<16x16x32xf32>
    %300 = arith.addf %294, %299 : vector<16x16x32xf32>
    %c0_131 = arith.constant 0 : index
    %c0_132 = arith.constant 0 : index
    %c8_133 = arith.constant 8 : index
    %c0_134 = arith.constant 0 : index
    %301 = vector.load %arg1[%c0_131, %c0_132, %c8_133, %c0_134] : memref<1x24x24x32xf32, #tpu.memory_space<vmem>>, vector<1x24x16x32xf32>
    %302 = vector.shape_cast %301 : vector<1x24x16x32xf32> to vector<24x16x32xf32>
    %c20 = arith.constant 20 : index
    %c0_135 = arith.constant 0 : index
    %303 = vector.load %arg3[%c20, %c0_135] : memref<27x32xf32, #tpu.memory_space<vmem>>, vector<1x32xf32>
    %304 = vector.extract_strided_slice %302 {offsets = [0, 0, 0], sizes = [16, 16, 32], strides = [1, 1, 1]} : vector<24x16x32xf32> to vector<16x16x32xf32>
    %305 = vector.shape_cast %303 : vector<1x32xf32> to vector<1x1x32xf32>
    %306 = vector.broadcast %305 : vector<1x1x32xf32> to vector<16x16x32xf32>
    %307 = arith.mulf %304, %306 : vector<16x16x32xf32>
    %308 = arith.addf %300, %307 : vector<16x16x32xf32>
    %c23 = arith.constant 23 : index
    %c0_136 = arith.constant 0 : index
    %309 = vector.load %arg3[%c23, %c0_136] : memref<27x32xf32, #tpu.memory_space<vmem>>, vector<1x32xf32>
    %310 = vector.extract_strided_slice %302 {offsets = [4, 0, 0], sizes = [16, 16, 32], strides = [1, 1, 1]} : vector<24x16x32xf32> to vector<16x16x32xf32>
    %311 = vector.shape_cast %309 : vector<1x32xf32> to vector<1x1x32xf32>
    %312 = vector.broadcast %311 : vector<1x1x32xf32> to vector<16x16x32xf32>
    %313 = arith.mulf %310, %312 : vector<16x16x32xf32>
    %314 = arith.addf %308, %313 : vector<16x16x32xf32>
    %c26 = arith.constant 26 : index
    %c0_137 = arith.constant 0 : index
    %315 = vector.load %arg3[%c26, %c0_137] : memref<27x32xf32, #tpu.memory_space<vmem>>, vector<1x32xf32>
    %316 = vector.extract_strided_slice %302 {offsets = [8, 0, 0], sizes = [16, 16, 32], strides = [1, 1, 1]} : vector<24x16x32xf32> to vector<16x16x32xf32>
    %317 = vector.shape_cast %315 : vector<1x32xf32> to vector<1x1x32xf32>
    %318 = vector.broadcast %317 : vector<1x1x32xf32> to vector<16x16x32xf32>
    %319 = arith.mulf %316, %318 : vector<16x16x32xf32>
    %320 = arith.addf %314, %319 : vector<16x16x32xf32>
    %321 = vector.shape_cast %320 : vector<16x16x32xf32> to vector<256x32xf32>
    %322 = arith.truncf %321 : vector<256x32xf32> to vector<256x32xbf16>
    %c64 = arith.constant 64 : index
    %c0_138 = arith.constant 0 : index
    %323 = vector.load %arg5[%c64, %c0_138] : memref<96x32xbf16, #tpu.memory_space<vmem>>, vector<32x32xbf16>
    %cst_139 = arith.constant dense<0.000000e+00> : vector<256x32xf32>
    %324 = tpu.matmul %322, %323, %cst_139 {dimension_numbers = #tpu.dot_dimension_numbers<[1], [0], [0], [1], [0, 0, 1, 1], [], []>} : vector<256x32xbf16>, vector<32x32xbf16>, vector<256x32xf32> -> vector<256x32xf32>
    %cst_140 = arith.constant 0.000000e+00 : f32
    %325 = vector.broadcast %cst_140 : f32 to vector<8x8x32xf32>
    %c0_141 = arith.constant 0 : index
    %c0_142 = arith.constant 0 : index
    %c0_143 = arith.constant 0 : index
    %c0_144 = arith.constant 0 : index
    %326 = vector.load %arg2[%c0_141, %c0_142, %c0_143, %c0_144] : memref<1x48x12x32xf32, #tpu.memory_space<vmem>>, vector<1x48x8x32xf32>
    %327 = vector.shape_cast %326 : vector<1x48x8x32xf32> to vector<48x8x32xf32>
    %c18_145 = arith.constant 18 : index
    %c0_146 = arith.constant 0 : index
    %328 = vector.load %arg4[%c18_145, %c0_146] : memref<27x32xf32, #tpu.memory_space<vmem>>, vector<1x32xf32>
    %329 = vector.extract_strided_slice %327 {offsets = [0, 0, 0], sizes = [8, 8, 32], strides = [1, 1, 1]} : vector<48x8x32xf32> to vector<8x8x32xf32>
    %330 = vector.shape_cast %328 : vector<1x32xf32> to vector<1x1x32xf32>
    %331 = vector.broadcast %330 : vector<1x1x32xf32> to vector<8x8x32xf32>
    %332 = arith.mulf %329, %331 : vector<8x8x32xf32>
    %333 = arith.addf %325, %332 : vector<8x8x32xf32>
    %c21_147 = arith.constant 21 : index
    %c0_148 = arith.constant 0 : index
    %334 = vector.load %arg4[%c21_147, %c0_148] : memref<27x32xf32, #tpu.memory_space<vmem>>, vector<1x32xf32>
    %335 = vector.extract_strided_slice %327 {offsets = [2, 0, 0], sizes = [8, 8, 32], strides = [1, 1, 1]} : vector<48x8x32xf32> to vector<8x8x32xf32>
    %336 = vector.shape_cast %334 : vector<1x32xf32> to vector<1x1x32xf32>
    %337 = vector.broadcast %336 : vector<1x1x32xf32> to vector<8x8x32xf32>
    %338 = arith.mulf %335, %337 : vector<8x8x32xf32>
    %339 = arith.addf %333, %338 : vector<8x8x32xf32>
    %c24_149 = arith.constant 24 : index
    %c0_150 = arith.constant 0 : index
    %340 = vector.load %arg4[%c24_149, %c0_150] : memref<27x32xf32, #tpu.memory_space<vmem>>, vector<1x32xf32>
    %341 = vector.extract_strided_slice %327 {offsets = [4, 0, 0], sizes = [8, 8, 32], strides = [1, 1, 1]} : vector<48x8x32xf32> to vector<8x8x32xf32>
    %342 = vector.shape_cast %340 : vector<1x32xf32> to vector<1x1x32xf32>
    %343 = vector.broadcast %342 : vector<1x1x32xf32> to vector<8x8x32xf32>
    %344 = arith.mulf %341, %343 : vector<8x8x32xf32>
    %345 = arith.addf %339, %344 : vector<8x8x32xf32>
    %c0_151 = arith.constant 0 : index
    %c0_152 = arith.constant 0 : index
    %c2_153 = arith.constant 2 : index
    %c0_154 = arith.constant 0 : index
    %346 = vector.load %arg2[%c0_151, %c0_152, %c2_153, %c0_154] : memref<1x48x12x32xf32, #tpu.memory_space<vmem>>, vector<1x48x8x32xf32>
    %347 = vector.shape_cast %346 : vector<1x48x8x32xf32> to vector<48x8x32xf32>
    %c19_155 = arith.constant 19 : index
    %c0_156 = arith.constant 0 : index
    %348 = vector.load %arg4[%c19_155, %c0_156] : memref<27x32xf32, #tpu.memory_space<vmem>>, vector<1x32xf32>
    %349 = vector.extract_strided_slice %347 {offsets = [0, 0, 0], sizes = [8, 8, 32], strides = [1, 1, 1]} : vector<48x8x32xf32> to vector<8x8x32xf32>
    %350 = vector.shape_cast %348 : vector<1x32xf32> to vector<1x1x32xf32>
    %351 = vector.broadcast %350 : vector<1x1x32xf32> to vector<8x8x32xf32>
    %352 = arith.mulf %349, %351 : vector<8x8x32xf32>
    %353 = arith.addf %345, %352 : vector<8x8x32xf32>
    %c22_157 = arith.constant 22 : index
    %c0_158 = arith.constant 0 : index
    %354 = vector.load %arg4[%c22_157, %c0_158] : memref<27x32xf32, #tpu.memory_space<vmem>>, vector<1x32xf32>
    %355 = vector.extract_strided_slice %347 {offsets = [2, 0, 0], sizes = [8, 8, 32], strides = [1, 1, 1]} : vector<48x8x32xf32> to vector<8x8x32xf32>
    %356 = vector.shape_cast %354 : vector<1x32xf32> to vector<1x1x32xf32>
    %357 = vector.broadcast %356 : vector<1x1x32xf32> to vector<8x8x32xf32>
    %358 = arith.mulf %355, %357 : vector<8x8x32xf32>
    %359 = arith.addf %353, %358 : vector<8x8x32xf32>
    %c25_159 = arith.constant 25 : index
    %c0_160 = arith.constant 0 : index
    %360 = vector.load %arg4[%c25_159, %c0_160] : memref<27x32xf32, #tpu.memory_space<vmem>>, vector<1x32xf32>
    %361 = vector.extract_strided_slice %347 {offsets = [4, 0, 0], sizes = [8, 8, 32], strides = [1, 1, 1]} : vector<48x8x32xf32> to vector<8x8x32xf32>
    %362 = vector.shape_cast %360 : vector<1x32xf32> to vector<1x1x32xf32>
    %363 = vector.broadcast %362 : vector<1x1x32xf32> to vector<8x8x32xf32>
    %364 = arith.mulf %361, %363 : vector<8x8x32xf32>
    %365 = arith.addf %359, %364 : vector<8x8x32xf32>
    %c0_161 = arith.constant 0 : index
    %c0_162 = arith.constant 0 : index
    %c4_163 = arith.constant 4 : index
    %c0_164 = arith.constant 0 : index
    %366 = vector.load %arg2[%c0_161, %c0_162, %c4_163, %c0_164] : memref<1x48x12x32xf32, #tpu.memory_space<vmem>>, vector<1x48x8x32xf32>
    %367 = vector.shape_cast %366 : vector<1x48x8x32xf32> to vector<48x8x32xf32>
    %c20_165 = arith.constant 20 : index
    %c0_166 = arith.constant 0 : index
    %368 = vector.load %arg4[%c20_165, %c0_166] : memref<27x32xf32, #tpu.memory_space<vmem>>, vector<1x32xf32>
    %369 = vector.extract_strided_slice %367 {offsets = [0, 0, 0], sizes = [8, 8, 32], strides = [1, 1, 1]} : vector<48x8x32xf32> to vector<8x8x32xf32>
    %370 = vector.shape_cast %368 : vector<1x32xf32> to vector<1x1x32xf32>
    %371 = vector.broadcast %370 : vector<1x1x32xf32> to vector<8x8x32xf32>
    %372 = arith.mulf %369, %371 : vector<8x8x32xf32>
    %373 = arith.addf %365, %372 : vector<8x8x32xf32>
    %c23_167 = arith.constant 23 : index
    %c0_168 = arith.constant 0 : index
    %374 = vector.load %arg4[%c23_167, %c0_168] : memref<27x32xf32, #tpu.memory_space<vmem>>, vector<1x32xf32>
    %375 = vector.extract_strided_slice %367 {offsets = [2, 0, 0], sizes = [8, 8, 32], strides = [1, 1, 1]} : vector<48x8x32xf32> to vector<8x8x32xf32>
    %376 = vector.shape_cast %374 : vector<1x32xf32> to vector<1x1x32xf32>
    %377 = vector.broadcast %376 : vector<1x1x32xf32> to vector<8x8x32xf32>
    %378 = arith.mulf %375, %377 : vector<8x8x32xf32>
    %379 = arith.addf %373, %378 : vector<8x8x32xf32>
    %c26_169 = arith.constant 26 : index
    %c0_170 = arith.constant 0 : index
    %380 = vector.load %arg4[%c26_169, %c0_170] : memref<27x32xf32, #tpu.memory_space<vmem>>, vector<1x32xf32>
    %381 = vector.extract_strided_slice %367 {offsets = [4, 0, 0], sizes = [8, 8, 32], strides = [1, 1, 1]} : vector<48x8x32xf32> to vector<8x8x32xf32>
    %382 = vector.shape_cast %380 : vector<1x32xf32> to vector<1x1x32xf32>
    %383 = vector.broadcast %382 : vector<1x1x32xf32> to vector<8x8x32xf32>
    %384 = arith.mulf %381, %383 : vector<8x8x32xf32>
    %385 = arith.addf %379, %384 : vector<8x8x32xf32>
    %386 = vector.shape_cast %385 : vector<8x8x32xf32> to vector<64x32xf32>
    %387 = arith.truncf %386 : vector<64x32xf32> to vector<64x32xbf16>
    %c64_171 = arith.constant 64 : index
    %c0_172 = arith.constant 0 : index
    %388 = vector.load %arg7[%c64_171, %c0_172] : memref<96x96xbf16, #tpu.memory_space<vmem>>, vector<32x96xbf16>
    %cst_173 = arith.constant dense<0.000000e+00> : vector<64x96xf32>
    %389 = tpu.matmul %387, %388, %cst_173 {dimension_numbers = #tpu.dot_dimension_numbers<[1], [0], [0], [1], [0, 0, 1, 1], [], []>} : vector<64x32xbf16>, vector<32x96xbf16>, vector<64x96xf32> -> vector<64x96xf32>
    %390 = tpu.concatenate %64, %194, %324 in 1 : vector<256x32xf32>, vector<256x32xf32>, vector<256x32xf32> -> vector<256x96xf32>
    %c0_174 = arith.constant 0 : index
    %c0_175 = arith.constant 0 : index
    %391 = vector.load %arg6[%c0_174, %c0_175] : memref<1x96xf32, #tpu.memory_space<vmem>>, vector<1x96xf32>
    %392 = vector.broadcast %391 : vector<1x96xf32> to vector<256x96xf32>
    %393 = arith.addf %390, %392 : vector<256x96xf32>
    %394 = arith.truncf %393 : vector<256x96xf32> to vector<256x96xbf16>
    %c0_176 = arith.constant 0 : index
    %c0_177 = arith.constant 0 : index
    %c0_178 = arith.constant 0 : index
    %395 = vector.load %arg9[%c0_176, %c0_177, %c0_178] : memref<1x256x96xbf16, #tpu.memory_space<vmem>>, vector<1x256x96xbf16>
    %396 = vector.shape_cast %395 : vector<1x256x96xbf16> to vector<256x96xbf16>
    %397 = vector.shape_cast %394 : vector<256x96xbf16> to vector<1x256x96xbf16>
    tpu.vector_store %arg9[%c0_176, %c0_177, %c0_178], %397 {strides = array<i32>} : memref<1x256x96xbf16, #tpu.memory_space<vmem>>, vector<1x256x96xbf16>,
    %398 = tpu.concatenate %129, %259, %389 in 1 : vector<64x96xf32>, vector<64x96xf32>, vector<64x96xf32> -> vector<64x288xf32>
    %c0_179 = arith.constant 0 : index
    %c0_180 = arith.constant 0 : index
    %399 = vector.load %arg8[%c0_179, %c0_180] : memref<1x288xf32, #tpu.memory_space<vmem>>, vector<1x288xf32>
    %400 = vector.broadcast %399 : vector<1x288xf32> to vector<64x288xf32>
    %401 = arith.addf %398, %400 : vector<64x288xf32>
    %402 = arith.truncf %401 : vector<64x288xf32> to vector<64x288xbf16>
    %c0_181 = arith.constant 0 : index
    %c0_182 = arith.constant 0 : index
    %c0_183 = arith.constant 0 : index
    %403 = vector.load %arg10[%c0_181, %c0_182, %c0_183] : memref<1x64x288xbf16, #tpu.memory_space<vmem>>, vector<1x64x288xbf16>
    %404 = vector.shape_cast %403 : vector<1x64x288xbf16> to vector<64x288xbf16>
    %405 = vector.shape_cast %402 : vector<64x288xbf16> to vector<1x64x288xbf16>
    tpu.vector_store %arg10[%c0_181, %c0_182, %c0_183], %405 {strides = array<i32>} : memref<1x64x288xbf16, #tpu.memory_space<vmem>>, vector<1x64x288xbf16>,
    return
  }
  func.func @transform_0(%arg0: i32) -> (i32, i32, i32, i32) {
    %c0_i32 = arith.constant 0 : i32
    %c0_i32_0 = arith.constant 0 : i32
    %c0_i32_1 = arith.constant 0 : i32
    %c0_i32_2 = arith.constant 0 : i32
    return %arg0, %c0_i32, %c0_i32_0, %c0_i32_1 : i32, i32, i32, i32
  }
  func.func @transform_1(%arg0: i32) -> (i32, i32, i32, i32) {
    %c0_i32 = arith.constant 0 : i32
    %c0_i32_0 = arith.constant 0 : i32
    %c0_i32_1 = arith.constant 0 : i32
    %c0_i32_2 = arith.constant 0 : i32
    return %arg0, %c0_i32, %c0_i32_0, %c0_i32_1 : i32, i32, i32, i32
  }
  func.func @transform_2(%arg0: i32) -> (i32, i32) {
    %c0_i32 = arith.constant 0 : i32
    %c0_i32_0 = arith.constant 0 : i32
    %c0_i32_1 = arith.constant 0 : i32
    return %c0_i32, %c0_i32_0 : i32, i32
  }
  func.func @transform_3(%arg0: i32) -> (i32, i32) {
    %c0_i32 = arith.constant 0 : i32
    %c0_i32_0 = arith.constant 0 : i32
    %c0_i32_1 = arith.constant 0 : i32
    return %c0_i32, %c0_i32_0 : i32, i32
  }
  func.func @transform_4(%arg0: i32) -> (i32, i32) {
    %c0_i32 = arith.constant 0 : i32
    %c0_i32_0 = arith.constant 0 : i32
    %c0_i32_1 = arith.constant 0 : i32
    return %c0_i32, %c0_i32_0 : i32, i32
  }
  func.func @transform_5(%arg0: i32) -> (i32, i32) {
    %c0_i32 = arith.constant 0 : i32
    %c0_i32_0 = arith.constant 0 : i32
    %c0_i32_1 = arith.constant 0 : i32
    return %c0_i32, %c0_i32_0 : i32, i32
  }
  func.func @transform_6(%arg0: i32) -> (i32, i32) {
    %c0_i32 = arith.constant 0 : i32
    %c0_i32_0 = arith.constant 0 : i32
    %c0_i32_1 = arith.constant 0 : i32
    return %c0_i32, %c0_i32_0 : i32, i32
  }
  func.func @transform_7(%arg0: i32) -> (i32, i32) {
    %c0_i32 = arith.constant 0 : i32
    %c0_i32_0 = arith.constant 0 : i32
    %c0_i32_1 = arith.constant 0 : i32
    return %c0_i32, %c0_i32_0 : i32, i32
  }
  func.func @transform_8(%arg0: i32) -> (i32, i32, i32) {
    %c0_i32 = arith.constant 0 : i32
    %c0_i32_0 = arith.constant 0 : i32
    %c0_i32_1 = arith.constant 0 : i32
    return %arg0, %c0_i32, %c0_i32_0 : i32, i32, i32
  }
  func.func @transform_9(%arg0: i32) -> (i32, i32, i32) {
    %c0_i32 = arith.constant 0 : i32
    %c0_i32_0 = arith.constant 0 : i32
    %c0_i32_1 = arith.constant 0 : i32
    return %arg0, %c0_i32, %c0_i32_0 : i32, i32, i32
  }
}

module attributes {stable_mosaic.version = 11 : i64} {
  func.func @_attn_out_kernel(%arg0: i32, %arg1: i32, %arg2: memref<1x256x96xbf16, #tpu.memory_space<vmem>>, %arg3: memref<1x64x288xbf16, #tpu.memory_space<vmem>>, %arg4: memref<1x32xf32, #tpu.memory_space<vmem>>, %arg5: memref<1x256x32xf32, #tpu.memory_space<vmem>>) attributes {dimension_semantics = [#tpu.dimension_semantics<parallel>, #tpu.dimension_semantics<parallel>], iteration_bounds = array<i64: 2, 1>, scalar_prefetch = 0 : i64, scratch_operands = 0 : i64, tpu.core_type = #tpu.core_type<tc>, window_params = [{transform_indices = @transform_0, window_bounds = array<i64: 1, 256, 96>}, {transform_indices = @transform_1, window_bounds = array<i64: 1, 64, 288>}, {pipeline_mode = #tpu.pipeline_mode<synchronous>, transform_indices = @transform_2, window_bounds = array<i64: 1, 32>}, {transform_indices = @transform_3, window_bounds = array<i64: 1, 256, 32>}]} {
    %cst = arith.constant 0.000000e+00 : f32
    %0 = vector.broadcast %cst : f32 to vector<256x32xf32>
    %c0 = arith.constant 0 : index
    %c0_0 = arith.constant 0 : index
    %c64 = arith.constant 64 : index
    %1 = vector.load %arg2[%c0, %c0_0, %c64] : memref<1x256x96xbf16, #tpu.memory_space<vmem>>, vector<1x256x16xbf16>
    %2 = vector.shape_cast %1 : vector<1x256x16xbf16> to vector<256x16xbf16>
    %c0_1 = arith.constant 0 : index
    %c0_2 = arith.constant 0 : index
    %c96 = arith.constant 96 : index
    %3 = vector.load %arg3[%c0_1, %c0_2, %c96] : memref<1x64x288xbf16, #tpu.memory_space<vmem>>, vector<1x64x16xbf16>
    %4 = vector.shape_cast %3 : vector<1x64x16xbf16> to vector<64x16xbf16>
    %c0_3 = arith.constant 0 : index
    %c0_4 = arith.constant 0 : index
    %c32 = arith.constant 32 : index
    %5 = vector.load %arg3[%c0_3, %c0_4, %c32] : memref<1x64x288xbf16, #tpu.memory_space<vmem>>, vector<1x64x32xbf16>
    %6 = vector.shape_cast %5 : vector<1x64x32xbf16> to vector<64x32xbf16>
    %cst_5 = arith.constant dense<0.000000e+00> : vector<256x64xf32>
    %7 = tpu.matmul %2, %4, %cst_5 {dimension_numbers = #tpu.dot_dimension_numbers<[1], [1], [0], [0], [0, 0, 1, 0], [], []>} : vector<256x16xbf16>, vector<64x16xbf16>, vector<256x64xf32> -> vector<256x64xf32>
    %cst_6 = arith.constant 2.500000e-01 : f32
    %8 = vector.broadcast %cst_6 : f32 to vector<256x64xf32>
    %9 = arith.mulf %7, %8 : vector<256x64xf32>
    %cst_7 = arith.constant dense<0xFF800000> : vector<256xf32>
    %10 = vector.multi_reduction <maximumf>, %9, %cst_7 [1] : vector<256x64xf32> to vector<256xf32>
    %11 = vector.shape_cast %10 : vector<256xf32> to vector<256x1xf32>
    %12 = vector.broadcast %11 : vector<256x1xf32> to vector<256x64xf32>
    %13 = arith.subf %9, %12 : vector<256x64xf32>
    %14 = math.exp %13 : vector<256x64xf32>
    %cst_8 = arith.constant dense<0.000000e+00> : vector<256xf32>
    %15 = vector.multi_reduction <add>, %14, %cst_8 [1] : vector<256x64xf32> to vector<256xf32>
    %16 = vector.shape_cast %15 : vector<256xf32> to vector<256x1xf32>
    %17 = tpu.reciprocal %16 : vector<256x1xf32> -> vector<256x1xf32>
    %18 = vector.broadcast %17 : vector<256x1xf32> to vector<256x64xf32>
    %19 = arith.mulf %14, %18 : vector<256x64xf32>
    %20 = arith.truncf %19 : vector<256x64xf32> to vector<256x64xbf16>
    %cst_9 = arith.constant dense<0.000000e+00> : vector<256x32xf32>
    %21 = tpu.matmul %20, %6, %cst_9 {dimension_numbers = #tpu.dot_dimension_numbers<[1], [0], [0], [1], [0, 0, 1, 1], [], []>} : vector<256x64xbf16>, vector<64x32xbf16>, vector<256x32xf32> -> vector<256x32xf32>
    %22 = arith.addf %0, %21 : vector<256x32xf32>
    %c0_10 = arith.constant 0 : index
    %c0_11 = arith.constant 0 : index
    %c80 = arith.constant 80 : index
    %23 = vector.load %arg2[%c0_10, %c0_11, %c80] : memref<1x256x96xbf16, #tpu.memory_space<vmem>>, vector<1x256x16xbf16>
    %24 = vector.shape_cast %23 : vector<1x256x16xbf16> to vector<256x16xbf16>
    %c0_12 = arith.constant 0 : index
    %c0_13 = arith.constant 0 : index
    %c112 = arith.constant 112 : index
    %25 = vector.load %arg3[%c0_12, %c0_13, %c112] : memref<1x64x288xbf16, #tpu.memory_space<vmem>>, vector<1x64x16xbf16>
    %26 = vector.shape_cast %25 : vector<1x64x16xbf16> to vector<64x16xbf16>
    %c0_14 = arith.constant 0 : index
    %c0_15 = arith.constant 0 : index
    %c64_16 = arith.constant 64 : index
    %27 = vector.load %arg3[%c0_14, %c0_15, %c64_16] : memref<1x64x288xbf16, #tpu.memory_space<vmem>>, vector<1x64x32xbf16>
    %28 = vector.shape_cast %27 : vector<1x64x32xbf16> to vector<64x32xbf16>
    %cst_17 = arith.constant dense<0.000000e+00> : vector<256x64xf32>
    %29 = tpu.matmul %24, %26, %cst_17 {dimension_numbers = #tpu.dot_dimension_numbers<[1], [1], [0], [0], [0, 0, 1, 0], [], []>} : vector<256x16xbf16>, vector<64x16xbf16>, vector<256x64xf32> -> vector<256x64xf32>
    %cst_18 = arith.constant 2.500000e-01 : f32
    %30 = vector.broadcast %cst_18 : f32 to vector<256x64xf32>
    %31 = arith.mulf %29, %30 : vector<256x64xf32>
    %cst_19 = arith.constant dense<0xFF800000> : vector<256xf32>
    %32 = vector.multi_reduction <maximumf>, %31, %cst_19 [1] : vector<256x64xf32> to vector<256xf32>
    %33 = vector.shape_cast %32 : vector<256xf32> to vector<256x1xf32>
    %34 = vector.broadcast %33 : vector<256x1xf32> to vector<256x64xf32>
    %35 = arith.subf %31, %34 : vector<256x64xf32>
    %36 = math.exp %35 : vector<256x64xf32>
    %cst_20 = arith.constant dense<0.000000e+00> : vector<256xf32>
    %37 = vector.multi_reduction <add>, %36, %cst_20 [1] : vector<256x64xf32> to vector<256xf32>
    %38 = vector.shape_cast %37 : vector<256xf32> to vector<256x1xf32>
    %39 = tpu.reciprocal %38 : vector<256x1xf32> -> vector<256x1xf32>
    %40 = vector.broadcast %39 : vector<256x1xf32> to vector<256x64xf32>
    %41 = arith.mulf %36, %40 : vector<256x64xf32>
    %42 = arith.truncf %41 : vector<256x64xf32> to vector<256x64xbf16>
    %cst_21 = arith.constant dense<0.000000e+00> : vector<256x32xf32>
    %43 = tpu.matmul %42, %28, %cst_21 {dimension_numbers = #tpu.dot_dimension_numbers<[1], [0], [0], [1], [0, 0, 1, 1], [], []>} : vector<256x64xbf16>, vector<64x32xbf16>, vector<256x32xf32> -> vector<256x32xf32>
    %44 = arith.addf %22, %43 : vector<256x32xf32>
    %c0_22 = arith.constant 0 : index
    %c0_23 = arith.constant 0 : index
    %c0_24 = arith.constant 0 : index
    %45 = vector.load %arg2[%c0_22, %c0_23, %c0_24] : memref<1x256x96xbf16, #tpu.memory_space<vmem>>, vector<1x256x16xbf16>
    %46 = vector.shape_cast %45 : vector<1x256x16xbf16> to vector<256x16xbf16>
    %c0_25 = arith.constant 0 : index
    %c0_26 = arith.constant 0 : index
    %c192 = arith.constant 192 : index
    %47 = vector.load %arg3[%c0_25, %c0_26, %c192] : memref<1x64x288xbf16, #tpu.memory_space<vmem>>, vector<1x64x16xbf16>
    %48 = vector.shape_cast %47 : vector<1x64x16xbf16> to vector<64x16xbf16>
    %c0_27 = arith.constant 0 : index
    %c0_28 = arith.constant 0 : index
    %c128 = arith.constant 128 : index
    %49 = vector.load %arg3[%c0_27, %c0_28, %c128] : memref<1x64x288xbf16, #tpu.memory_space<vmem>>, vector<1x64x32xbf16>
    %50 = vector.shape_cast %49 : vector<1x64x32xbf16> to vector<64x32xbf16>
    %cst_29 = arith.constant dense<0.000000e+00> : vector<256x64xf32>
    %51 = tpu.matmul %46, %48, %cst_29 {dimension_numbers = #tpu.dot_dimension_numbers<[1], [1], [0], [0], [0, 0, 1, 0], [], []>} : vector<256x16xbf16>, vector<64x16xbf16>, vector<256x64xf32> -> vector<256x64xf32>
    %cst_30 = arith.constant 2.500000e-01 : f32
    %52 = vector.broadcast %cst_30 : f32 to vector<256x64xf32>
    %53 = arith.mulf %51, %52 : vector<256x64xf32>
    %cst_31 = arith.constant dense<0xFF800000> : vector<256xf32>
    %54 = vector.multi_reduction <maximumf>, %53, %cst_31 [1] : vector<256x64xf32> to vector<256xf32>
    %55 = vector.shape_cast %54 : vector<256xf32> to vector<256x1xf32>
    %56 = vector.broadcast %55 : vector<256x1xf32> to vector<256x64xf32>
    %57 = arith.subf %53, %56 : vector<256x64xf32>
    %58 = math.exp %57 : vector<256x64xf32>
    %cst_32 = arith.constant dense<0.000000e+00> : vector<256xf32>
    %59 = vector.multi_reduction <add>, %58, %cst_32 [1] : vector<256x64xf32> to vector<256xf32>
    %60 = vector.shape_cast %59 : vector<256xf32> to vector<256x1xf32>
    %61 = tpu.reciprocal %60 : vector<256x1xf32> -> vector<256x1xf32>
    %62 = vector.broadcast %61 : vector<256x1xf32> to vector<256x64xf32>
    %63 = arith.mulf %58, %62 : vector<256x64xf32>
    %64 = arith.truncf %63 : vector<256x64xf32> to vector<256x64xbf16>
    %cst_33 = arith.constant dense<0.000000e+00> : vector<256x32xf32>
    %65 = tpu.matmul %64, %50, %cst_33 {dimension_numbers = #tpu.dot_dimension_numbers<[1], [0], [0], [1], [0, 0, 1, 1], [], []>} : vector<256x64xbf16>, vector<64x32xbf16>, vector<256x32xf32> -> vector<256x32xf32>
    %66 = arith.addf %44, %65 : vector<256x32xf32>
    %c0_34 = arith.constant 0 : index
    %c0_35 = arith.constant 0 : index
    %c16 = arith.constant 16 : index
    %67 = vector.load %arg2[%c0_34, %c0_35, %c16] : memref<1x256x96xbf16, #tpu.memory_space<vmem>>, vector<1x256x16xbf16>
    %68 = vector.shape_cast %67 : vector<1x256x16xbf16> to vector<256x16xbf16>
    %c0_36 = arith.constant 0 : index
    %c0_37 = arith.constant 0 : index
    %c208 = arith.constant 208 : index
    %69 = vector.load %arg3[%c0_36, %c0_37, %c208] : memref<1x64x288xbf16, #tpu.memory_space<vmem>>, vector<1x64x16xbf16>
    %70 = vector.shape_cast %69 : vector<1x64x16xbf16> to vector<64x16xbf16>
    %c0_38 = arith.constant 0 : index
    %c0_39 = arith.constant 0 : index
    %c160 = arith.constant 160 : index
    %71 = vector.load %arg3[%c0_38, %c0_39, %c160] : memref<1x64x288xbf16, #tpu.memory_space<vmem>>, vector<1x64x32xbf16>
    %72 = vector.shape_cast %71 : vector<1x64x32xbf16> to vector<64x32xbf16>
    %cst_40 = arith.constant dense<0.000000e+00> : vector<256x64xf32>
    %73 = tpu.matmul %68, %70, %cst_40 {dimension_numbers = #tpu.dot_dimension_numbers<[1], [1], [0], [0], [0, 0, 1, 0], [], []>} : vector<256x16xbf16>, vector<64x16xbf16>, vector<256x64xf32> -> vector<256x64xf32>
    %cst_41 = arith.constant 2.500000e-01 : f32
    %74 = vector.broadcast %cst_41 : f32 to vector<256x64xf32>
    %75 = arith.mulf %73, %74 : vector<256x64xf32>
    %cst_42 = arith.constant dense<0xFF800000> : vector<256xf32>
    %76 = vector.multi_reduction <maximumf>, %75, %cst_42 [1] : vector<256x64xf32> to vector<256xf32>
    %77 = vector.shape_cast %76 : vector<256xf32> to vector<256x1xf32>
    %78 = vector.broadcast %77 : vector<256x1xf32> to vector<256x64xf32>
    %79 = arith.subf %75, %78 : vector<256x64xf32>
    %80 = math.exp %79 : vector<256x64xf32>
    %cst_43 = arith.constant dense<0.000000e+00> : vector<256xf32>
    %81 = vector.multi_reduction <add>, %80, %cst_43 [1] : vector<256x64xf32> to vector<256xf32>
    %82 = vector.shape_cast %81 : vector<256xf32> to vector<256x1xf32>
    %83 = tpu.reciprocal %82 : vector<256x1xf32> -> vector<256x1xf32>
    %84 = vector.broadcast %83 : vector<256x1xf32> to vector<256x64xf32>
    %85 = arith.mulf %80, %84 : vector<256x64xf32>
    %86 = arith.truncf %85 : vector<256x64xf32> to vector<256x64xbf16>
    %cst_44 = arith.constant dense<0.000000e+00> : vector<256x32xf32>
    %87 = tpu.matmul %86, %72, %cst_44 {dimension_numbers = #tpu.dot_dimension_numbers<[1], [0], [0], [1], [0, 0, 1, 1], [], []>} : vector<256x64xbf16>, vector<64x32xbf16>, vector<256x32xf32> -> vector<256x32xf32>
    %88 = arith.addf %66, %87 : vector<256x32xf32>
    %c0_45 = arith.constant 0 : index
    %c0_46 = arith.constant 0 : index
    %c32_47 = arith.constant 32 : index
    %89 = vector.load %arg2[%c0_45, %c0_46, %c32_47] : memref<1x256x96xbf16, #tpu.memory_space<vmem>>, vector<1x256x16xbf16>
    %90 = vector.shape_cast %89 : vector<1x256x16xbf16> to vector<256x16xbf16>
    %c0_48 = arith.constant 0 : index
    %c0_49 = arith.constant 0 : index
    %c0_50 = arith.constant 0 : index
    %91 = vector.load %arg3[%c0_48, %c0_49, %c0_50] : memref<1x64x288xbf16, #tpu.memory_space<vmem>>, vector<1x64x16xbf16>
    %92 = vector.shape_cast %91 : vector<1x64x16xbf16> to vector<64x16xbf16>
    %c0_51 = arith.constant 0 : index
    %c0_52 = arith.constant 0 : index
    %c224 = arith.constant 224 : index
    %93 = vector.load %arg3[%c0_51, %c0_52, %c224] : memref<1x64x288xbf16, #tpu.memory_space<vmem>>, vector<1x64x32xbf16>
    %94 = vector.shape_cast %93 : vector<1x64x32xbf16> to vector<64x32xbf16>
    %cst_53 = arith.constant dense<0.000000e+00> : vector<256x64xf32>
    %95 = tpu.matmul %90, %92, %cst_53 {dimension_numbers = #tpu.dot_dimension_numbers<[1], [1], [0], [0], [0, 0, 1, 0], [], []>} : vector<256x16xbf16>, vector<64x16xbf16>, vector<256x64xf32> -> vector<256x64xf32>
    %cst_54 = arith.constant 2.500000e-01 : f32
    %96 = vector.broadcast %cst_54 : f32 to vector<256x64xf32>
    %97 = arith.mulf %95, %96 : vector<256x64xf32>
    %cst_55 = arith.constant dense<0xFF800000> : vector<256xf32>
    %98 = vector.multi_reduction <maximumf>, %97, %cst_55 [1] : vector<256x64xf32> to vector<256xf32>
    %99 = vector.shape_cast %98 : vector<256xf32> to vector<256x1xf32>
    %100 = vector.broadcast %99 : vector<256x1xf32> to vector<256x64xf32>
    %101 = arith.subf %97, %100 : vector<256x64xf32>
    %102 = math.exp %101 : vector<256x64xf32>
    %cst_56 = arith.constant dense<0.000000e+00> : vector<256xf32>
    %103 = vector.multi_reduction <add>, %102, %cst_56 [1] : vector<256x64xf32> to vector<256xf32>
    %104 = vector.shape_cast %103 : vector<256xf32> to vector<256x1xf32>
    %105 = tpu.reciprocal %104 : vector<256x1xf32> -> vector<256x1xf32>
    %106 = vector.broadcast %105 : vector<256x1xf32> to vector<256x64xf32>
    %107 = arith.mulf %102, %106 : vector<256x64xf32>
    %108 = arith.truncf %107 : vector<256x64xf32> to vector<256x64xbf16>
    %cst_57 = arith.constant dense<0.000000e+00> : vector<256x32xf32>
    %109 = tpu.matmul %108, %94, %cst_57 {dimension_numbers = #tpu.dot_dimension_numbers<[1], [0], [0], [1], [0, 0, 1, 1], [], []>} : vector<256x64xbf16>, vector<64x32xbf16>, vector<256x32xf32> -> vector<256x32xf32>
    %110 = arith.addf %88, %109 : vector<256x32xf32>
    %c0_58 = arith.constant 0 : index
    %c0_59 = arith.constant 0 : index
    %c48 = arith.constant 48 : index
    %111 = vector.load %arg2[%c0_58, %c0_59, %c48] : memref<1x256x96xbf16, #tpu.memory_space<vmem>>, vector<1x256x16xbf16>
    %112 = vector.shape_cast %111 : vector<1x256x16xbf16> to vector<256x16xbf16>
    %c0_60 = arith.constant 0 : index
    %c0_61 = arith.constant 0 : index
    %c16_62 = arith.constant 16 : index
    %113 = vector.load %arg3[%c0_60, %c0_61, %c16_62] : memref<1x64x288xbf16, #tpu.memory_space<vmem>>, vector<1x64x16xbf16>
    %114 = vector.shape_cast %113 : vector<1x64x16xbf16> to vector<64x16xbf16>
    %c0_63 = arith.constant 0 : index
    %c0_64 = arith.constant 0 : index
    %c256 = arith.constant 256 : index
    %115 = vector.load %arg3[%c0_63, %c0_64, %c256] : memref<1x64x288xbf16, #tpu.memory_space<vmem>>, vector<1x64x32xbf16>
    %116 = vector.shape_cast %115 : vector<1x64x32xbf16> to vector<64x32xbf16>
    %cst_65 = arith.constant dense<0.000000e+00> : vector<256x64xf32>
    %117 = tpu.matmul %112, %114, %cst_65 {dimension_numbers = #tpu.dot_dimension_numbers<[1], [1], [0], [0], [0, 0, 1, 0], [], []>} : vector<256x16xbf16>, vector<64x16xbf16>, vector<256x64xf32> -> vector<256x64xf32>
    %cst_66 = arith.constant 2.500000e-01 : f32
    %118 = vector.broadcast %cst_66 : f32 to vector<256x64xf32>
    %119 = arith.mulf %117, %118 : vector<256x64xf32>
    %cst_67 = arith.constant dense<0xFF800000> : vector<256xf32>
    %120 = vector.multi_reduction <maximumf>, %119, %cst_67 [1] : vector<256x64xf32> to vector<256xf32>
    %121 = vector.shape_cast %120 : vector<256xf32> to vector<256x1xf32>
    %122 = vector.broadcast %121 : vector<256x1xf32> to vector<256x64xf32>
    %123 = arith.subf %119, %122 : vector<256x64xf32>
    %124 = math.exp %123 : vector<256x64xf32>
    %cst_68 = arith.constant dense<0.000000e+00> : vector<256xf32>
    %125 = vector.multi_reduction <add>, %124, %cst_68 [1] : vector<256x64xf32> to vector<256xf32>
    %126 = vector.shape_cast %125 : vector<256xf32> to vector<256x1xf32>
    %127 = tpu.reciprocal %126 : vector<256x1xf32> -> vector<256x1xf32>
    %128 = vector.broadcast %127 : vector<256x1xf32> to vector<256x64xf32>
    %129 = arith.mulf %124, %128 : vector<256x64xf32>
    %130 = arith.truncf %129 : vector<256x64xf32> to vector<256x64xbf16>
    %cst_69 = arith.constant dense<0.000000e+00> : vector<256x32xf32>
    %131 = tpu.matmul %130, %116, %cst_69 {dimension_numbers = #tpu.dot_dimension_numbers<[1], [0], [0], [1], [0, 0, 1, 1], [], []>} : vector<256x64xbf16>, vector<64x32xbf16>, vector<256x32xf32> -> vector<256x32xf32>
    %132 = arith.addf %110, %131 : vector<256x32xf32>
    %c0_70 = arith.constant 0 : index
    %c0_71 = arith.constant 0 : index
    %133 = vector.load %arg4[%c0_70, %c0_71] : memref<1x32xf32, #tpu.memory_space<vmem>>, vector<1x32xf32>
    %134 = vector.broadcast %133 : vector<1x32xf32> to vector<256x32xf32>
    %135 = arith.addf %132, %134 : vector<256x32xf32>
    %c0_72 = arith.constant 0 : index
    %c0_73 = arith.constant 0 : index
    %c0_74 = arith.constant 0 : index
    %136 = vector.load %arg5[%c0_72, %c0_73, %c0_74] : memref<1x256x32xf32, #tpu.memory_space<vmem>>, vector<1x256x32xf32>
    %137 = vector.shape_cast %136 : vector<1x256x32xf32> to vector<256x32xf32>
    %138 = vector.shape_cast %135 : vector<256x32xf32> to vector<1x256x32xf32>
    tpu.vector_store %arg5[%c0_72, %c0_73, %c0_74], %138 {strides = array<i32>} : memref<1x256x32xf32, #tpu.memory_space<vmem>>, vector<1x256x32xf32>,
    return
  }
  func.func @transform_0(%arg0: i32, %arg1: i32) -> (i32, i32, i32) {
    %c0_i32 = arith.constant 0 : i32
    %c0_i32_0 = arith.constant 0 : i32
    return %arg0, %arg1, %c0_i32 : i32, i32, i32
  }
  func.func @transform_1(%arg0: i32, %arg1: i32) -> (i32, i32, i32) {
    %c0_i32 = arith.constant 0 : i32
    %c0_i32_0 = arith.constant 0 : i32
    %c0_i32_1 = arith.constant 0 : i32
    return %arg0, %c0_i32, %c0_i32_0 : i32, i32, i32
  }
  func.func @transform_2(%arg0: i32, %arg1: i32) -> (i32, i32) {
    %c0_i32 = arith.constant 0 : i32
    %c0_i32_0 = arith.constant 0 : i32
    %c0_i32_1 = arith.constant 0 : i32
    return %c0_i32, %c0_i32_0 : i32, i32
  }
  func.func @transform_3(%arg0: i32, %arg1: i32) -> (i32, i32, i32) {
    %c0_i32 = arith.constant 0 : i32
    %c0_i32_0 = arith.constant 0 : i32
    return %arg0, %arg1, %c0_i32 : i32, i32, i32
  }
}

</mosaic_0001>

<llo_original>
// kernel: fwd.2
$region0: #{fwd.2}
  #allocation0 [shape = 'u32[]', space=smem, size = 0x4, offset = 0x4, fixed_abs, tag = 'smem constant byte address 0x4 - core index']
  #allocation1 [shape = 'u32[144,128]{1,0:T(1,128)}', space=vmem, size = 0x12000, scoped, tag = 'internal scratch']
  %s0 = inlined_call_operand.vmem [shape: f32[2,24,24,32], index: 0, kind: input, shape index: {}]
  %s1 = inlined_call_operand.vmem [shape: f32[2,48,12,32], index: 1, kind: input, shape index: {}]
  %s2 = inlined_call_operand.vmem [shape: f32[27,32], index: 2, kind: input, shape index: {}]
  %s3 = inlined_call_operand.vmem [shape: f32[27,32], index: 3, kind: input, shape index: {}]
  %s4 = inlined_call_operand.vmem [shape: bf16[96,32], index: 4, kind: input, shape index: {}]
  %s5 = inlined_call_operand.vmem [shape: f32[1,96], index: 5, kind: input, shape index: {}]
  %s6 = inlined_call_operand.vmem [shape: bf16[96,96], index: 6, kind: input, shape index: {}]
  %s7 = inlined_call_operand.vmem [shape: f32[1,288], index: 7, kind: input, shape index: {}]
  %s8 = inlined_call_operand.vmem [shape: bf16[2,256,96], index: 8, kind: output, shape index: {0}]
  %s9 = inlined_call_operand.vmem [shape: bf16[2,64,288], index: 9, kind: output, shape index: {1}]
  %10 = xla_tuple %s8, %s9
  %s11 = sld [smem:[#allocation0]]
  $region73: #{fwd.2} parent=0
    _
  %s13 = ssub.s32 1, %s11
  %s14 = scalar_select 0, %s13, %s11
  loop: start=0, step=1, limit=4
  $region2: #{fwd.2} parent=0 // loop_pre_header
    _
  $region3: #{fwd.2} parent=0 // loop_header
    %s16 = sphi 0, %s20
    %p17 = scmp.ge.s32.totalorder %s16, 4
    %s26 = sphi 0, %s28
    %s29 = sphi 0, %s26
    %s30 = sphi 0, %s29
    %s46 = sphi 0, %s30
    %s52 = sphi 0, %s54
    %s55 = sphi 0, %s52
    %s56 = sphi 0, %s55
    %s72 = sphi 0, %s56
    %s76 = sphi 0, %s76
    %s78 = sphi 0, %s76
    %s79 = sphi 0, %s78
    %s93 = sphi 0, %s79
    %s97 = sphi 0, %s97
    %s99 = sphi 0, %s97
    %s100 = sphi 0, %s99
    %s114 = sphi 0, %s100
    %s118 = sphi 0, %s118
    %s120 = sphi 0, %s118
    %s121 = sphi 0, %s120
    %s135 = sphi 0, %s121
    %s139 = sphi 0, %s139
    %s141 = sphi 0, %s139
    %s142 = sphi 0, %s141
    %s156 = sphi 0, %s142
    %s160 = sphi 0, %s160
    %s162 = sphi 0, %s160
    %s163 = sphi 0, %s162
    %s177 = sphi 0, %s163
    %s181 = sphi 0, %s181
    %s183 = sphi 0, %s181
    %s184 = sphi 0, %s183
    %s198 = sphi 0, %s184
    %s204 = sphi 0, %s206
    %s207 = sphi 0, %s204
    %s208 = sphi 0, %s207
    %s224 = sphi 0, %s208
    %s230 = sphi 0, %s232
    %s233 = sphi 0, %s230
    %s234 = sphi 0, %s233
    %s250 = sphi 0, %s234
  $region4: #{fwd.2} parent=0 // loop_header_branch
    %19 = sbr.rel (%p17) target = $region8
  $region5: #{fwd.2} parent=0 // loop_body
    %s21 = ssub.s32 %s16, 1
    %s22 = ssub.s32 %s16, 2
    %s23 = sadd.s32 %s16, 1
    %s24 = ssub.s32 %s16, %s23
    %p25 = scmp.eq.s32.totalorder %s24, 0
    %s27 = sadd.s32 %s26, 1
    %s28 = scalar_select %p25, %s26, %s27
    %p31 = pneg %p25
    %p32 = scmp.eq.s32.totalorder %s16, 1
    %p33 = por %p31, %p32
    %p34 = scmp.ne.s32.totalorder %s26, %s29
    %p35 = scmp.eq.s32.totalorder %s16, 0
    %p36 = por %p34, %p35
    %p37 = scmp.ne.s32.totalorder %s26, %s29
    %p38 = scmp.eq.s32.totalorder %s21, 1
    %p39 = por %p37, %p38
    %p40 = scmp.ne.s32.totalorder %s29, %s30
    %p41 = scmp.eq.s32.totalorder %s21, 0
    %p42 = por %p40, %p41
    %p43 = scmp.ne.s32.totalorder %s29, %s30
    %p44 = scmp.eq.s32.totalorder %s22, 1
    %p45 = por %p43, %p44
    %p47 = scmp.ne.s32.totalorder %s30, %s46
    %p48 = scmp.eq.s32.totalorder %s22, 0
    %p49 = por %p47, %p48
    %s50 = ssub.s32 %s16, %s23
    %p51 = scmp.eq.s32.totalorder %s50, 0
    %s53 = sadd.s32 %s52, 1
    %s54 = scalar_select %p51, %s52, %s53
    %p57 = pneg %p51
    %p58 = scmp.eq.s32.totalorder %s16, 1
    %p59 = por %p57, %p58
    %p60 = scmp.ne.s32.totalorder %s52, %s55
    %p61 = scmp.eq.s32.totalorder %s16, 0
    %p62 = por %p60, %p61
    %p63 = scmp.ne.s32.totalorder %s52, %s55
    %p64 = scmp.eq.s32.totalorder %s21, 1
    %p65 = por %p63, %p64
    %p66 = scmp.ne.s32.totalorder %s55, %s56
    %p67 = scmp.eq.s32.totalorder %s21, 0
    %p68 = por %p66, %p67
    %p69 = scmp.ne.s32.totalorder %s55, %s56
    %p70 = scmp.eq.s32.totalorder %s22, 1
    %p71 = por %p69, %p70
    %p73 = scmp.ne.s32.totalorder %s56, %s72
    %p74 = scmp.eq.s32.totalorder %s22, 0
    %p75 = por %p73, %p74
    %s77 = sadd.s32 %s76, 1
    %p80 = scmp.eq.s32.totalorder %s16, 1
    %p81 = scmp.ne.s32.totalorder %s76, %s78
    %p82 = scmp.eq.s32.totalorder %s16, 0
    %p83 = por %p81, %p82
    %p84 = scmp.ne.s32.totalorder %s76, %s78
    %p85 = scmp.eq.s32.totalorder %s21, 1
    %p86 = por %p84, %p85
    %p87 = scmp.ne.s32.totalorder %s78, %s79
    %p88 = scmp.eq.s32.totalorder %s21, 0
    %p89 = por %p87, %p88
    %p90 = scmp.ne.s32.totalorder %s78, %s79
    %p91 = scmp.eq.s32.totalorder %s22, 1
    %p92 = por %p90, %p91
    %p94 = scmp.ne.s32.totalorder %s79, %s93
    %p95 = scmp.eq.s32.totalorder %s22, 0
    %p96 = por %p94, %p95
    %s98 = sadd.s32 %s97, 1
    %p101 = scmp.eq.s32.totalorder %s16, 1
    %p102 = scmp.ne.s32.totalorder %s97, %s99
    %p103 = scmp.eq.s32.totalorder %s16, 0
    %p104 = por %p102, %p103
    %p105 = scmp.ne.s32.totalorder %s97, %s99
    %p106 = scmp.eq.s32.totalorder %s21, 1
    %p107 = por %p105, %p106
    %p108 = scmp.ne.s32.totalorder %s99, %s100
    %p109 = scmp.eq.s32.totalorder %s21, 0
    %p110 = por %p108, %p109
    %p111 = scmp.ne.s32.totalorder %s99, %s100
    %p112 = scmp.eq.s32.totalorder %s22, 1
    %p113 = por %p111, %p112
    %p115 = scmp.ne.s32.totalorder %s100, %s114
    %p116 = scmp.eq.s32.totalorder %s22, 0
    %p117 = por %p115, %p116
    %s119 = sadd.s32 %s118, 1
    %p122 = scmp.eq.s32.totalorder %s16, 1
    %p123 = scmp.ne.s32.totalorder %s118, %s120
    %p124 = scmp.eq.s32.totalorder %s16, 0
    %p125 = por %p123, %p124
    %p126 = scmp.ne.s32.totalorder %s118, %s120
    %p127 = scmp.eq.s32.totalorder %s21, 1
    %p128 = por %p126, %p127
    %p129 = scmp.ne.s32.totalorder %s120, %s121
    %p130 = scmp.eq.s32.totalorder %s21, 0
    %p131 = por %p129, %p130
    %p132 = scmp.ne.s32.totalorder %s120, %s121
    %p133 = scmp.eq.s32.totalorder %s22, 1
    %p134 = por %p132, %p133
    %p136 = scmp.ne.s32.totalorder %s121, %s135
    %p137 = scmp.eq.s32.totalorder %s22, 0
    %p138 = por %p136, %p137
    %s140 = sadd.s32 %s139, 1
    %p143 = scmp.eq.s32.totalorder %s16, 1
    %p144 = scmp.ne.s32.totalorder %s139, %s141
    %p145 = scmp.eq.s32.totalorder %s16, 0
    %p146 = por %p144, %p145
    %p147 = scmp.ne.s32.totalorder %s139, %s141
    %p148 = scmp.eq.s32.totalorder %s21, 1
    %p149 = por %p147, %p148
    %p150 = scmp.ne.s32.totalorder %s141, %s142
    %p151 = scmp.eq.s32.totalorder %s21, 0
    %p152 = por %p150, %p151
    %p153 = scmp.ne.s32.totalorder %s141, %s142
    %p154 = scmp.eq.s32.totalorder %s22, 1
    %p155 = por %p153, %p154
    %p157 = scmp.ne.s32.totalorder %s142, %s156
    %p158 = scmp.eq.s32.totalorder %s22, 0
    %p159 = por %p157, %p158
    %s161 = sadd.s32 %s160, 1
    %p164 = scmp.eq.s32.totalorder %s16, 1
    %p165 = scmp.ne.s32.totalorder %s160, %s162
    %p166 = scmp.eq.s32.totalorder %s16, 0
    %p167 = por %p165, %p166
    %p168 = scmp.ne.s32.totalorder %s160, %s162
    %p169 = scmp.eq.s32.totalorder %s21, 1
    %p170 = por %p168, %p169
    %p171 = scmp.ne.s32.totalorder %s162, %s163
    %p172 = scmp.eq.s32.totalorder %s21, 0
    %p173 = por %p171, %p172
    %p174 = scmp.ne.s32.totalorder %s162, %s163
    %p175 = scmp.eq.s32.totalorder %s22, 1
    %p176 = por %p174, %p175
    %p178 = scmp.ne.s32.totalorder %s163, %s177
    %p179 = scmp.eq.s32.totalorder %s22, 0
    %p180 = por %p178, %p179
    %s182 = sadd.s32 %s181, 1
    %p185 = scmp.eq.s32.totalorder %s16, 1
    %p186 = scmp.ne.s32.totalorder %s181, %s183
    %p187 = scmp.eq.s32.totalorder %s16, 0
    %p188 = por %p186, %p187
    %p189 = scmp.ne.s32.totalorder %s181, %s183
    %p190 = scmp.eq.s32.totalorder %s21, 1
    %p191 = por %p189, %p190
    %p192 = scmp.ne.s32.totalorder %s183, %s184
    %p193 = scmp.eq.s32.totalorder %s21, 0
    %p194 = por %p192, %p193
    %p195 = scmp.ne.s32.totalorder %s183, %s184
    %p196 = scmp.eq.s32.totalorder %s22, 1
    %p197 = por %p195, %p196
    %p199 = scmp.ne.s32.totalorder %s184, %s198
    %p200 = scmp.eq.s32.totalorder %s22, 0
    %p201 = por %p199, %p200
    %s202 = ssub.s32 %s16, %s23
    %p203 = scmp.eq.s32.totalorder %s202, 0
    %s205 = sadd.s32 %s204, 1
    %s206 = scalar_select %p203, %s204, %s205
    %p209 = pneg %p203
    %p210 = scmp.eq.s32.totalorder %s16, 1
    %p211 = por %p209, %p210
    %p212 = scmp.ne.s32.totalorder %s204, %s207
    %p213 = scmp.eq.s32.totalorder %s16, 0
    %p214 = por %p212, %p213
    %p215 = scmp.ne.s32.totalorder %s204, %s207
    %p216 = scmp.eq.s32.totalorder %s21, 1
    %p217 = por %p215, %p216
    %p218 = scmp.ne.s32.totalorder %s207, %s208
    %p219 = scmp.eq.s32.totalorder %s21, 0
    %p220 = por %p218, %p219
    %p221 = scmp.ne.s32.totalorder %s207, %s208
    %p222 = scmp.eq.s32.totalorder %s22, 1
    %p223 = por %p221, %p222
    %p225 = scmp.ne.s32.totalorder %s208, %s224
    %p226 = scmp.eq.s32.totalorder %s22, 0
    %p227 = por %p225, %p226
    %s228 = ssub.s32 %s16, %s23
    %p229 = scmp.eq.s32.totalorder %s228, 0
    %s231 = sadd.s32 %s230, 1
    %s232 = scalar_select %p229, %s230, %s231
    %p235 = pneg %p229
    %p236 = scmp.eq.s32.totalorder %s16, 1
    %p237 = por %p235, %p236
    %p238 = scmp.ne.s32.totalorder %s230, %s233
    %p239 = scmp.eq.s32.totalorder %s16, 0
    %p240 = por %p238, %p239
    %p241 = scmp.ne.s32.totalorder %s230, %s233
    %p242 = scmp.eq.s32.totalorder %s21, 1
    %p243 = por %p241, %p242
    %p244 = scmp.ne.s32.totalorder %s233, %s234
    %p245 = scmp.eq.s32.totalorder %s21, 0
    %p246 = por %p244, %p245
    %p247 = scmp.ne.s32.totalorder %s233, %s234
    %p248 = scmp.eq.s32.totalorder %s22, 1
    %p249 = por %p247, %p248
    %p251 = scmp.ne.s32.totalorder %s234, %s250
    %p252 = scmp.eq.s32.totalorder %s22, 0
    %p253 = por %p251, %p252
    %p254 = scmp.le.s32.totalorder 1, %s16
    %p255 = scmp.lt.s32.totalorder %s16, 3
    %p256 = pnand %p254, %p255
    %p257 = pneg %p256
    // Predicated region
    $region9: #{fwd.2} parent=5 // pred_check
      _
    $region10: #{fwd.2} parent=5 // pred_check_branch
      %259 = sbr.rel (%p256) target = $region12
    $region11: #{fwd.2} parent=5 // pred_region
      %s260 = ssub.s32 %s16, 1
      // Predicated region
      $region13: #{fwd.2} parent=11 // pred_check
        %p261 = pneg %p89
      $region14: #{fwd.2} parent=11 // pred_check_branch
        %263 = sbr.rel (%p261) target = $region16
      $region15: #{fwd.2} parent=11 // pred_region
        _
      $region16: #{fwd.2} parent=11 // pred_fallthru
        _
      // Predicated region
      $region17: #{fwd.2} parent=11 // pred_check
        %p264 = pneg %p110
      $region18: #{fwd.2} parent=11 // pred_check_branch
        %266 = sbr.rel (%p264) target = $region20
      $region19: #{fwd.2} parent=11 // pred_region
        _
      $region20: #{fwd.2} parent=11 // pred_fallthru
        _
      // Predicated region
      $region21: #{fwd.2} parent=11 // pred_check
        %p267 = pneg %p131
      $region22: #{fwd.2} parent=11 // pred_check_branch
        %269 = sbr.rel (%p267) target = $region24
      $region23: #{fwd.2} parent=11 // pred_region
        _
      $region24: #{fwd.2} parent=11 // pred_fallthru
        _
      // Predicated region
      $region25: #{fwd.2} parent=11 // pred_check
        %p270 = pneg %p152
      $region26: #{fwd.2} parent=11 // pred_check_branch
        %272 = sbr.rel (%p270) target = $region28
      $region27: #{fwd.2} parent=11 // pred_region
        _
      $region28: #{fwd.2} parent=11 // pred_fallthru
        _
      // Predicated region
      $region29: #{fwd.2} parent=11 // pred_check
        %p273 = pneg %p173
      $region30: #{fwd.2} parent=11 // pred_check_branch
        %275 = sbr.rel (%p273) target = $region32
      $region31: #{fwd.2} parent=11 // pred_region
        _
      $region32: #{fwd.2} parent=11 // pred_fallthru
        _
      // Predicated region
      $region33: #{fwd.2} parent=11 // pred_check
        %p276 = pneg %p194
      $region34: #{fwd.2} parent=11 // pred_check_branch
        %278 = sbr.rel (%p276) target = $region36
      $region35: #{fwd.2} parent=11 // pred_region
        _
      $region36: #{fwd.2} parent=11 // pred_fallthru
        _
    $region12: #{fwd.2} parent=5 // pred_fallthru
      _
    %p279 = scmp.lt.s32.totalorder %s16, 2
    // Predicated region
    $region37: #{fwd.2} parent=5 // pred_check
      %p280 = pneg %p279
    $region38: #{fwd.2} parent=5 // pred_check_branch
      %282 = sbr.rel (%p280) target = $region40
    $region39: #{fwd.2} parent=5 // pred_region
      // Predicated region
      $region41: #{fwd.2} parent=39 // pred_check
        %p283 = pneg %p36
      $region42: #{fwd.2} parent=39 // pred_check_branch
        %285 = sbr.rel (%p283) target = $region44
      $region43: #{fwd.2} parent=39 // pred_region
        %p286 = scmp.lt.s32.totalorder %s16, 1
        %s287 = scalar_select %p286, %s16, 1
        %s288 = smul.addr %s287, 72
        %s289 = smul.addr %s288, 8
        %s290 = scalar_lea.vmem %s0, %s289
      $region44: #{fwd.2} parent=39 // pred_fallthru
        _
      // Predicated region
      $region45: #{fwd.2} parent=39 // pred_check
        %p291 = pneg %p62
      $region46: #{fwd.2} parent=39 // pred_check_branch
        %293 = sbr.rel (%p291) target = $region48
      $region47: #{fwd.2} parent=39 // pred_region
        %p294 = scmp.lt.s32.totalorder %s16, 1
        %s295 = scalar_select %p294, %s16, 1
        %s296 = smul.addr %s295, 96
        %s297 = smul.addr %s296, 8
        %s298 = scalar_lea.vmem %s1, %s297
      $region48: #{fwd.2} parent=39 // pred_fallthru
        _
    $region40: #{fwd.2} parent=5 // pred_fallthru
      _
    %p299 = scmp.le.s32.totalorder 1, %s16
    %p300 = scmp.lt.s32.totalorder %s16, 3
    %p301 = pnand %p299, %p300
    %p302 = pneg %p301
    // Predicated region
    $region49: #{fwd.2} parent=5 // pred_check
      _
    $region50: #{fwd.2} parent=5 // pred_check_branch
      %304 = sbr.rel (%p301) target = $region52
    $region51: #{fwd.2} parent=5 // pred_region
      %s305 = ssub.s32 %s16, 1
      %p306 = scmp.lt.s32.totalorder %s21, 1
      %s307 = scalar_select %p306, %s21, 1
      %s308 = smul.addr %s307, 72
      %s309 = smul.addr %s308, 8
      %s310 = scalar_lea.vmem %s0, %s309
      %p311 = pneg %p42
      %p312 = pneg %p39
      %p313 = scmp.lt.s32.totalorder %s21, 1
      %s314 = scalar_select %p313, %s21, 1
      %s315 = smul.addr %s314, 96
      %s316 = smul.addr %s315, 8
      %s317 = scalar_lea.vmem %s1, %s316
      %p318 = pneg %p68
      %p319 = pneg %p65
      %p320 = pneg %p89
      %p321 = pneg %p86
      %p322 = pneg %p110
      %p323 = pneg %p107
      %p324 = pneg %p131
      %p325 = pneg %p128
      %p326 = pneg %p152
      %p327 = pneg %p149
      %p328 = pneg %p173
      %p329 = pneg %p170
      %p330 = pneg %p194
      %p331 = pneg %p191
      %p332 = pneg %p220
      %p333 = pneg %p217
      %p334 = scmp.lt.s32.totalorder %s21, 1
      %s335 = scalar_select %p334, %s21, 1
      %s336 = smul.addr %s335, 32
      %s337 = smul.addr %s336, 4
      %s338 = scalar_lea.vmem %s8, %s337
      %p339 = pneg %p246
      %p340 = pneg %p243
      %p341 = scmp.lt.s32.totalorder %s21, 1
      %s342 = scalar_select %p341, %s21, 1
      %s343 = smul.addr %s342, 24
      %s344 = smul.addr %s343, 4
      %s345 = scalar_lea.vmem %s9, %s344
      %p346 = scmp.lt.s32.totalorder %s21, 1
      %s347 = scalar_select %p346, %s21, 1
      %s348 = smul.addr %s347, 72
      %s349 = smul.addr %s348, 8
      %s350 = scalar_lea.vmem %s0, %s349
      %p351 = scmp.lt.s32.totalorder %s21, 1
      %s352 = scalar_select %p351, %s21, 1
      %s353 = smul.addr %s352, 96
      %s354 = smul.addr %s353, 8
      %s355 = scalar_lea.vmem %s1, %s354
      %p356 = scmp.lt.s32.totalorder %s21, 1
      %s357 = scalar_select %p356, %s21, 1
      %s358 = smul.addr %s357, 32
      %s359 = smul.addr %s358, 4
      %s360 = scalar_lea.vmem %s8, %s359
      %p361 = scmp.lt.s32.totalorder %s21, 1
      %s362 = scalar_select %p361, %s21, 1
      %s363 = smul.addr %s362, 24
      %s364 = smul.addr %s363, 4
      %s365 = scalar_lea.vmem %s9, %s364
      %v367 = vld [vmem:[%s350 + $0x4b] sm:$0xff]
      %v368 = vld [vmem:[%s350 + $0x53] sm:$0xff]
      %v369 = vld [vmem:[%s350 + $0x63] sm:$0xff]
      %v370 = vld [vmem:[%s350 + $0x6b] sm:$0xff]
      %v371 = vld [vmem:[%s350 + $0x7b] sm:$0xff]
      %v372 = vld [vmem:[%s350 + $0x83] sm:$0xff]
      %v373 = vld [vmem:[%s350 + $0x93] sm:$0xff]
      %v374 = vld [vmem:[%s350 + $0x9b] sm:$0xff]
      %v375 = vld [vmem:[%s350 + $0xab] sm:$0xff]
      %v376 = vld [vmem:[%s350 + $0xb3] sm:$0xff]
      %v377 = vld [vmem:[%s350 + $0xc3] sm:$0xff]
      %v378 = vld [vmem:[%s350 + $0xcb] sm:$0xff]
      %v379 = vld [vmem:[%s350 + $0xdb] sm:$0xff]
      %v380 = vld [vmem:[%s350 + $0xe3] sm:$0xff]
      %v381 = vld [vmem:[%s350 + $0xf3] sm:$0xff]
      %v382 = vld [vmem:[%s350 + $0xfb] sm:$0xff]
      %v383 = vld [vmem:[%s350 + $0x10b] sm:$0xff]
      %v384 = vld [vmem:[%s350 + $0x113] sm:$0xff]
      %v385 = vld [vmem:[%s350 + $0x123] sm:$0xff]
      %v386 = vld [vmem:[%s350 + $0x12b] sm:$0xff]
      %v387 = vld [vmem:[%s350 + $0x13b] sm:$0xff]
      %v388 = vld [vmem:[%s350 + $0x143] sm:$0xff]
      %v389 = vld [vmem:[%s350 + $0x153] sm:$0xff]
      %v390 = vld [vmem:[%s350 + $0x15b] sm:$0xff]
      %v391 = vld [vmem:[%s350 + $0x16b] sm:$0xff]
      %v392 = vld [vmem:[%s350 + $0x173] sm:$0xff]
      %v393 = vld [vmem:[%s350 + $0x183] sm:$0xff]
      %v394 = vld [vmem:[%s350 + $0x18b] sm:$0xff]
      %v395 = vld [vmem:[%s350 + $0x19b] sm:$0xff]
      %v396 = vld [vmem:[%s350 + $0x1a3] sm:$0xff]
      %v397 = vld [vmem:[%s350 + $0x1b3] sm:$0xff]
      %v398 = vld [vmem:[%s350 + $0x1bb] sm:$0xff]
      %v399 = vld [vmem:[%s350 + $0x1cb] sm:$0xff]
      %v400 = vld [vmem:[%s350 + $0x1d3] sm:$0xff]
      %v401 = vld [vmem:[%s350 + $0x1e3] sm:$0xff]
      %v402 = vld [vmem:[%s350 + $0x1eb] sm:$0xff]
      %v403 = vld [vmem:[%s2] sm:$0x1]
      %v404 = vlaneseq
      %v405 = vshrl.u32 %v404, 7
      %v406 = vsub.s32 0, %v405
      %v407 = vrot.slane %v403, %v406
      %v408 = vmul.f32 %v367, %v407
      %v409 = vmul.f32 %v368, %v407
      %v410 = vmul.f32 %v369, %v407
      %v411 = vmul.f32 %v370, %v407
      %v412 = vmul.f32 %v371, %v407
      %v413 = vmul.f32 %v372, %v407
      %v414 = vmul.f32 %v373, %v407
      %v415 = vmul.f32 %v374, %v407
      %v416 = vmul.f32 %v375, %v407
      %v417 = vmul.f32 %v376, %v407
      %v418 = vmul.f32 %v377, %v407
      %v419 = vmul.f32 %v378, %v407
      %v420 = vmul.f32 %v379, %v407
      %v421 = vmul.f32 %v380, %v407
      %v422 = vmul.f32 %v381, %v407
      %v423 = vmul.f32 %v382, %v407
      %v424 = vmul.f32 %v383, %v407
      %v425 = vmul.f32 %v384, %v407
      %v426 = vmul.f32 %v385, %v407
      %v427 = vmul.f32 %v386, %v407
      %v428 = vmul.f32 %v387, %v407
      %v429 = vmul.f32 %v388, %v407
      %v430 = vmul.f32 %v389, %v407
      %v431 = vmul.f32 %v390, %v407
      %v432 = vmul.f32 %v391, %v407
      %v433 = vmul.f32 %v392, %v407
      %v434 = vmul.f32 %v393, %v407
      %v435 = vmul.f32 %v394, %v407
      %v436 = vmul.f32 %v395, %v407
      %v437 = vmul.f32 %v396, %v407
      %v438 = vmul.f32 %v397, %v407
      %v439 = vmul.f32 %v398, %v407
      %v440 = vadd.f32 %v408, 0.0
      %v441 = vadd.f32 %v409, 0.0
      %v442 = vadd.f32 %v410, 0.0
      %v443 = vadd.f32 %v411, 0.0
      %v444 = vadd.f32 %v412, 0.0
      %v445 = vadd.f32 %v413, 0.0
      %v446 = vadd.f32 %v414, 0.0
      %v447 = vadd.f32 %v415, 0.0
      %v448 = vadd.f32 %v416, 0.0
      %v449 = vadd.f32 %v417, 0.0
      %v450 = vadd.f32 %v418, 0.0
      %v451 = vadd.f32 %v419, 0.0
      %v452 = vadd.f32 %v420, 0.0
      %v453 = vadd.f32 %v421, 0.0
      %v454 = vadd.f32 %v422, 0.0
      %v455 = vadd.f32 %v423, 0.0
      %v456 = vadd.f32 %v424, 0.0
      %v457 = vadd.f32 %v425, 0.0
      %v458 = vadd.f32 %v426, 0.0
      %v459 = vadd.f32 %v427, 0.0
      %v460 = vadd.f32 %v428, 0.0
      %v461 = vadd.f32 %v429, 0.0
      %v462 = vadd.f32 %v430, 0.0
      %v463 = vadd.f32 %v431, 0.0
      %v464 = vadd.f32 %v432, 0.0
      %v465 = vadd.f32 %v433, 0.0
      %v466 = vadd.f32 %v434, 0.0
      %v467 = vadd.f32 %v435, 0.0
      %v468 = vadd.f32 %v436, 0.0
      %v469 = vadd.f32 %v437, 0.0
      %v470 = vadd.f32 %v438, 0.0
      %v471 = vadd.f32 %v439, 0.0
      %v472 = vld [vmem:[%s2 + $0x3] sm:$0x1]
      %v473 = vlaneseq
      %v474 = vshrl.u32 %v473, 7
      %v475 = vsub.s32 0, %v474
      %v476 = vrot.slane %v472, %v475
      %v477 = vmul.f32 %v369, %v476
      %v478 = vmul.f32 %v370, %v476
      %v479 = vmul.f32 %v371, %v476
      %v480 = vmul.f32 %v372, %v476
      %v481 = vmul.f32 %v373, %v476
      %v482 = vmul.f32 %v374, %v476
      %v483 = vmul.f32 %v375, %v476
      %v484 = vmul.f32 %v376, %v476
      %v485 = vmul.f32 %v377, %v476
      %v486 = vmul.f32 %v378, %v476
      %v487 = vmul.f32 %v379, %v476
      %v488 = vmul.f32 %v380, %v476
      %v489 = vmul.f32 %v381, %v476
      %v490 = vmul.f32 %v382, %v476
      %v491 = vmul.f32 %v383, %v476
      %v492 = vmul.f32 %v384, %v476
      %v493 = vmul.f32 %v385, %v476
      %v494 = vmul.f32 %v386, %v476
      %v495 = vmul.f32 %v387, %v476
      %v496 = vmul.f32 %v388, %v476
      %v497 = vmul.f32 %v389, %v476
      %v498 = vmul.f32 %v390, %v476
      %v499 = vmul.f32 %v391, %v476
      %v500 = vmul.f32 %v392, %v476
      %v501 = vmul.f32 %v393, %v476
      %v502 = vmul.f32 %v394, %v476
      %v503 = vmul.f32 %v395, %v476
      %v504 = vmul.f32 %v396, %v476
      %v505 = vmul.f32 %v397, %v476
      %v506 = vmul.f32 %v398, %v476
      %v507 = vmul.f32 %v399, %v476
      %v508 = vmul.f32 %v400, %v476
      %v509 = vadd.f32 %v440, %v477
      %v510 = vadd.f32 %v441, %v478
      %v511 = vadd.f32 %v442, %v479
      %v512 = vadd.f32 %v443, %v480
      %v513 = vadd.f32 %v444, %v481
      %v514 = vadd.f32 %v445, %v482
      %v515 = vadd.f32 %v446, %v483
      %v516 = vadd.f32 %v447, %v484
      %v517 = vadd.f32 %v448, %v485
      %v518 = vadd.f32 %v449, %v486
      %v519 = vadd.f32 %v450, %v487
      %v520 = vadd.f32 %v451, %v488
      %v521 = vadd.f32 %v452, %v489
      %v522 = vadd.f32 %v453, %v490
      %v523 = vadd.f32 %v454, %v491
      %v524 = vadd.f32 %v455, %v492
      %v525 = vadd.f32 %v456, %v493
      %v526 = vadd.f32 %v457, %v494
      %v527 = vadd.f32 %v458, %v495
      %v528 = vadd.f32 %v459, %v496
      %v529 = vadd.f32 %v460, %v497
      %v530 = vadd.f32 %v461, %v498
      %v531 = vadd.f32 %v462, %v499
      %v532 = vadd.f32 %v463, %v500
      %v533 = vadd.f32 %v464, %v501
      %v534 = vadd.f32 %v465, %v502
      %v535 = vadd.f32 %v466, %v503
      %v536 = vadd.f32 %v467, %v504
      %v537 = vadd.f32 %v468, %v505
      %v538 = vadd.f32 %v469, %v506
      %v539 = vadd.f32 %v470, %v507
      %v540 = vadd.f32 %v471, %v508
      %v541 = vld [vmem:[%s2 + $0x6] sm:$0x1]
      %v542 = vlaneseq
      %v543 = vshrl.u32 %v542, 7
      %v544 = vsub.s32 0, %v543
      %v545 = vrot.slane %v541, %v544
      %v546 = vmul.f32 %v371, %v545
      %v547 = vmul.f32 %v372, %v545
      %v548 = vmul.f32 %v373, %v545
      %v549 = vmul.f32 %v374, %v545
      %v550 = vmul.f32 %v375, %v545
      %v551 = vmul.f32 %v376, %v545
      %v552 = vmul.f32 %v377, %v545
      %v553 = vmul.f32 %v378, %v545
      %v554 = vmul.f32 %v379, %v545
      %v555 = vmul.f32 %v380, %v545
      %v556 = vmul.f32 %v381, %v545
      %v557 = vmul.f32 %v382, %v545
      %v558 = vmul.f32 %v383, %v545
      %v559 = vmul.f32 %v384, %v545
      %v560 = vmul.f32 %v385, %v545
      %v561 = vmul.f32 %v386, %v545
      %v562 = vmul.f32 %v387, %v545
      %v563 = vmul.f32 %v388, %v545
      %v564 = vmul.f32 %v389, %v545
      %v565 = vmul.f32 %v390, %v545
      %v566 = vmul.f32 %v391, %v545
      %v567 = vmul.f32 %v392, %v545
      %v568 = vmul.f32 %v393, %v545
      %v569 = vmul.f32 %v394, %v545
      %v570 = vmul.f32 %v395, %v545
      %v571 = vmul.f32 %v396, %v545
      %v572 = vmul.f32 %v397, %v545
      %v573 = vmul.f32 %v398, %v545
      %v574 = vmul.f32 %v399, %v545
      %v575 = vmul.f32 %v400, %v545
      %v576 = vmul.f32 %v401, %v545
      %v577 = vmul.f32 %v402, %v545
      %v578 = vadd.f32 %v509, %v546
      %v579 = vadd.f32 %v510, %v547
      %v580 = vadd.f32 %v511, %v548
      %v581 = vadd.f32 %v512, %v549
      %v582 = vadd.f32 %v513, %v550
      %v583 = vadd.f32 %v514, %v551
      %v584 = vadd.f32 %v515, %v552
      %v585 = vadd.f32 %v516, %v553
      %v586 = vadd.f32 %v517, %v554
      %v587 = vadd.f32 %v518, %v555
      %v588 = vadd.f32 %v519, %v556
      %v589 = vadd.f32 %v520, %v557
      %v590 = vadd.f32 %v521, %v558
      %v591 = vadd.f32 %v522, %v559
      %v592 = vadd.f32 %v523, %v560
      %v593 = vadd.f32 %v524, %v561
      %v594 = vadd.f32 %v525, %v562
      %v595 = vadd.f32 %v526, %v563
      %v596 = vadd.f32 %v527, %v564
      %v597 = vadd.f32 %v528, %v565
      %v598 = vadd.f32 %v529, %v566
      %v599 = vadd.f32 %v530, %v567
      %v600 = vadd.f32 %v531, %v568
      %v601 = vadd.f32 %v532, %v569
      %v602 = vadd.f32 %v533, %v570
      %v603 = vadd.f32 %v534, %v571
      %v604 = vadd.f32 %v535, %v572
      %v605 = vadd.f32 %v536, %v573
      %v606 = vadd.f32 %v537, %v574
      %v607 = vadd.f32 %v538, %v575
      %v608 = vadd.f32 %v539, %v576
      %v609 = vadd.f32 %v540, %v577
      %v610 = vld [vmem:[%s350 + $0x4] sm:$0xff]
      %v611 = vld [vmem:[%s350 + $0xc] sm:$0xff]
      %v612 = vld [vmem:[%s350 + $0x1c] sm:$0xff]
      %v613 = vld [vmem:[%s350 + $0x24] sm:$0xff]
      %v614 = vld [vmem:[%s350 + $0x34] sm:$0xff]
      %v615 = vld [vmem:[%s350 + $0x3c] sm:$0xff]
      %v616 = vld [vmem:[%s350 + $0x4c] sm:$0xff]
      %v617 = vld [vmem:[%s350 + $0x54] sm:$0xff]
      %v618 = vld [vmem:[%s350 + $0x64] sm:$0xff]
      %v619 = vld [vmem:[%s350 + $0x6c] sm:$0xff]
      %v620 = vld [vmem:[%s350 + $0x7c] sm:$0xff]
      %v621 = vld [vmem:[%s350 + $0x84] sm:$0xff]
      %v622 = vld [vmem:[%s350 + $0x94] sm:$0xff]
      %v623 = vld [vmem:[%s350 + $0x9c] sm:$0xff]
      %v624 = vld [vmem:[%s350 + $0xac] sm:$0xff]
      %v625 = vld [vmem:[%s350 + $0xb4] sm:$0xff]
      %v626 = vld [vmem:[%s350 + $0xc4] sm:$0xff]
      %v627 = vld [vmem:[%s350 + $0xcc] sm:$0xff]
      %v628 = vld [vmem:[%s350 + $0xdc] sm:$0xff]
      %v629 = vld [vmem:[%s350 + $0xe4] sm:$0xff]
      %v630 = vld [vmem:[%s350 + $0xf4] sm:$0xff]
      %v631 = vld [vmem:[%s350 + $0xfc] sm:$0xff]
      %v632 = vld [vmem:[%s350 + $0x10c] sm:$0xff]
      %v633 = vld [vmem:[%s350 + $0x114] sm:$0xff]
      %v634 = vld [vmem:[%s350 + $0x124] sm:$0xff]
      %v635 = vld [vmem:[%s350 + $0x12c] sm:$0xff]
      %v636 = vld [vmem:[%s350 + $0x13c] sm:$0xff]
      %v637 = vld [vmem:[%s350 + $0x144] sm:$0xff]
      %v638 = vld [vmem:[%s350 + $0x154] sm:$0xff]
      %v639 = vld [vmem:[%s350 + $0x15c] sm:$0xff]
      %v640 = vld [vmem:[%s350 + $0x16c] sm:$0xff]
      %v641 = vld [vmem:[%s350 + $0x174] sm:$0xff]
      %v642 = vld [vmem:[%s350 + $0x184] sm:$0xff]
      %v643 = vld [vmem:[%s350 + $0x18c] sm:$0xff]
      %v644 = vld [vmem:[%s350 + $0x19c] sm:$0xff]
      %v645 = vld [vmem:[%s350 + $0x1a4] sm:$0xff]
      %v646 = vld [vmem:[%s350 + $0x1b4] sm:$0xff]
      %v647 = vld [vmem:[%s350 + $0x1bc] sm:$0xff]
      %v648 = vld [vmem:[%s350 + $0x1cc] sm:$0xff]
      %v649 = vld [vmem:[%s350 + $0x1d4] sm:$0xff]
      %v650 = vld [vmem:[%s350 + $0x1e4] sm:$0xff]
      %v651 = vld [vmem:[%s350 + $0x1ec] sm:$0xff]
      %v652 = vld [vmem:[%s350 + $0x1fc] sm:$0xff]
      %v653 = vld [vmem:[%s350 + $0x204] sm:$0xff]
      %v654 = vld [vmem:[%s350 + $0x214] sm:$0xff]
      %v655 = vld [vmem:[%s350 + $0x21c] sm:$0xff]
      %v656 = vld [vmem:[%s350 + $0x22c] sm:$0xff]
      %v657 = vld [vmem:[%s350 + $0x234] sm:$0xff]
      %v658 = vld [vmem:[%s2 + $0x1] sm:$0x1]
      %v659 = vlaneseq
      %v660 = vshrl.u32 %v659, 7
      %v661 = vsub.s32 0, %v660
      %v662 = vrot.slane %v658, %v661
      %v663 = vmul.f32 %v616, %v662
      %v664 = vmul.f32 %v617, %v662
      %v665 = vmul.f32 %v618, %v662
      %v666 = vmul.f32 %v619, %v662
      %v667 = vmul.f32 %v620, %v662
      %v668 = vmul.f32 %v621, %v662
      %v669 = vmul.f32 %v622, %v662
      %v670 = vmul.f32 %v623, %v662
      %v671 = vmul.f32 %v624, %v662
      %v672 = vmul.f32 %v625, %v662
      %v673 = vmul.f32 %v626, %v662
      %v674 = vmul.f32 %v627, %v662
      %v675 = vmul.f32 %v628, %v662
      %v676 = vmul.f32 %v629, %v662
      %v677 = vmul.f32 %v630, %v662
      %v678 = vmul.f32 %v631, %v662
      %v679 = vmul.f32 %v632, %v662
      %v680 = vmul.f32 %v633, %v662
      %v681 = vmul.f32 %v634, %v662
      %v682 = vmul.f32 %v635, %v662
      %v683 = vmul.f32 %v636, %v662
      %v684 = vmul.f32 %v637, %v662
      %v685 = vmul.f32 %v638, %v662
      %v686 = vmul.f32 %v639, %v662
      %v687 = vmul.f32 %v640, %v662
      %v688 = vmul.f32 %v641, %v662
      %v689 = vmul.f32 %v642, %v662
      %v690 = vmul.f32 %v643, %v662
      %v691 = vmul.f32 %v644, %v662
      %v692 = vmul.f32 %v645, %v662
      %v693 = vmul.f32 %v646, %v662
      %v694 = vmul.f32 %v647, %v662
      %v695 = vadd.f32 %v578, %v663
      %v696 = vadd.f32 %v579, %v664
      %v697 = vadd.f32 %v580, %v665
      %v698 = vadd.f32 %v581, %v666
      %v699 = vadd.f32 %v582, %v667
      %v700 = vadd.f32 %v583, %v668
      %v701 = vadd.f32 %v584, %v669
      %v702 = vadd.f32 %v585, %v670
      %v703 = vadd.f32 %v586, %v671
      %v704 = vadd.f32 %v587, %v672
      %v705 = vadd.f32 %v588, %v673
      %v706 = vadd.f32 %v589, %v674
      %v707 = vadd.f32 %v590, %v675
      %v708 = vadd.f32 %v591, %v676
      %v709 = vadd.f32 %v592, %v677
      %v710 = vadd.f32 %v593, %v678
      %v711 = vadd.f32 %v594, %v679
      %v712 = vadd.f32 %v595, %v680
      %v713 = vadd.f32 %v596, %v681
      %v714 = vadd.f32 %v597, %v682
      %v715 = vadd.f32 %v598, %v683
      %v716 = vadd.f32 %v599, %v684
      %v717 = vadd.f32 %v600, %v685
      %v718 = vadd.f32 %v601, %v686
      %v719 = vadd.f32 %v602, %v687
      %v720 = vadd.f32 %v603, %v688
      %v721 = vadd.f32 %v604, %v689
      %v722 = vadd.f32 %v605, %v690
      %v723 = vadd.f32 %v606, %v691
      %v724 = vadd.f32 %v607, %v692
      %v725 = vadd.f32 %v608, %v693
      %v726 = vadd.f32 %v609, %v694
      %v727 = vld [vmem:[%s2 + $0x4] sm:$0x1]
      %v728 = vlaneseq
      %v729 = vshrl.u32 %v728, 7
      %v730 = vsub.s32 0, %v729
      %v731 = vrot.slane %v727, %v730
      %v732 = vmul.f32 %v618, %v731
      %v733 = vmul.f32 %v619, %v731
      %v734 = vmul.f32 %v620, %v731
      %v735 = vmul.f32 %v621, %v731
      %v736 = vmul.f32 %v622, %v731
      %v737 = vmul.f32 %v623, %v731
      %v738 = vmul.f32 %v624, %v731
      %v739 = vmul.f32 %v625, %v731
      %v740 = vmul.f32 %v626, %v731
      %v741 = vmul.f32 %v627, %v731
      %v742 = vmul.f32 %v628, %v731
      %v743 = vmul.f32 %v629, %v731
      %v744 = vmul.f32 %v630, %v731
      %v745 = vmul.f32 %v631, %v731
      %v746 = vmul.f32 %v632, %v731
      %v747 = vmul.f32 %v633, %v731
      %v748 = vmul.f32 %v634, %v731
      %v749 = vmul.f32 %v635, %v731
      %v750 = vmul.f32 %v636, %v731
      %v751 = vmul.f32 %v637, %v731
      %v752 = vmul.f32 %v638, %v731
      %v753 = vmul.f32 %v639, %v731
      %v754 = vmul.f32 %v640, %v731
      %v755 = vmul.f32 %v641, %v731
      %v756 = vmul.f32 %v642, %v731
      %v757 = vmul.f32 %v643, %v731
      %v758 = vmul.f32 %v644, %v731
      %v759 = vmul.f32 %v645, %v731
      %v760 = vmul.f32 %v646, %v731
      %v761 = vmul.f32 %v647, %v731
      %v762 = vmul.f32 %v648, %v731
      %v763 = vmul.f32 %v649, %v731
      %v764 = vadd.f32 %v695, %v732
      %v765 = vadd.f32 %v696, %v733
      %v766 = vadd.f32 %v697, %v734
      %v767 = vadd.f32 %v698, %v735
      %v768 = vadd.f32 %v699, %v736
      %v769 = vadd.f32 %v700, %v737
      %v770 = vadd.f32 %v701, %v738
      %v771 = vadd.f32 %v702, %v739
      %v772 = vadd.f32 %v703, %v740
      %v773 = vadd.f32 %v704, %v741
      %v774 = vadd.f32 %v705, %v742
      %v775 = vadd.f32 %v706, %v743
      %v776 = vadd.f32 %v707, %v744
      %v777 = vadd.f32 %v708, %v745
      %v778 = vadd.f32 %v709, %v746
      %v779 = vadd.f32 %v710, %v747
      %v780 = vadd.f32 %v711, %v748
      %v781 = vadd.f32 %v712, %v749
      %v782 = vadd.f32 %v713, %v750
      %v783 = vadd.f32 %v714, %v751
      %v784 = vadd.f32 %v715, %v752
      %v785 = vadd.f32 %v716, %v753
      %v786 = vadd.f32 %v717, %v754
      %v787 = vadd.f32 %v718, %v755
      %v788 = vadd.f32 %v719, %v756
      %v789 = vadd.f32 %v720, %v757
      %v790 = vadd.f32 %v721, %v758
      %v791 = vadd.f32 %v722, %v759
      %v792 = vadd.f32 %v723, %v760
      %v793 = vadd.f32 %v724, %v761
      %v794 = vadd.f32 %v725, %v762
      %v795 = vadd.f32 %v726, %v763
      %v796 = vld [vmem:[%s2 + $0x7] sm:$0x1]
      %v797 = vlaneseq
      %v798 = vshrl.u32 %v797, 7
      %v799 = vsub.s32 0, %v798
      %v800 = vrot.slane %v796, %v799
      %v801 = vmul.f32 %v620, %v800
      %v802 = vmul.f32 %v621, %v800
      %v803 = vmul.f32 %v622, %v800
      %v804 = vmul.f32 %v623, %v800
      %v805 = vmul.f32 %v624, %v800
      %v806 = vmul.f32 %v625, %v800
      %v807 = vmul.f32 %v626, %v800
      %v808 = vmul.f32 %v627, %v800
      %v809 = vmul.f32 %v628, %v800
      %v810 = vmul.f32 %v629, %v800
      %v811 = vmul.f32 %v630, %v800
      %v812 = vmul.f32 %v631, %v800
      %v813 = vmul.f32 %v632, %v800
      %v814 = vmul.f32 %v633, %v800
      %v815 = vmul.f32 %v634, %v800
      %v816 = vmul.f32 %v635, %v800
      %v817 = vmul.f32 %v636, %v800
      %v818 = vmul.f32 %v637, %v800
      %v819 = vmul.f32 %v638, %v800
      %v820 = vmul.f32 %v639, %v800
      %v821 = vmul.f32 %v640, %v800
      %v822 = vmul.f32 %v641, %v800
      %v823 = vmul.f32 %v642, %v800
      %v824 = vmul.f32 %v643, %v800
      %v825 = vmul.f32 %v644, %v800
      %v826 = vmul.f32 %v645, %v800
      %v827 = vmul.f32 %v646, %v800
      %v828 = vmul.f32 %v647, %v800
      %v829 = vmul.f32 %v648, %v800
      %v830 = vmul.f32 %v649, %v800
      %v831 = vmul.f32 %v650, %v800
      %v832 = vmul.f32 %v651, %v800
      %v833 = vadd.f32 %v764, %v801
      %v834 = vadd.f32 %v765, %v802
      %v835 = vadd.f32 %v766, %v803
      %v836 = vadd.f32 %v767, %v804
      %v837 = vadd.f32 %v768, %v805
      %v838 = vadd.f32 %v769, %v806
      %v839 = vadd.f32 %v770, %v807
      %v840 = vadd.f32 %v771, %v808
      %v841 = vadd.f32 %v772, %v809
      %v842 = vadd.f32 %v773, %v810
      %v843 = vadd.f32 %v774, %v811
      %v844 = vadd.f32 %v775, %v812
      %v845 = vadd.f32 %v776, %v813
      %v846 = vadd.f32 %v777, %v814
      %v847 = vadd.f32 %v778, %v815
      %v848 = vadd.f32 %v779, %v816
      %v849 = vadd.f32 %v780, %v817
      %v850 = vadd.f32 %v781, %v818
      %v851 = vadd.f32 %v782, %v819
      %v852 = vadd.f32 %v783, %v820
      %v853 = vadd.f32 %v784, %v821
      %v854 = vadd.f32 %v785, %v822
      %v855 = vadd.f32 %v786, %v823
      %v856 = vadd.f32 %v787, %v824
      %v857 = vadd.f32 %v788, %v825
      %v858 = vadd.f32 %v789, %v826
      %v859 = vadd.f32 %v790, %v827
      %v860 = vadd.f32 %v791, %v828
      %v861 = vadd.f32 %v792, %v829
      %v862 = vadd.f32 %v793, %v830
      %v863 = vadd.f32 %v794, %v831
      %v864 = vadd.f32 %v795, %v832
      %v865 = vld [vmem:[%s350 + $0x4d] sm:$0xff]
      %v866 = vld [vmem:[%s350 + $0x55] sm:$0xff]
      %v867 = vld [vmem:[%s350 + $0x65] sm:$0xff]
      %v868 = vld [vmem:[%s350 + $0x6d] sm:$0xff]
      %v869 = vld [vmem:[%s350 + $0x7d] sm:$0xff]
      %v870 = vld [vmem:[%s350 + $0x85] sm:$0xff]
      %v871 = vld [vmem:[%s350 + $0x95] sm:$0xff]
      %v872 = vld [vmem:[%s350 + $0x9d] sm:$0xff]
      %v873 = vld [vmem:[%s350 + $0xad] sm:$0xff]
      %v874 = vld [vmem:[%s350 + $0xb5] sm:$0xff]
      %v875 = vld [vmem:[%s350 + $0xc5] sm:$0xff]
      %v876 = vld [vmem:[%s350 + $0xcd] sm:$0xff]
      %v877 = vld [vmem:[%s350 + $0xdd] sm:$0xff]
      %v878 = vld [vmem:[%s350 + $0xe5] sm:$0xff]
      %v879 = vld [vmem:[%s350 + $0xf5] sm:$0xff]
      %v880 = vld [vmem:[%s350 + $0xfd] sm:$0xff]
      %v881 = vld [vmem:[%s350 + $0x10d] sm:$0xff]
      %v882 = vld [vmem:[%s350 + $0x115] sm:$0xff]
      %v883 = vld [vmem:[%s350 + $0x125] sm:$0xff]
      %v884 = vld [vmem:[%s350 + $0x12d] sm:$0xff]
      %v885 = vld [vmem:[%s350 + $0x13d] sm:$0xff]
      %v886 = vld [vmem:[%s350 + $0x145] sm:$0xff]
      %v887 = vld [vmem:[%s350 + $0x155] sm:$0xff]
      %v888 = vld [vmem:[%s350 + $0x15d] sm:$0xff]
      %v889 = vld [vmem:[%s350 + $0x16d] sm:$0xff]
      %v890 = vld [vmem:[%s350 + $0x175] sm:$0xff]
      %v891 = vld [vmem:[%s350 + $0x185] sm:$0xff]
      %v892 = vld [vmem:[%s350 + $0x18d] sm:$0xff]
      %v893 = vld [vmem:[%s350 + $0x19d] sm:$0xff]
      %v894 = vld [vmem:[%s350 + $0x1a5] sm:$0xff]
      %v895 = vld [vmem:[%s350 + $0x1b5] sm:$0xff]
      %v896 = vld [vmem:[%s350 + $0x1bd] sm:$0xff]
      %v897 = vld [vmem:[%s350 + $0x1cd] sm:$0xff]
      %v898 = vld [vmem:[%s350 + $0x1d5] sm:$0xff]
      %v899 = vld [vmem:[%s350 + $0x1e5] sm:$0xff]
      %v900 = vld [vmem:[%s350 + $0x1ed] sm:$0xff]
      %v901 = vld [vmem:[%s2 + $0x2] sm:$0x1]
      %v902 = vlaneseq
      %v903 = vshrl.u32 %v902, 7
      %v904 = vsub.s32 0, %v903
      %v905 = vrot.slane %v901, %v904
      %v906 = vmul.f32 %v865, %v905
      %v907 = vmul.f32 %v866, %v905
      %v908 = vmul.f32 %v867, %v905
      %v909 = vmul.f32 %v868, %v905
      %v910 = vmul.f32 %v869, %v905
      %v911 = vmul.f32 %v870, %v905
      %v912 = vmul.f32 %v871, %v905
      %v913 = vmul.f32 %v872, %v905
      %v914 = vmul.f32 %v873, %v905
      %v915 = vmul.f32 %v874, %v905
      %v916 = vmul.f32 %v875, %v905
      %v917 = vmul.f32 %v876, %v905
      %v918 = vmul.f32 %v877, %v905
      %v919 = vmul.f32 %v878, %v905
      %v920 = vmul.f32 %v879, %v905
      %v921 = vmul.f32 %v880, %v905
      %v922 = vmul.f32 %v881, %v905
      %v923 = vmul.f32 %v882, %v905
      %v924 = vmul.f32 %v883, %v905
      %v925 = vmul.f32 %v884, %v905
      %v926 = vmul.f32 %v885, %v905
      %v927 = vmul.f32 %v886, %v905
      %v928 = vmul.f32 %v887, %v905
      %v929 = vmul.f32 %v888, %v905
      %v930 = vmul.f32 %v889, %v905
      %v931 = vmul.f32 %v890, %v905
      %v932 = vmul.f32 %v891, %v905
      %v933 = vmul.f32 %v892, %v905
      %v934 = vmul.f32 %v893, %v905
      %v935 = vmul.f32 %v894, %v905
      %v936 = vmul.f32 %v895, %v905
      %v937 = vmul.f32 %v896, %v905
      %v938 = vadd.f32 %v833, %v906
      %v939 = vadd.f32 %v834, %v907
      %v940 = vadd.f32 %v835, %v908
      %v941 = vadd.f32 %v836, %v909
      %v942 = vadd.f32 %v837, %v910
      %v943 = vadd.f32 %v838, %v911
      %v944 = vadd.f32 %v839, %v912
      %v945 = vadd.f32 %v840, %v913
      %v946 = vadd.f32 %v841, %v914
      %v947 = vadd.f32 %v842, %v915
      %v948 = vadd.f32 %v843, %v916
      %v949 = vadd.f32 %v844, %v917
      %v950 = vadd.f32 %v845, %v918
      %v951 = vadd.f32 %v846, %v919
      %v952 = vadd.f32 %v847, %v920
      %v953 = vadd.f32 %v848, %v921
      %v954 = vadd.f32 %v849, %v922
      %v955 = vadd.f32 %v850, %v923
      %v956 = vadd.f32 %v851, %v924
      %v957 = vadd.f32 %v852, %v925
      %v958 = vadd.f32 %v853, %v926
      %v959 = vadd.f32 %v854, %v927
      %v960 = vadd.f32 %v855, %v928
      %v961 = vadd.f32 %v856, %v929
      %v962 = vadd.f32 %v857, %v930
      %v963 = vadd.f32 %v858, %v931
      %v964 = vadd.f32 %v859, %v932
      %v965 = vadd.f32 %v860, %v933
      %v966 = vadd.f32 %v861, %v934
      %v967 = vadd.f32 %v862, %v935
      %v968 = vadd.f32 %v863, %v936
      %v969 = vadd.f32 %v864, %v937
      %v970 = vld [vmem:[%s2 + $0x5] sm:$0x1]
      %v971 = vlaneseq
      %v972 = vshrl.u32 %v971, 7
      %v973 = vsub.s32 0, %v972
      %v974 = vrot.slane %v970, %v973
      %v975 = vmul.f32 %v867, %v974
      %v976 = vmul.f32 %v868, %v974
      %v977 = vmul.f32 %v869, %v974
      %v978 = vmul.f32 %v870, %v974
      %v979 = vmul.f32 %v871, %v974
      %v980 = vmul.f32 %v872, %v974
      %v981 = vmul.f32 %v873, %v974
      %v982 = vmul.f32 %v874, %v974
      %v983 = vmul.f32 %v875, %v974
      %v984 = vmul.f32 %v876, %v974
      %v985 = vmul.f32 %v877, %v974
      %v986 = vmul.f32 %v878, %v974
      %v987 = vmul.f32 %v879, %v974
      %v988 = vmul.f32 %v880, %v974
      %v989 = vmul.f32 %v881, %v974
      %v990 = vmul.f32 %v882, %v974
      %v991 = vmul.f32 %v883, %v974
      %v992 = vmul.f32 %v884, %v974
      %v993 = vmul.f32 %v885, %v974
      %v994 = vmul.f32 %v886, %v974
      %v995 = vmul.f32 %v887, %v974
      %v996 = vmul.f32 %v888, %v974
      %v997 = vmul.f32 %v889, %v974
      %v998 = vmul.f32 %v890, %v974
      %v999 = vmul.f32 %v891, %v974
      %v1000 = vmul.f32 %v892, %v974
      %v1001 = vmul.f32 %v893, %v974
      %v1002 = vmul.f32 %v894, %v974
      %v1003 = vmul.f32 %v895, %v974
      %v1004 = vmul.f32 %v896, %v974
      %v1005 = vmul.f32 %v897, %v974
      %v1006 = vmul.f32 %v898, %v974
      %v1007 = vadd.f32 %v938, %v975
      %v1008 = vadd.f32 %v939, %v976
      %v1009 = vadd.f32 %v940, %v977
      %v1010 = vadd.f32 %v941, %v978
      %v1011 = vadd.f32 %v942, %v979
      %v1012 = vadd.f32 %v943, %v980
      %v1013 = vadd.f32 %v944, %v981
      %v1014 = vadd.f32 %v945, %v982
      %v1015 = vadd.f32 %v946, %v983
      %v1016 = vadd.f32 %v947, %v984
      %v1017 = vadd.f32 %v948, %v985
      %v1018 = vadd.f32 %v949, %v986
      %v1019 = vadd.f32 %v950, %v987
      %v1020 = vadd.f32 %v951, %v988
      %v1021 = vadd.f32 %v952, %v989
      %v1022 = vadd.f32 %v953, %v990
      %v1023 = vadd.f32 %v954, %v991
      %v1024 = vadd.f32 %v955, %v992
      %v1025 = vadd.f32 %v956, %v993
      %v1026 = vadd.f32 %v957, %v994
      %v1027 = vadd.f32 %v958, %v995
      %v1028 = vadd.f32 %v959, %v996
      %v1029 = vadd.f32 %v960, %v997
      %v1030 = vadd.f32 %v961, %v998
      %v1031 = vadd.f32 %v962, %v999
      %v1032 = vadd.f32 %v963, %v1000
      %v1033 = vadd.f32 %v964, %v1001
      %v1034 = vadd.f32 %v965, %v1002
      %v1035 = vadd.f32 %v966, %v1003
      %v1036 = vadd.f32 %v967, %v1004
      %v1037 = vadd.f32 %v968, %v1005
      %v1038 = vadd.f32 %v969, %v1006
      %v1039 = vld [vmem:[%s2 + $0x8] sm:$0x1]
      %v1040 = vlaneseq
      %v1041 = vshrl.u32 %v1040, 7
      %v1042 = vsub.s32 0, %v1041
      %v1043 = vrot.slane %v1039, %v1042
      %v1044 = vmul.f32 %v869, %v1043
      %v1045 = vmul.f32 %v870, %v1043
      %v1046 = vmul.f32 %v871, %v1043
      %v1047 = vmul.f32 %v872, %v1043
      %v1048 = vmul.f32 %v873, %v1043
      %v1049 = vmul.f32 %v874, %v1043
      %v1050 = vmul.f32 %v875, %v1043
      %v1051 = vmul.f32 %v876, %v1043
      %v1052 = vmul.f32 %v877, %v1043
      %v1053 = vmul.f32 %v878, %v1043
      %v1054 = vmul.f32 %v879, %v1043
      %v1055 = vmul.f32 %v880, %v1043
      %v1056 = vmul.f32 %v881, %v1043
      %v1057 = vmul.f32 %v882, %v1043
      %v1058 = vmul.f32 %v883, %v1043
      %v1059 = vmul.f32 %v884, %v1043
      %v1060 = vmul.f32 %v885, %v1043
      %v1061 = vmul.f32 %v886, %v1043
      %v1062 = vmul.f32 %v887, %v1043
      %v1063 = vmul.f32 %v888, %v1043
      %v1064 = vmul.f32 %v889, %v1043
      %v1065 = vmul.f32 %v890, %v1043
      %v1066 = vmul.f32 %v891, %v1043
      %v1067 = vmul.f32 %v892, %v1043
      %v1068 = vmul.f32 %v893, %v1043
      %v1069 = vmul.f32 %v894, %v1043
      %v1070 = vmul.f32 %v895, %v1043
      %v1071 = vmul.f32 %v896, %v1043
      %v1072 = vmul.f32 %v897, %v1043
      %v1073 = vmul.f32 %v898, %v1043
      %v1074 = vmul.f32 %v899, %v1043
      %v1075 = vmul.f32 %v900, %v1043
      %v1076 = vadd.f32 %v1007, %v1044
      %v1077 = vadd.f32 %v1008, %v1045
      %v1078 = vadd.f32 %v1009, %v1046
      %v1079 = vadd.f32 %v1010, %v1047
      %v1080 = vadd.f32 %v1011, %v1048
      %v1081 = vadd.f32 %v1012, %v1049
      %v1082 = vadd.f32 %v1013, %v1050
      %v1083 = vadd.f32 %v1014, %v1051
      %v1084 = vadd.f32 %v1015, %v1052
      %v1085 = vadd.f32 %v1016, %v1053
      %v1086 = vadd.f32 %v1017, %v1054
      %v1087 = vadd.f32 %v1018, %v1055
      %v1088 = vadd.f32 %v1019, %v1056
      %v1089 = vadd.f32 %v1020, %v1057
      %v1090 = vadd.f32 %v1021, %v1058
      %v1091 = vadd.f32 %v1022, %v1059
      %v1092 = vadd.f32 %v1023, %v1060
      %v1093 = vadd.f32 %v1024, %v1061
      %v1094 = vadd.f32 %v1025, %v1062
      %v1095 = vadd.f32 %v1026, %v1063
      %v1096 = vadd.f32 %v1027, %v1064
      %v1097 = vadd.f32 %v1028, %v1065
      %v1098 = vadd.f32 %v1029, %v1066
      %v1099 = vadd.f32 %v1030, %v1067
      %v1100 = vadd.f32 %v1031, %v1068
      %v1101 = vadd.f32 %v1032, %v1069
      %v1102 = vadd.f32 %v1033, %v1070
      %v1103 = vadd.f32 %v1034, %v1071
      %v1104 = vadd.f32 %v1035, %v1072
      %v1105 = vadd.f32 %v1036, %v1073
      %v1106 = vadd.f32 %v1037, %v1074
      %v1107 = vadd.f32 %v1038, %v1075
      %v1108 = vpack.c.bf16 %v1077, %v1076
      %v1109 = vpack.c.bf16 %v1079, %v1078
      %v1110 = vpack.c.bf16 %v1081, %v1080
      %v1111 = vpack.c.bf16 %v1083, %v1082
      %v1112 = vpack.c.bf16 %v1085, %v1084
      %v1113 = vpack.c.bf16 %v1087, %v1086
      %v1114 = vpack.c.bf16 %v1089, %v1088
      %v1115 = vpack.c.bf16 %v1091, %v1090
      %v1116 = vpack.c.bf16 %v1093, %v1092
      %v1117 = vpack.c.bf16 %v1095, %v1094
      %v1118 = vpack.c.bf16 %v1097, %v1096
      %v1119 = vpack.c.bf16 %v1099, %v1098
      %v1120 = vpack.c.bf16 %v1101, %v1100
      %v1121 = vpack.c.bf16 %v1103, %v1102
      %v1122 = vpack.c.bf16 %v1105, %v1104
      %v1123 = vpack.c.bf16 %v1107, %v1106
      %v1124 = vld [vmem:[%s4] sm:$0xf]
      %v1125 = vld [vmem:[%s4 + $0x4] sm:$0xf]
      %v1126 = vld [vmem:[%s4 + $0x8] sm:$0xf]
      %v1127 = vld [vmem:[%s4 + $0xc] sm:$0xf]
      %v1132 = vunpack.c.l.b16 %v1124
      %v1133 = vunpack.c.l.b16 %v1125
      %v1134 = vunpack.c.l.b16 %v1126
      %v1135 = vunpack.c.l.b16 %v1127
      %v1136 = vpack.c.b16 %v1133, %v1132
      %v1137 = vpack.c.b16 %v1135, %v1134
      %vm1140 = vcmask 261120
      %v1142 = vsel %vm1140, %v1108, 0
      %v1145 = vsel %vm1140, %v1109, 0
      %v1148 = vsel %vm1140, %v1110, 0
      %v1151 = vsel %vm1140, %v1111, 0
      %v1154 = vsel %vm1140, %v1112, 0
      %v1157 = vsel %vm1140, %v1113, 0
      %v1160 = vsel %vm1140, %v1114, 0
      %v1163 = vsel %vm1140, %v1115, 0
      %v1166 = vsel %vm1140, %v1116, 0
      %v1169 = vsel %vm1140, %v1117, 0
      %v1172 = vsel %vm1140, %v1118, 0
      %v1175 = vsel %vm1140, %v1119, 0
      %v1178 = vsel %vm1140, %v1120, 0
      %v1181 = vsel %vm1140, %v1121, 0
      %v1184 = vsel %vm1140, %v1122, 0
      %v1187 = vsel %vm1140, %v1123, 0
      %1189 = vmatprep.subr.bf16.mxu0 0
      %1190 = vmatpush1.bf16.msra.mxu0 %v1136
      %1191 = vmatprep.subr.bf16.mxu0 0
      %1192 = vmatpush1.bf16.msra.mxu0 %v1137
      %1193 = vmatprep.subr.bf16.mxu0 0
      %1194 = vmatpush1.bf16.msra.mxu0 0
      %1195 = vmatprep.subr.bf16.mxu0 0
      %1196 = vmatpush1.bf16.msra.mxu0 0
      %1197 = vmatprep.subr.bf16.mxu0 0
      %1198 = vmatpush1.bf16.msra.mxu0 0
      %1199 = vmatprep.subr.bf16.mxu0 0
      %1200 = vmatpush1.bf16.msra.mxu0 0
      %1201 = vmatprep.subr.bf16.mxu0 0
      %1202 = vmatpush1.bf16.msra.mxu0 0
      %1203 = vmatprep.subr.bf16.mxu0 0
      %1204 = vmatpush1.bf16.msra.mxu0 0
      %1205 = vmatprep.subr.bf16.mxu0 0
      %1206 = vmatpush1.bf16.msra.mxu0 0
      %1207 = vmatprep.subr.bf16.mxu0 0
      %1208 = vmatpush1.bf16.msra.mxu0 0
      %1209 = vmatprep.subr.bf16.mxu0 0
      %1210 = vmatpush1.bf16.msra.mxu0 0
      %1211 = vmatprep.subr.bf16.mxu0 0
      %1212 = vmatpush1.bf16.msra.mxu0 0
      %1213 = vmatprep.subr.bf16.mxu0 0
      %1214 = vmatpush1.bf16.msra.mxu0 0
      %1215 = vmatprep.subr.bf16.mxu0 0
      %1216 = vmatpush1.bf16.msra.mxu0 0
      %1217 = vmatprep.subr.bf16.mxu0 0
      %1218 = vmatpush1.bf16.msra.mxu0 0
      %1219 = vmatprep.subr.bf16.mxu0 0
      %1220 = vmatpush1.bf16.msra.mxu0 0
      %1221 = vmatprep.mubr.bf16.mxu0 0
      %1222 = vmatmul.mubr.bf16.gmra.mrb[0].mxu0 %v1142
      %v1223 = vpop.f32.mrb[0].mxu0
      %v1224 = vadd.f32 0.0, %v1223
      %v1225 = vpop.f32.mrb[0].mxu0
      %v1226 = vpop.f32.mrb[0].mxu0
      %v1227 = vadd.f32 0.0, %v1226
      %v1228 = vpop.f32.mrb[0].mxu0
      %1229 = vmatprep.mubr.bf16.mxu0 0
      %1230 = vmatmul.mubr.bf16.gmra.mrb[0].mxu0 %v1145
      %v1231 = vpop.f32.mrb[0].mxu0
      %v1232 = vadd.f32 0.0, %v1231
      %v1233 = vpop.f32.mrb[0].mxu0
      %v1234 = vpop.f32.mrb[0].mxu0
      %v1235 = vadd.f32 0.0, %v1234
      %v1236 = vpop.f32.mrb[0].mxu0
      %1237 = vmatprep.mubr.bf16.mxu0 0
      %1238 = vmatmul.mubr.bf16.gmra.mrb[0].mxu0 %v1148
      %v1239 = vpop.f32.mrb[0].mxu0
      %v1240 = vadd.f32 0.0, %v1239
      %v1241 = vpop.f32.mrb[0].mxu0
      %v1242 = vpop.f32.mrb[0].mxu0
      %v1243 = vadd.f32 0.0, %v1242
      %v1244 = vpop.f32.mrb[0].mxu0
      %1245 = vmatprep.mubr.bf16.mxu0 0
      %1246 = vmatmul.mubr.bf16.gmra.mrb[0].mxu0 %v1151
      %v1247 = vpop.f32.mrb[0].mxu0
      %v1248 = vadd.f32 0.0, %v1247
      %v1249 = vpop.f32.mrb[0].mxu0
      %v1250 = vpop.f32.mrb[0].mxu0
      %v1251 = vadd.f32 0.0, %v1250
      %v1252 = vpop.f32.mrb[0].mxu0
      %1253 = vmatprep.mubr.bf16.mxu0 0
      %1254 = vmatmul.mubr.bf16.gmra.mrb[0].mxu0 %v1154
      %v1255 = vpop.f32.mrb[0].mxu0
      %v1256 = vadd.f32 0.0, %v1255
      %v1257 = vpop.f32.mrb[0].mxu0
      %v1258 = vpop.f32.mrb[0].mxu0
      %v1259 = vadd.f32 0.0, %v1258
      %v1260 = vpop.f32.mrb[0].mxu0
      %1261 = vmatprep.mubr.bf16.mxu0 0
      %1262 = vmatmul.mubr.bf16.gmra.mrb[0].mxu0 %v1157
      %v1263 = vpop.f32.mrb[0].mxu0
      %v1264 = vadd.f32 0.0, %v1263
      %v1265 = vpop.f32.mrb[0].mxu0
      %v1266 = vpop.f32.mrb[0].mxu0
      %v1267 = vadd.f32 0.0, %v1266
      %v1268 = vpop.f32.mrb[0].mxu0
      %1269 = vmatprep.mubr.bf16.mxu0 0
      %1270 = vmatmul.mubr.bf16.gmra.mrb[0].mxu0 %v1160
      %v1271 = vpop.f32.mrb[0].mxu0
      %v1272 = vadd.f32 0.0, %v1271
      %v1273 = vpop.f32.mrb[0].mxu0
      %v1274 = vpop.f32.mrb[0].mxu0
      %v1275 = vadd.f32 0.0, %v1274
      %v1276 = vpop.f32.mrb[0].mxu0
      %1277 = vmatprep.mubr.bf16.mxu0 0
      %1278 = vmatmul.mubr.bf16.gmra.mrb[0].mxu0 %v1163
      %v1279 = vpop.f32.mrb[0].mxu0
      %v1280 = vadd.f32 0.0, %v1279
      %v1281 = vpop.f32.mrb[0].mxu0
      %v1282 = vpop.f32.mrb[0].mxu0
      %v1283 = vadd.f32 0.0, %v1282
      %v1284 = vpop.f32.mrb[0].mxu0
      %1285 = vmatprep.mubr.bf16.mxu0 0
      %1286 = vmatmul.mubr.bf16.gmra.mrb[0].mxu0 %v1166
      %v1287 = vpop.f32.mrb[0].mxu0
      %v1288 = vadd.f32 0.0, %v1287
      %v1289 = vpop.f32.mrb[0].mxu0
      %v1290 = vpop.f32.mrb[0].mxu0
      %v1291 = vadd.f32 0.0, %v1290
      %v1292 = vpop.f32.mrb[0].mxu0
      %1293 = vmatprep.mubr.bf16.mxu0 0
      %1294 = vmatmul.mubr.bf16.gmra.mrb[0].mxu0 %v1169
      %v1295 = vpop.f32.mrb[0].mxu0
      %v1296 = vadd.f32 0.0, %v1295
      %v1297 = vpop.f32.mrb[0].mxu0
      %v1298 = vpop.f32.mrb[0].mxu0
      %v1299 = vadd.f32 0.0, %v1298
      %v1300 = vpop.f32.mrb[0].mxu0
      %1301 = vmatprep.mubr.bf16.mxu0 0
      %1302 = vmatmul.mubr.bf16.gmra.mrb[0].mxu0 %v1172
      %v1303 = vpop.f32.mrb[0].mxu0
      %v1304 = vadd.f32 0.0, %v1303
      %v1305 = vpop.f32.mrb[0].mxu0
      %v1306 = vpop.f32.mrb[0].mxu0
      %v1307 = vadd.f32 0.0, %v1306
      %v1308 = vpop.f32.mrb[0].mxu0
      %1309 = vmatprep.mubr.bf16.mxu0 0
      %1310 = vmatmul.mubr.bf16.gmra.mrb[0].mxu0 %v1175
      %v1311 = vpop.f32.mrb[0].mxu0
      %v1312 = vadd.f32 0.0, %v1311
      %v1313 = vpop.f32.mrb[0].mxu0
      %v1314 = vpop.f32.mrb[0].mxu0
      %v1315 = vadd.f32 0.0, %v1314
      %v1316 = vpop.f32.mrb[0].mxu0
      %1317 = vmatprep.mubr.bf16.mxu0 0
      %1318 = vmatmul.mubr.bf16.gmra.mrb[0].mxu0 %v1178
      %v1319 = vpop.f32.mrb[0].mxu0
      %v1320 = vadd.f32 0.0, %v1319
      %v1321 = vpop.f32.mrb[0].mxu0
      %v1322 = vpop.f32.mrb[0].mxu0
      %v1323 = vadd.f32 0.0, %v1322
      %v1324 = vpop.f32.mrb[0].mxu0
      %1325 = vmatprep.mubr.bf16.mxu0 0
      %1326 = vmatmul.mubr.bf16.gmra.mrb[0].mxu0 %v1181
      %v1327 = vpop.f32.mrb[0].mxu0
      %v1328 = vadd.f32 0.0, %v1327
      %v1329 = vpop.f32.mrb[0].mxu0
      %v1330 = vpop.f32.mrb[0].mxu0
      %v1331 = vadd.f32 0.0, %v1330
      %v1332 = vpop.f32.mrb[0].mxu0
      %1333 = vmatprep.mubr.bf16.mxu0 0
      %1334 = vmatmul.mubr.bf16.gmra.mrb[0].mxu0 %v1184
      %v1335 = vpop.f32.mrb[0].mxu0
      %v1336 = vadd.f32 0.0, %v1335
      %v1337 = vpop.f32.mrb[0].mxu0
      %v1338 = vpop.f32.mrb[0].mxu0
      %v1339 = vadd.f32 0.0, %v1338
      %v1340 = vpop.f32.mrb[0].mxu0
      %1341 = vmatprep.mubr.bf16.mxu0 0
      %1342 = vmatmul.mubr.bf16.gmra.mrb[0].mxu0 %v1187
      %v1343 = vpop.f32.mrb[0].mxu0
      %v1344 = vadd.f32 0.0, %v1343
      %v1345 = vpop.f32.mrb[0].mxu0
      %v1346 = vpop.f32.mrb[0].mxu0
      %v1347 = vadd.f32 0.0, %v1346
      %v1348 = vpop.f32.mrb[0].mxu0
      %1349 = vdwg.mxu0
      %v1350 = vld [vmem:[%s355 + $0x11] sm:$0xff]
      %v1351 = vld [vmem:[%s355 + $0x21] sm:$0xff]
      %v1352 = vld [vmem:[%s355 + $0x31] sm:$0xff]
      %v1353 = vld [vmem:[%s355 + $0x41] sm:$0xff]
      %v1354 = vld [vmem:[%s355 + $0x51] sm:$0xff]
      %v1355 = vld [vmem:[%s355 + $0x61] sm:$0xff]
      %v1356 = vld [vmem:[%s355 + $0x71] sm:$0xff]
      %v1357 = vld [vmem:[%s355 + $0x81] sm:$0xff]
      %v1358 = vld [vmem:[%s355 + $0x91] sm:$0xff]
      %v1359 = vld [vmem:[%s355 + $0xa1] sm:$0xff]
      %v1360 = vld [vmem:[%s355 + $0xe1] sm:$0xff]
      %v1361 = vld [vmem:[%s355 + $0xf1] sm:$0xff]
      %v1362 = vld [vmem:[%s355 + $0x101] sm:$0xff]
      %v1363 = vld [vmem:[%s355 + $0x111] sm:$0xff]
      %v1364 = vld [vmem:[%s355 + $0x121] sm:$0xff]
      %v1365 = vld [vmem:[%s355 + $0x131] sm:$0xff]
      %v1366 = vld [vmem:[%s355 + $0x141] sm:$0xff]
      %v1367 = vld [vmem:[%s355 + $0x151] sm:$0xff]
      %v1368 = vld [vmem:[%s355 + $0x251] sm:$0xff]
      %v1369 = vld [vmem:[%s355 + $0x261] sm:$0xff]
      %v1370 = vld [vmem:[%s355 + $0x271] sm:$0xff]
      %v1371 = vld [vmem:[%s355 + $0x281] sm:$0xff]
      %v1372 = vld [vmem:[%s355 + $0x291] sm:$0xff]
      %v1373 = vld [vmem:[%s355 + $0x2a1] sm:$0xff]
      %v1374 = vld [vmem:[%s355 + $0x2b1] sm:$0xff]
      %v1375 = vld [vmem:[%s355 + $0x2c1] sm:$0xff]
      %v1376 = vld [vmem:[%s355 + $0x2d1] sm:$0xff]
      %v1377 = vld [vmem:[%s3] sm:$0x1]
      %v1378 = vlaneseq
      %v1379 = vshrl.u32 %v1378, 7
      %v1380 = vsub.s32 0, %v1379
      %v1381 = vrot.slane %v1377, %v1380
      %v1382 = vmul.f32 %v1368, %v1381
      %v1383 = vmul.f32 %v1369, %v1381
      %v1384 = vmul.f32 %v1370, %v1381
      %v1385 = vmul.f32 %v1371, %v1381
      %v1386 = vmul.f32 %v1372, %v1381
      %v1387 = vmul.f32 %v1373, %v1381
      %v1388 = vmul.f32 %v1374, %v1381
      %v1389 = vmul.f32 %v1375, %v1381
      %v1390 = vadd.f32 %v1382, 0.0
      %v1391 = vadd.f32 %v1383, 0.0
      %v1392 = vadd.f32 %v1384, 0.0
      %v1393 = vadd.f32 %v1385, 0.0
      %v1394 = vadd.f32 %v1386, 0.0
      %v1395 = vadd.f32 %v1387, 0.0
      %v1396 = vadd.f32 %v1388, 0.0
      %v1397 = vadd.f32 %v1389, 0.0
      %v1398 = vld [vmem:[%s3 + $0x3] sm:$0x1]
      %v1399 = vlaneseq
      %v1400 = vshrl.u32 %v1399, 7
      %v1401 = vsub.s32 0, %v1400
      %v1402 = vrot.slane %v1398, %v1401
      %v1403 = vmul.f32 %v1360, %v1402
      %v1404 = vmul.f32 %v1361, %v1402
      %v1405 = vmul.f32 %v1362, %v1402
      %v1406 = vmul.f32 %v1363, %v1402
      %v1407 = vmul.f32 %v1364, %v1402
      %v1408 = vmul.f32 %v1365, %v1402
      %v1409 = vmul.f32 %v1366, %v1402
      %v1410 = vmul.f32 %v1367, %v1402
      %v1411 = vadd.f32 %v1390, %v1403
      %v1412 = vadd.f32 %v1391, %v1404
      %v1413 = vadd.f32 %v1392, %v1405
      %v1414 = vadd.f32 %v1393, %v1406
      %v1415 = vadd.f32 %v1394, %v1407
      %v1416 = vadd.f32 %v1395, %v1408
      %v1417 = vadd.f32 %v1396, %v1409
      %v1418 = vadd.f32 %v1397, %v1410
      %v1419 = vld [vmem:[%s3 + $0x6] sm:$0x1]
      %v1420 = vlaneseq
      %v1421 = vshrl.u32 %v1420, 7
      %v1422 = vsub.s32 0, %v1421
      %v1423 = vrot.slane %v1419, %v1422
      %v1424 = vmul.f32 %v1369, %v1423
      %v1425 = vmul.f32 %v1370, %v1423
      %v1426 = vmul.f32 %v1371, %v1423
      %v1427 = vmul.f32 %v1372, %v1423
      %v1428 = vmul.f32 %v1373, %v1423
      %v1429 = vmul.f32 %v1374, %v1423
      %v1430 = vmul.f32 %v1375, %v1423
      %v1431 = vmul.f32 %v1376, %v1423
      %v1432 = vadd.f32 %v1411, %v1424
      %v1433 = vadd.f32 %v1412, %v1425
      %v1434 = vadd.f32 %v1413, %v1426
      %v1435 = vadd.f32 %v1414, %v1427
      %v1436 = vadd.f32 %v1415, %v1428
      %v1437 = vadd.f32 %v1416, %v1429
      %v1438 = vadd.f32 %v1417, %v1430
      %v1439 = vadd.f32 %v1418, %v1431
      %v1440 = vld [vmem:[%s355 + $0x2] sm:$0xff]
      %v1441 = vld [vmem:[%s355 + $0x12] sm:$0xff]
      %v1442 = vld [vmem:[%s355 + $0x22] sm:$0xff]
      %v1443 = vld [vmem:[%s355 + $0x32] sm:$0xff]
      %v1444 = vld [vmem:[%s355 + $0x42] sm:$0xff]
      %v1445 = vld [vmem:[%s355 + $0x52] sm:$0xff]
      %v1446 = vld [vmem:[%s355 + $0x62] sm:$0xff]
      %v1447 = vld [vmem:[%s355 + $0x72] sm:$0xff]
      %v1448 = vld [vmem:[%s355 + $0x82] sm:$0xff]
      %v1449 = vld [vmem:[%s355 + $0x92] sm:$0xff]
      %v1450 = vld [vmem:[%s355 + $0xa2] sm:$0xff]
      %v1451 = vld [vmem:[%s355 + $0xb2] sm:$0xff]
      %v1452 = vld [vmem:[%s355 + $0xe2] sm:$0xff]
      %v1453 = vld [vmem:[%s355 + $0xf2] sm:$0xff]
      %v1454 = vld [vmem:[%s355 + $0x102] sm:$0xff]
      %v1455 = vld [vmem:[%s355 + $0x112] sm:$0xff]
      %v1456 = vld [vmem:[%s355 + $0x122] sm:$0xff]
      %v1457 = vld [vmem:[%s355 + $0x132] sm:$0xff]
      %v1458 = vld [vmem:[%s355 + $0x142] sm:$0xff]
      %v1459 = vld [vmem:[%s355 + $0x152] sm:$0xff]
      %v1460 = vld [vmem:[%s355 + $0x192] sm:$0xff]
      %v1461 = vld [vmem:[%s355 + $0x1a2] sm:$0xff]
      %v1462 = vld [vmem:[%s355 + $0x1b2] sm:$0xff]
      %v1463 = vld [vmem:[%s355 + $0x1c2] sm:$0xff]
      %v1464 = vld [vmem:[%s355 + $0x1d2] sm:$0xff]
      %v1465 = vld [vmem:[%s355 + $0x1e2] sm:$0xff]
      %v1466 = vld [vmem:[%s355 + $0x1f2] sm:$0xff]
      %v1467 = vld [vmem:[%s355 + $0x202] sm:$0xff]
      %v1468 = vld [vmem:[%s355 + $0x212] sm:$0xff]
      %v1469 = vld [vmem:[%s355 + $0x252] sm:$0xff]
      %v1470 = vld [vmem:[%s355 + $0x262] sm:$0xff]
      %v1471 = vld [vmem:[%s355 + $0x272] sm:$0xff]
      %v1472 = vld [vmem:[%s355 + $0x282] sm:$0xff]
      %v1473 = vld [vmem:[%s355 + $0x292] sm:$0xff]
      %v1474 = vld [vmem:[%s355 + $0x2a2] sm:$0xff]
      %v1475 = vld [vmem:[%s355 + $0x2b2] sm:$0xff]
      %v1476 = vld [vmem:[%s355 + $0x2c2] sm:$0xff]
      %v1477 = vld [vmem:[%s355 + $0x2d2] sm:$0xff]
      %v1478 = vld [vmem:[%s3 + $0x1] sm:$0x1]
      %v1479 = vlaneseq
      %v1480 = vshrl.u32 %v1479, 7
      %v1481 = vsub.s32 0, %v1480
      %v1482 = vrot.slane %v1478, %v1481
      %v1483 = vmul.f32 %v1460, %v1482
      %v1484 = vmul.f32 %v1461, %v1482
      %v1485 = vmul.f32 %v1462, %v1482
      %v1486 = vmul.f32 %v1463, %v1482
      %v1487 = vmul.f32 %v1464, %v1482
      %v1488 = vmul.f32 %v1465, %v1482
      %v1489 = vmul.f32 %v1466, %v1482
      %v1490 = vmul.f32 %v1467, %v1482
      %v1491 = vadd.f32 %v1432, %v1483
      %v1492 = vadd.f32 %v1433, %v1484
      %v1493 = vadd.f32 %v1434, %v1485
      %v1494 = vadd.f32 %v1435, %v1486
      %v1495 = vadd.f32 %v1436, %v1487
      %v1496 = vadd.f32 %v1437, %v1488
      %v1497 = vadd.f32 %v1438, %v1489
      %v1498 = vadd.f32 %v1439, %v1490
      %v1499 = vld [vmem:[%s3 + $0x4] sm:$0x1]
      %v1500 = vlaneseq
      %v1501 = vshrl.u32 %v1500, 7
      %v1502 = vsub.s32 0, %v1501
      %v1503 = vrot.slane %v1499, %v1502
      %v1504 = vmul.f32 %v1442, %v1503
      %v1505 = vmul.f32 %v1443, %v1503
      %v1506 = vmul.f32 %v1444, %v1503
      %v1507 = vmul.f32 %v1445, %v1503
      %v1508 = vmul.f32 %v1446, %v1503
      %v1509 = vmul.f32 %v1447, %v1503
      %v1510 = vmul.f32 %v1448, %v1503
      %v1511 = vmul.f32 %v1449, %v1503
      %v1512 = vadd.f32 %v1491, %v1504
      %v1513 = vadd.f32 %v1492, %v1505
      %v1514 = vadd.f32 %v1493, %v1506
      %v1515 = vadd.f32 %v1494, %v1507
      %v1516 = vadd.f32 %v1495, %v1508
      %v1517 = vadd.f32 %v1496, %v1509
      %v1518 = vadd.f32 %v1497, %v1510
      %v1519 = vadd.f32 %v1498, %v1511
      %v1520 = vld [vmem:[%s3 + $0x7] sm:$0x1]
      %v1521 = vlaneseq
      %v1522 = vshrl.u32 %v1521, 7
      %v1523 = vsub.s32 0, %v1522
      %v1524 = vrot.slane %v1520, %v1523
      %v1525 = vmul.f32 %v1461, %v1524
      %v1526 = vmul.f32 %v1462, %v1524
      %v1527 = vmul.f32 %v1463, %v1524
      %v1528 = vmul.f32 %v1464, %v1524
      %v1529 = vmul.f32 %v1465, %v1524
      %v1530 = vmul.f32 %v1466, %v1524
      %v1531 = vmul.f32 %v1467, %v1524
      %v1532 = vmul.f32 %v1468, %v1524
      %v1533 = vadd.f32 %v1512, %v1525
      %v1534 = vadd.f32 %v1513, %v1526
      %v1535 = vadd.f32 %v1514, %v1527
      %v1536 = vadd.f32 %v1515, %v1528
      %v1537 = vadd.f32 %v1516, %v1529
      %v1538 = vadd.f32 %v1517, %v1530
      %v1539 = vadd.f32 %v1518, %v1531
      %v1540 = vadd.f32 %v1519, %v1532
      %v1541 = vld [vmem:[%s3 + $0x2] sm:$0x1]
      %v1542 = vlaneseq
      %v1543 = vshrl.u32 %v1542, 7
      %v1544 = vsub.s32 0, %v1543
      %v1545 = vrot.slane %v1541, %v1544
      %v1546 = vmul.f32 %v1469, %v1545
      %v1547 = vmul.f32 %v1470, %v1545
      %v1548 = vmul.f32 %v1471, %v1545
      %v1549 = vmul.f32 %v1472, %v1545
      %v1550 = vmul.f32 %v1473, %v1545
      %v1551 = vmul.f32 %v1474, %v1545
      %v1552 = vmul.f32 %v1475, %v1545
      %v1553 = vmul.f32 %v1476, %v1545
      %v1554 = vadd.f32 %v1533, %v1546
      %v1555 = vadd.f32 %v1534, %v1547
      %v1556 = vadd.f32 %v1535, %v1548
      %v1557 = vadd.f32 %v1536, %v1549
      %v1558 = vadd.f32 %v1537, %v1550
      %v1559 = vadd.f32 %v1538, %v1551
      %v1560 = vadd.f32 %v1539, %v1552
      %v1561 = vadd.f32 %v1540, %v1553
      %v1562 = vld [vmem:[%s3 + $0x5] sm:$0x1]
      %v1563 = vlaneseq
      %v1564 = vshrl.u32 %v1563, 7
      %v1565 = vsub.s32 0, %v1564
      %v1566 = vrot.slane %v1562, %v1565
      %v1567 = vmul.f32 %v1452, %v1566
      %v1568 = vmul.f32 %v1453, %v1566
      %v1569 = vmul.f32 %v1454, %v1566
      %v1570 = vmul.f32 %v1455, %v1566
      %v1571 = vmul.f32 %v1456, %v1566
      %v1572 = vmul.f32 %v1457, %v1566
      %v1573 = vmul.f32 %v1458, %v1566
      %v1574 = vmul.f32 %v1459, %v1566
      %v1575 = vadd.f32 %v1554, %v1567
      %v1576 = vadd.f32 %v1555, %v1568
      %v1577 = vadd.f32 %v1556, %v1569
      %v1578 = vadd.f32 %v1557, %v1570
      %v1579 = vadd.f32 %v1558, %v1571
      %v1580 = vadd.f32 %v1559, %v1572
      %v1581 = vadd.f32 %v1560, %v1573
      %v1582 = vadd.f32 %v1561, %v1574
      %v1583 = vld [vmem:[%s3 + $0x8] sm:$0x1]
      %v1584 = vlaneseq
      %v1585 = vshrl.u32 %v1584, 7
      %v1586 = vsub.s32 0, %v1585
      %v1587 = vrot.slane %v1583, %v1586
      %v1588 = vmul.f32 %v1470, %v1587
      %v1589 = vmul.f32 %v1471, %v1587
      %v1590 = vmul.f32 %v1472, %v1587
      %v1591 = vmul.f32 %v1473, %v1587
      %v1592 = vmul.f32 %v1474, %v1587
      %v1593 = vmul.f32 %v1475, %v1587
      %v1594 = vmul.f32 %v1476, %v1587
      %v1595 = vmul.f32 %v1477, %v1587
      %v1596 = vadd.f32 %v1575, %v1588
      %v1597 = vadd.f32 %v1576, %v1589
      %v1598 = vadd.f32 %v1577, %v1590
      %v1599 = vadd.f32 %v1578, %v1591
      %v1600 = vadd.f32 %v1579, %v1592
      %v1601 = vadd.f32 %v1580, %v1593
      %v1602 = vadd.f32 %v1581, %v1594
      %v1603 = vadd.f32 %v1582, %v1595
      %v1604 = vpack.c.bf16 %v1597, %v1596
      %v1605 = vpack.c.bf16 %v1599, %v1598
      %v1606 = vpack.c.bf16 %v1601, %v1600
      %v1607 = vpack.c.bf16 %v1603, %v1602
      %v1608 = vld [vmem:[%s6] sm:$0xf]
      %v1609 = vld [vmem:[%s6 + $0x4] sm:$0xf]
      %v1610 = vld [vmem:[%s6 + $0x8] sm:$0xf]
      %v1611 = vld [vmem:[%s6 + $0xc] sm:$0xf]
      %v1616 = vunpack.c.l.b16 %v1608
      %v1617 = vunpack.c.l.b16 %v1609
      %v1618 = vunpack.c.l.b16 %v1610
      %v1619 = vunpack.c.l.b16 %v1611
      %v1620 = vpack.c.b16 %v1617, %v1616
      %v1621 = vpack.c.b16 %v1619, %v1618
      %v1625 = vsel %vm1140, %v1604, 0
      %v1628 = vsel %vm1140, %v1605, 0
      %v1631 = vsel %vm1140, %v1606, 0
      %v1634 = vsel %vm1140, %v1607, 0
      %1636 = vmatprep.subr.bf16.mxu0 0
      %1637 = vmatpush1.bf16.msra.mxu0 %v1620
      %1638 = vmatprep.subr.bf16.mxu0 0
      %1639 = vmatpush1.bf16.msra.mxu0 %v1621
      %1640 = vmatprep.subr.bf16.mxu0 0
      %1641 = vmatpush1.bf16.msra.mxu0 0
      %1642 = vmatprep.subr.bf16.mxu0 0
      %1643 = vmatpush1.bf16.msra.mxu0 0
      %1644 = vmatprep.subr.bf16.mxu0 0
      %1645 = vmatpush1.bf16.msra.mxu0 0
      %1646 = vmatprep.subr.bf16.mxu0 0
      %1647 = vmatpush1.bf16.msra.mxu0 0
      %1648 = vmatprep.subr.bf16.mxu0 0
      %1649 = vmatpush1.bf16.msra.mxu0 0
      %1650 = vmatprep.subr.bf16.mxu0 0
      %1651 = vmatpush1.bf16.msra.mxu0 0
      %1652 = vmatprep.subr.bf16.mxu0 0
      %1653 = vmatpush1.bf16.msra.mxu0 0
      %1654 = vmatprep.subr.bf16.mxu0 0
      %1655 = vmatpush1.bf16.msra.mxu0 0
      %1656 = vmatprep.subr.bf16.mxu0 0
      %1657 = vmatpush1.bf16.msra.mxu0 0
      %1658 = vmatprep.subr.bf16.mxu0 0
      %1659 = vmatpush1.bf16.msra.mxu0 0
      %1660 = vmatprep.subr.bf16.mxu0 0
      %1661 = vmatpush1.bf16.msra.mxu0 0
      %1662 = vmatprep.subr.bf16.mxu0 0
      %1663 = vmatpush1.bf16.msra.mxu0 0
      %1664 = vmatprep.subr.bf16.mxu0 0
      %1665 = vmatpush1.bf16.msra.mxu0 0
      %1666 = vmatprep.subr.bf16.mxu0 0
      %1667 = vmatpush1.bf16.msra.mxu0 0
      %1668 = vmatprep.mubr.bf16.mxu0 0
      %1669 = vmatmul.mubr.bf16.gmra.mrb[0].mxu0 %v1625
      %v1670 = vpop.f32.mrb[0].mxu0
      %v1671 = vadd.f32 0.0, %v1670
      %v1672 = vpop.f32.mrb[0].mxu0
      %v1673 = vpop.f32.mrb[0].mxu0
      %v1674 = vadd.f32 0.0, %v1673
      %v1675 = vpop.f32.mrb[0].mxu0
      %1676 = vmatprep.mubr.bf16.mxu0 0
      %1677 = vmatmul.mubr.bf16.gmra.mrb[0].mxu0 %v1628
      %v1678 = vpop.f32.mrb[0].mxu0
      %v1679 = vadd.f32 0.0, %v1678
      %v1680 = vpop.f32.mrb[0].mxu0
      %v1681 = vpop.f32.mrb[0].mxu0
      %v1682 = vadd.f32 0.0, %v1681
      %v1683 = vpop.f32.mrb[0].mxu0
      %1684 = vmatprep.mubr.bf16.mxu0 0
      %1685 = vmatmul.mubr.bf16.gmra.mrb[0].mxu0 %v1631
      %v1686 = vpop.f32.mrb[0].mxu0
      %v1687 = vadd.f32 0.0, %v1686
      %v1688 = vpop.f32.mrb[0].mxu0
      %v1689 = vpop.f32.mrb[0].mxu0
      %v1690 = vadd.f32 0.0, %v1689
      %v1691 = vpop.f32.mrb[0].mxu0
      %1692 = vmatprep.mubr.bf16.mxu0 0
      %1693 = vmatmul.mubr.bf16.gmra.mrb[0].mxu0 %v1634
      %v1694 = vpop.f32.mrb[0].mxu0
      %v1695 = vadd.f32 0.0, %v1694
      %v1696 = vpop.f32.mrb[0].mxu0
      %v1697 = vpop.f32.mrb[0].mxu0
      %v1698 = vadd.f32 0.0, %v1697
      %v1699 = vpop.f32.mrb[0].mxu0
      %1700 = vdwg.mxu0
      %v1701 = vld [vmem:[%s350 + $0x32] sm:$0xff]
      %v1702 = vld [vmem:[%s350 + $0x3a] sm:$0xff]
      %v1703 = vld [vmem:[%s350 + $0x4a] sm:$0xff]
      %v1704 = vld [vmem:[%s350 + $0x52] sm:$0xff]
      %v1705 = vld [vmem:[%s350 + $0x62] sm:$0xff]
      %v1706 = vld [vmem:[%s350 + $0x6a] sm:$0xff]
      %v1707 = vld [vmem:[%s350 + $0x7a] sm:$0xff]
      %v1708 = vld [vmem:[%s350 + $0x82] sm:$0xff]
      %v1709 = vld [vmem:[%s350 + $0x92] sm:$0xff]
      %v1710 = vld [vmem:[%s350 + $0x9a] sm:$0xff]
      %v1711 = vld [vmem:[%s350 + $0xaa] sm:$0xff]
      %v1712 = vld [vmem:[%s350 + $0xb2] sm:$0xff]
      %v1713 = vld [vmem:[%s350 + $0xc2] sm:$0xff]
      %v1714 = vld [vmem:[%s350 + $0xca] sm:$0xff]
      %v1715 = vld [vmem:[%s350 + $0xda] sm:$0xff]
      %v1716 = vld [vmem:[%s350 + $0xe2] sm:$0xff]
      %v1717 = vld [vmem:[%s350 + $0xf2] sm:$0xff]
      %v1718 = vld [vmem:[%s350 + $0xfa] sm:$0xff]
      %v1719 = vld [vmem:[%s350 + $0x10a] sm:$0xff]
      %v1720 = vld [vmem:[%s350 + $0x112] sm:$0xff]
      %v1721 = vld [vmem:[%s350 + $0x122] sm:$0xff]
      %v1722 = vld [vmem:[%s350 + $0x12a] sm:$0xff]
      %v1723 = vld [vmem:[%s350 + $0x13a] sm:$0xff]
      %v1724 = vld [vmem:[%s350 + $0x142] sm:$0xff]
      %v1725 = vld [vmem:[%s350 + $0x152] sm:$0xff]
      %v1726 = vld [vmem:[%s350 + $0x15a] sm:$0xff]
      %v1727 = vld [vmem:[%s350 + $0x16a] sm:$0xff]
      %v1728 = vld [vmem:[%s350 + $0x172] sm:$0xff]
      %v1729 = vld [vmem:[%s350 + $0x182] sm:$0xff]
      %v1730 = vld [vmem:[%s350 + $0x18a] sm:$0xff]
      %v1731 = vld [vmem:[%s350 + $0x19a] sm:$0xff]
      %v1732 = vld [vmem:[%s350 + $0x1a2] sm:$0xff]
      %v1733 = vld [vmem:[%s350 + $0x1b2] sm:$0xff]
      %v1734 = vld [vmem:[%s350 + $0x1ba] sm:$0xff]
      %v1735 = vld [vmem:[%s350 + $0x1ca] sm:$0xff]
      %v1736 = vld [vmem:[%s350 + $0x1d2] sm:$0xff]
      %v1737 = vld [vmem:[%s350 + $0x1e2] sm:$0xff]
      %v1738 = vld [vmem:[%s350 + $0x1ea] sm:$0xff]
      %v1739 = vld [vmem:[%s350 + $0x1fa] sm:$0xff]
      %v1740 = vld [vmem:[%s350 + $0x202] sm:$0xff]
      %v1741 = vld [vmem:[%s2 + $0x9] sm:$0x1]
      %v1742 = vlaneseq
      %v1743 = vshrl.u32 %v1742, 7
      %v1744 = vsub.s32 0, %v1743
      %v1745 = vrot.slane %v1741, %v1744
      %v1746 = vmul.f32 %v1701, %v1745
      %v1747 = vmul.f32 %v1702, %v1745
      %v1748 = vmul.f32 %v1703, %v1745
      %v1749 = vmul.f32 %v1704, %v1745
      %v1750 = vmul.f32 %v1705, %v1745
      %v1751 = vmul.f32 %v1706, %v1745
      %v1752 = vmul.f32 %v1707, %v1745
      %v1753 = vmul.f32 %v1708, %v1745
      %v1754 = vmul.f32 %v1709, %v1745
      %v1755 = vmul.f32 %v1710, %v1745
      %v1756 = vmul.f32 %v1711, %v1745
      %v1757 = vmul.f32 %v1712, %v1745
      %v1758 = vmul.f32 %v1713, %v1745
      %v1759 = vmul.f32 %v1714, %v1745
      %v1760 = vmul.f32 %v1715, %v1745
      %v1761 = vmul.f32 %v1716, %v1745
      %v1762 = vmul.f32 %v1717, %v1745
      %v1763 = vmul.f32 %v1718, %v1745
      %v1764 = vmul.f32 %v1719, %v1745
      %v1765 = vmul.f32 %v1720, %v1745
      %v1766 = vmul.f32 %v1721, %v1745
      %v1767 = vmul.f32 %v1722, %v1745
      %v1768 = vmul.f32 %v1723, %v1745
      %v1769 = vmul.f32 %v1724, %v1745
      %v1770 = vmul.f32 %v1725, %v1745
      %v1771 = vmul.f32 %v1726, %v1745
      %v1772 = vmul.f32 %v1727, %v1745
      %v1773 = vmul.f32 %v1728, %v1745
      %v1774 = vmul.f32 %v1729, %v1745
      %v1775 = vmul.f32 %v1730, %v1745
      %v1776 = vmul.f32 %v1731, %v1745
      %v1777 = vmul.f32 %v1732, %v1745
      %v1778 = vadd.f32 %v1746, 0.0
      %v1779 = vadd.f32 %v1747, 0.0
      %v1780 = vadd.f32 %v1748, 0.0
      %v1781 = vadd.f32 %v1749, 0.0
      %v1782 = vadd.f32 %v1750, 0.0
      %v1783 = vadd.f32 %v1751, 0.0
      %v1784 = vadd.f32 %v1752, 0.0
      %v1785 = vadd.f32 %v1753, 0.0
      %v1786 = vadd.f32 %v1754, 0.0
      %v1787 = vadd.f32 %v1755, 0.0
      %v1788 = vadd.f32 %v1756, 0.0
      %v1789 = vadd.f32 %v1757, 0.0
      %v1790 = vadd.f32 %v1758, 0.0
      %v1791 = vadd.f32 %v1759, 0.0
      %v1792 = vadd.f32 %v1760, 0.0
      %v1793 = vadd.f32 %v1761, 0.0
      %v1794 = vadd.f32 %v1762, 0.0
      %v1795 = vadd.f32 %v1763, 0.0
      %v1796 = vadd.f32 %v1764, 0.0
      %v1797 = vadd.f32 %v1765, 0.0
      %v1798 = vadd.f32 %v1766, 0.0
      %v1799 = vadd.f32 %v1767, 0.0
      %v1800 = vadd.f32 %v1768, 0.0
      %v1801 = vadd.f32 %v1769, 0.0
      %v1802 = vadd.f32 %v1770, 0.0
      %v1803 = vadd.f32 %v1771, 0.0
      %v1804 = vadd.f32 %v1772, 0.0
      %v1805 = vadd.f32 %v1773, 0.0
      %v1806 = vadd.f32 %v1774, 0.0
      %v1807 = vadd.f32 %v1775, 0.0
      %v1808 = vadd.f32 %v1776, 0.0
      %v1809 = vadd.f32 %v1777, 0.0
      %v1810 = vld [vmem:[%s2 + $0xc] sm:$0x1]
      %v1811 = vlaneseq
      %v1812 = vshrl.u32 %v1811, 7
      %v1813 = vsub.s32 0, %v1812
      %v1814 = vrot.slane %v1810, %v1813
      %v1815 = vmul.f32 %v1705, %v1814
      %v1816 = vmul.f32 %v1706, %v1814
      %v1817 = vmul.f32 %v1707, %v1814
      %v1818 = vmul.f32 %v1708, %v1814
      %v1819 = vmul.f32 %v1709, %v1814
      %v1820 = vmul.f32 %v1710, %v1814
      %v1821 = vmul.f32 %v1711, %v1814
      %v1822 = vmul.f32 %v1712, %v1814
      %v1823 = vmul.f32 %v1713, %v1814
      %v1824 = vmul.f32 %v1714, %v1814
      %v1825 = vmul.f32 %v1715, %v1814
      %v1826 = vmul.f32 %v1716, %v1814
      %v1827 = vmul.f32 %v1717, %v1814
      %v1828 = vmul.f32 %v1718, %v1814
      %v1829 = vmul.f32 %v1719, %v1814
      %v1830 = vmul.f32 %v1720, %v1814
      %v1831 = vmul.f32 %v1721, %v1814
      %v1832 = vmul.f32 %v1722, %v1814
      %v1833 = vmul.f32 %v1723, %v1814
      %v1834 = vmul.f32 %v1724, %v1814
      %v1835 = vmul.f32 %v1725, %v1814
      %v1836 = vmul.f32 %v1726, %v1814
      %v1837 = vmul.f32 %v1727, %v1814
      %v1838 = vmul.f32 %v1728, %v1814
      %v1839 = vmul.f32 %v1729, %v1814
      %v1840 = vmul.f32 %v1730, %v1814
      %v1841 = vmul.f32 %v1731, %v1814
      %v1842 = vmul.f32 %v1732, %v1814
      %v1843 = vmul.f32 %v1733, %v1814
      %v1844 = vmul.f32 %v1734, %v1814
      %v1845 = vmul.f32 %v1735, %v1814
      %v1846 = vmul.f32 %v1736, %v1814
      %v1847 = vadd.f32 %v1778, %v1815
      %v1848 = vadd.f32 %v1779, %v1816
      %v1849 = vadd.f32 %v1780, %v1817
      %v1850 = vadd.f32 %v1781, %v1818
      %v1851 = vadd.f32 %v1782, %v1819
      %v1852 = vadd.f32 %v1783, %v1820
      %v1853 = vadd.f32 %v1784, %v1821
      %v1854 = vadd.f32 %v1785, %v1822
      %v1855 = vadd.f32 %v1786, %v1823
      %v1856 = vadd.f32 %v1787, %v1824
      %v1857 = vadd.f32 %v1788, %v1825
      %v1858 = vadd.f32 %v1789, %v1826
      %v1859 = vadd.f32 %v1790, %v1827
      %v1860 = vadd.f32 %v1791, %v1828
      %v1861 = vadd.f32 %v1792, %v1829
      %v1862 = vadd.f32 %v1793, %v1830
      %v1863 = vadd.f32 %v1794, %v1831
      %v1864 = vadd.f32 %v1795, %v1832
      %v1865 = vadd.f32 %v1796, %v1833
      %v1866 = vadd.f32 %v1797, %v1834
      %v1867 = vadd.f32 %v1798, %v1835
      %v1868 = vadd.f32 %v1799, %v1836
      %v1869 = vadd.f32 %v1800, %v1837
      %v1870 = vadd.f32 %v1801, %v1838
      %v1871 = vadd.f32 %v1802, %v1839
      %v1872 = vadd.f32 %v1803, %v1840
      %v1873 = vadd.f32 %v1804, %v1841
      %v1874 = vadd.f32 %v1805, %v1842
      %v1875 = vadd.f32 %v1806, %v1843
      %v1876 = vadd.f32 %v1807, %v1844
      %v1877 = vadd.f32 %v1808, %v1845
      %v1878 = vadd.f32 %v1809, %v1846
      %v1879 = vld [vmem:[%s2 + $0xf] sm:$0x1]
      %v1880 = vlaneseq
      %v1881 = vshrl.u32 %v1880, 7
      %v1882 = vsub.s32 0, %v1881
      %v1883 = vrot.slane %v1879, %v1882
      %v1884 = vmul.f32 %v1709, %v1883
      %v1885 = vmul.f32 %v1710, %v1883
      %v1886 = vmul.f32 %v1711, %v1883
      %v1887 = vmul.f32 %v1712, %v1883
      %v1888 = vmul.f32 %v1713, %v1883
      %v1889 = vmul.f32 %v1714, %v1883
      %v1890 = vmul.f32 %v1715, %v1883
      %v1891 = vmul.f32 %v1716, %v1883
      %v1892 = vmul.f32 %v1717, %v1883
      %v1893 = vmul.f32 %v1718, %v1883
      %v1894 = vmul.f32 %v1719, %v1883
      %v1895 = vmul.f32 %v1720, %v1883
      %v1896 = vmul.f32 %v1721, %v1883
      %v1897 = vmul.f32 %v1722, %v1883
      %v1898 = vmul.f32 %v1723, %v1883
      %v1899 = vmul.f32 %v1724, %v1883
      %v1900 = vmul.f32 %v1725, %v1883
      %v1901 = vmul.f32 %v1726, %v1883
      %v1902 = vmul.f32 %v1727, %v1883
      %v1903 = vmul.f32 %v1728, %v1883
      %v1904 = vmul.f32 %v1729, %v1883
      %v1905 = vmul.f32 %v1730, %v1883
      %v1906 = vmul.f32 %v1731, %v1883
      %v1907 = vmul.f32 %v1732, %v1883
      %v1908 = vmul.f32 %v1733, %v1883
      %v1909 = vmul.f32 %v1734, %v1883
      %v1910 = vmul.f32 %v1735, %v1883
      %v1911 = vmul.f32 %v1736, %v1883
      %v1912 = vmul.f32 %v1737, %v1883
      %v1913 = vmul.f32 %v1738, %v1883
      %v1914 = vmul.f32 %v1739, %v1883
      %v1915 = vmul.f32 %v1740, %v1883
      %v1916 = vadd.f32 %v1847, %v1884
      %v1917 = vadd.f32 %v1848, %v1885
      %v1918 = vadd.f32 %v1849, %v1886
      %v1919 = vadd.f32 %v1850, %v1887
      %v1920 = vadd.f32 %v1851, %v1888
      %v1921 = vadd.f32 %v1852, %v1889
      %v1922 = vadd.f32 %v1853, %v1890
      %v1923 = vadd.f32 %v1854, %v1891
      %v1924 = vadd.f32 %v1855, %v1892
      %v1925 = vadd.f32 %v1856, %v1893
      %v1926 = vadd.f32 %v1857, %v1894
      %v1927 = vadd.f32 %v1858, %v1895
      %v1928 = vadd.f32 %v1859, %v1896
      %v1929 = vadd.f32 %v1860, %v1897
      %v1930 = vadd.f32 %v1861, %v1898
      %v1931 = vadd.f32 %v1862, %v1899
      %v1932 = vadd.f32 %v1863, %v1900
      %v1933 = vadd.f32 %v1864, %v1901
      %v1934 = vadd.f32 %v1865, %v1902
      %v1935 = vadd.f32 %v1866, %v1903
      %v1936 = vadd.f32 %v1867, %v1904
      %v1937 = vadd.f32 %v1868, %v1905
      %v1938 = vadd.f32 %v1869, %v1906
      %v1939 = vadd.f32 %v1870, %v1907
      %v1940 = vadd.f32 %v1871, %v1908
      %v1941 = vadd.f32 %v1872, %v1909
      %v1942 = vadd.f32 %v1873, %v1910
      %v1943 = vadd.f32 %v1874, %v1911
      %v1944 = vadd.f32 %v1875, %v1912
      %v1945 = vadd.f32 %v1876, %v1913
      %v1946 = vadd.f32 %v1877, %v1914
      %v1947 = vadd.f32 %v1878, %v1915
      %v1948 = vld [vmem:[%s2 + $0xa] sm:$0x1]
      %v1949 = vlaneseq
      %v1950 = vshrl.u32 %v1949, 7
      %v1951 = vsub.s32 0, %v1950
      %v1952 = vrot.slane %v1948, %v1951
      %v1953 = vmul.f32 %v614, %v1952
      %v1954 = vmul.f32 %v615, %v1952
      %v1955 = vmul.f32 %v616, %v1952
      %v1956 = vmul.f32 %v617, %v1952
      %v1957 = vmul.f32 %v618, %v1952
      %v1958 = vmul.f32 %v619, %v1952
      %v1959 = vmul.f32 %v620, %v1952
      %v1960 = vmul.f32 %v621, %v1952
      %v1961 = vmul.f32 %v622, %v1952
      %v1962 = vmul.f32 %v623, %v1952
      %v1963 = vmul.f32 %v624, %v1952
      %v1964 = vmul.f32 %v625, %v1952
      %v1965 = vmul.f32 %v626, %v1952
      %v1966 = vmul.f32 %v627, %v1952
      %v1967 = vmul.f32 %v628, %v1952
      %v1968 = vmul.f32 %v629, %v1952
      %v1969 = vmul.f32 %v630, %v1952
      %v1970 = vmul.f32 %v631, %v1952
      %v1971 = vmul.f32 %v632, %v1952
      %v1972 = vmul.f32 %v633, %v1952
      %v1973 = vmul.f32 %v634, %v1952
      %v1974 = vmul.f32 %v635, %v1952
      %v1975 = vmul.f32 %v636, %v1952
      %v1976 = vmul.f32 %v637, %v1952
      %v1977 = vmul.f32 %v638, %v1952
      %v1978 = vmul.f32 %v639, %v1952
      %v1979 = vmul.f32 %v640, %v1952
      %v1980 = vmul.f32 %v641, %v1952
      %v1981 = vmul.f32 %v642, %v1952
      %v1982 = vmul.f32 %v643, %v1952
      %v1983 = vmul.f32 %v644, %v1952
      %v1984 = vmul.f32 %v645, %v1952
      %v1985 = vadd.f32 %v1916, %v1953
      %v1986 = vadd.f32 %v1917, %v1954
      %v1987 = vadd.f32 %v1918, %v1955
      %v1988 = vadd.f32 %v1919, %v1956
      %v1989 = vadd.f32 %v1920, %v1957
      %v1990 = vadd.f32 %v1921, %v1958
      %v1991 = vadd.f32 %v1922, %v1959
      %v1992 = vadd.f32 %v1923, %v1960
      %v1993 = vadd.f32 %v1924, %v1961
      %v1994 = vadd.f32 %v1925, %v1962
      %v1995 = vadd.f32 %v1926, %v1963
      %v1996 = vadd.f32 %v1927, %v1964
      %v1997 = vadd.f32 %v1928, %v1965
      %v1998 = vadd.f32 %v1929, %v1966
      %v1999 = vadd.f32 %v1930, %v1967
      %v2000 = vadd.f32 %v1931, %v1968
      %v2001 = vadd.f32 %v1932, %v1969
      %v2002 = vadd.f32 %v1933, %v1970
      %v2003 = vadd.f32 %v1934, %v1971
      %v2004 = vadd.f32 %v1935, %v1972
      %v2005 = vadd.f32 %v1936, %v1973
      %v2006 = vadd.f32 %v1937, %v1974
      %v2007 = vadd.f32 %v1938, %v1975
      %v2008 = vadd.f32 %v1939, %v1976
      %v2009 = vadd.f32 %v1940, %v1977
      %v2010 = vadd.f32 %v1941, %v1978
      %v2011 = vadd.f32 %v1942, %v1979
      %v2012 = vadd.f32 %v1943, %v1980
      %v2013 = vadd.f32 %v1944, %v1981
      %v2014 = vadd.f32 %v1945, %v1982
      %v2015 = vadd.f32 %v1946, %v1983
      %v2016 = vadd.f32 %v1947, %v1984
      %v2017 = vld [vmem:[%s2 + $0xd] sm:$0x1]
      %v2018 = vlaneseq
      %v2019 = vshrl.u32 %v2018, 7
      %v2020 = vsub.s32 0, %v2019
      %v2021 = vrot.slane %v2017, %v2020
      %v2022 = vmul.f32 %v618, %v2021
      %v2023 = vmul.f32 %v619, %v2021
      %v2024 = vmul.f32 %v620, %v2021
      %v2025 = vmul.f32 %v621, %v2021
      %v2026 = vmul.f32 %v622, %v2021
      %v2027 = vmul.f32 %v623, %v2021
      %v2028 = vmul.f32 %v624, %v2021
      %v2029 = vmul.f32 %v625, %v2021
      %v2030 = vmul.f32 %v626, %v2021
      %v2031 = vmul.f32 %v627, %v2021
      %v2032 = vmul.f32 %v628, %v2021
      %v2033 = vmul.f32 %v629, %v2021
      %v2034 = vmul.f32 %v630, %v2021
      %v2035 = vmul.f32 %v631, %v2021
      %v2036 = vmul.f32 %v632, %v2021
      %v2037 = vmul.f32 %v633, %v2021
      %v2038 = vmul.f32 %v634, %v2021
      %v2039 = vmul.f32 %v635, %v2021
      %v2040 = vmul.f32 %v636, %v2021
      %v2041 = vmul.f32 %v637, %v2021
      %v2042 = vmul.f32 %v638, %v2021
      %v2043 = vmul.f32 %v639, %v2021
      %v2044 = vmul.f32 %v640, %v2021
      %v2045 = vmul.f32 %v641, %v2021
      %v2046 = vmul.f32 %v642, %v2021
      %v2047 = vmul.f32 %v643, %v2021
      %v2048 = vmul.f32 %v644, %v2021
      %v2049 = vmul.f32 %v645, %v2021
      %v2050 = vmul.f32 %v646, %v2021
      %v2051 = vmul.f32 %v647, %v2021
      %v2052 = vmul.f32 %v648, %v2021
      %v2053 = vmul.f32 %v649, %v2021
      %v2054 = vadd.f32 %v1985, %v2022
      %v2055 = vadd.f32 %v1986, %v2023
      %v2056 = vadd.f32 %v1987, %v2024
      %v2057 = vadd.f32 %v1988, %v2025
      %v2058 = vadd.f32 %v1989, %v2026
      %v2059 = vadd.f32 %v1990, %v2027
      %v2060 = vadd.f32 %v1991, %v2028
      %v2061 = vadd.f32 %v1992, %v2029
      %v2062 = vadd.f32 %v1993, %v2030
      %v2063 = vadd.f32 %v1994, %v2031
      %v2064 = vadd.f32 %v1995, %v2032
      %v2065 = vadd.f32 %v1996, %v2033
      %v2066 = vadd.f32 %v1997, %v2034
      %v2067 = vadd.f32 %v1998, %v2035
      %v2068 = vadd.f32 %v1999, %v2036
      %v2069 = vadd.f32 %v2000, %v2037
      %v2070 = vadd.f32 %v2001, %v2038
      %v2071 = vadd.f32 %v2002, %v2039
      %v2072 = vadd.f32 %v2003, %v2040
      %v2073 = vadd.f32 %v2004, %v2041
      %v2074 = vadd.f32 %v2005, %v2042
      %v2075 = vadd.f32 %v2006, %v2043
      %v2076 = vadd.f32 %v2007, %v2044
      %v2077 = vadd.f32 %v2008, %v2045
      %v2078 = vadd.f32 %v2009, %v2046
      %v2079 = vadd.f32 %v2010, %v2047
      %v2080 = vadd.f32 %v2011, %v2048
      %v2081 = vadd.f32 %v2012, %v2049
      %v2082 = vadd.f32 %v2013, %v2050
      %v2083 = vadd.f32 %v2014, %v2051
      %v2084 = vadd.f32 %v2015, %v2052
      %v2085 = vadd.f32 %v2016, %v2053
      %v2086 = vld [vmem:[%s2 + $0x10] sm:$0x1]
      %v2087 = vlaneseq
      %v2088 = vshrl.u32 %v2087, 7
      %v2089 = vsub.s32 0, %v2088
      %v2090 = vrot.slane %v2086, %v2089
      %v2091 = vmul.f32 %v622, %v2090
      %v2092 = vmul.f32 %v623, %v2090
      %v2093 = vmul.f32 %v624, %v2090
      %v2094 = vmul.f32 %v625, %v2090
      %v2095 = vmul.f32 %v626, %v2090
      %v2096 = vmul.f32 %v627, %v2090
      %v2097 = vmul.f32 %v628, %v2090
      %v2098 = vmul.f32 %v629, %v2090
      %v2099 = vmul.f32 %v630, %v2090
      %v2100 = vmul.f32 %v631, %v2090
      %v2101 = vmul.f32 %v632, %v2090
      %v2102 = vmul.f32 %v633, %v2090
      %v2103 = vmul.f32 %v634, %v2090
      %v2104 = vmul.f32 %v635, %v2090
      %v2105 = vmul.f32 %v636, %v2090
      %v2106 = vmul.f32 %v637, %v2090
      %v2107 = vmul.f32 %v638, %v2090
      %v2108 = vmul.f32 %v639, %v2090
      %v2109 = vmul.f32 %v640, %v2090
      %v2110 = vmul.f32 %v641, %v2090
      %v2111 = vmul.f32 %v642, %v2090
      %v2112 = vmul.f32 %v643, %v2090
      %v2113 = vmul.f32 %v644, %v2090
      %v2114 = vmul.f32 %v645, %v2090
      %v2115 = vmul.f32 %v646, %v2090
      %v2116 = vmul.f32 %v647, %v2090
      %v2117 = vmul.f32 %v648, %v2090
      %v2118 = vmul.f32 %v649, %v2090
      %v2119 = vmul.f32 %v650, %v2090
      %v2120 = vmul.f32 %v651, %v2090
      %v2121 = vmul.f32 %v652, %v2090
      %v2122 = vmul.f32 %v653, %v2090
      %v2123 = vadd.f32 %v2054, %v2091
      %v2124 = vadd.f32 %v2055, %v2092
      %v2125 = vadd.f32 %v2056, %v2093
      %v2126 = vadd.f32 %v2057, %v2094
      %v2127 = vadd.f32 %v2058, %v2095
      %v2128 = vadd.f32 %v2059, %v2096
      %v2129 = vadd.f32 %v2060, %v2097
      %v2130 = vadd.f32 %v2061, %v2098
      %v2131 = vadd.f32 %v2062, %v2099
      %v2132 = vadd.f32 %v2063, %v2100
      %v2133 = vadd.f32 %v2064, %v2101
      %v2134 = vadd.f32 %v2065, %v2102
      %v2135 = vadd.f32 %v2066, %v2103
      %v2136 = vadd.f32 %v2067, %v2104
      %v2137 = vadd.f32 %v2068, %v2105
      %v2138 = vadd.f32 %v2069, %v2106
      %v2139 = vadd.f32 %v2070, %v2107
      %v2140 = vadd.f32 %v2071, %v2108
      %v2141 = vadd.f32 %v2072, %v2109
      %v2142 = vadd.f32 %v2073, %v2110
      %v2143 = vadd.f32 %v2074, %v2111
      %v2144 = vadd.f32 %v2075, %v2112
      %v2145 = vadd.f32 %v2076, %v2113
      %v2146 = vadd.f32 %v2077, %v2114
      %v2147 = vadd.f32 %v2078, %v2115
      %v2148 = vadd.f32 %v2079, %v2116
      %v2149 = vadd.f32 %v2080, %v2117
      %v2150 = vadd.f32 %v2081, %v2118
      %v2151 = vadd.f32 %v2082, %v2119
      %v2152 = vadd.f32 %v2083, %v2120
      %v2153 = vadd.f32 %v2084, %v2121
      %v2154 = vadd.f32 %v2085, %v2122
      %v2155 = vld [vmem:[%s350 + $0x36] sm:$0xff]
      %v2156 = vld [vmem:[%s350 + $0x3e] sm:$0xff]
      %v2157 = vld [vmem:[%s350 + $0x4e] sm:$0xff]
      %v2158 = vld [vmem:[%s350 + $0x56] sm:$0xff]
      %v2159 = vld [vmem:[%s350 + $0x66] sm:$0xff]
      %v2160 = vld [vmem:[%s350 + $0x6e] sm:$0xff]
      %v2161 = vld [vmem:[%s350 + $0x7e] sm:$0xff]
      %v2162 = vld [vmem:[%s350 + $0x86] sm:$0xff]
      %v2163 = vld [vmem:[%s350 + $0x96] sm:$0xff]
      %v2164 = vld [vmem:[%s350 + $0x9e] sm:$0xff]
      %v2165 = vld [vmem:[%s350 + $0xae] sm:$0xff]
      %v2166 = vld [vmem:[%s350 + $0xb6] sm:$0xff]
      %v2167 = vld [vmem:[%s350 + $0xc6] sm:$0xff]
      %v2168 = vld [vmem:[%s350 + $0xce] sm:$0xff]
      %v2169 = vld [vmem:[%s350 + $0xde] sm:$0xff]
      %v2170 = vld [vmem:[%s350 + $0xe6] sm:$0xff]
      %v2171 = vld [vmem:[%s350 + $0xf6] sm:$0xff]
      %v2172 = vld [vmem:[%s350 + $0xfe] sm:$0xff]
      %v2173 = vld [vmem:[%s350 + $0x10e] sm:$0xff]
      %v2174 = vld [vmem:[%s350 + $0x116] sm:$0xff]
      %v2175 = vld [vmem:[%s350 + $0x126] sm:$0xff]
      %v2176 = vld [vmem:[%s350 + $0x12e] sm:$0xff]
      %v2177 = vld [vmem:[%s350 + $0x13e] sm:$0xff]
      %v2178 = vld [vmem:[%s350 + $0x146] sm:$0xff]
      %v2179 = vld [vmem:[%s350 + $0x156] sm:$0xff]
      %v2180 = vld [vmem:[%s350 + $0x15e] sm:$0xff]
      %v2181 = vld [vmem:[%s350 + $0x16e] sm:$0xff]
      %v2182 = vld [vmem:[%s350 + $0x176] sm:$0xff]
      %v2183 = vld [vmem:[%s350 + $0x186] sm:$0xff]
      %v2184 = vld [vmem:[%s350 + $0x18e] sm:$0xff]
      %v2185 = vld [vmem:[%s350 + $0x19e] sm:$0xff]
      %v2186 = vld [vmem:[%s350 + $0x1a6] sm:$0xff]
      %v2187 = vld [vmem:[%s350 + $0x1b6] sm:$0xff]
      %v2188 = vld [vmem:[%s350 + $0x1be] sm:$0xff]
      %v2189 = vld [vmem:[%s350 + $0x1ce] sm:$0xff]
      %v2190 = vld [vmem:[%s350 + $0x1d6] sm:$0xff]
      %v2191 = vld [vmem:[%s350 + $0x1e6] sm:$0xff]
      %v2192 = vld [vmem:[%s350 + $0x1ee] sm:$0xff]
      %v2193 = vld [vmem:[%s350 + $0x1fe] sm:$0xff]
      %v2194 = vld [vmem:[%s350 + $0x206] sm:$0xff]
      %v2195 = vld [vmem:[%s2 + $0xb] sm:$0x1]
      %v2196 = vlaneseq
      %v2197 = vshrl.u32 %v2196, 7
      %v2198 = vsub.s32 0, %v2197
      %v2199 = vrot.slane %v2195, %v2198
      %v2200 = vmul.f32 %v2155, %v2199
      %v2201 = vmul.f32 %v2156, %v2199
      %v2202 = vmul.f32 %v2157, %v2199
      %v2203 = vmul.f32 %v2158, %v2199
      %v2204 = vmul.f32 %v2159, %v2199
      %v2205 = vmul.f32 %v2160, %v2199
      %v2206 = vmul.f32 %v2161, %v2199
      %v2207 = vmul.f32 %v2162, %v2199
      %v2208 = vmul.f32 %v2163, %v2199
      %v2209 = vmul.f32 %v2164, %v2199
      %v2210 = vmul.f32 %v2165, %v2199
      %v2211 = vmul.f32 %v2166, %v2199
      %v2212 = vmul.f32 %v2167, %v2199
      %v2213 = vmul.f32 %v2168, %v2199
      %v2214 = vmul.f32 %v2169, %v2199
      %v2215 = vmul.f32 %v2170, %v2199
      %v2216 = vmul.f32 %v2171, %v2199
      %v2217 = vmul.f32 %v2172, %v2199
      %v2218 = vmul.f32 %v2173, %v2199
      %v2219 = vmul.f32 %v2174, %v2199
      %v2220 = vmul.f32 %v2175, %v2199
      %v2221 = vmul.f32 %v2176, %v2199
      %v2222 = vmul.f32 %v2177, %v2199
      %v2223 = vmul.f32 %v2178, %v2199
      %v2224 = vmul.f32 %v2179, %v2199
      %v2225 = vmul.f32 %v2180, %v2199
      %v2226 = vmul.f32 %v2181, %v2199
      %v2227 = vmul.f32 %v2182, %v2199
      %v2228 = vmul.f32 %v2183, %v2199
      %v2229 = vmul.f32 %v2184, %v2199
      %v2230 = vmul.f32 %v2185, %v2199
      %v2231 = vmul.f32 %v2186, %v2199
      %v2232 = vadd.f32 %v2123, %v2200
      %v2233 = vadd.f32 %v2124, %v2201
      %v2234 = vadd.f32 %v2125, %v2202
      %v2235 = vadd.f32 %v2126, %v2203
      %v2236 = vadd.f32 %v2127, %v2204
      %v2237 = vadd.f32 %v2128, %v2205
      %v2238 = vadd.f32 %v2129, %v2206
      %v2239 = vadd.f32 %v2130, %v2207
      %v2240 = vadd.f32 %v2131, %v2208
      %v2241 = vadd.f32 %v2132, %v2209
      %v2242 = vadd.f32 %v2133, %v2210
      %v2243 = vadd.f32 %v2134, %v2211
      %v2244 = vadd.f32 %v2135, %v2212
      %v2245 = vadd.f32 %v2136, %v2213
      %v2246 = vadd.f32 %v2137, %v2214
      %v2247 = vadd.f32 %v2138, %v2215
      %v2248 = vadd.f32 %v2139, %v2216
      %v2249 = vadd.f32 %v2140, %v2217
      %v2250 = vadd.f32 %v2141, %v2218
      %v2251 = vadd.f32 %v2142, %v2219
      %v2252 = vadd.f32 %v2143, %v2220
      %v2253 = vadd.f32 %v2144, %v2221
      %v2254 = vadd.f32 %v2145, %v2222
      %v2255 = vadd.f32 %v2146, %v2223
      %v2256 = vadd.f32 %v2147, %v2224
      %v2257 = vadd.f32 %v2148, %v2225
      %v2258 = vadd.f32 %v2149, %v2226
      %v2259 = vadd.f32 %v2150, %v2227
      %v2260 = vadd.f32 %v2151, %v2228
      %v2261 = vadd.f32 %v2152, %v2229
      %v2262 = vadd.f32 %v2153, %v2230
      %v2263 = vadd.f32 %v2154, %v2231
      %v2264 = vld [vmem:[%s2 + $0xe] sm:$0x1]
      %v2265 = vlaneseq
      %v2266 = vshrl.u32 %v2265, 7
      %v2267 = vsub.s32 0, %v2266
      %v2268 = vrot.slane %v2264, %v2267
      %v2269 = vmul.f32 %v2159, %v2268
      %v2270 = vmul.f32 %v2160, %v2268
      %v2271 = vmul.f32 %v2161, %v2268
      %v2272 = vmul.f32 %v2162, %v2268
      %v2273 = vmul.f32 %v2163, %v2268
      %v2274 = vmul.f32 %v2164, %v2268
      %v2275 = vmul.f32 %v2165, %v2268
      %v2276 = vmul.f32 %v2166, %v2268
      %v2277 = vmul.f32 %v2167, %v2268
      %v2278 = vmul.f32 %v2168, %v2268
      %v2279 = vmul.f32 %v2169, %v2268
      %v2280 = vmul.f32 %v2170, %v2268
      %v2281 = vmul.f32 %v2171, %v2268
      %v2282 = vmul.f32 %v2172, %v2268
      %v2283 = vmul.f32 %v2173, %v2268
      %v2284 = vmul.f32 %v2174, %v2268
      %v2285 = vmul.f32 %v2175, %v2268
      %v2286 = vmul.f32 %v2176, %v2268
      %v2287 = vmul.f32 %v2177, %v2268
      %v2288 = vmul.f32 %v2178, %v2268
      %v2289 = vmul.f32 %v2179, %v2268
      %v2290 = vmul.f32 %v2180, %v2268
      %v2291 = vmul.f32 %v2181, %v2268
      %v2292 = vmul.f32 %v2182, %v2268
      %v2293 = vmul.f32 %v2183, %v2268
      %v2294 = vmul.f32 %v2184, %v2268
      %v2295 = vmul.f32 %v2185, %v2268
      %v2296 = vmul.f32 %v2186, %v2268
      %v2297 = vmul.f32 %v2187, %v2268
      %v2298 = vmul.f32 %v2188, %v2268
      %v2299 = vmul.f32 %v2189, %v2268
      %v2300 = vmul.f32 %v2190, %v2268
      %v2301 = vadd.f32 %v2232, %v2269
      %v2302 = vadd.f32 %v2233, %v2270
      %v2303 = vadd.f32 %v2234, %v2271
      %v2304 = vadd.f32 %v2235, %v2272
      %v2305 = vadd.f32 %v2236, %v2273
      %v2306 = vadd.f32 %v2237, %v2274
      %v2307 = vadd.f32 %v2238, %v2275
      %v2308 = vadd.f32 %v2239, %v2276
      %v2309 = vadd.f32 %v2240, %v2277
      %v2310 = vadd.f32 %v2241, %v2278
      %v2311 = vadd.f32 %v2242, %v2279
      %v2312 = vadd.f32 %v2243, %v2280
      %v2313 = vadd.f32 %v2244, %v2281
      %v2314 = vadd.f32 %v2245, %v2282
      %v2315 = vadd.f32 %v2246, %v2283
      %v2316 = vadd.f32 %v2247, %v2284
      %v2317 = vadd.f32 %v2248, %v2285
      %v2318 = vadd.f32 %v2249, %v2286
      %v2319 = vadd.f32 %v2250, %v2287
      %v2320 = vadd.f32 %v2251, %v2288
      %v2321 = vadd.f32 %v2252, %v2289
      %v2322 = vadd.f32 %v2253, %v2290
      %v2323 = vadd.f32 %v2254, %v2291
      %v2324 = vadd.f32 %v2255, %v2292
      %v2325 = vadd.f32 %v2256, %v2293
      %v2326 = vadd.f32 %v2257, %v2294
      %v2327 = vadd.f32 %v2258, %v2295
      %v2328 = vadd.f32 %v2259, %v2296
      %v2329 = vadd.f32 %v2260, %v2297
      %v2330 = vadd.f32 %v2261, %v2298
      %v2331 = vadd.f32 %v2262, %v2299
      %v2332 = vadd.f32 %v2263, %v2300
      %v2333 = vld [vmem:[%s2 + $0x11] sm:$0x1]
      %v2334 = vlaneseq
      %v2335 = vshrl.u32 %v2334, 7
      %v2336 = vsub.s32 0, %v2335
      %v2337 = vrot.slane %v2333, %v2336
      %v2338 = vmul.f32 %v2163, %v2337
      %v2339 = vmul.f32 %v2164, %v2337
      %v2340 = vmul.f32 %v2165, %v2337
      %v2341 = vmul.f32 %v2166, %v2337
      %v2342 = vmul.f32 %v2167, %v2337
      %v2343 = vmul.f32 %v2168, %v2337
      %v2344 = vmul.f32 %v2169, %v2337
      %v2345 = vmul.f32 %v2170, %v2337
      %v2346 = vmul.f32 %v2171, %v2337
      %v2347 = vmul.f32 %v2172, %v2337
      %v2348 = vmul.f32 %v2173, %v2337
      %v2349 = vmul.f32 %v2174, %v2337
      %v2350 = vmul.f32 %v2175, %v2337
      %v2351 = vmul.f32 %v2176, %v2337
      %v2352 = vmul.f32 %v2177, %v2337
      %v2353 = vmul.f32 %v2178, %v2337
      %v2354 = vmul.f32 %v2179, %v2337
      %v2355 = vmul.f32 %v2180, %v2337
      %v2356 = vmul.f32 %v2181, %v2337
      %v2357 = vmul.f32 %v2182, %v2337
      %v2358 = vmul.f32 %v2183, %v2337
      %v2359 = vmul.f32 %v2184, %v2337
      %v2360 = vmul.f32 %v2185, %v2337
      %v2361 = vmul.f32 %v2186, %v2337
      %v2362 = vmul.f32 %v2187, %v2337
      %v2363 = vmul.f32 %v2188, %v2337
      %v2364 = vmul.f32 %v2189, %v2337
      %v2365 = vmul.f32 %v2190, %v2337
      %v2366 = vmul.f32 %v2191, %v2337
      %v2367 = vmul.f32 %v2192, %v2337
      %v2368 = vmul.f32 %v2193, %v2337
      %v2369 = vmul.f32 %v2194, %v2337
      %v2370 = vadd.f32 %v2301, %v2338
      %v2371 = vadd.f32 %v2302, %v2339
      %v2372 = vadd.f32 %v2303, %v2340
      %v2373 = vadd.f32 %v2304, %v2341
      %v2374 = vadd.f32 %v2305, %v2342
      %v2375 = vadd.f32 %v2306, %v2343
      %v2376 = vadd.f32 %v2307, %v2344
      %v2377 = vadd.f32 %v2308, %v2345
      %v2378 = vadd.f32 %v2309, %v2346
      %v2379 = vadd.f32 %v2310, %v2347
      %v2380 = vadd.f32 %v2311, %v2348
      %v2381 = vadd.f32 %v2312, %v2349
      %v2382 = vadd.f32 %v2313, %v2350
      %v2383 = vadd.f32 %v2314, %v2351
      %v2384 = vadd.f32 %v2315, %v2352
      %v2385 = vadd.f32 %v2316, %v2353
      %v2386 = vadd.f32 %v2317, %v2354
      %v2387 = vadd.f32 %v2318, %v2355
      %v2388 = vadd.f32 %v2319, %v2356
      %v2389 = vadd.f32 %v2320, %v2357
      %v2390 = vadd.f32 %v2321, %v2358
      %v2391 = vadd.f32 %v2322, %v2359
      %v2392 = vadd.f32 %v2323, %v2360
      %v2393 = vadd.f32 %v2324, %v2361
      %v2394 = vadd.f32 %v2325, %v2362
      %v2395 = vadd.f32 %v2326, %v2363
      %v2396 = vadd.f32 %v2327, %v2364
      %v2397 = vadd.f32 %v2328, %v2365
      %v2398 = vadd.f32 %v2329, %v2366
      %v2399 = vadd.f32 %v2330, %v2367
      %v2400 = vadd.f32 %v2331, %v2368
      %v2401 = vadd.f32 %v2332, %v2369
      %v2402 = vpack.c.bf16 %v2371, %v2370
      %v2403 = vpack.c.bf16 %v2373, %v2372
      %v2404 = vpack.c.bf16 %v2375, %v2374
      %v2405 = vpack.c.bf16 %v2377, %v2376
      %v2406 = vpack.c.bf16 %v2379, %v2378
      %v2407 = vpack.c.bf16 %v2381, %v2380
      %v2408 = vpack.c.bf16 %v2383, %v2382
      %v2409 = vpack.c.bf16 %v2385, %v2384
      %v2410 = vpack.c.bf16 %v2387, %v2386
      %v2411 = vpack.c.bf16 %v2389, %v2388
      %v2412 = vpack.c.bf16 %v2391, %v2390
      %v2413 = vpack.c.bf16 %v2393, %v2392
      %v2414 = vpack.c.bf16 %v2395, %v2394
      %v2415 = vpack.c.bf16 %v2397, %v2396
      %v2416 = vpack.c.bf16 %v2399, %v2398
      %v2417 = vpack.c.bf16 %v2401, %v2400
      %v2418 = vld [vmem:[%s4 + $0x10] sm:$0xf]
      %v2419 = vld [vmem:[%s4 + $0x14] sm:$0xf]
      %v2420 = vld [vmem:[%s4 + $0x18] sm:$0xf]
      %v2421 = vld [vmem:[%s4 + $0x1c] sm:$0xf]
      %v2426 = vunpack.c.l.b16 %v2418
      %v2427 = vunpack.c.l.b16 %v2419
      %v2428 = vunpack.c.l.b16 %v2420
      %v2429 = vunpack.c.l.b16 %v2421
      %v2430 = vpack.c.b16 %v2427, %v2426
      %v2431 = vpack.c.b16 %v2429, %v2428
      %v2435 = vsel %vm1140, %v2402, 0
      %v2438 = vsel %vm1140, %v2403, 0
      %v2441 = vsel %vm1140, %v2404, 0
      %v2444 = vsel %vm1140, %v2405, 0
      %v2447 = vsel %vm1140, %v2406, 0
      %v2450 = vsel %vm1140, %v2407, 0
      %v2453 = vsel %vm1140, %v2408, 0
      %v2456 = vsel %vm1140, %v2409, 0
      %v2459 = vsel %vm1140, %v2410, 0
      %v2462 = vsel %vm1140, %v2411, 0
      %v2465 = vsel %vm1140, %v2412, 0
      %v2468 = vsel %vm1140, %v2413, 0
      %v2471 = vsel %vm1140, %v2414, 0
      %v2474 = vsel %vm1140, %v2415, 0
      %v2477 = vsel %vm1140, %v2416, 0
      %v2480 = vsel %vm1140, %v2417, 0
      %2482 = vmatprep.subr.bf16.mxu0 0
      %2483 = vmatpush1.bf16.msra.mxu0 %v2430
      %2484 = vmatprep.subr.bf16.mxu0 0
      %2485 = vmatpush1.bf16.msra.mxu0 %v2431
      %2486 = vmatprep.subr.bf16.mxu0 0
      %2487 = vmatpush1.bf16.msra.mxu0 0
      %2488 = vmatprep.subr.bf16.mxu0 0
      %2489 = vmatpush1.bf16.msra.mxu0 0
      %2490 = vmatprep.subr.bf16.mxu0 0
      %2491 = vmatpush1.bf16.msra.mxu0 0
      %2492 = vmatprep.subr.bf16.mxu0 0
      %2493 = vmatpush1.bf16.msra.mxu0 0
      %2494 = vmatprep.subr.bf16.mxu0 0
      %2495 = vmatpush1.bf16.msra.mxu0 0
      %2496 = vmatprep.subr.bf16.mxu0 0
      %2497 = vmatpush1.bf16.msra.mxu0 0
      %2498 = vmatprep.subr.bf16.mxu0 0
      %2499 = vmatpush1.bf16.msra.mxu0 0
      %2500 = vmatprep.subr.bf16.mxu0 0
      %2501 = vmatpush1.bf16.msra.mxu0 0
      %2502 = vmatprep.subr.bf16.mxu0 0
      %2503 = vmatpush1.bf16.msra.mxu0 0
      %2504 = vmatprep.subr.bf16.mxu0 0
      %2505 = vmatpush1.bf16.msra.mxu0 0
      %2506 = vmatprep.subr.bf16.mxu0 0
      %2507 = vmatpush1.bf16.msra.mxu0 0
      %2508 = vmatprep.subr.bf16.mxu0 0
      %2509 = vmatpush1.bf16.msra.mxu0 0
      %2510 = vmatprep.subr.bf16.mxu0 0
      %2511 = vmatpush1.bf16.msra.mxu0 0
      %2512 = vmatprep.subr.bf16.mxu0 0
      %2513 = vmatpush1.bf16.msra.mxu0 0
      %2514 = vmatprep.mubr.bf16.mxu0 0
      %2515 = vmatmul.mubr.bf16.gmra.mrb[0].mxu0 %v2435
      %v2516 = vpop.f32.mrb[0].mxu0
      %v2517 = vadd.f32 0.0, %v2516
      %v2518 = vpop.f32.mrb[0].mxu0
      %v2519 = vpop.f32.mrb[0].mxu0
      %v2520 = vadd.f32 0.0, %v2519
      %v2521 = vpop.f32.mrb[0].mxu0
      %2522 = vmatprep.mubr.bf16.mxu0 0
      %2523 = vmatmul.mubr.bf16.gmra.mrb[0].mxu0 %v2438
      %v2524 = vpop.f32.mrb[0].mxu0
      %v2525 = vadd.f32 0.0, %v2524
      %v2526 = vpop.f32.mrb[0].mxu0
      %v2527 = vpop.f32.mrb[0].mxu0
      %v2528 = vadd.f32 0.0, %v2527
      %v2529 = vpop.f32.mrb[0].mxu0
      %2530 = vmatprep.mubr.bf16.mxu0 0
      %2531 = vmatmul.mubr.bf16.gmra.mrb[0].mxu0 %v2441
      %v2532 = vpop.f32.mrb[0].mxu0
      %v2533 = vadd.f32 0.0, %v2532
      %v2534 = vpop.f32.mrb[0].mxu0
      %v2535 = vpop.f32.mrb[0].mxu0
      %v2536 = vadd.f32 0.0, %v2535
      %v2537 = vpop.f32.mrb[0].mxu0
      %2538 = vmatprep.mubr.bf16.mxu0 0
      %2539 = vmatmul.mubr.bf16.gmra.mrb[0].mxu0 %v2444
      %v2540 = vpop.f32.mrb[0].mxu0
      %v2541 = vadd.f32 0.0, %v2540
      %v2542 = vpop.f32.mrb[0].mxu0
      %v2543 = vpop.f32.mrb[0].mxu0
      %v2544 = vadd.f32 0.0, %v2543
      %v2545 = vpop.f32.mrb[0].mxu0
      %2546 = vmatprep.mubr.bf16.mxu0 0
      %2547 = vmatmul.mubr.bf16.gmra.mrb[0].mxu0 %v2447
      %v2548 = vpop.f32.mrb[0].mxu0
      %v2549 = vadd.f32 0.0, %v2548
      %v2550 = vpop.f32.mrb[0].mxu0
      %v2551 = vpop.f32.mrb[0].mxu0
      %v2552 = vadd.f32 0.0, %v2551
      %v2553 = vpop.f32.mrb[0].mxu0
      %2554 = vmatprep.mubr.bf16.mxu0 0
      %2555 = vmatmul.mubr.bf16.gmra.mrb[0].mxu0 %v2450
      %v2556 = vpop.f32.mrb[0].mxu0
      %v2557 = vadd.f32 0.0, %v2556
      %v2558 = vpop.f32.mrb[0].mxu0
      %v2559 = vpop.f32.mrb[0].mxu0
      %v2560 = vadd.f32 0.0, %v2559
      %v2561 = vpop.f32.mrb[0].mxu0
      %2562 = vmatprep.mubr.bf16.mxu0 0
      %2563 = vmatmul.mubr.bf16.gmra.mrb[0].mxu0 %v2453
      %v2564 = vpop.f32.mrb[0].mxu0
      %v2565 = vadd.f32 0.0, %v2564
      %v2566 = vpop.f32.mrb[0].mxu0
      %v2567 = vpop.f32.mrb[0].mxu0
      %v2568 = vadd.f32 0.0, %v2567
      %v2569 = vpop.f32.mrb[0].mxu0
      %2570 = vmatprep.mubr.bf16.mxu0 0
      %2571 = vmatmul.mubr.bf16.gmra.mrb[0].mxu0 %v2456
      %v2572 = vpop.f32.mrb[0].mxu0
      %v2573 = vadd.f32 0.0, %v2572
      %v2574 = vpop.f32.mrb[0].mxu0
      %v2575 = vpop.f32.mrb[0].mxu0
      %v2576 = vadd.f32 0.0, %v2575
      %v2577 = vpop.f32.mrb[0].mxu0
      %2578 = vmatprep.mubr.bf16.mxu0 0
      %2579 = vmatmul.mubr.bf16.gmra.mrb[0].mxu0 %v2459
      %v2580 = vpop.f32.mrb[0].mxu0
      %v2581 = vadd.f32 0.0, %v2580
      %v2582 = vpop.f32.mrb[0].mxu0
      %v2583 = vpop.f32.mrb[0].mxu0
      %v2584 = vadd.f32 0.0, %v2583
      %v2585 = vpop.f32.mrb[0].mxu0
      %2586 = vmatprep.mubr.bf16.mxu0 0
      %2587 = vmatmul.mubr.bf16.gmra.mrb[0].mxu0 %v2462
      %v2588 = vpop.f32.mrb[0].mxu0
      %v2589 = vadd.f32 0.0, %v2588
      %v2590 = vpop.f32.mrb[0].mxu0
      %v2591 = vpop.f32.mrb[0].mxu0
      %v2592 = vadd.f32 0.0, %v2591
      %v2593 = vpop.f32.mrb[0].mxu0
      %2594 = vmatprep.mubr.bf16.mxu0 0
      %2595 = vmatmul.mubr.bf16.gmra.mrb[0].mxu0 %v2465
      %v2596 = vpop.f32.mrb[0].mxu0
      %v2597 = vadd.f32 0.0, %v2596
      %v2598 = vpop.f32.mrb[0].mxu0
      %v2599 = vpop.f32.mrb[0].mxu0
      %v2600 = vadd.f32 0.0, %v2599
      %v2601 = vpop.f32.mrb[0].mxu0
      %2602 = vmatprep.mubr.bf16.mxu0 0
      %2603 = vmatmul.mubr.bf16.gmra.mrb[0].mxu0 %v2468
      %v2604 = vpop.f32.mrb[0].mxu0
      %v2605 = vadd.f32 0.0, %v2604
      %v2606 = vpop.f32.mrb[0].mxu0
      %v2607 = vpop.f32.mrb[0].mxu0
      %v2608 = vadd.f32 0.0, %v2607
      %v2609 = vpop.f32.mrb[0].mxu0
      %2610 = vmatprep.mubr.bf16.mxu0 0
      %2611 = vmatmul.mubr.bf16.gmra.mrb[0].mxu0 %v2471
      %v2612 = vpop.f32.mrb[0].mxu0
      %v2613 = vadd.f32 0.0, %v2612
      %v2614 = vpop.f32.mrb[0].mxu0
      %v2615 = vpop.f32.mrb[0].mxu0
      %v2616 = vadd.f32 0.0, %v2615
      %v2617 = vpop.f32.mrb[0].mxu0
      %2618 = vmatprep.mubr.bf16.mxu0 0
      %2619 = vmatmul.mubr.bf16.gmra.mrb[0].mxu0 %v2474
      %v2620 = vpop.f32.mrb[0].mxu0
      %v2621 = vadd.f32 0.0, %v2620
      %v2622 = vpop.f32.mrb[0].mxu0
      %v2623 = vpop.f32.mrb[0].mxu0
      %v2624 = vadd.f32 0.0, %v2623
      %v2625 = vpop.f32.mrb[0].mxu0
      %2626 = vmatprep.mubr.bf16.mxu0 0
      %2627 = vmatmul.mubr.bf16.gmra.mrb[0].mxu0 %v2477
      %v2628 = vpop.f32.mrb[0].mxu0
      %v2629 = vadd.f32 0.0, %v2628
      %v2630 = vpop.f32.mrb[0].mxu0
      %v2631 = vpop.f32.mrb[0].mxu0
      %v2632 = vadd.f32 0.0, %v2631
      %v2633 = vpop.f32.mrb[0].mxu0
      %2634 = vmatprep.mubr.bf16.mxu0 0
      %2635 = vmatmul.mubr.bf16.gmra.mrb[0].mxu0 %v2480
      %v2636 = vpop.f32.mrb[0].mxu0
      %v2637 = vadd.f32 0.0, %v2636
      %v2638 = vpop.f32.mrb[0].mxu0
      %v2639 = vpop.f32.mrb[0].mxu0
      %v2640 = vadd.f32 0.0, %v2639
      %v2641 = vpop.f32.mrb[0].mxu0
      %2642 = vdwg.mxu0
      %v2643 = vld [vmem:[%s3 + $0x9] sm:$0x1]
      %v2644 = vlaneseq
      %v2645 = vshrl.u32 %v2644, 7
      %v2646 = vsub.s32 0, %v2645
      %v2647 = vrot.slane %v2643, %v2646
      %v2648 = vmul.f32 %v1350, %v2647
      %v2649 = vmul.f32 %v1351, %v2647
      %v2650 = vmul.f32 %v1352, %v2647
      %v2651 = vmul.f32 %v1353, %v2647
      %v2652 = vmul.f32 %v1354, %v2647
      %v2653 = vmul.f32 %v1355, %v2647
      %v2654 = vmul.f32 %v1356, %v2647
      %v2655 = vmul.f32 %v1357, %v2647
      %v2656 = vadd.f32 %v2648, 0.0
      %v2657 = vadd.f32 %v2649, 0.0
      %v2658 = vadd.f32 %v2650, 0.0
      %v2659 = vadd.f32 %v2651, 0.0
      %v2660 = vadd.f32 %v2652, 0.0
      %v2661 = vadd.f32 %v2653, 0.0
      %v2662 = vadd.f32 %v2654, 0.0
      %v2663 = vadd.f32 %v2655, 0.0
      %v2664 = vld [vmem:[%s3 + $0xc] sm:$0x1]
      %v2665 = vlaneseq
      %v2666 = vshrl.u32 %v2665, 7
      %v2667 = vsub.s32 0, %v2666
      %v2668 = vrot.slane %v2664, %v2667
      %v2669 = vmul.f32 %v1351, %v2668
      %v2670 = vmul.f32 %v1352, %v2668
      %v2671 = vmul.f32 %v1353, %v2668
      %v2672 = vmul.f32 %v1354, %v2668
      %v2673 = vmul.f32 %v1355, %v2668
      %v2674 = vmul.f32 %v1356, %v2668
      %v2675 = vmul.f32 %v1357, %v2668
      %v2676 = vmul.f32 %v1358, %v2668
      %v2677 = vadd.f32 %v2656, %v2669
      %v2678 = vadd.f32 %v2657, %v2670
      %v2679 = vadd.f32 %v2658, %v2671
      %v2680 = vadd.f32 %v2659, %v2672
      %v2681 = vadd.f32 %v2660, %v2673
      %v2682 = vadd.f32 %v2661, %v2674
      %v2683 = vadd.f32 %v2662, %v2675
      %v2684 = vadd.f32 %v2663, %v2676
      %v2685 = vld [vmem:[%s3 + $0xf] sm:$0x1]
      %v2686 = vlaneseq
      %v2687 = vshrl.u32 %v2686, 7
      %v2688 = vsub.s32 0, %v2687
      %v2689 = vrot.slane %v2685, %v2688
      %v2690 = vmul.f32 %v1352, %v2689
      %v2691 = vmul.f32 %v1353, %v2689
      %v2692 = vmul.f32 %v1354, %v2689
      %v2693 = vmul.f32 %v1355, %v2689
      %v2694 = vmul.f32 %v1356, %v2689
      %v2695 = vmul.f32 %v1357, %v2689
      %v2696 = vmul.f32 %v1358, %v2689
      %v2697 = vmul.f32 %v1359, %v2689
      %v2698 = vadd.f32 %v2677, %v2690
      %v2699 = vadd.f32 %v2678, %v2691
      %v2700 = vadd.f32 %v2679, %v2692
      %v2701 = vadd.f32 %v2680, %v2693
      %v2702 = vadd.f32 %v2681, %v2694
      %v2703 = vadd.f32 %v2682, %v2695
      %v2704 = vadd.f32 %v2683, %v2696
      %v2705 = vadd.f32 %v2684, %v2697
      %v2706 = vld [vmem:[%s3 + $0xa] sm:$0x1]
      %v2707 = vlaneseq
      %v2708 = vshrl.u32 %v2707, 7
      %v2709 = vsub.s32 0, %v2708
      %v2710 = vrot.slane %v2706, %v2709
      %v2711 = vmul.f32 %v1441, %v2710
      %v2712 = vmul.f32 %v1442, %v2710
      %v2713 = vmul.f32 %v1443, %v2710
      %v2714 = vmul.f32 %v1444, %v2710
      %v2715 = vmul.f32 %v1445, %v2710
      %v2716 = vmul.f32 %v1446, %v2710
      %v2717 = vmul.f32 %v1447, %v2710
      %v2718 = vmul.f32 %v1448, %v2710
      %v2719 = vadd.f32 %v2698, %v2711
      %v2720 = vadd.f32 %v2699, %v2712
      %v2721 = vadd.f32 %v2700, %v2713
      %v2722 = vadd.f32 %v2701, %v2714
      %v2723 = vadd.f32 %v2702, %v2715
      %v2724 = vadd.f32 %v2703, %v2716
      %v2725 = vadd.f32 %v2704, %v2717
      %v2726 = vadd.f32 %v2705, %v2718
      %v2727 = vld [vmem:[%s3 + $0xd] sm:$0x1]
      %v2728 = vlaneseq
      %v2729 = vshrl.u32 %v2728, 7
      %v2730 = vsub.s32 0, %v2729
      %v2731 = vrot.slane %v2727, %v2730
      %v2732 = vmul.f32 %v1442, %v2731
      %v2733 = vmul.f32 %v1443, %v2731
      %v2734 = vmul.f32 %v1444, %v2731
      %v2735 = vmul.f32 %v1445, %v2731
      %v2736 = vmul.f32 %v1446, %v2731
      %v2737 = vmul.f32 %v1447, %v2731
      %v2738 = vmul.f32 %v1448, %v2731
      %v2739 = vmul.f32 %v1449, %v2731
      %v2740 = vadd.f32 %v2719, %v2732
      %v2741 = vadd.f32 %v2720, %v2733
      %v2742 = vadd.f32 %v2721, %v2734
      %v2743 = vadd.f32 %v2722, %v2735
      %v2744 = vadd.f32 %v2723, %v2736
      %v2745 = vadd.f32 %v2724, %v2737
      %v2746 = vadd.f32 %v2725, %v2738
      %v2747 = vadd.f32 %v2726, %v2739
      %v2748 = vld [vmem:[%s3 + $0x10] sm:$0x1]
      %v2749 = vlaneseq
      %v2750 = vshrl.u32 %v2749, 7
      %v2751 = vsub.s32 0, %v2750
      %v2752 = vrot.slane %v2748, %v2751
      %v2753 = vmul.f32 %v1443, %v2752
      %v2754 = vmul.f32 %v1444, %v2752
      %v2755 = vmul.f32 %v1445, %v2752
      %v2756 = vmul.f32 %v1446, %v2752
      %v2757 = vmul.f32 %v1447, %v2752
      %v2758 = vmul.f32 %v1448, %v2752
      %v2759 = vmul.f32 %v1449, %v2752
      %v2760 = vmul.f32 %v1450, %v2752
      %v2761 = vadd.f32 %v2740, %v2753
      %v2762 = vadd.f32 %v2741, %v2754
      %v2763 = vadd.f32 %v2742, %v2755
      %v2764 = vadd.f32 %v2743, %v2756
      %v2765 = vadd.f32 %v2744, %v2757
      %v2766 = vadd.f32 %v2745, %v2758
      %v2767 = vadd.f32 %v2746, %v2759
      %v2768 = vadd.f32 %v2747, %v2760
      %v2769 = vld [vmem:[%s355 + $0x13] sm:$0xff]
      %v2770 = vld [vmem:[%s355 + $0x23] sm:$0xff]
      %v2771 = vld [vmem:[%s355 + $0x33] sm:$0xff]
      %v2772 = vld [vmem:[%s355 + $0x43] sm:$0xff]
      %v2773 = vld [vmem:[%s355 + $0x53] sm:$0xff]
      %v2774 = vld [vmem:[%s355 + $0x63] sm:$0xff]
      %v2775 = vld [vmem:[%s355 + $0x73] sm:$0xff]
      %v2776 = vld [vmem:[%s355 + $0x83] sm:$0xff]
      %v2777 = vld [vmem:[%s355 + $0x93] sm:$0xff]
      %v2778 = vld [vmem:[%s355 + $0xa3] sm:$0xff]
      %v2779 = vld [vmem:[%s3 + $0xb] sm:$0x1]
      %v2780 = vlaneseq
      %v2781 = vshrl.u32 %v2780, 7
      %v2782 = vsub.s32 0, %v2781
      %v2783 = vrot.slane %v2779, %v2782
      %v2784 = vmul.f32 %v2769, %v2783
      %v2785 = vmul.f32 %v2770, %v2783
      %v2786 = vmul.f32 %v2771, %v2783
      %v2787 = vmul.f32 %v2772, %v2783
      %v2788 = vmul.f32 %v2773, %v2783
      %v2789 = vmul.f32 %v2774, %v2783
      %v2790 = vmul.f32 %v2775, %v2783
      %v2791 = vmul.f32 %v2776, %v2783
      %v2792 = vadd.f32 %v2761, %v2784
      %v2793 = vadd.f32 %v2762, %v2785
      %v2794 = vadd.f32 %v2763, %v2786
      %v2795 = vadd.f32 %v2764, %v2787
      %v2796 = vadd.f32 %v2765, %v2788
      %v2797 = vadd.f32 %v2766, %v2789
      %v2798 = vadd.f32 %v2767, %v2790
      %v2799 = vadd.f32 %v2768, %v2791
      %v2800 = vld [vmem:[%s3 + $0xe] sm:$0x1]
      %v2801 = vlaneseq
      %v2802 = vshrl.u32 %v2801, 7
      %v2803 = vsub.s32 0, %v2802
      %v2804 = vrot.slane %v2800, %v2803
      %v2805 = vmul.f32 %v2770, %v2804
      %v2806 = vmul.f32 %v2771, %v2804
      %v2807 = vmul.f32 %v2772, %v2804
      %v2808 = vmul.f32 %v2773, %v2804
      %v2809 = vmul.f32 %v2774, %v2804
      %v2810 = vmul.f32 %v2775, %v2804
      %v2811 = vmul.f32 %v2776, %v2804
      %v2812 = vmul.f32 %v2777, %v2804
      %v2813 = vadd.f32 %v2792, %v2805
      %v2814 = vadd.f32 %v2793, %v2806
      %v2815 = vadd.f32 %v2794, %v2807
      %v2816 = vadd.f32 %v2795, %v2808
      %v2817 = vadd.f32 %v2796, %v2809
      %v2818 = vadd.f32 %v2797, %v2810
      %v2819 = vadd.f32 %v2798, %v2811
      %v2820 = vadd.f32 %v2799, %v2812
      %v2821 = vld [vmem:[%s3 + $0x11] sm:$0x1]
      %v2822 = vlaneseq
      %v2823 = vshrl.u32 %v2822, 7
      %v2824 = vsub.s32 0, %v2823
      %v2825 = vrot.slane %v2821, %v2824
      %v2826 = vmul.f32 %v2771, %v2825
      %v2827 = vmul.f32 %v2772, %v2825
      %v2828 = vmul.f32 %v2773, %v2825
      %v2829 = vmul.f32 %v2774, %v2825
      %v2830 = vmul.f32 %v2775, %v2825
      %v2831 = vmul.f32 %v2776, %v2825
      %v2832 = vmul.f32 %v2777, %v2825
      %v2833 = vmul.f32 %v2778, %v2825
      %v2834 = vadd.f32 %v2813, %v2826
      %v2835 = vadd.f32 %v2814, %v2827
      %v2836 = vadd.f32 %v2815, %v2828
      %v2837 = vadd.f32 %v2816, %v2829
      %v2838 = vadd.f32 %v2817, %v2830
      %v2839 = vadd.f32 %v2818, %v2831
      %v2840 = vadd.f32 %v2819, %v2832
      %v2841 = vadd.f32 %v2820, %v2833
      %v2842 = vpack.c.bf16 %v2835, %v2834
      %v2843 = vpack.c.bf16 %v2837, %v2836
      %v2844 = vpack.c.bf16 %v2839, %v2838
      %v2845 = vpack.c.bf16 %v2841, %v2840
      %v2846 = vld [vmem:[%s6 + $0x10] sm:$0xf]
      %v2847 = vld [vmem:[%s6 + $0x14] sm:$0xf]
      %v2848 = vld [vmem:[%s6 + $0x18] sm:$0xf]
      %v2849 = vld [vmem:[%s6 + $0x1c] sm:$0xf]
      %v2854 = vunpack.c.l.b16 %v2846
      %v2855 = vunpack.c.l.b16 %v2847
      %v2856 = vunpack.c.l.b16 %v2848
      %v2857 = vunpack.c.l.b16 %v2849
      %v2858 = vpack.c.b16 %v2855, %v2854
      %v2859 = vpack.c.b16 %v2857, %v2856
      %v2863 = vsel %vm1140, %v2842, 0
      %v2866 = vsel %vm1140, %v2843, 0
      %v2869 = vsel %vm1140, %v2844, 0
      %v2872 = vsel %vm1140, %v2845, 0
      %2874 = vmatprep.subr.bf16.mxu0 0
      %2875 = vmatpush1.bf16.msra.mxu0 %v2858
      %2876 = vmatprep.subr.bf16.mxu0 0
      %2877 = vmatpush1.bf16.msra.mxu0 %v2859
      %2878 = vmatprep.subr.bf16.mxu0 0
      %2879 = vmatpush1.bf16.msra.mxu0 0
      %2880 = vmatprep.subr.bf16.mxu0 0
      %2881 = vmatpush1.bf16.msra.mxu0 0
      %2882 = vmatprep.subr.bf16.mxu0 0
      %2883 = vmatpush1.bf16.msra.mxu0 0
      %2884 = vmatprep.subr.bf16.mxu0 0
      %2885 = vmatpush1.bf16.msra.mxu0 0
      %2886 = vmatprep.subr.bf16.mxu0 0
      %2887 = vmatpush1.bf16.msra.mxu0 0
      %2888 = vmatprep.subr.bf16.mxu0 0
      %2889 = vmatpush1.bf16.msra.mxu0 0
      %2890 = vmatprep.subr.bf16.mxu0 0
      %2891 = vmatpush1.bf16.msra.mxu0 0
      %2892 = vmatprep.subr.bf16.mxu0 0
      %2893 = vmatpush1.bf16.msra.mxu0 0
      %2894 = vmatprep.subr.bf16.mxu0 0
      %2895 = vmatpush1.bf16.msra.mxu0 0
      %2896 = vmatprep.subr.bf16.mxu0 0
      %2897 = vmatpush1.bf16.msra.mxu0 0
      %2898 = vmatprep.subr.bf16.mxu0 0
      %2899 = vmatpush1.bf16.msra.mxu0 0
      %2900 = vmatprep.subr.bf16.mxu0 0
      %2901 = vmatpush1.bf16.msra.mxu0 0
      %2902 = vmatprep.subr.bf16.mxu0 0
      %2903 = vmatpush1.bf16.msra.mxu0 0
      %2904 = vmatprep.subr.bf16.mxu0 0
      %2905 = vmatpush1.bf16.msra.mxu0 0
      %2906 = vmatprep.mubr.bf16.mxu0 0
      %2907 = vmatmul.mubr.bf16.gmra.mrb[0].mxu0 %v2863
      %v2908 = vpop.f32.mrb[0].mxu0
      %v2909 = vadd.f32 0.0, %v2908
      %v2910 = vpop.f32.mrb[0].mxu0
      %v2911 = vpop.f32.mrb[0].mxu0
      %v2912 = vadd.f32 0.0, %v2911
      %v2913 = vpop.f32.mrb[0].mxu0
      %2914 = vmatprep.mubr.bf16.mxu0 0
      %2915 = vmatmul.mubr.bf16.gmra.mrb[0].mxu0 %v2866
      %v2916 = vpop.f32.mrb[0].mxu0
      %v2917 = vadd.f32 0.0, %v2916
      %v2918 = vpop.f32.mrb[0].mxu0
      %v2919 = vpop.f32.mrb[0].mxu0
      %v2920 = vadd.f32 0.0, %v2919
      %v2921 = vpop.f32.mrb[0].mxu0
      %2922 = vmatprep.mubr.bf16.mxu0 0
      %2923 = vmatmul.mubr.bf16.gmra.mrb[0].mxu0 %v2869
      %v2924 = vpop.f32.mrb[0].mxu0
      %v2925 = vadd.f32 0.0, %v2924
      %v2926 = vpop.f32.mrb[0].mxu0
      %v2927 = vpop.f32.mrb[0].mxu0
      %v2928 = vadd.f32 0.0, %v2927
      %v2929 = vpop.f32.mrb[0].mxu0
      %2930 = vmatprep.mubr.bf16.mxu0 0
      %2931 = vmatmul.mubr.bf16.gmra.mrb[0].mxu0 %v2872
      %v2932 = vpop.f32.mrb[0].mxu0
      %v2933 = vadd.f32 0.0, %v2932
      %v2934 = vpop.f32.mrb[0].mxu0
      %v2935 = vpop.f32.mrb[0].mxu0
      %v2936 = vadd.f32 0.0, %v2935
      %v2937 = vpop.f32.mrb[0].mxu0
      %2938 = vdwg.mxu0
      %v2939 = vld [vmem:[%s350] sm:$0xff]
      %v2940 = vld [vmem:[%s350 + $0x8] sm:$0xff]
      %v2941 = vld [vmem:[%s350 + $0x18] sm:$0xff]
      %v2942 = vld [vmem:[%s350 + $0x20] sm:$0xff]
      %v2943 = vld [vmem:[%s350 + $0x30] sm:$0xff]
      %v2944 = vld [vmem:[%s350 + $0x38] sm:$0xff]
      %v2945 = vld [vmem:[%s350 + $0x48] sm:$0xff]
      %v2946 = vld [vmem:[%s350 + $0x50] sm:$0xff]
      %v2947 = vld [vmem:[%s350 + $0x60] sm:$0xff]
      %v2948 = vld [vmem:[%s350 + $0x68] sm:$0xff]
      %v2949 = vld [vmem:[%s350 + $0x78] sm:$0xff]
      %v2950 = vld [vmem:[%s350 + $0x80] sm:$0xff]
      %v2951 = vld [vmem:[%s350 + $0x90] sm:$0xff]
      %v2952 = vld [vmem:[%s350 + $0x98] sm:$0xff]
      %v2953 = vld [vmem:[%s350 + $0xa8] sm:$0xff]
      %v2954 = vld [vmem:[%s350 + $0xb0] sm:$0xff]
      %v2955 = vld [vmem:[%s350 + $0xc0] sm:$0xff]
      %v2956 = vld [vmem:[%s350 + $0xc8] sm:$0xff]
      %v2957 = vld [vmem:[%s350 + $0xd8] sm:$0xff]
      %v2958 = vld [vmem:[%s350 + $0xe0] sm:$0xff]
      %v2959 = vld [vmem:[%s350 + $0xf0] sm:$0xff]
      %v2960 = vld [vmem:[%s350 + $0xf8] sm:$0xff]
      %v2961 = vld [vmem:[%s350 + $0x108] sm:$0xff]
      %v2962 = vld [vmem:[%s350 + $0x110] sm:$0xff]
      %v2963 = vld [vmem:[%s350 + $0x120] sm:$0xff]
      %v2964 = vld [vmem:[%s350 + $0x128] sm:$0xff]
      %v2965 = vld [vmem:[%s350 + $0x138] sm:$0xff]
      %v2966 = vld [vmem:[%s350 + $0x140] sm:$0xff]
      %v2967 = vld [vmem:[%s350 + $0x150] sm:$0xff]
      %v2968 = vld [vmem:[%s350 + $0x158] sm:$0xff]
      %v2969 = vld [vmem:[%s350 + $0x168] sm:$0xff]
      %v2970 = vld [vmem:[%s350 + $0x170] sm:$0xff]
      %v2971 = vld [vmem:[%s350 + $0x180] sm:$0xff]
      %v2972 = vld [vmem:[%s350 + $0x188] sm:$0xff]
      %v2973 = vld [vmem:[%s350 + $0x198] sm:$0xff]
      %v2974 = vld [vmem:[%s350 + $0x1a0] sm:$0xff]
      %v2975 = vld [vmem:[%s350 + $0x1b0] sm:$0xff]
      %v2976 = vld [vmem:[%s350 + $0x1b8] sm:$0xff]
      %v2977 = vld [vmem:[%s350 + $0x1c8] sm:$0xff]
      %v2978 = vld [vmem:[%s350 + $0x1d0] sm:$0xff]
      %v2979 = vld [vmem:[%s350 + $0x1e0] sm:$0xff]
      %v2980 = vld [vmem:[%s350 + $0x1e8] sm:$0xff]
      %v2981 = vld [vmem:[%s350 + $0x1f8] sm:$0xff]
      %v2982 = vld [vmem:[%s350 + $0x200] sm:$0xff]
      %v2983 = vld [vmem:[%s350 + $0x210] sm:$0xff]
      %v2984 = vld [vmem:[%s350 + $0x218] sm:$0xff]
      %v2985 = vld [vmem:[%s350 + $0x228] sm:$0xff]
      %v2986 = vld [vmem:[%s350 + $0x230] sm:$0xff]
      %v2987 = vld [vmem:[%s2 + $0x12] sm:$0x1]
      %v2988 = vlaneseq
      %v2989 = vshrl.u32 %v2988, 7
      %v2990 = vsub.s32 0, %v2989
      %v2991 = vrot.slane %v2987, %v2990
      %v2992 = vmul.f32 %v2939, %v2991
      %v2993 = vmul.f32 %v2940, %v2991
      %v2994 = vmul.f32 %v2941, %v2991
      %v2995 = vmul.f32 %v2942, %v2991
      %v2996 = vmul.f32 %v2943, %v2991
      %v2997 = vmul.f32 %v2944, %v2991
      %v2998 = vmul.f32 %v2945, %v2991
      %v2999 = vmul.f32 %v2946, %v2991
      %v3000 = vmul.f32 %v2947, %v2991
      %v3001 = vmul.f32 %v2948, %v2991
      %v3002 = vmul.f32 %v2949, %v2991
      %v3003 = vmul.f32 %v2950, %v2991
      %v3004 = vmul.f32 %v2951, %v2991
      %v3005 = vmul.f32 %v2952, %v2991
      %v3006 = vmul.f32 %v2953, %v2991
      %v3007 = vmul.f32 %v2954, %v2991
      %v3008 = vmul.f32 %v2955, %v2991
      %v3009 = vmul.f32 %v2956, %v2991
      %v3010 = vmul.f32 %v2957, %v2991
      %v3011 = vmul.f32 %v2958, %v2991
      %v3012 = vmul.f32 %v2959, %v2991
      %v3013 = vmul.f32 %v2960, %v2991
      %v3014 = vmul.f32 %v2961, %v2991
      %v3015 = vmul.f32 %v2962, %v2991
      %v3016 = vmul.f32 %v2963, %v2991
      %v3017 = vmul.f32 %v2964, %v2991
      %v3018 = vmul.f32 %v2965, %v2991
      %v3019 = vmul.f32 %v2966, %v2991
      %v3020 = vmul.f32 %v2967, %v2991
      %v3021 = vmul.f32 %v2968, %v2991
      %v3022 = vmul.f32 %v2969, %v2991
      %v3023 = vmul.f32 %v2970, %v2991
      %v3024 = vadd.f32 %v2992, 0.0
      %v3025 = vadd.f32 %v2993, 0.0
      %v3026 = vadd.f32 %v2994, 0.0
      %v3027 = vadd.f32 %v2995, 0.0
      %v3028 = vadd.f32 %v2996, 0.0
      %v3029 = vadd.f32 %v2997, 0.0
      %v3030 = vadd.f32 %v2998, 0.0
      %v3031 = vadd.f32 %v2999, 0.0
      %v3032 = vadd.f32 %v3000, 0.0
      %v3033 = vadd.f32 %v3001, 0.0
      %v3034 = vadd.f32 %v3002, 0.0
      %v3035 = vadd.f32 %v3003, 0.0
      %v3036 = vadd.f32 %v3004, 0.0
      %v3037 = vadd.f32 %v3005, 0.0
      %v3038 = vadd.f32 %v3006, 0.0
      %v3039 = vadd.f32 %v3007, 0.0
      %v3040 = vadd.f32 %v3008, 0.0
      %v3041 = vadd.f32 %v3009, 0.0
      %v3042 = vadd.f32 %v3010, 0.0
      %v3043 = vadd.f32 %v3011, 0.0
      %v3044 = vadd.f32 %v3012, 0.0
      %v3045 = vadd.f32 %v3013, 0.0
      %v3046 = vadd.f32 %v3014, 0.0
      %v3047 = vadd.f32 %v3015, 0.0
      %v3048 = vadd.f32 %v3016, 0.0
      %v3049 = vadd.f32 %v3017, 0.0
      %v3050 = vadd.f32 %v3018, 0.0
      %v3051 = vadd.f32 %v3019, 0.0
      %v3052 = vadd.f32 %v3020, 0.0
      %v3053 = vadd.f32 %v3021, 0.0
      %v3054 = vadd.f32 %v3022, 0.0
      %v3055 = vadd.f32 %v3023, 0.0
      %v3056 = vld [vmem:[%s2 + $0x15] sm:$0x1]
      %v3057 = vlaneseq
      %v3058 = vshrl.u32 %v3057, 7
      %v3059 = vsub.s32 0, %v3058
      %v3060 = vrot.slane %v3056, %v3059
      %v3061 = vmul.f32 %v2947, %v3060
      %v3062 = vmul.f32 %v2948, %v3060
      %v3063 = vmul.f32 %v2949, %v3060
      %v3064 = vmul.f32 %v2950, %v3060
      %v3065 = vmul.f32 %v2951, %v3060
      %v3066 = vmul.f32 %v2952, %v3060
      %v3067 = vmul.f32 %v2953, %v3060
      %v3068 = vmul.f32 %v2954, %v3060
      %v3069 = vmul.f32 %v2955, %v3060
      %v3070 = vmul.f32 %v2956, %v3060
      %v3071 = vmul.f32 %v2957, %v3060
      %v3072 = vmul.f32 %v2958, %v3060
      %v3073 = vmul.f32 %v2959, %v3060
      %v3074 = vmul.f32 %v2960, %v3060
      %v3075 = vmul.f32 %v2961, %v3060
      %v3076 = vmul.f32 %v2962, %v3060
      %v3077 = vmul.f32 %v2963, %v3060
      %v3078 = vmul.f32 %v2964, %v3060
      %v3079 = vmul.f32 %v2965, %v3060
      %v3080 = vmul.f32 %v2966, %v3060
      %v3081 = vmul.f32 %v2967, %v3060
      %v3082 = vmul.f32 %v2968, %v3060
      %v3083 = vmul.f32 %v2969, %v3060
      %v3084 = vmul.f32 %v2970, %v3060
      %v3085 = vmul.f32 %v2971, %v3060
      %v3086 = vmul.f32 %v2972, %v3060
      %v3087 = vmul.f32 %v2973, %v3060
      %v3088 = vmul.f32 %v2974, %v3060
      %v3089 = vmul.f32 %v2975, %v3060
      %v3090 = vmul.f32 %v2976, %v3060
      %v3091 = vmul.f32 %v2977, %v3060
      %v3092 = vmul.f32 %v2978, %v3060
      %v3093 = vadd.f32 %v3024, %v3061
      %v3094 = vadd.f32 %v3025, %v3062
      %v3095 = vadd.f32 %v3026, %v3063
      %v3096 = vadd.f32 %v3027, %v3064
      %v3097 = vadd.f32 %v3028, %v3065
      %v3098 = vadd.f32 %v3029, %v3066
      %v3099 = vadd.f32 %v3030, %v3067
      %v3100 = vadd.f32 %v3031, %v3068
      %v3101 = vadd.f32 %v3032, %v3069
      %v3102 = vadd.f32 %v3033, %v3070
      %v3103 = vadd.f32 %v3034, %v3071
      %v3104 = vadd.f32 %v3035, %v3072
      %v3105 = vadd.f32 %v3036, %v3073
      %v3106 = vadd.f32 %v3037, %v3074
      %v3107 = vadd.f32 %v3038, %v3075
      %v3108 = vadd.f32 %v3039, %v3076
      %v3109 = vadd.f32 %v3040, %v3077
      %v3110 = vadd.f32 %v3041, %v3078
      %v3111 = vadd.f32 %v3042, %v3079
      %v3112 = vadd.f32 %v3043, %v3080
      %v3113 = vadd.f32 %v3044, %v3081
      %v3114 = vadd.f32 %v3045, %v3082
      %v3115 = vadd.f32 %v3046, %v3083
      %v3116 = vadd.f32 %v3047, %v3084
      %v3117 = vadd.f32 %v3048, %v3085
      %v3118 = vadd.f32 %v3049, %v3086
      %v3119 = vadd.f32 %v3050, %v3087
      %v3120 = vadd.f32 %v3051, %v3088
      %v3121 = vadd.f32 %v3052, %v3089
      %v3122 = vadd.f32 %v3053, %v3090
      %v3123 = vadd.f32 %v3054, %v3091
      %v3124 = vadd.f32 %v3055, %v3092
      %v3125 = vld [vmem:[%s2 + $0x18] sm:$0x1]
      %v3126 = vlaneseq
      %v3127 = vshrl.u32 %v3126, 7
      %v3128 = vsub.s32 0, %v3127
      %v3129 = vrot.slane %v3125, %v3128
      %v3130 = vmul.f32 %v2955, %v3129
      %v3131 = vmul.f32 %v2956, %v3129
      %v3132 = vmul.f32 %v2957, %v3129
      %v3133 = vmul.f32 %v2958, %v3129
      %v3134 = vmul.f32 %v2959, %v3129
      %v3135 = vmul.f32 %v2960, %v3129
      %v3136 = vmul.f32 %v2961, %v3129
      %v3137 = vmul.f32 %v2962, %v3129
      %v3138 = vmul.f32 %v2963, %v3129
      %v3139 = vmul.f32 %v2964, %v3129
      %v3140 = vmul.f32 %v2965, %v3129
      %v3141 = vmul.f32 %v2966, %v3129
      %v3142 = vmul.f32 %v2967, %v3129
      %v3143 = vmul.f32 %v2968, %v3129
      %v3144 = vmul.f32 %v2969, %v3129
      %v3145 = vmul.f32 %v2970, %v3129
      %v3146 = vmul.f32 %v2971, %v3129
      %v3147 = vmul.f32 %v2972, %v3129
      %v3148 = vmul.f32 %v2973, %v3129
      %v3149 = vmul.f32 %v2974, %v3129
      %v3150 = vmul.f32 %v2975, %v3129
      %v3151 = vmul.f32 %v2976, %v3129
      %v3152 = vmul.f32 %v2977, %v3129
      %v3153 = vmul.f32 %v2978, %v3129
      %v3154 = vmul.f32 %v2979, %v3129
      %v3155 = vmul.f32 %v2980, %v3129
      %v3156 = vmul.f32 %v2981, %v3129
      %v3157 = vmul.f32 %v2982, %v3129
      %v3158 = vmul.f32 %v2983, %v3129
      %v3159 = vmul.f32 %v2984, %v3129
      %v3160 = vmul.f32 %v2985, %v3129
      %v3161 = vmul.f32 %v2986, %v3129
      %v3162 = vadd.f32 %v3093, %v3130
      %v3163 = vadd.f32 %v3094, %v3131
      %v3164 = vadd.f32 %v3095, %v3132
      %v3165 = vadd.f32 %v3096, %v3133
      %v3166 = vadd.f32 %v3097, %v3134
      %v3167 = vadd.f32 %v3098, %v3135
      %v3168 = vadd.f32 %v3099, %v3136
      %v3169 = vadd.f32 %v3100, %v3137
      %v3170 = vadd.f32 %v3101, %v3138
      %v3171 = vadd.f32 %v3102, %v3139
      %v3172 = vadd.f32 %v3103, %v3140
      %v3173 = vadd.f32 %v3104, %v3141
      %v3174 = vadd.f32 %v3105, %v3142
      %v3175 = vadd.f32 %v3106, %v3143
      %v3176 = vadd.f32 %v3107, %v3144
      %v3177 = vadd.f32 %v3108, %v3145
      %v3178 = vadd.f32 %v3109, %v3146
      %v3179 = vadd.f32 %v3110, %v3147
      %v3180 = vadd.f32 %v3111, %v3148
      %v3181 = vadd.f32 %v3112, %v3149
      %v3182 = vadd.f32 %v3113, %v3150
      %v3183 = vadd.f32 %v3114, %v3151
      %v3184 = vadd.f32 %v3115, %v3152
      %v3185 = vadd.f32 %v3116, %v3153
      %v3186 = vadd.f32 %v3117, %v3154
      %v3187 = vadd.f32 %v3118, %v3155
      %v3188 = vadd.f32 %v3119, %v3156
      %v3189 = vadd.f32 %v3120, %v3157
      %v3190 = vadd.f32 %v3121, %v3158
      %v3191 = vadd.f32 %v3122, %v3159
      %v3192 = vadd.f32 %v3123, %v3160
      %v3193 = vadd.f32 %v3124, %v3161
      %v3194 = vld [vmem:[%s2 + $0x13] sm:$0x1]
      %v3195 = vlaneseq
      %v3196 = vshrl.u32 %v3195, 7
      %v3197 = vsub.s32 0, %v3196
      %v3198 = vrot.slane %v3194, %v3197
      %v3199 = vmul.f32 %v610, %v3198
      %v3200 = vmul.f32 %v611, %v3198
      %v3201 = vmul.f32 %v612, %v3198
      %v3202 = vmul.f32 %v613, %v3198
      %v3203 = vmul.f32 %v614, %v3198
      %v3204 = vmul.f32 %v615, %v3198
      %v3205 = vmul.f32 %v616, %v3198
      %v3206 = vmul.f32 %v617, %v3198
      %v3207 = vmul.f32 %v618, %v3198
      %v3208 = vmul.f32 %v619, %v3198
      %v3209 = vmul.f32 %v620, %v3198
      %v3210 = vmul.f32 %v621, %v3198
      %v3211 = vmul.f32 %v622, %v3198
      %v3212 = vmul.f32 %v623, %v3198
      %v3213 = vmul.f32 %v624, %v3198
      %v3214 = vmul.f32 %v625, %v3198
      %v3215 = vmul.f32 %v626, %v3198
      %v3216 = vmul.f32 %v627, %v3198
      %v3217 = vmul.f32 %v628, %v3198
      %v3218 = vmul.f32 %v629, %v3198
      %v3219 = vmul.f32 %v630, %v3198
      %v3220 = vmul.f32 %v631, %v3198
      %v3221 = vmul.f32 %v632, %v3198
      %v3222 = vmul.f32 %v633, %v3198
      %v3223 = vmul.f32 %v634, %v3198
      %v3224 = vmul.f32 %v635, %v3198
      %v3225 = vmul.f32 %v636, %v3198
      %v3226 = vmul.f32 %v637, %v3198
      %v3227 = vmul.f32 %v638, %v3198
      %v3228 = vmul.f32 %v639, %v3198
      %v3229 = vmul.f32 %v640, %v3198
      %v3230 = vmul.f32 %v641, %v3198
      %v3231 = vadd.f32 %v3162, %v3199
      %v3232 = vadd.f32 %v3163, %v3200
      %v3233 = vadd.f32 %v3164, %v3201
      %v3234 = vadd.f32 %v3165, %v3202
      %v3235 = vadd.f32 %v3166, %v3203
      %v3236 = vadd.f32 %v3167, %v3204
      %v3237 = vadd.f32 %v3168, %v3205
      %v3238 = vadd.f32 %v3169, %v3206
      %v3239 = vadd.f32 %v3170, %v3207
      %v3240 = vadd.f32 %v3171, %v3208
      %v3241 = vadd.f32 %v3172, %v3209
      %v3242 = vadd.f32 %v3173, %v3210
      %v3243 = vadd.f32 %v3174, %v3211
      %v3244 = vadd.f32 %v3175, %v3212
      %v3245 = vadd.f32 %v3176, %v3213
      %v3246 = vadd.f32 %v3177, %v3214
      %v3247 = vadd.f32 %v3178, %v3215
      %v3248 = vadd.f32 %v3179, %v3216
      %v3249 = vadd.f32 %v3180, %v3217
      %v3250 = vadd.f32 %v3181, %v3218
      %v3251 = vadd.f32 %v3182, %v3219
      %v3252 = vadd.f32 %v3183, %v3220
      %v3253 = vadd.f32 %v3184, %v3221
      %v3254 = vadd.f32 %v3185, %v3222
      %v3255 = vadd.f32 %v3186, %v3223
      %v3256 = vadd.f32 %v3187, %v3224
      %v3257 = vadd.f32 %v3188, %v3225
      %v3258 = vadd.f32 %v3189, %v3226
      %v3259 = vadd.f32 %v3190, %v3227
      %v3260 = vadd.f32 %v3191, %v3228
      %v3261 = vadd.f32 %v3192, %v3229
      %v3262 = vadd.f32 %v3193, %v3230
      %v3263 = vld [vmem:[%s2 + $0x16] sm:$0x1]
      %v3264 = vlaneseq
      %v3265 = vshrl.u32 %v3264, 7
      %v3266 = vsub.s32 0, %v3265
      %v3267 = vrot.slane %v3263, %v3266
      %v3268 = vmul.f32 %v618, %v3267
      %v3269 = vmul.f32 %v619, %v3267
      %v3270 = vmul.f32 %v620, %v3267
      %v3271 = vmul.f32 %v621, %v3267
      %v3272 = vmul.f32 %v622, %v3267
      %v3273 = vmul.f32 %v623, %v3267
      %v3274 = vmul.f32 %v624, %v3267
      %v3275 = vmul.f32 %v625, %v3267
      %v3276 = vmul.f32 %v626, %v3267
      %v3277 = vmul.f32 %v627, %v3267
      %v3278 = vmul.f32 %v628, %v3267
      %v3279 = vmul.f32 %v629, %v3267
      %v3280 = vmul.f32 %v630, %v3267
      %v3281 = vmul.f32 %v631, %v3267
      %v3282 = vmul.f32 %v632, %v3267
      %v3283 = vmul.f32 %v633, %v3267
      %v3284 = vmul.f32 %v634, %v3267
      %v3285 = vmul.f32 %v635, %v3267
      %v3286 = vmul.f32 %v636, %v3267
      %v3287 = vmul.f32 %v637, %v3267
      %v3288 = vmul.f32 %v638, %v3267
      %v3289 = vmul.f32 %v639, %v3267
      %v3290 = vmul.f32 %v640, %v3267
      %v3291 = vmul.f32 %v641, %v3267
      %v3292 = vmul.f32 %v642, %v3267
      %v3293 = vmul.f32 %v643, %v3267
      %v3294 = vmul.f32 %v644, %v3267
      %v3295 = vmul.f32 %v645, %v3267
      %v3296 = vmul.f32 %v646, %v3267
      %v3297 = vmul.f32 %v647, %v3267
      %v3298 = vmul.f32 %v648, %v3267
      %v3299 = vmul.f32 %v649, %v3267
      %v3300 = vadd.f32 %v3231, %v3268
      %v3301 = vadd.f32 %v3232, %v3269
      %v3302 = vadd.f32 %v3233, %v3270
      %v3303 = vadd.f32 %v3234, %v3271
      %v3304 = vadd.f32 %v3235, %v3272
      %v3305 = vadd.f32 %v3236, %v3273
      %v3306 = vadd.f32 %v3237, %v3274
      %v3307 = vadd.f32 %v3238, %v3275
      %v3308 = vadd.f32 %v3239, %v3276
      %v3309 = vadd.f32 %v3240, %v3277
      %v3310 = vadd.f32 %v3241, %v3278
      %v3311 = vadd.f32 %v3242, %v3279
      %v3312 = vadd.f32 %v3243, %v3280
      %v3313 = vadd.f32 %v3244, %v3281
      %v3314 = vadd.f32 %v3245, %v3282
      %v3315 = vadd.f32 %v3246, %v3283
      %v3316 = vadd.f32 %v3247, %v3284
      %v3317 = vadd.f32 %v3248, %v3285
      %v3318 = vadd.f32 %v3249, %v3286
      %v3319 = vadd.f32 %v3250, %v3287
      %v3320 = vadd.f32 %v3251, %v3288
      %v3321 = vadd.f32 %v3252, %v3289
      %v3322 = vadd.f32 %v3253, %v3290
      %v3323 = vadd.f32 %v3254, %v3291
      %v3324 = vadd.f32 %v3255, %v3292
      %v3325 = vadd.f32 %v3256, %v3293
      %v3326 = vadd.f32 %v3257, %v3294
      %v3327 = vadd.f32 %v3258, %v3295
      %v3328 = vadd.f32 %v3259, %v3296
      %v3329 = vadd.f32 %v3260, %v3297
      %v3330 = vadd.f32 %v3261, %v3298
      %v3331 = vadd.f32 %v3262, %v3299
      %v3332 = vld [vmem:[%s2 + $0x19] sm:$0x1]
      %v3333 = vlaneseq
      %v3334 = vshrl.u32 %v3333, 7
      %v3335 = vsub.s32 0, %v3334
      %v3336 = vrot.slane %v3332, %v3335
      %v3337 = vmul.f32 %v626, %v3336
      %v3338 = vmul.f32 %v627, %v3336
      %v3339 = vmul.f32 %v628, %v3336
      %v3340 = vmul.f32 %v629, %v3336
      %v3341 = vmul.f32 %v630, %v3336
      %v3342 = vmul.f32 %v631, %v3336
      %v3343 = vmul.f32 %v632, %v3336
      %v3344 = vmul.f32 %v633, %v3336
      %v3345 = vmul.f32 %v634, %v3336
      %v3346 = vmul.f32 %v635, %v3336
      %v3347 = vmul.f32 %v636, %v3336
      %v3348 = vmul.f32 %v637, %v3336
      %v3349 = vmul.f32 %v638, %v3336
      %v3350 = vmul.f32 %v639, %v3336
      %v3351 = vmul.f32 %v640, %v3336
      %v3352 = vmul.f32 %v641, %v3336
      %v3353 = vmul.f32 %v642, %v3336
      %v3354 = vmul.f32 %v643, %v3336
      %v3355 = vmul.f32 %v644, %v3336
      %v3356 = vmul.f32 %v645, %v3336
      %v3357 = vmul.f32 %v646, %v3336
      %v3358 = vmul.f32 %v647, %v3336
      %v3359 = vmul.f32 %v648, %v3336
      %v3360 = vmul.f32 %v649, %v3336
      %v3361 = vmul.f32 %v650, %v3336
      %v3362 = vmul.f32 %v651, %v3336
      %v3363 = vmul.f32 %v652, %v3336
      %v3364 = vmul.f32 %v653, %v3336
      %v3365 = vmul.f32 %v654, %v3336
      %v3366 = vmul.f32 %v655, %v3336
      %v3367 = vmul.f32 %v656, %v3336
      %v3368 = vmul.f32 %v657, %v3336
      %v3369 = vadd.f32 %v3300, %v3337
      %v3370 = vadd.f32 %v3301, %v3338
      %v3371 = vadd.f32 %v3302, %v3339
      %v3372 = vadd.f32 %v3303, %v3340
      %v3373 = vadd.f32 %v3304, %v3341
      %v3374 = vadd.f32 %v3305, %v3342
      %v3375 = vadd.f32 %v3306, %v3343
      %v3376 = vadd.f32 %v3307, %v3344
      %v3377 = vadd.f32 %v3308, %v3345
      %v3378 = vadd.f32 %v3309, %v3346
      %v3379 = vadd.f32 %v3310, %v3347
      %v3380 = vadd.f32 %v3311, %v3348
      %v3381 = vadd.f32 %v3312, %v3349
      %v3382 = vadd.f32 %v3313, %v3350
      %v3383 = vadd.f32 %v3314, %v3351
      %v3384 = vadd.f32 %v3315, %v3352
      %v3385 = vadd.f32 %v3316, %v3353
      %v3386 = vadd.f32 %v3317, %v3354
      %v3387 = vadd.f32 %v3318, %v3355
      %v3388 = vadd.f32 %v3319, %v3356
      %v3389 = vadd.f32 %v3320, %v3357
      %v3390 = vadd.f32 %v3321, %v3358
      %v3391 = vadd.f32 %v3322, %v3359
      %v3392 = vadd.f32 %v3323, %v3360
      %v3393 = vadd.f32 %v3324, %v3361
      %v3394 = vadd.f32 %v3325, %v3362
      %v3395 = vadd.f32 %v3326, %v3363
      %v3396 = vadd.f32 %v3327, %v3364
      %v3397 = vadd.f32 %v3328, %v3365
      %v3398 = vadd.f32 %v3329, %v3366
      %v3399 = vadd.f32 %v3330, %v3367
      %v3400 = vadd.f32 %v3331, %v3368
      %v3401 = vld [vmem:[%s350 + $0x10] sm:$0xff]
      %v3402 = vld [vmem:[%s350 + $0x28] sm:$0xff]
      %v3403 = vld [vmem:[%s350 + $0x40] sm:$0xff]
      %v3404 = vld [vmem:[%s350 + $0x58] sm:$0xff]
      %v3405 = vld [vmem:[%s350 + $0x70] sm:$0xff]
      %v3406 = vld [vmem:[%s350 + $0x88] sm:$0xff]
      %v3407 = vld [vmem:[%s350 + $0xa0] sm:$0xff]
      %v3408 = vld [vmem:[%s350 + $0xb8] sm:$0xff]
      %v3409 = vld [vmem:[%s350 + $0xd0] sm:$0xff]
      %v3410 = vld [vmem:[%s350 + $0xe8] sm:$0xff]
      %v3411 = vld [vmem:[%s350 + $0x100] sm:$0xff]
      %v3412 = vld [vmem:[%s350 + $0x118] sm:$0xff]
      %v3413 = vld [vmem:[%s350 + $0x130] sm:$0xff]
      %v3414 = vld [vmem:[%s350 + $0x148] sm:$0xff]
      %v3415 = vld [vmem:[%s350 + $0x160] sm:$0xff]
      %v3416 = vld [vmem:[%s350 + $0x178] sm:$0xff]
      %v3417 = vld [vmem:[%s350 + $0x190] sm:$0xff]
      %v3418 = vld [vmem:[%s350 + $0x1a8] sm:$0xff]
      %v3419 = vld [vmem:[%s350 + $0x1c0] sm:$0xff]
      %v3420 = vld [vmem:[%s350 + $0x1d8] sm:$0xff]
      %v3421 = vld [vmem:[%s350 + $0x1f0] sm:$0xff]
      %v3422 = vld [vmem:[%s350 + $0x208] sm:$0xff]
      %v3423 = vld [vmem:[%s350 + $0x220] sm:$0xff]
      %v3424 = vld [vmem:[%s350 + $0x238] sm:$0xff]
      %v3425 = vld [vmem:[%s2 + $0x14] sm:$0x1]
      %v3426 = vlaneseq
      %v3427 = vshrl.u32 %v3426, 7
      %v3428 = vsub.s32 0, %v3427
      %v3429 = vrot.slane %v3425, %v3428
      %v3430 = vmul.f32 %v2940, %v3429
      %v3431 = vmul.f32 %v3401, %v3429
      %v3432 = vmul.f32 %v2942, %v3429
      %v3433 = vmul.f32 %v3402, %v3429
      %v3434 = vmul.f32 %v2944, %v3429
      %v3435 = vmul.f32 %v3403, %v3429
      %v3436 = vmul.f32 %v2946, %v3429
      %v3437 = vmul.f32 %v3404, %v3429
      %v3438 = vmul.f32 %v2948, %v3429
      %v3439 = vmul.f32 %v3405, %v3429
      %v3440 = vmul.f32 %v2950, %v3429
      %v3441 = vmul.f32 %v3406, %v3429
      %v3442 = vmul.f32 %v2952, %v3429
      %v3443 = vmul.f32 %v3407, %v3429
      %v3444 = vmul.f32 %v2954, %v3429
      %v3445 = vmul.f32 %v3408, %v3429
      %v3446 = vmul.f32 %v2956, %v3429
      %v3447 = vmul.f32 %v3409, %v3429
      %v3448 = vmul.f32 %v2958, %v3429
      %v3449 = vmul.f32 %v3410, %v3429
      %v3450 = vmul.f32 %v2960, %v3429
      %v3451 = vmul.f32 %v3411, %v3429
      %v3452 = vmul.f32 %v2962, %v3429
      %v3453 = vmul.f32 %v3412, %v3429
      %v3454 = vmul.f32 %v2964, %v3429
      %v3455 = vmul.f32 %v3413, %v3429
      %v3456 = vmul.f32 %v2966, %v3429
      %v3457 = vmul.f32 %v3414, %v3429
      %v3458 = vmul.f32 %v2968, %v3429
      %v3459 = vmul.f32 %v3415, %v3429
      %v3460 = vmul.f32 %v2970, %v3429
      %v3461 = vmul.f32 %v3416, %v3429
      %v3462 = vadd.f32 %v3369, %v3430
      %v3463 = vadd.f32 %v3370, %v3431
      %v3464 = vadd.f32 %v3371, %v3432
      %v3465 = vadd.f32 %v3372, %v3433
      %v3466 = vadd.f32 %v3373, %v3434
      %v3467 = vadd.f32 %v3374, %v3435
      %v3468 = vadd.f32 %v3375, %v3436
      %v3469 = vadd.f32 %v3376, %v3437
      %v3470 = vadd.f32 %v3377, %v3438
      %v3471 = vadd.f32 %v3378, %v3439
      %v3472 = vadd.f32 %v3379, %v3440
      %v3473 = vadd.f32 %v3380, %v3441
      %v3474 = vadd.f32 %v3381, %v3442
      %v3475 = vadd.f32 %v3382, %v3443
      %v3476 = vadd.f32 %v3383, %v3444
      %v3477 = vadd.f32 %v3384, %v3445
      %v3478 = vadd.f32 %v3385, %v3446
      %v3479 = vadd.f32 %v3386, %v3447
      %v3480 = vadd.f32 %v3387, %v3448
      %v3481 = vadd.f32 %v3388, %v3449
      %v3482 = vadd.f32 %v3389, %v3450
      %v3483 = vadd.f32 %v3390, %v3451
      %v3484 = vadd.f32 %v3391, %v3452
      %v3485 = vadd.f32 %v3392, %v3453
      %v3486 = vadd.f32 %v3393, %v3454
      %v3487 = vadd.f32 %v3394, %v3455
      %v3488 = vadd.f32 %v3395, %v3456
      %v3489 = vadd.f32 %v3396, %v3457
      %v3490 = vadd.f32 %v3397, %v3458
      %v3491 = vadd.f32 %v3398, %v3459
      %v3492 = vadd.f32 %v3399, %v3460
      %v3493 = vadd.f32 %v3400, %v3461
      %v3494 = vld [vmem:[%s2 + $0x17] sm:$0x1]
      %v3495 = vlaneseq
      %v3496 = vshrl.u32 %v3495, 7
      %v3497 = vsub.s32 0, %v3496
      %v3498 = vrot.slane %v3494, %v3497
      %v3499 = vmul.f32 %v2948, %v3498
      %v3500 = vmul.f32 %v3405, %v3498
      %v3501 = vmul.f32 %v2950, %v3498
      %v3502 = vmul.f32 %v3406, %v3498
      %v3503 = vmul.f32 %v2952, %v3498
      %v3504 = vmul.f32 %v3407, %v3498
      %v3505 = vmul.f32 %v2954, %v3498
      %v3506 = vmul.f32 %v3408, %v3498
      %v3507 = vmul.f32 %v2956, %v3498
      %v3508 = vmul.f32 %v3409, %v3498
      %v3509 = vmul.f32 %v2958, %v3498
      %v3510 = vmul.f32 %v3410, %v3498
      %v3511 = vmul.f32 %v2960, %v3498
      %v3512 = vmul.f32 %v3411, %v3498
      %v3513 = vmul.f32 %v2962, %v3498
      %v3514 = vmul.f32 %v3412, %v3498
      %v3515 = vmul.f32 %v2964, %v3498
      %v3516 = vmul.f32 %v3413, %v3498
      %v3517 = vmul.f32 %v2966, %v3498
      %v3518 = vmul.f32 %v3414, %v3498
      %v3519 = vmul.f32 %v2968, %v3498
      %v3520 = vmul.f32 %v3415, %v3498
      %v3521 = vmul.f32 %v2970, %v3498
      %v3522 = vmul.f32 %v3416, %v3498
      %v3523 = vmul.f32 %v2972, %v3498
      %v3524 = vmul.f32 %v3417, %v3498
      %v3525 = vmul.f32 %v2974, %v3498
      %v3526 = vmul.f32 %v3418, %v3498
      %v3527 = vmul.f32 %v2976, %v3498
      %v3528 = vmul.f32 %v3419, %v3498
      %v3529 = vmul.f32 %v2978, %v3498
      %v3530 = vmul.f32 %v3420, %v3498
      %v3531 = vadd.f32 %v3462, %v3499
      %v3532 = vadd.f32 %v3463, %v3500
      %v3533 = vadd.f32 %v3464, %v3501
      %v3534 = vadd.f32 %v3465, %v3502
      %v3535 = vadd.f32 %v3466, %v3503
      %v3536 = vadd.f32 %v3467, %v3504
      %v3537 = vadd.f32 %v3468, %v3505
      %v3538 = vadd.f32 %v3469, %v3506
      %v3539 = vadd.f32 %v3470, %v3507
      %v3540 = vadd.f32 %v3471, %v3508
      %v3541 = vadd.f32 %v3472, %v3509
      %v3542 = vadd.f32 %v3473, %v3510
      %v3543 = vadd.f32 %v3474, %v3511
      %v3544 = vadd.f32 %v3475, %v3512
      %v3545 = vadd.f32 %v3476, %v3513
      %v3546 = vadd.f32 %v3477, %v3514
      %v3547 = vadd.f32 %v3478, %v3515
      %v3548 = vadd.f32 %v3479, %v3516
      %v3549 = vadd.f32 %v3480, %v3517
      %v3550 = vadd.f32 %v3481, %v3518
      %v3551 = vadd.f32 %v3482, %v3519
      %v3552 = vadd.f32 %v3483, %v3520
      %v3553 = vadd.f32 %v3484, %v3521
      %v3554 = vadd.f32 %v3485, %v3522
      %v3555 = vadd.f32 %v3486, %v3523
      %v3556 = vadd.f32 %v3487, %v3524
      %v3557 = vadd.f32 %v3488, %v3525
      %v3558 = vadd.f32 %v3489, %v3526
      %v3559 = vadd.f32 %v3490, %v3527
      %v3560 = vadd.f32 %v3491, %v3528
      %v3561 = vadd.f32 %v3492, %v3529
      %v3562 = vadd.f32 %v3493, %v3530
      %v3563 = vld [vmem:[%s2 + $0x1a] sm:$0x1]
      %v3564 = vlaneseq
      %v3565 = vshrl.u32 %v3564, 7
      %v3566 = vsub.s32 0, %v3565
      %v3567 = vrot.slane %v3563, %v3566
      %v3568 = vmul.f32 %v2956, %v3567
      %v3569 = vmul.f32 %v3409, %v3567
      %v3570 = vmul.f32 %v2958, %v3567
      %v3571 = vmul.f32 %v3410, %v3567
      %v3572 = vmul.f32 %v2960, %v3567
      %v3573 = vmul.f32 %v3411, %v3567
      %v3574 = vmul.f32 %v2962, %v3567
      %v3575 = vmul.f32 %v3412, %v3567
      %v3576 = vmul.f32 %v2964, %v3567
      %v3577 = vmul.f32 %v3413, %v3567
      %v3578 = vmul.f32 %v2966, %v3567
      %v3579 = vmul.f32 %v3414, %v3567
      %v3580 = vmul.f32 %v2968, %v3567
      %v3581 = vmul.f32 %v3415, %v3567
      %v3582 = vmul.f32 %v2970, %v3567
      %v3583 = vmul.f32 %v3416, %v3567
      %v3584 = vmul.f32 %v2972, %v3567
      %v3585 = vmul.f32 %v3417, %v3567
      %v3586 = vmul.f32 %v2974, %v3567
      %v3587 = vmul.f32 %v3418, %v3567
      %v3588 = vmul.f32 %v2976, %v3567
      %v3589 = vmul.f32 %v3419, %v3567
      %v3590 = vmul.f32 %v2978, %v3567
      %v3591 = vmul.f32 %v3420, %v3567
      %v3592 = vmul.f32 %v2980, %v3567
      %v3593 = vmul.f32 %v3421, %v3567
      %v3594 = vmul.f32 %v2982, %v3567
      %v3595 = vmul.f32 %v3422, %v3567
      %v3596 = vmul.f32 %v2984, %v3567
      %v3597 = vmul.f32 %v3423, %v3567
      %v3598 = vmul.f32 %v2986, %v3567
      %v3599 = vmul.f32 %v3424, %v3567
      %v3600 = vadd.f32 %v3531, %v3568
      %v3601 = vadd.f32 %v3532, %v3569
      %v3602 = vadd.f32 %v3533, %v3570
      %v3603 = vadd.f32 %v3534, %v3571
      %v3604 = vadd.f32 %v3535, %v3572
      %v3605 = vadd.f32 %v3536, %v3573
      %v3606 = vadd.f32 %v3537, %v3574
      %v3607 = vadd.f32 %v3538, %v3575
      %v3608 = vadd.f32 %v3539, %v3576
      %v3609 = vadd.f32 %v3540, %v3577
      %v3610 = vadd.f32 %v3541, %v3578
      %v3611 = vadd.f32 %v3542, %v3579
      %v3612 = vadd.f32 %v3543, %v3580
      %v3613 = vadd.f32 %v3544, %v3581
      %v3614 = vadd.f32 %v3545, %v3582
      %v3615 = vadd.f32 %v3546, %v3583
      %v3616 = vadd.f32 %v3547, %v3584
      %v3617 = vadd.f32 %v3548, %v3585
      %v3618 = vadd.f32 %v3549, %v3586
      %v3619 = vadd.f32 %v3550, %v3587
      %v3620 = vadd.f32 %v3551, %v3588
      %v3621 = vadd.f32 %v3552, %v3589
      %v3622 = vadd.f32 %v3553, %v3590
      %v3623 = vadd.f32 %v3554, %v3591
      %v3624 = vadd.f32 %v3555, %v3592
      %v3625 = vadd.f32 %v3556, %v3593
      %v3626 = vadd.f32 %v3557, %v3594
      %v3627 = vadd.f32 %v3558, %v3595
      %v3628 = vadd.f32 %v3559, %v3596
      %v3629 = vadd.f32 %v3560, %v3597
      %v3630 = vadd.f32 %v3561, %v3598
      %v3631 = vadd.f32 %v3562, %v3599
      %v3632 = vpack.c.bf16 %v3601, %v3600
      %v3633 = vpack.c.bf16 %v3603, %v3602
      %v3634 = vpack.c.bf16 %v3605, %v3604
      %v3635 = vpack.c.bf16 %v3607, %v3606
      %v3636 = vpack.c.bf16 %v3609, %v3608
      %v3637 = vpack.c.bf16 %v3611, %v3610
      %v3638 = vpack.c.bf16 %v3613, %v3612
      %v3639 = vpack.c.bf16 %v3615, %v3614
      %v3640 = vpack.c.bf16 %v3617, %v3616
      %v3641 = vpack.c.bf16 %v3619, %v3618
      %v3642 = vpack.c.bf16 %v3621, %v3620
      %v3643 = vpack.c.bf16 %v3623, %v3622
      %v3644 = vpack.c.bf16 %v3625, %v3624
      %v3645 = vpack.c.bf16 %v3627, %v3626
      %v3646 = vpack.c.bf16 %v3629, %v3628
      %v3647 = vpack.c.bf16 %v3631, %v3630
      %v3648 = vld [vmem:[%s4 + $0x20] sm:$0xf]
      %v3649 = vld [vmem:[%s4 + $0x24] sm:$0xf]
      %v3650 = vld [vmem:[%s4 + $0x28] sm:$0xf]
      %v3651 = vld [vmem:[%s4 + $0x2c] sm:$0xf]
      %v3656 = vunpack.c.l.b16 %v3648
      %v3657 = vunpack.c.l.b16 %v3649
      %v3658 = vunpack.c.l.b16 %v3650
      %v3659 = vunpack.c.l.b16 %v3651
      %v3660 = vpack.c.b16 %v3657, %v3656
      %v3661 = vpack.c.b16 %v3659, %v3658
      %v3665 = vsel %vm1140, %v3632, 0
      %v3668 = vsel %vm1140, %v3633, 0
      %v3671 = vsel %vm1140, %v3634, 0
      %v3674 = vsel %vm1140, %v3635, 0
      %v3677 = vsel %vm1140, %v3636, 0
      %v3680 = vsel %vm1140, %v3637, 0
      %v3683 = vsel %vm1140, %v3638, 0
      %v3686 = vsel %vm1140, %v3639, 0
      %v3689 = vsel %vm1140, %v3640, 0
      %v3692 = vsel %vm1140, %v3641, 0
      %v3695 = vsel %vm1140, %v3642, 0
      %v3698 = vsel %vm1140, %v3643, 0
      %v3701 = vsel %vm1140, %v3644, 0
      %v3704 = vsel %vm1140, %v3645, 0
      %v3707 = vsel %vm1140, %v3646, 0
      %v3710 = vsel %vm1140, %v3647, 0
      %3712 = vmatprep.subr.bf16.mxu0 0
      %3713 = vmatpush1.bf16.msra.mxu0 %v3660
      %3714 = vmatprep.subr.bf16.mxu0 0
      %3715 = vmatpush1.bf16.msra.mxu0 %v3661
      %3716 = vmatprep.subr.bf16.mxu0 0
      %3717 = vmatpush1.bf16.msra.mxu0 0
      %3718 = vmatprep.subr.bf16.mxu0 0
      %3719 = vmatpush1.bf16.msra.mxu0 0
      %3720 = vmatprep.subr.bf16.mxu0 0
      %3721 = vmatpush1.bf16.msra.mxu0 0
      %3722 = vmatprep.subr.bf16.mxu0 0
      %3723 = vmatpush1.bf16.msra.mxu0 0
      %3724 = vmatprep.subr.bf16.mxu0 0
      %3725 = vmatpush1.bf16.msra.mxu0 0
      %3726 = vmatprep.subr.bf16.mxu0 0
      %3727 = vmatpush1.bf16.msra.mxu0 0
      %3728 = vmatprep.subr.bf16.mxu0 0
      %3729 = vmatpush1.bf16.msra.mxu0 0
      %3730 = vmatprep.subr.bf16.mxu0 0
      %3731 = vmatpush1.bf16.msra.mxu0 0
      %3732 = vmatprep.subr.bf16.mxu0 0
      %3733 = vmatpush1.bf16.msra.mxu0 0
      %3734 = vmatprep.subr.bf16.mxu0 0
      %3735 = vmatpush1.bf16.msra.mxu0 0
      %3736 = vmatprep.subr.bf16.mxu0 0
      %3737 = vmatpush1.bf16.msra.mxu0 0
      %3738 = vmatprep.subr.bf16.mxu0 0
      %3739 = vmatpush1.bf16.msra.mxu0 0
      %3740 = vmatprep.subr.bf16.mxu0 0
      %3741 = vmatpush1.bf16.msra.mxu0 0
      %3742 = vmatprep.subr.bf16.mxu0 0
      %3743 = vmatpush1.bf16.msra.mxu0 0
      %3744 = vmatprep.mubr.bf16.mxu0 0
      %3745 = vmatmul.mubr.bf16.gmra.mrb[0].mxu0 %v3665
      %v3746 = vpop.f32.mrb[0].mxu0
      %v3747 = vadd.f32 0.0, %v3746
      %v3748 = vpop.f32.mrb[0].mxu0
      %v3749 = vpop.f32.mrb[0].mxu0
      %v3750 = vadd.f32 0.0, %v3749
      %v3751 = vpop.f32.mrb[0].mxu0
      %3752 = vmatprep.mubr.bf16.mxu0 0
      %3753 = vmatmul.mubr.bf16.gmra.mrb[0].mxu0 %v3668
      %v3754 = vpop.f32.mrb[0].mxu0
      %v3755 = vadd.f32 0.0, %v3754
      %v3756 = vpop.f32.mrb[0].mxu0
      %v3757 = vpop.f32.mrb[0].mxu0
      %v3758 = vadd.f32 0.0, %v3757
      %v3759 = vpop.f32.mrb[0].mxu0
      %3760 = vmatprep.mubr.bf16.mxu0 0
      %3761 = vmatmul.mubr.bf16.gmra.mrb[0].mxu0 %v3671
      %v3762 = vpop.f32.mrb[0].mxu0
      %v3763 = vadd.f32 0.0, %v3762
      %v3764 = vpop.f32.mrb[0].mxu0
      %v3765 = vpop.f32.mrb[0].mxu0
      %v3766 = vadd.f32 0.0, %v3765
      %v3767 = vpop.f32.mrb[0].mxu0
      %3768 = vmatprep.mubr.bf16.mxu0 0
      %3769 = vmatmul.mubr.bf16.gmra.mrb[0].mxu0 %v3674
      %v3770 = vpop.f32.mrb[0].mxu0
      %v3771 = vadd.f32 0.0, %v3770
      %v3772 = vpop.f32.mrb[0].mxu0
      %v3773 = vpop.f32.mrb[0].mxu0
      %v3774 = vadd.f32 0.0, %v3773
      %v3775 = vpop.f32.mrb[0].mxu0
      %3776 = vmatprep.mubr.bf16.mxu0 0
      %3777 = vmatmul.mubr.bf16.gmra.mrb[0].mxu0 %v3677
      %v3778 = vpop.f32.mrb[0].mxu0
      %v3779 = vadd.f32 0.0, %v3778
      %v3780 = vpop.f32.mrb[0].mxu0
      %v3781 = vpop.f32.mrb[0].mxu0
      %v3782 = vadd.f32 0.0, %v3781
      %v3783 = vpop.f32.mrb[0].mxu0
      %3784 = vmatprep.mubr.bf16.mxu0 0
      %3785 = vmatmul.mubr.bf16.gmra.mrb[0].mxu0 %v3680
      %v3786 = vpop.f32.mrb[0].mxu0
      %v3787 = vadd.f32 0.0, %v3786
      %v3788 = vpop.f32.mrb[0].mxu0
      %v3789 = vpop.f32.mrb[0].mxu0
      %v3790 = vadd.f32 0.0, %v3789
      %v3791 = vpop.f32.mrb[0].mxu0
      %3792 = vmatprep.mubr.bf16.mxu0 0
      %3793 = vmatmul.mubr.bf16.gmra.mrb[0].mxu0 %v3683
      %v3794 = vpop.f32.mrb[0].mxu0
      %v3795 = vadd.f32 0.0, %v3794
      %v3796 = vpop.f32.mrb[0].mxu0
      %v3797 = vpop.f32.mrb[0].mxu0
      %v3798 = vadd.f32 0.0, %v3797
      %v3799 = vpop.f32.mrb[0].mxu0
      %3800 = vmatprep.mubr.bf16.mxu0 0
      %3801 = vmatmul.mubr.bf16.gmra.mrb[0].mxu0 %v3686
      %v3802 = vpop.f32.mrb[0].mxu0
      %v3803 = vadd.f32 0.0, %v3802
      %v3804 = vpop.f32.mrb[0].mxu0
      %v3805 = vpop.f32.mrb[0].mxu0
      %v3806 = vadd.f32 0.0, %v3805
      %v3807 = vpop.f32.mrb[0].mxu0
      %3808 = vmatprep.mubr.bf16.mxu0 0
      %3809 = vmatmul.mubr.bf16.gmra.mrb[0].mxu0 %v3689
      %v3810 = vpop.f32.mrb[0].mxu0
      %v3811 = vadd.f32 0.0, %v3810
      %v3812 = vpop.f32.mrb[0].mxu0
      %v3813 = vpop.f32.mrb[0].mxu0
      %v3814 = vadd.f32 0.0, %v3813
      %v3815 = vpop.f32.mrb[0].mxu0
      %3816 = vmatprep.mubr.bf16.mxu0 0
      %3817 = vmatmul.mubr.bf16.gmra.mrb[0].mxu0 %v3692
      %v3818 = vpop.f32.mrb[0].mxu0
      %v3819 = vadd.f32 0.0, %v3818
      %v3820 = vpop.f32.mrb[0].mxu0
      %v3821 = vpop.f32.mrb[0].mxu0
      %v3822 = vadd.f32 0.0, %v3821
      %v3823 = vpop.f32.mrb[0].mxu0
      %3824 = vmatprep.mubr.bf16.mxu0 0
      %3825 = vmatmul.mubr.bf16.gmra.mrb[0].mxu0 %v3695
      %v3826 = vpop.f32.mrb[0].mxu0
      %v3827 = vadd.f32 0.0, %v3826
      %v3828 = vpop.f32.mrb[0].mxu0
      %v3829 = vpop.f32.mrb[0].mxu0
      %v3830 = vadd.f32 0.0, %v3829
      %v3831 = vpop.f32.mrb[0].mxu0
      %3832 = vmatprep.mubr.bf16.mxu0 0
      %3833 = vmatmul.mubr.bf16.gmra.mrb[0].mxu0 %v3698
      %v3834 = vpop.f32.mrb[0].mxu0
      %v3835 = vadd.f32 0.0, %v3834
      %v3836 = vpop.f32.mrb[0].mxu0
      %v3837 = vpop.f32.mrb[0].mxu0
      %v3838 = vadd.f32 0.0, %v3837
      %v3839 = vpop.f32.mrb[0].mxu0
      %3840 = vmatprep.mubr.bf16.mxu0 0
      %3841 = vmatmul.mubr.bf16.gmra.mrb[0].mxu0 %v3701
      %v3842 = vpop.f32.mrb[0].mxu0
      %v3843 = vadd.f32 0.0, %v3842
      %v3844 = vpop.f32.mrb[0].mxu0
      %v3845 = vpop.f32.mrb[0].mxu0
      %v3846 = vadd.f32 0.0, %v3845
      %v3847 = vpop.f32.mrb[0].mxu0
      %3848 = vmatprep.mubr.bf16.mxu0 0
      %3849 = vmatmul.mubr.bf16.gmra.mrb[0].mxu0 %v3704
      %v3850 = vpop.f32.mrb[0].mxu0
      %v3851 = vadd.f32 0.0, %v3850
      %v3852 = vpop.f32.mrb[0].mxu0
      %v3853 = vpop.f32.mrb[0].mxu0
      %v3854 = vadd.f32 0.0, %v3853
      %v3855 = vpop.f32.mrb[0].mxu0
      %3856 = vmatprep.mubr.bf16.mxu0 0
      %3857 = vmatmul.mubr.bf16.gmra.mrb[0].mxu0 %v3707
      %v3858 = vpop.f32.mrb[0].mxu0
      %v3859 = vadd.f32 0.0, %v3858
      %v3860 = vpop.f32.mrb[0].mxu0
      %v3861 = vpop.f32.mrb[0].mxu0
      %v3862 = vadd.f32 0.0, %v3861
      %v3863 = vpop.f32.mrb[0].mxu0
      %3864 = vmatprep.mubr.bf16.mxu0 0
      %3865 = vmatmul.mubr.bf16.gmra.mrb[0].mxu0 %v3710
      %v3866 = vpop.f32.mrb[0].mxu0
      %v3867 = vadd.f32 0.0, %v3866
      %v3868 = vpop.f32.mrb[0].mxu0
      %v3869 = vpop.f32.mrb[0].mxu0
      %v3870 = vadd.f32 0.0, %v3869
      %v3871 = vpop.f32.mrb[0].mxu0
      %3872 = vdwg.mxu0
      %v3873 = vld [vmem:[%s355] sm:$0xff]
      %v3874 = vld [vmem:[%s355 + $0x10] sm:$0xff]
      %v3875 = vld [vmem:[%s355 + $0x20] sm:$0xff]
      %v3876 = vld [vmem:[%s355 + $0x30] sm:$0xff]
      %v3877 = vld [vmem:[%s355 + $0x40] sm:$0xff]
      %v3878 = vld [vmem:[%s355 + $0x50] sm:$0xff]
      %v3879 = vld [vmem:[%s355 + $0x60] sm:$0xff]
      %v3880 = vld [vmem:[%s355 + $0x70] sm:$0xff]
      %v3881 = vld [vmem:[%s355 + $0x80] sm:$0xff]
      %v3882 = vld [vmem:[%s355 + $0x90] sm:$0xff]
      %v3883 = vld [vmem:[%s355 + $0xa0] sm:$0xff]
      %v3884 = vld [vmem:[%s355 + $0xb0] sm:$0xff]
      %v3885 = vld [vmem:[%s3 + $0x12] sm:$0x1]
      %v3886 = vlaneseq
      %v3887 = vshrl.u32 %v3886, 7
      %v3888 = vsub.s32 0, %v3887
      %v3889 = vrot.slane %v3885, %v3888
      %v3890 = vmul.f32 %v3873, %v3889
      %v3891 = vmul.f32 %v3874, %v3889
      %v3892 = vmul.f32 %v3875, %v3889
      %v3893 = vmul.f32 %v3876, %v3889
      %v3894 = vmul.f32 %v3877, %v3889
      %v3895 = vmul.f32 %v3878, %v3889
      %v3896 = vmul.f32 %v3879, %v3889
      %v3897 = vmul.f32 %v3880, %v3889
      %v3898 = vadd.f32 %v3890, 0.0
      %v3899 = vadd.f32 %v3891, 0.0
      %v3900 = vadd.f32 %v3892, 0.0
      %v3901 = vadd.f32 %v3893, 0.0
      %v3902 = vadd.f32 %v3894, 0.0
      %v3903 = vadd.f32 %v3895, 0.0
      %v3904 = vadd.f32 %v3896, 0.0
      %v3905 = vadd.f32 %v3897, 0.0
      %v3906 = vld [vmem:[%s3 + $0x15] sm:$0x1]
      %v3907 = vlaneseq
      %v3908 = vshrl.u32 %v3907, 7
      %v3909 = vsub.s32 0, %v3908
      %v3910 = vrot.slane %v3906, %v3909
      %v3911 = vmul.f32 %v3875, %v3910
      %v3912 = vmul.f32 %v3876, %v3910
      %v3913 = vmul.f32 %v3877, %v3910
      %v3914 = vmul.f32 %v3878, %v3910
      %v3915 = vmul.f32 %v3879, %v3910
      %v3916 = vmul.f32 %v3880, %v3910
      %v3917 = vmul.f32 %v3881, %v3910
      %v3918 = vmul.f32 %v3882, %v3910
      %v3919 = vadd.f32 %v3898, %v3911
      %v3920 = vadd.f32 %v3899, %v3912
      %v3921 = vadd.f32 %v3900, %v3913
      %v3922 = vadd.f32 %v3901, %v3914
      %v3923 = vadd.f32 %v3902, %v3915
      %v3924 = vadd.f32 %v3903, %v3916
      %v3925 = vadd.f32 %v3904, %v3917
      %v3926 = vadd.f32 %v3905, %v3918
      %v3927 = vld [vmem:[%s3 + $0x18] sm:$0x1]
      %v3928 = vlaneseq
      %v3929 = vshrl.u32 %v3928, 7
      %v3930 = vsub.s32 0, %v3929
      %v3931 = vrot.slane %v3927, %v3930
      %v3932 = vmul.f32 %v3877, %v3931
      %v3933 = vmul.f32 %v3878, %v3931
      %v3934 = vmul.f32 %v3879, %v3931
      %v3935 = vmul.f32 %v3880, %v3931
      %v3936 = vmul.f32 %v3881, %v3931
      %v3937 = vmul.f32 %v3882, %v3931
      %v3938 = vmul.f32 %v3883, %v3931
      %v3939 = vmul.f32 %v3884, %v3931
      %v3940 = vadd.f32 %v3919, %v3932
      %v3941 = vadd.f32 %v3920, %v3933
      %v3942 = vadd.f32 %v3921, %v3934
      %v3943 = vadd.f32 %v3922, %v3935
      %v3944 = vadd.f32 %v3923, %v3936
      %v3945 = vadd.f32 %v3924, %v3937
      %v3946 = vadd.f32 %v3925, %v3938
      %v3947 = vadd.f32 %v3926, %v3939
      %v3948 = vld [vmem:[%s3 + $0x13] sm:$0x1]
      %v3949 = vlaneseq
      %v3950 = vshrl.u32 %v3949, 7
      %v3951 = vsub.s32 0, %v3950
      %v3952 = vrot.slane %v3948, %v3951
      %v3953 = vmul.f32 %v1440, %v3952
      %v3954 = vmul.f32 %v1441, %v3952
      %v3955 = vmul.f32 %v1442, %v3952
      %v3956 = vmul.f32 %v1443, %v3952
      %v3957 = vmul.f32 %v1444, %v3952
      %v3958 = vmul.f32 %v1445, %v3952
      %v3959 = vmul.f32 %v1446, %v3952
      %v3960 = vmul.f32 %v1447, %v3952
      %v3961 = vadd.f32 %v3940, %v3953
      %v3962 = vadd.f32 %v3941, %v3954
      %v3963 = vadd.f32 %v3942, %v3955
      %v3964 = vadd.f32 %v3943, %v3956
      %v3965 = vadd.f32 %v3944, %v3957
      %v3966 = vadd.f32 %v3945, %v3958
      %v3967 = vadd.f32 %v3946, %v3959
      %v3968 = vadd.f32 %v3947, %v3960
      %v3969 = vld [vmem:[%s3 + $0x16] sm:$0x1]
      %v3970 = vlaneseq
      %v3971 = vshrl.u32 %v3970, 7
      %v3972 = vsub.s32 0, %v3971
      %v3973 = vrot.slane %v3969, %v3972
      %v3974 = vmul.f32 %v1442, %v3973
      %v3975 = vmul.f32 %v1443, %v3973
      %v3976 = vmul.f32 %v1444, %v3973
      %v3977 = vmul.f32 %v1445, %v3973
      %v3978 = vmul.f32 %v1446, %v3973
      %v3979 = vmul.f32 %v1447, %v3973
      %v3980 = vmul.f32 %v1448, %v3973
      %v3981 = vmul.f32 %v1449, %v3973
      %v3982 = vadd.f32 %v3961, %v3974
      %v3983 = vadd.f32 %v3962, %v3975
      %v3984 = vadd.f32 %v3963, %v3976
      %v3985 = vadd.f32 %v3964, %v3977
      %v3986 = vadd.f32 %v3965, %v3978
      %v3987 = vadd.f32 %v3966, %v3979
      %v3988 = vadd.f32 %v3967, %v3980
      %v3989 = vadd.f32 %v3968, %v3981
      %v3990 = vld [vmem:[%s3 + $0x19] sm:$0x1]
      %v3991 = vlaneseq
      %v3992 = vshrl.u32 %v3991, 7
      %v3993 = vsub.s32 0, %v3992
      %v3994 = vrot.slane %v3990, %v3993
      %v3995 = vmul.f32 %v1444, %v3994
      %v3996 = vmul.f32 %v1445, %v3994
      %v3997 = vmul.f32 %v1446, %v3994
      %v3998 = vmul.f32 %v1447, %v3994
      %v3999 = vmul.f32 %v1448, %v3994
      %v4000 = vmul.f32 %v1449, %v3994
      %v4001 = vmul.f32 %v1450, %v3994
      %v4002 = vmul.f32 %v1451, %v3994
      %v4003 = vadd.f32 %v3982, %v3995
      %v4004 = vadd.f32 %v3983, %v3996
      %v4005 = vadd.f32 %v3984, %v3997
      %v4006 = vadd.f32 %v3985, %v3998
      %v4007 = vadd.f32 %v3986, %v3999
      %v4008 = vadd.f32 %v3987, %v4000
      %v4009 = vadd.f32 %v3988, %v4001
      %v4010 = vadd.f32 %v3989, %v4002
      %v4011 = vld [vmem:[%s355 + $0x4] sm:$0xff]
      %v4012 = vld [vmem:[%s355 + $0x14] sm:$0xff]
      %v4013 = vld [vmem:[%s355 + $0x24] sm:$0xff]
      %v4014 = vld [vmem:[%s355 + $0x34] sm:$0xff]
      %v4015 = vld [vmem:[%s355 + $0x44] sm:$0xff]
      %v4016 = vld [vmem:[%s355 + $0x54] sm:$0xff]
      %v4017 = vld [vmem:[%s355 + $0x64] sm:$0xff]
      %v4018 = vld [vmem:[%s355 + $0x74] sm:$0xff]
      %v4019 = vld [vmem:[%s355 + $0x84] sm:$0xff]
      %v4020 = vld [vmem:[%s355 + $0x94] sm:$0xff]
      %v4021 = vld [vmem:[%s355 + $0xa4] sm:$0xff]
      %v4022 = vld [vmem:[%s355 + $0xb4] sm:$0xff]
      %v4023 = vld [vmem:[%s3 + $0x14] sm:$0x1]
      %v4024 = vlaneseq
      %v4025 = vshrl.u32 %v4024, 7
      %v4026 = vsub.s32 0, %v4025
      %v4027 = vrot.slane %v4023, %v4026
      %v4028 = vmul.f32 %v4011, %v4027
      %v4029 = vmul.f32 %v4012, %v4027
      %v4030 = vmul.f32 %v4013, %v4027
      %v4031 = vmul.f32 %v4014, %v4027
      %v4032 = vmul.f32 %v4015, %v4027
      %v4033 = vmul.f32 %v4016, %v4027
      %v4034 = vmul.f32 %v4017, %v4027
      %v4035 = vmul.f32 %v4018, %v4027
      %v4036 = vadd.f32 %v4003, %v4028
      %v4037 = vadd.f32 %v4004, %v4029
      %v4038 = vadd.f32 %v4005, %v4030
      %v4039 = vadd.f32 %v4006, %v4031
      %v4040 = vadd.f32 %v4007, %v4032
      %v4041 = vadd.f32 %v4008, %v4033
      %v4042 = vadd.f32 %v4009, %v4034
      %v4043 = vadd.f32 %v4010, %v4035
      %v4044 = vld [vmem:[%s3 + $0x17] sm:$0x1]
      %v4045 = vlaneseq
      %v4046 = vshrl.u32 %v4045, 7
      %v4047 = vsub.s32 0, %v4046
      %v4048 = vrot.slane %v4044, %v4047
      %v4049 = vmul.f32 %v4013, %v4048
      %v4050 = vmul.f32 %v4014, %v4048
      %v4051 = vmul.f32 %v4015, %v4048
      %v4052 = vmul.f32 %v4016, %v4048
      %v4053 = vmul.f32 %v4017, %v4048
      %v4054 = vmul.f32 %v4018, %v4048
      %v4055 = vmul.f32 %v4019, %v4048
      %v4056 = vmul.f32 %v4020, %v4048
      %v4057 = vadd.f32 %v4036, %v4049
      %v4058 = vadd.f32 %v4037, %v4050
      %v4059 = vadd.f32 %v4038, %v4051
      %v4060 = vadd.f32 %v4039, %v4052
      %v4061 = vadd.f32 %v4040, %v4053
      %v4062 = vadd.f32 %v4041, %v4054
      %v4063 = vadd.f32 %v4042, %v4055
      %v4064 = vadd.f32 %v4043, %v4056
      %v4065 = vld [vmem:[%s3 + $0x1a] sm:$0x1]
      %v4066 = vlaneseq
      %v4067 = vshrl.u32 %v4066, 7
      %v4068 = vsub.s32 0, %v4067
      %v4069 = vrot.slane %v4065, %v4068
      %v4070 = vmul.f32 %v4015, %v4069
      %v4071 = vmul.f32 %v4016, %v4069
      %v4072 = vmul.f32 %v4017, %v4069
      %v4073 = vmul.f32 %v4018, %v4069
      %v4074 = vmul.f32 %v4019, %v4069
      %v4075 = vmul.f32 %v4020, %v4069
      %v4076 = vmul.f32 %v4021, %v4069
      %v4077 = vmul.f32 %v4022, %v4069
      %v4078 = vadd.f32 %v4057, %v4070
      %v4079 = vadd.f32 %v4058, %v4071
      %v4080 = vadd.f32 %v4059, %v4072
      %v4081 = vadd.f32 %v4060, %v4073
      %v4082 = vadd.f32 %v4061, %v4074
      %v4083 = vadd.f32 %v4062, %v4075
      %v4084 = vadd.f32 %v4063, %v4076
      %v4085 = vadd.f32 %v4064, %v4077
      %v4086 = vpack.c.bf16 %v4079, %v4078
      %v4087 = vpack.c.bf16 %v4081, %v4080
      %v4088 = vpack.c.bf16 %v4083, %v4082
      %v4089 = vpack.c.bf16 %v4085, %v4084
      %v4090 = vld [vmem:[%s6 + $0x20] sm:$0xf]
      %v4091 = vld [vmem:[%s6 + $0x24] sm:$0xf]
      %v4092 = vld [vmem:[%s6 + $0x28] sm:$0xf]
      %v4093 = vld [vmem:[%s6 + $0x2c] sm:$0xf]
      %v4098 = vunpack.c.l.b16 %v4090
      %v4099 = vunpack.c.l.b16 %v4091
      %v4100 = vunpack.c.l.b16 %v4092
      %v4101 = vunpack.c.l.b16 %v4093
      %v4102 = vpack.c.b16 %v4099, %v4098
      %v4103 = vpack.c.b16 %v4101, %v4100
      %v4107 = vsel %vm1140, %v4086, 0
      %v4110 = vsel %vm1140, %v4087, 0
      %v4113 = vsel %vm1140, %v4088, 0
      %v4116 = vsel %vm1140, %v4089, 0
      %4118 = vmatprep.subr.bf16.mxu0 0
      %4119 = vmatpush1.bf16.msra.mxu0 %v4102
      %4120 = vmatprep.subr.bf16.mxu0 0
      %4121 = vmatpush1.bf16.msra.mxu0 %v4103
      %4122 = vmatprep.subr.bf16.mxu0 0
      %4123 = vmatpush1.bf16.msra.mxu0 0
      %4124 = vmatprep.subr.bf16.mxu0 0
      %4125 = vmatpush1.bf16.msra.mxu0 0
      %4126 = vmatprep.subr.bf16.mxu0 0
      %4127 = vmatpush1.bf16.msra.mxu0 0
      %4128 = vmatprep.subr.bf16.mxu0 0
      %4129 = vmatpush1.bf16.msra.mxu0 0
      %4130 = vmatprep.subr.bf16.mxu0 0
      %4131 = vmatpush1.bf16.msra.mxu0 0
      %4132 = vmatprep.subr.bf16.mxu0 0
      %4133 = vmatpush1.bf16.msra.mxu0 0
      %4134 = vmatprep.subr.bf16.mxu0 0
      %4135 = vmatpush1.bf16.msra.mxu0 0
      %4136 = vmatprep.subr.bf16.mxu0 0
      %4137 = vmatpush1.bf16.msra.mxu0 0
      %4138 = vmatprep.subr.bf16.mxu0 0
      %4139 = vmatpush1.bf16.msra.mxu0 0
      %4140 = vmatprep.subr.bf16.mxu0 0
      %4141 = vmatpush1.bf16.msra.mxu0 0
      %4142 = vmatprep.subr.bf16.mxu0 0
      %4143 = vmatpush1.bf16.msra.mxu0 0
      %4144 = vmatprep.subr.bf16.mxu0 0
      %4145 = vmatpush1.bf16.msra.mxu0 0
      %4146 = vmatprep.subr.bf16.mxu0 0
      %4147 = vmatpush1.bf16.msra.mxu0 0
      %4148 = vmatprep.subr.bf16.mxu0 0
      %4149 = vmatpush1.bf16.msra.mxu0 0
      %4150 = vmatprep.mubr.bf16.mxu0 0
      %4151 = vmatmul.mubr.bf16.gmra.mrb[0].mxu0 %v4107
      %v4152 = vpop.f32.mrb[0].mxu0
      %v4153 = vadd.f32 0.0, %v4152
      %v4154 = vpop.f32.mrb[0].mxu0
      %v4155 = vpop.f32.mrb[0].mxu0
      %v4156 = vadd.f32 0.0, %v4155
      %v4157 = vpop.f32.mrb[0].mxu0
      %4158 = vmatprep.mubr.bf16.mxu0 0
      %4159 = vmatmul.mubr.bf16.gmra.mrb[0].mxu0 %v4110
      %v4160 = vpop.f32.mrb[0].mxu0
      %v4161 = vadd.f32 0.0, %v4160
      %v4162 = vpop.f32.mrb[0].mxu0
      %v4163 = vpop.f32.mrb[0].mxu0
      %v4164 = vadd.f32 0.0, %v4163
      %v4165 = vpop.f32.mrb[0].mxu0
      %4166 = vmatprep.mubr.bf16.mxu0 0
      %4167 = vmatmul.mubr.bf16.gmra.mrb[0].mxu0 %v4113
      %v4168 = vpop.f32.mrb[0].mxu0
      %v4169 = vadd.f32 0.0, %v4168
      %v4170 = vpop.f32.mrb[0].mxu0
      %v4171 = vpop.f32.mrb[0].mxu0
      %v4172 = vadd.f32 0.0, %v4171
      %v4173 = vpop.f32.mrb[0].mxu0
      %4174 = vmatprep.mubr.bf16.mxu0 0
      %4175 = vmatmul.mubr.bf16.gmra.mrb[0].mxu0 %v4116
      %v4176 = vpop.f32.mrb[0].mxu0
      %v4177 = vadd.f32 0.0, %v4176
      %v4178 = vpop.f32.mrb[0].mxu0
      %v4179 = vpop.f32.mrb[0].mxu0
      %v4180 = vadd.f32 0.0, %v4179
      %v4181 = vpop.f32.mrb[0].mxu0
      %4182 = vdwg.mxu0
      %4215 = vrot.lane.b32.xlu0 %v2517, 32
      %v4216 = vpop.permute.xlu0 %4215
      %4217 = vrot.lane.b32.xlu0 %v2520, 32
      %v4218 = vpop.permute.xlu0 %4217
      %4219 = vrot.lane.b32.xlu0 %v2525, 32
      %v4220 = vpop.permute.xlu0 %4219
      %4221 = vrot.lane.b32.xlu0 %v2528, 32
      %v4222 = vpop.permute.xlu0 %4221
      %4223 = vrot.lane.b32.xlu0 %v2533, 32
      %v4224 = vpop.permute.xlu0 %4223
      %4225 = vrot.lane.b32.xlu0 %v2536, 32
      %v4226 = vpop.permute.xlu0 %4225
      %4227 = vrot.lane.b32.xlu0 %v2541, 32
      %v4228 = vpop.permute.xlu0 %4227
      %4229 = vrot.lane.b32.xlu0 %v2544, 32
      %v4230 = vpop.permute.xlu0 %4229
      %4231 = vrot.lane.b32.xlu0 %v2549, 32
      %v4232 = vpop.permute.xlu0 %4231
      %4233 = vrot.lane.b32.xlu0 %v2552, 32
      %v4234 = vpop.permute.xlu0 %4233
      %4235 = vrot.lane.b32.xlu0 %v2557, 32
      %v4236 = vpop.permute.xlu0 %4235
      %4237 = vrot.lane.b32.xlu0 %v2560, 32
      %v4238 = vpop.permute.xlu0 %4237
      %4239 = vrot.lane.b32.xlu0 %v2565, 32
      %v4240 = vpop.permute.xlu0 %4239
      %4241 = vrot.lane.b32.xlu0 %v2568, 32
      %v4242 = vpop.permute.xlu0 %4241
      %4243 = vrot.lane.b32.xlu0 %v2573, 32
      %v4244 = vpop.permute.xlu0 %4243
      %4245 = vrot.lane.b32.xlu0 %v2576, 32
      %v4246 = vpop.permute.xlu0 %4245
      %4247 = vrot.lane.b32.xlu0 %v2581, 32
      %v4248 = vpop.permute.xlu0 %4247
      %4249 = vrot.lane.b32.xlu0 %v2584, 32
      %v4250 = vpop.permute.xlu0 %4249
      %4251 = vrot.lane.b32.xlu0 %v2589, 32
      %v4252 = vpop.permute.xlu0 %4251
      %4253 = vrot.lane.b32.xlu0 %v2592, 32
      %v4254 = vpop.permute.xlu0 %4253
      %4255 = vrot.lane.b32.xlu0 %v2597, 32
      %v4256 = vpop.permute.xlu0 %4255
      %4257 = vrot.lane.b32.xlu0 %v2600, 32
      %v4258 = vpop.permute.xlu0 %4257
      %4259 = vrot.lane.b32.xlu0 %v2605, 32
      %v4260 = vpop.permute.xlu0 %4259
      %4261 = vrot.lane.b32.xlu0 %v2608, 32
      %v4262 = vpop.permute.xlu0 %4261
      %4263 = vrot.lane.b32.xlu0 %v2613, 32
      %v4264 = vpop.permute.xlu0 %4263
      %4265 = vrot.lane.b32.xlu0 %v2616, 32
      %v4266 = vpop.permute.xlu0 %4265
      %4267 = vrot.lane.b32.xlu0 %v2621, 32
      %v4268 = vpop.permute.xlu0 %4267
      %4269 = vrot.lane.b32.xlu0 %v2624, 32
      %v4270 = vpop.permute.xlu0 %4269
      %4271 = vrot.lane.b32.xlu0 %v2629, 32
      %v4272 = vpop.permute.xlu0 %4271
      %4273 = vrot.lane.b32.xlu0 %v2632, 32
      %v4274 = vpop.permute.xlu0 %4273
      %4275 = vrot.lane.b32.xlu0 %v2637, 32
      %v4276 = vpop.permute.xlu0 %4275
      %4277 = vrot.lane.b32.xlu0 %v2640, 32
      %v4278 = vpop.permute.xlu0 %4277
      %4343 = vrot.lane.b32.xlu0 %v3747, 64
      %v4344 = vpop.permute.xlu0 %4343
      %4345 = vrot.lane.b32.xlu0 %v3750, 64
      %v4346 = vpop.permute.xlu0 %4345
      %4347 = vrot.lane.b32.xlu0 %v3755, 64
      %v4348 = vpop.permute.xlu0 %4347
      %4349 = vrot.lane.b32.xlu0 %v3758, 64
      %v4350 = vpop.permute.xlu0 %4349
      %4351 = vrot.lane.b32.xlu0 %v3763, 64
      %v4352 = vpop.permute.xlu0 %4351
      %4353 = vrot.lane.b32.xlu0 %v3766, 64
      %v4354 = vpop.permute.xlu0 %4353
      %4355 = vrot.lane.b32.xlu0 %v3771, 64
      %v4356 = vpop.permute.xlu0 %4355
      %4357 = vrot.lane.b32.xlu0 %v3774, 64
      %v4358 = vpop.permute.xlu0 %4357
      %4359 = vrot.lane.b32.xlu0 %v3779, 64
      %v4360 = vpop.permute.xlu0 %4359
      %4361 = vrot.lane.b32.xlu0 %v3782, 64
      %v4362 = vpop.permute.xlu0 %4361
      %4363 = vrot.lane.b32.xlu0 %v3787, 64
      %v4364 = vpop.permute.xlu0 %4363
      %4365 = vrot.lane.b32.xlu0 %v3790, 64
      %v4366 = vpop.permute.xlu0 %4365
      %4367 = vrot.lane.b32.xlu0 %v3795, 64
      %v4368 = vpop.permute.xlu0 %4367
      %4369 = vrot.lane.b32.xlu0 %v3798, 64
      %v4370 = vpop.permute.xlu0 %4369
      %4371 = vrot.lane.b32.xlu0 %v3803, 64
      %v4372 = vpop.permute.xlu0 %4371
      %4373 = vrot.lane.b32.xlu0 %v3806, 64
      %v4374 = vpop.permute.xlu0 %4373
      %4375 = vrot.lane.b32.xlu0 %v3811, 64
      %v4376 = vpop.permute.xlu0 %4375
      %4377 = vrot.lane.b32.xlu0 %v3814, 64
      %v4378 = vpop.permute.xlu0 %4377
      %4379 = vrot.lane.b32.xlu0 %v3819, 64
      %v4380 = vpop.permute.xlu0 %4379
      %4381 = vrot.lane.b32.xlu0 %v3822, 64
      %v4382 = vpop.permute.xlu0 %4381
      %4383 = vrot.lane.b32.xlu0 %v3827, 64
      %v4384 = vpop.permute.xlu0 %4383
      %4385 = vrot.lane.b32.xlu0 %v3830, 64
      %v4386 = vpop.permute.xlu0 %4385
      %4387 = vrot.lane.b32.xlu0 %v3835, 64
      %v4388 = vpop.permute.xlu0 %4387
      %4389 = vrot.lane.b32.xlu0 %v3838, 64
      %v4390 = vpop.permute.xlu0 %4389
      %4391 = vrot.lane.b32.xlu0 %v3843, 64
      %v4392 = vpop.permute.xlu0 %4391
      %4393 = vrot.lane.b32.xlu0 %v3846, 64
      %v4394 = vpop.permute.xlu0 %4393
      %4395 = vrot.lane.b32.xlu0 %v3851, 64
      %v4396 = vpop.permute.xlu0 %4395
      %4397 = vrot.lane.b32.xlu0 %v3854, 64
      %v4398 = vpop.permute.xlu0 %4397
      %4399 = vrot.lane.b32.xlu0 %v3859, 64
      %v4400 = vpop.permute.xlu0 %4399
      %4401 = vrot.lane.b32.xlu0 %v3862, 64
      %v4402 = vpop.permute.xlu0 %4401
      %4403 = vrot.lane.b32.xlu0 %v3867, 64
      %v4404 = vpop.permute.xlu0 %4403
      %4405 = vrot.lane.b32.xlu0 %v3870, 64
      %v4406 = vpop.permute.xlu0 %4405
      %v4439 = vsel %vm1140, %v1224, %v4216
      %v4440 = vsel %vm1140, %v1227, %v4218
      %v4441 = vsel %vm1140, %v1232, %v4220
      %v4442 = vsel %vm1140, %v1235, %v4222
      %v4443 = vsel %vm1140, %v1240, %v4224
      %v4444 = vsel %vm1140, %v1243, %v4226
      %v4445 = vsel %vm1140, %v1248, %v4228
      %v4446 = vsel %vm1140, %v1251, %v4230
      %v4447 = vsel %vm1140, %v1256, %v4232
      %v4448 = vsel %vm1140, %v1259, %v4234
      %v4449 = vsel %vm1140, %v1264, %v4236
      %v4450 = vsel %vm1140, %v1267, %v4238
      %v4451 = vsel %vm1140, %v1272, %v4240
      %v4452 = vsel %vm1140, %v1275, %v4242
      %v4453 = vsel %vm1140, %v1280, %v4244
      %v4454 = vsel %vm1140, %v1283, %v4246
      %v4455 = vsel %vm1140, %v1288, %v4248
      %v4456 = vsel %vm1140, %v1291, %v4250
      %v4457 = vsel %vm1140, %v1296, %v4252
      %v4458 = vsel %vm1140, %v1299, %v4254
      %v4459 = vsel %vm1140, %v1304, %v4256
      %v4460 = vsel %vm1140, %v1307, %v4258
      %v4461 = vsel %vm1140, %v1312, %v4260
      %v4462 = vsel %vm1140, %v1315, %v4262
      %v4463 = vsel %vm1140, %v1320, %v4264
      %v4464 = vsel %vm1140, %v1323, %v4266
      %v4465 = vsel %vm1140, %v1328, %v4268
      %v4466 = vsel %vm1140, %v1331, %v4270
      %v4467 = vsel %vm1140, %v1336, %v4272
      %v4468 = vsel %vm1140, %v1339, %v4274
      %v4469 = vsel %vm1140, %v1344, %v4276
      %v4470 = vsel %vm1140, %v1347, %v4278
      %vm4471 = vcmask 523264
      %v4472 = vsel %vm4471, %v4439, %v4344
      %v4473 = vsel %vm4471, %v4440, %v4346
      %v4474 = vsel %vm4471, %v4441, %v4348
      %v4475 = vsel %vm4471, %v4442, %v4350
      %v4476 = vsel %vm4471, %v4443, %v4352
      %v4477 = vsel %vm4471, %v4444, %v4354
      %v4478 = vsel %vm4471, %v4445, %v4356
      %v4479 = vsel %vm4471, %v4446, %v4358
      %v4480 = vsel %vm4471, %v4447, %v4360
      %v4481 = vsel %vm4471, %v4448, %v4362
      %v4482 = vsel %vm4471, %v4449, %v4364
      %v4483 = vsel %vm4471, %v4450, %v4366
      %v4484 = vsel %vm4471, %v4451, %v4368
      %v4485 = vsel %vm4471, %v4452, %v4370
      %v4486 = vsel %vm4471, %v4453, %v4372
      %v4487 = vsel %vm4471, %v4454, %v4374
      %v4488 = vsel %vm4471, %v4455, %v4376
      %v4489 = vsel %vm4471, %v4456, %v4378
      %v4490 = vsel %vm4471, %v4457, %v4380
      %v4491 = vsel %vm4471, %v4458, %v4382
      %v4492 = vsel %vm4471, %v4459, %v4384
      %v4493 = vsel %vm4471, %v4460, %v4386
      %v4494 = vsel %vm4471, %v4461, %v4388
      %v4495 = vsel %vm4471, %v4462, %v4390
      %v4496 = vsel %vm4471, %v4463, %v4392
      %v4497 = vsel %vm4471, %v4464, %v4394
      %v4498 = vsel %vm4471, %v4465, %v4396
      %v4499 = vsel %vm4471, %v4466, %v4398
      %v4500 = vsel %vm4471, %v4467, %v4400
      %v4501 = vsel %vm4471, %v4468, %v4402
      %v4502 = vsel %vm4471, %v4469, %v4404
      %v4503 = vsel %vm4471, %v4470, %v4406
      %v4504 = vld [vmem:[%s5] sm:$0x1]
      %v4506 = vlaneseq
      %v4507 = vshrl.u32 %v4506, 7
      %v4508 = vsub.s32 0, %v4507
      %v4509 = vrot.slane %v4504, %v4508
      %v4511 = vadd.f32 %v4472, %v4509
      %v4512 = vadd.f32 %v4473, %v4509
      %v4513 = vadd.f32 %v4474, %v4509
      %v4514 = vadd.f32 %v4475, %v4509
      %v4515 = vadd.f32 %v4476, %v4509
      %v4516 = vadd.f32 %v4477, %v4509
      %v4517 = vadd.f32 %v4478, %v4509
      %v4518 = vadd.f32 %v4479, %v4509
      %v4519 = vadd.f32 %v4480, %v4509
      %v4520 = vadd.f32 %v4481, %v4509
      %v4521 = vadd.f32 %v4482, %v4509
      %v4522 = vadd.f32 %v4483, %v4509
      %v4523 = vadd.f32 %v4484, %v4509
      %v4524 = vadd.f32 %v4485, %v4509
      %v4525 = vadd.f32 %v4486, %v4509
      %v4526 = vadd.f32 %v4487, %v4509
      %v4527 = vadd.f32 %v4488, %v4509
      %v4528 = vadd.f32 %v4489, %v4509
      %v4529 = vadd.f32 %v4490, %v4509
      %v4530 = vadd.f32 %v4491, %v4509
      %v4531 = vadd.f32 %v4492, %v4509
      %v4532 = vadd.f32 %v4493, %v4509
      %v4533 = vadd.f32 %v4494, %v4509
      %v4534 = vadd.f32 %v4495, %v4509
      %v4535 = vadd.f32 %v4496, %v4509
      %v4536 = vadd.f32 %v4497, %v4509
      %v4537 = vadd.f32 %v4498, %v4509
      %v4538 = vadd.f32 %v4499, %v4509
      %v4539 = vadd.f32 %v4500, %v4509
      %v4540 = vadd.f32 %v4501, %v4509
      %v4541 = vadd.f32 %v4502, %v4509
      %v4542 = vadd.f32 %v4503, %v4509
      %v4543 = vpack.c.bf16 %v4512, %v4511
      %v4544 = vpack.c.bf16 %v4514, %v4513
      %v4545 = vpack.c.bf16 %v4516, %v4515
      %v4546 = vpack.c.bf16 %v4518, %v4517
      %v4547 = vpack.c.bf16 %v4520, %v4519
      %v4548 = vpack.c.bf16 %v4522, %v4521
      %v4549 = vpack.c.bf16 %v4524, %v4523
      %v4550 = vpack.c.bf16 %v4526, %v4525
      %v4551 = vpack.c.bf16 %v4528, %v4527
      %v4552 = vpack.c.bf16 %v4530, %v4529
      %v4553 = vpack.c.bf16 %v4532, %v4531
      %v4554 = vpack.c.bf16 %v4534, %v4533
      %v4555 = vpack.c.bf16 %v4536, %v4535
      %v4556 = vpack.c.bf16 %v4538, %v4537
      %v4557 = vpack.c.bf16 %v4540, %v4539
      %v4558 = vpack.c.bf16 %v4542, %v4541
      %v4575 = vunpack.c.l.b16 %v4543
      %v4576 = vunpack.c.h.b16 %v4543
      %v4577 = vunpack.c.l.b16 %v4544
      %v4578 = vunpack.c.h.b16 %v4544
      %v4579 = vunpack.c.l.b16 %v4545
      %v4580 = vunpack.c.h.b16 %v4545
      %v4581 = vunpack.c.l.b16 %v4546
      %v4582 = vunpack.c.h.b16 %v4546
      %v4583 = vunpack.c.l.b16 %v4547
      %v4584 = vunpack.c.h.b16 %v4547
      %v4585 = vunpack.c.l.b16 %v4548
      %v4586 = vunpack.c.h.b16 %v4548
      %v4587 = vunpack.c.l.b16 %v4549
      %v4588 = vunpack.c.h.b16 %v4549
      %v4589 = vunpack.c.l.b16 %v4550
      %v4590 = vunpack.c.h.b16 %v4550
      %v4591 = vunpack.c.l.b16 %v4551
      %v4592 = vunpack.c.h.b16 %v4551
      %v4593 = vunpack.c.l.b16 %v4552
      %v4594 = vunpack.c.h.b16 %v4552
      %v4595 = vunpack.c.l.b16 %v4553
      %v4596 = vunpack.c.h.b16 %v4553
      %v4597 = vunpack.c.l.b16 %v4554
      %v4598 = vunpack.c.h.b16 %v4554
      %v4599 = vunpack.c.l.b16 %v4555
      %v4600 = vunpack.c.h.b16 %v4555
      %v4601 = vunpack.c.l.b16 %v4556
      %v4602 = vunpack.c.h.b16 %v4556
      %v4603 = vunpack.c.l.b16 %v4557
      %v4604 = vunpack.c.h.b16 %v4557
      %v4605 = vunpack.c.l.b16 %v4558
      %v4606 = vunpack.c.h.b16 %v4558
      %v4607 = vpack.c.b16 %v4575, %v4575
      %v4608 = vpack.c.b16 %v4576, %v4576
      %v4609 = vpack.c.b16 %v4577, %v4577
      %v4610 = vpack.c.b16 %v4578, %v4578
      %v4611 = vpack.c.b16 %v4579, %v4579
      %v4612 = vpack.c.b16 %v4580, %v4580
      %v4613 = vpack.c.b16 %v4581, %v4581
      %v4614 = vpack.c.b16 %v4582, %v4582
      %v4615 = vpack.c.b16 %v4583, %v4583
      %v4616 = vpack.c.b16 %v4584, %v4584
      %v4617 = vpack.c.b16 %v4585, %v4585
      %v4618 = vpack.c.b16 %v4586, %v4586
      %v4619 = vpack.c.b16 %v4587, %v4587
      %v4620 = vpack.c.b16 %v4588, %v4588
      %v4621 = vpack.c.b16 %v4589, %v4589
      %v4622 = vpack.c.b16 %v4590, %v4590
      %v4623 = vpack.c.b16 %v4591, %v4591
      %v4624 = vpack.c.b16 %v4592, %v4592
      %v4625 = vpack.c.b16 %v4593, %v4593
      %v4626 = vpack.c.b16 %v4594, %v4594
      %v4627 = vpack.c.b16 %v4595, %v4595
      %v4628 = vpack.c.b16 %v4596, %v4596
      %v4629 = vpack.c.b16 %v4597, %v4597
      %v4630 = vpack.c.b16 %v4598, %v4598
      %v4631 = vpack.c.b16 %v4599, %v4599
      %v4632 = vpack.c.b16 %v4600, %v4600
      %v4633 = vpack.c.b16 %v4601, %v4601
      %v4634 = vpack.c.b16 %v4602, %v4602
      %v4635 = vpack.c.b16 %v4603, %v4603
      %v4636 = vpack.c.b16 %v4604, %v4604
      %v4637 = vpack.c.b16 %v4605, %v4605
      %v4638 = vpack.c.b16 %v4606, %v4606
      %vm4671 = vcmask 781312
      %4672 = vst.msk [vmem:[%s360] sm:$0xf] %vm4671, %v4607
      %4673 = vst.msk [vmem:[%s360 + $0x4] sm:$0xf] %vm4671, %v4608
      %4674 = vst.msk [vmem:[%s360 + $0x8] sm:$0xf] %vm4671, %v4609
      %4675 = vst.msk [vmem:[%s360 + $0xc] sm:$0xf] %vm4671, %v4610
      %4676 = vst.msk [vmem:[%s360 + $0x10] sm:$0xf] %vm4671, %v4611
      %4677 = vst.msk [vmem:[%s360 + $0x14] sm:$0xf] %vm4671, %v4612
      %4678 = vst.msk [vmem:[%s360 + $0x18] sm:$0xf] %vm4671, %v4613
      %4679 = vst.msk [vmem:[%s360 + $0x1c] sm:$0xf] %vm4671, %v4614
      %4680 = vst.msk [vmem:[%s360 + $0x20] sm:$0xf] %vm4671, %v4615
      %4681 = vst.msk [vmem:[%s360 + $0x24] sm:$0xf] %vm4671, %v4616
      %4682 = vst.msk [vmem:[%s360 + $0x28] sm:$0xf] %vm4671, %v4617
      %4683 = vst.msk [vmem:[%s360 + $0x2c] sm:$0xf] %vm4671, %v4618
      %4684 = vst.msk [vmem:[%s360 + $0x30] sm:$0xf] %vm4671, %v4619
      %4685 = vst.msk [vmem:[%s360 + $0x34] sm:$0xf] %vm4671, %v4620
      %4686 = vst.msk [vmem:[%s360 + $0x38] sm:$0xf] %vm4671, %v4621
      %4687 = vst.msk [vmem:[%s360 + $0x3c] sm:$0xf] %vm4671, %v4622
      %4688 = vst.msk [vmem:[%s360 + $0x40] sm:$0xf] %vm4671, %v4623
      %4689 = vst.msk [vmem:[%s360 + $0x44] sm:$0xf] %vm4671, %v4624
      %4690 = vst.msk [vmem:[%s360 + $0x48] sm:$0xf] %vm4671, %v4625
      %4691 = vst.msk [vmem:[%s360 + $0x4c] sm:$0xf] %vm4671, %v4626
      %4692 = vst.msk [vmem:[%s360 + $0x50] sm:$0xf] %vm4671, %v4627
      %4693 = vst.msk [vmem:[%s360 + $0x54] sm:$0xf] %vm4671, %v4628
      %4694 = vst.msk [vmem:[%s360 + $0x58] sm:$0xf] %vm4671, %v4629
      %4695 = vst.msk [vmem:[%s360 + $0x5c] sm:$0xf] %vm4671, %v4630
      %4696 = vst.msk [vmem:[%s360 + $0x60] sm:$0xf] %vm4671, %v4631
      %4697 = vst.msk [vmem:[%s360 + $0x64] sm:$0xf] %vm4671, %v4632
      %4698 = vst.msk [vmem:[%s360 + $0x68] sm:$0xf] %vm4671, %v4633
      %4699 = vst.msk [vmem:[%s360 + $0x6c] sm:$0xf] %vm4671, %v4634
      %4700 = vst.msk [vmem:[%s360 + $0x70] sm:$0xf] %vm4671, %v4635
      %4701 = vst.msk [vmem:[%s360 + $0x74] sm:$0xf] %vm4671, %v4636
      %4702 = vst.msk [vmem:[%s360 + $0x78] sm:$0xf] %vm4671, %v4637
      %4703 = vst.msk [vmem:[%s360 + $0x7c] sm:$0xf] %vm4671, %v4638
      %4712 = vrot.lane.b32.xlu0 %v2909, 96
      %v4713 = vpop.permute.xlu0 %4712
      %4714 = vrot.lane.b32.xlu0 %v2912, 96
      %v4715 = vpop.permute.xlu0 %4714
      %4716 = vrot.lane.b32.xlu0 %v2917, 96
      %v4717 = vpop.permute.xlu0 %4716
      %4718 = vrot.lane.b32.xlu0 %v2920, 96
      %v4719 = vpop.permute.xlu0 %4718
      %4720 = vrot.lane.b32.xlu0 %v2925, 96
      %v4721 = vpop.permute.xlu0 %4720
      %4722 = vrot.lane.b32.xlu0 %v2928, 96
      %v4723 = vpop.permute.xlu0 %4722
      %4724 = vrot.lane.b32.xlu0 %v2933, 96
      %v4725 = vpop.permute.xlu0 %4724
      %4726 = vrot.lane.b32.xlu0 %v2936, 96
      %v4727 = vpop.permute.xlu0 %4726
      %4744 = vrot.lane.b32.xlu0 %v4153, 64
      %v4745 = vpop.permute.xlu0 %4744
      %4746 = vrot.lane.b32.xlu0 %v4156, 64
      %v4747 = vpop.permute.xlu0 %4746
      %4748 = vrot.lane.b32.xlu0 %v4161, 64
      %v4749 = vpop.permute.xlu0 %4748
      %4750 = vrot.lane.b32.xlu0 %v4164, 64
      %v4751 = vpop.permute.xlu0 %4750
      %4752 = vrot.lane.b32.xlu0 %v4169, 64
      %v4753 = vpop.permute.xlu0 %4752
      %4754 = vrot.lane.b32.xlu0 %v4172, 64
      %v4755 = vpop.permute.xlu0 %4754
      %4756 = vrot.lane.b32.xlu0 %v4177, 64
      %v4757 = vpop.permute.xlu0 %4756
      %4758 = vrot.lane.b32.xlu0 %v4180, 64
      %v4759 = vpop.permute.xlu0 %4758
      %vm4768 = vcmask 785408
      %v4769 = vsel %vm4768, %v1671, %v4713
      %v4770 = vsel %vm4768, %v1674, %v4715
      %v4771 = vsel %vm4768, %v1679, %v4717
      %v4772 = vsel %vm4768, %v1682, %v4719
      %v4773 = vsel %vm4768, %v1687, %v4721
      %v4774 = vsel %vm4768, %v1690, %v4723
      %v4775 = vsel %vm4768, %v1695, %v4725
      %v4776 = vsel %vm4768, %v1698, %v4727
      %v4777 = vsel %vm4471, %v4713, %v4745
      %v4778 = vsel %vm4471, %v4715, %v4747
      %v4779 = vsel %vm4471, %v4717, %v4749
      %v4780 = vsel %vm4471, %v4719, %v4751
      %v4781 = vsel %vm4471, %v4721, %v4753
      %v4782 = vsel %vm4471, %v4723, %v4755
      %v4783 = vsel %vm4471, %v4725, %v4757
      %v4784 = vsel %vm4471, %v4727, %v4759
      %v4785 = vld [vmem:[%s7] sm:$0x7]
      %v4787 = vlaneseq
      %v4788 = vshrl.u32 %v4787, 7
      %v4789 = vsub.s32 0, %v4788
      %v4790 = vrot.slane %v4785, %v4789
      %v4791 = vlaneseq
      %v4792 = vshrl.u32 %v4791, 7
      %v4793 = vsub.s32 1, %v4792
      %v4794 = vrot.slane %v4785, %v4793
      %v4795 = vlaneseq
      %v4796 = vshrl.u32 %v4795, 7
      %v4797 = vsub.s32 2, %v4796
      %v4798 = vrot.slane %v4785, %v4797
      %v4802 = vadd.f32 %v4769, %v4790
      %v4803 = vadd.f32 %v4777, %v4794
      %v4804 = vadd.f32 %v4745, %v4798
      %v4805 = vadd.f32 %v4770, %v4790
      %v4806 = vadd.f32 %v4778, %v4794
      %v4807 = vadd.f32 %v4747, %v4798
      %v4808 = vadd.f32 %v4771, %v4790
      %v4809 = vadd.f32 %v4779, %v4794
      %v4810 = vadd.f32 %v4749, %v4798
      %v4811 = vadd.f32 %v4772, %v4790
      %v4812 = vadd.f32 %v4780, %v4794
      %v4813 = vadd.f32 %v4751, %v4798
      %v4814 = vadd.f32 %v4773, %v4790
      %v4815 = vadd.f32 %v4781, %v4794
      %v4816 = vadd.f32 %v4753, %v4798
      %v4817 = vadd.f32 %v4774, %v4790
      %v4818 = vadd.f32 %v4782, %v4794
      %v4819 = vadd.f32 %v4755, %v4798
      %v4820 = vadd.f32 %v4775, %v4790
      %v4821 = vadd.f32 %v4783, %v4794
      %v4822 = vadd.f32 %v4757, %v4798
      %v4823 = vadd.f32 %v4776, %v4790
      %v4824 = vadd.f32 %v4784, %v4794
      %v4825 = vadd.f32 %v4759, %v4798
      %v4826 = vpack.c.bf16 %v4805, %v4802
      %v4827 = vpack.c.bf16 %v4806, %v4803
      %v4828 = vpack.c.bf16 %v4807, %v4804
      %v4829 = vpack.c.bf16 %v4811, %v4808
      %v4830 = vpack.c.bf16 %v4812, %v4809
      %v4831 = vpack.c.bf16 %v4813, %v4810
      %v4832 = vpack.c.bf16 %v4817, %v4814
      %v4833 = vpack.c.bf16 %v4818, %v4815
      %v4834 = vpack.c.bf16 %v4819, %v4816
      %v4835 = vpack.c.bf16 %v4823, %v4820
      %v4836 = vpack.c.bf16 %v4824, %v4821
      %v4837 = vpack.c.bf16 %v4825, %v4822
      %v4850 = vunpack.c.l.b16 %v4826
      %v4851 = vunpack.c.l.b16 %v4827
      %v4852 = vunpack.c.l.b16 %v4828
      %v4853 = vunpack.c.h.b16 %v4826
      %v4854 = vunpack.c.h.b16 %v4827
      %v4855 = vunpack.c.h.b16 %v4828
      %v4856 = vunpack.c.l.b16 %v4829
      %v4857 = vunpack.c.l.b16 %v4830
      %v4858 = vunpack.c.l.b16 %v4831
      %v4859 = vunpack.c.h.b16 %v4829
      %v4860 = vunpack.c.h.b16 %v4830
      %v4861 = vunpack.c.h.b16 %v4831
      %v4862 = vunpack.c.l.b16 %v4832
      %v4863 = vunpack.c.l.b16 %v4833
      %v4864 = vunpack.c.l.b16 %v4834
      %v4865 = vunpack.c.h.b16 %v4832
      %v4866 = vunpack.c.h.b16 %v4833
      %v4867 = vunpack.c.h.b16 %v4834
      %v4868 = vunpack.c.l.b16 %v4835
      %v4869 = vunpack.c.l.b16 %v4836
      %v4870 = vunpack.c.l.b16 %v4837
      %v4871 = vunpack.c.h.b16 %v4835
      %v4872 = vunpack.c.h.b16 %v4836
      %v4873 = vunpack.c.h.b16 %v4837
      %v4874 = vpack.c.b16 %v4851, %v4850
      %v4875 = vpack.c.b16 %v4852, %v4852
      %v4876 = vpack.c.b16 %v4854, %v4853
      %v4877 = vpack.c.b16 %v4855, %v4855
      %v4878 = vpack.c.b16 %v4857, %v4856
      %v4879 = vpack.c.b16 %v4858, %v4858
      %v4880 = vpack.c.b16 %v4860, %v4859
      %v4881 = vpack.c.b16 %v4861, %v4861
      %v4882 = vpack.c.b16 %v4863, %v4862
      %v4883 = vpack.c.b16 %v4864, %v4864
      %v4884 = vpack.c.b16 %v4866, %v4865
      %v4885 = vpack.c.b16 %v4867, %v4867
      %v4886 = vpack.c.b16 %v4869, %v4868
      %v4887 = vpack.c.b16 %v4870, %v4870
      %v4888 = vpack.c.b16 %v4872, %v4871
      %v4889 = vpack.c.b16 %v4873, %v4873
      %4906 = vst [vmem:[%s365] sm:$0xff] %v4874
      %vm4907 = vcmask 257024
      %4908 = vst.msk [vmem:[%s365 + $0x8] sm:$0xf] %vm4907, %v4875
      %4909 = vst [vmem:[%s365 + $0xc] sm:$0xff] %v4876
      %4910 = vst.msk [vmem:[%s365 + $0x14] sm:$0xf] %vm4907, %v4877
      %4911 = vst [vmem:[%s365 + $0x18] sm:$0xff] %v4878
      %4912 = vst.msk [vmem:[%s365 + $0x20] sm:$0xf] %vm4907, %v4879
      %4913 = vst [vmem:[%s365 + $0x24] sm:$0xff] %v4880
      %4914 = vst.msk [vmem:[%s365 + $0x2c] sm:$0xf] %vm4907, %v4881
      %4915 = vst [vmem:[%s365 + $0x30] sm:$0xff] %v4882
      %4916 = vst.msk [vmem:[%s365 + $0x38] sm:$0xf] %vm4907, %v4883
      %4917 = vst [vmem:[%s365 + $0x3c] sm:$0xff] %v4884
      %4918 = vst.msk [vmem:[%s365 + $0x44] sm:$0xf] %vm4907, %v4885
      %4919 = vst [vmem:[%s365 + $0x48] sm:$0xff] %v4886
      %4920 = vst.msk [vmem:[%s365 + $0x50] sm:$0xf] %vm4907, %v4887
      %4921 = vst [vmem:[%s365 + $0x54] sm:$0xff] %v4888
      %4922 = vst.msk [vmem:[%s365 + $0x5c] sm:$0xf] %vm4907, %v4889
      %p4923 = scmp.lt.s32.totalorder %s21, 1
      %s4924 = scalar_select %p4923, %s21, 1
      %s4925 = smul.addr %s4924, 32
      %s4926 = smul.addr %s4925, 4
      %s4927 = scalar_lea.vmem %s8, %s4926
      %p4928 = scmp.lt.s32.totalorder %s21, 1
      %s4929 = scalar_select %p4928, %s21, 1
      %s4930 = smul.addr %s4929, 24
      %s4931 = smul.addr %s4930, 4
      %s4932 = scalar_lea.vmem %s9, %s4931
      // Predicated region
      $region53: #{fwd.2} parent=51 // pred_check
        %p4933 = pneg %p217
      $region54: #{fwd.2} parent=51 // pred_check_branch
        %4935 = sbr.rel (%p4933) target = $region56
      $region55: #{fwd.2} parent=51 // pred_region
        _
      $region56: #{fwd.2} parent=51 // pred_fallthru
        _
      // Predicated region
      $region57: #{fwd.2} parent=51 // pred_check
        %p4936 = pneg %p243
      $region58: #{fwd.2} parent=51 // pred_check_branch
        %4938 = sbr.rel (%p4936) target = $region60
      $region59: #{fwd.2} parent=51 // pred_region
        _
      $region60: #{fwd.2} parent=51 // pred_fallthru
        _
    $region52: #{fwd.2} parent=5 // pred_fallthru
      _
    %p4939 = scmp.le.s32.totalorder 2, %s16
    // Predicated region
    $region61: #{fwd.2} parent=5 // pred_check
      %p4940 = pneg %p4939
    $region62: #{fwd.2} parent=5 // pred_check_branch
      %4942 = sbr.rel (%p4940) target = $region64
    $region63: #{fwd.2} parent=5 // pred_region
      %s4943 = ssub.s32 %s16, 2
      // Predicated region
      $region65: #{fwd.2} parent=63 // pred_check
        %p4944 = pneg %p223
      $region66: #{fwd.2} parent=63 // pred_check_branch
        %4946 = sbr.rel (%p4944) target = $region68
      $region67: #{fwd.2} parent=63 // pred_region
        %p4947 = scmp.lt.s32.totalorder %s22, 1
        %s4948 = scalar_select %p4947, %s22, 1
        %s4949 = smul.addr %s4948, 32
        %s4950 = smul.addr %s4949, 4
        %s4951 = scalar_lea.vmem %s8, %s4950
      $region68: #{fwd.2} parent=63 // pred_fallthru
        _
      // Predicated region
      $region69: #{fwd.2} parent=63 // pred_check
        %p4952 = pneg %p249
      $region70: #{fwd.2} parent=63 // pred_check_branch
        %4954 = sbr.rel (%p4952) target = $region72
      $region71: #{fwd.2} parent=63 // pred_region
        %p4955 = scmp.lt.s32.totalorder %s22, 1
        %s4956 = scalar_select %p4955, %s22, 1
        %s4957 = smul.addr %s4956, 24
        %s4958 = smul.addr %s4957, 4
        %s4959 = scalar_lea.vmem %s9, %s4958
      $region72: #{fwd.2} parent=63 // pred_fallthru
        _
    $region64: #{fwd.2} parent=5 // pred_fallthru
      _
  $region6: #{fwd.2} parent=0 // loop_footer
    %s20 = sadd.s32 1, %s16
  $region7: #{fwd.2} parent=0 // loop_footer_branch
    %15 = sbr.rel target = $region3
  $region8: #{fwd.2} parent=0 // loop_exit
    _

// kernel: fwd.3
$region0: #{fwd.3}
  #allocation0 [shape = 'u32[]', space=smem, size = 0x4, offset = 0x4, fixed_abs, tag = 'smem constant byte address 0x4 - core index']
  #allocation1 [shape = 'u32[144,128]{1,0:T(1,128)}', space=vmem, size = 0x12000, scoped, tag = 'internal scratch']
  %s0 = inlined_call_operand.vmem [shape: bf16[2,256,96], index: 0, kind: input, shape index: {}]
  %s1 = inlined_call_operand.vmem [shape: bf16[2,64,288], index: 1, kind: input, shape index: {}]
  %s2 = inlined_call_operand.vmem [shape: f32[1,32], index: 2, kind: input, shape index: {}]
  %s3 = inlined_call_operand.hbm [shape: f32[2,256,32], index: 3, kind: output, shape index: {}]
  %s4 = sld [smem:[#allocation0]]
  $region45: #{fwd.3} parent=0
    _
  %s6 = ssub.s32 1, %s4
  %s7 = scalar_select 0, %s6, %s4
  $region1: #{fwd.3} parent=0
    #allocation2 [shape = 'u8[262144]{0}', space=vmem, size = 0x40000, scoped, tag = 'output window, operand 0']
    #allocation3 [shape = 's32[2]{0}', space=sflag, size = 0x8, scoped, tag = 'scoped memory for fwd.3']
    %8 = vsyncpa [#allocation3], 0
    %s9 = scalar_lea.sflag [#allocation3], 1
    %10 = vsyncpa %s9, 0
    loop: start=0, step=1, limit=4
    $region2: #{fwd.3} parent=1 // loop_pre_header
      _
    $region3: #{fwd.3} parent=1 // loop_header
      %s12 = sphi 0, %s16
      %p13 = scmp.ge.s32.totalorder %s12, 4
      %s19 = sphi 0, %s31
      %s20 = sphi 0, %s27
      %s21 = sphi 0, %s19
      %s22 = sphi 0, %s20
      %s23 = sphi 0, %s21
      %s24 = sphi 0, %s22
      %s36 = sphi 0, %s38
      %s39 = sphi 0, %s36
      %s40 = sphi 0, %s39
      %s56 = sphi 0, %s40
      %s62 = sphi 0, %s64
      %s65 = sphi 0, %s62
      %s66 = sphi 0, %s65
      %s82 = sphi 0, %s66
      %s86 = sphi 0, %s86
      %s88 = sphi 0, %s86
      %s89 = sphi 0, %s88
      %s103 = sphi 0, %s89
      %s111 = sphi 0, %s113
      %s114 = sphi 0, %s111
      %s115 = sphi 0, %s114
      %s131 = sphi 0, %s115
    $region4: #{fwd.3} parent=1 // loop_header_branch
      %15 = sbr.rel (%p13) target = $region8
    $region5: #{fwd.3} parent=1 // loop_body
      %s17 = ssub.s32 %s12, 1
      %s18 = ssub.s32 %s12, 2
      %s25 = sadd.s32 1, %s20
      %p26 = scmp.ge.s32.totalorder %s25, 1
      %s27 = scalar_select %p26, 0, %s25
      %s28 = sadd.s32 1, %s19
      %s29 = scalar_select %p26, %s28, %s19
      %p30 = scmp.ge.s32.totalorder %s29, 2
      %s31 = scalar_select %p30, 0, %s29
      %s32 = ssub.s32 %s19, %s31
      %s33 = ssub.s32 %s20, %s27
      %s34 = sor.u32 %s32, %s33
      %p35 = scmp.eq.s32.totalorder %s34, 0
      %s37 = sadd.s32 %s36, 1
      %s38 = scalar_select %p35, %s36, %s37
      %p41 = pneg %p35
      %p42 = scmp.eq.s32.totalorder %s12, 1
      %p43 = por %p41, %p42
      %p44 = scmp.ne.s32.totalorder %s36, %s39
      %p45 = scmp.eq.s32.totalorder %s12, 0
      %p46 = por %p44, %p45
      %p47 = scmp.ne.s32.totalorder %s36, %s39
      %p48 = scmp.eq.s32.totalorder %s17, 1
      %p49 = por %p47, %p48
      %p50 = scmp.ne.s32.totalorder %s39, %s40
      %p51 = scmp.eq.s32.totalorder %s17, 0
      %p52 = por %p50, %p51
      %p53 = scmp.ne.s32.totalorder %s39, %s40
      %p54 = scmp.eq.s32.totalorder %s18, 1
      %p55 = por %p53, %p54
      %p57 = scmp.ne.s32.totalorder %s40, %s56
      %p58 = scmp.eq.s32.totalorder %s18, 0
      %p59 = por %p57, %p58
      %s60 = ssub.s32 %s19, %s31
      %p61 = scmp.eq.s32.totalorder %s60, 0
      %s63 = sadd.s32 %s62, 1
      %s64 = scalar_select %p61, %s62, %s63
      %p67 = pneg %p61
      %p68 = scmp.eq.s32.totalorder %s12, 1
      %p69 = por %p67, %p68
      %p70 = scmp.ne.s32.totalorder %s62, %s65
      %p71 = scmp.eq.s32.totalorder %s12, 0
      %p72 = por %p70, %p71
      %p73 = scmp.ne.s32.totalorder %s62, %s65
      %p74 = scmp.eq.s32.totalorder %s17, 1
      %p75 = por %p73, %p74
      %p76 = scmp.ne.s32.totalorder %s65, %s66
      %p77 = scmp.eq.s32.totalorder %s17, 0
      %p78 = por %p76, %p77
      %p79 = scmp.ne.s32.totalorder %s65, %s66
      %p80 = scmp.eq.s32.totalorder %s18, 1
      %p81 = por %p79, %p80
      %p83 = scmp.ne.s32.totalorder %s66, %s82
      %p84 = scmp.eq.s32.totalorder %s18, 0
      %p85 = por %p83, %p84
      %s87 = sadd.s32 %s86, 1
      %p90 = scmp.eq.s32.totalorder %s12, 1
      %p91 = scmp.ne.s32.totalorder %s86, %s88
      %p92 = scmp.eq.s32.totalorder %s12, 0
      %p93 = por %p91, %p92
      %p94 = scmp.ne.s32.totalorder %s86, %s88
      %p95 = scmp.eq.s32.totalorder %s17, 1
      %p96 = por %p94, %p95
      %p97 = scmp.ne.s32.totalorder %s88, %s89
      %p98 = scmp.eq.s32.totalorder %s17, 0
      %p99 = por %p97, %p98
      %p100 = scmp.ne.s32.totalorder %s88, %s89
      %p101 = scmp.eq.s32.totalorder %s18, 1
      %p102 = por %p100, %p101
      %p104 = scmp.ne.s32.totalorder %s89, %s103
      %p105 = scmp.eq.s32.totalorder %s18, 0
      %p106 = por %p104, %p105
      %s107 = ssub.s32 %s19, %s31
      %s108 = ssub.s32 %s20, %s27
      %s109 = sor.u32 %s107, %s108
      %p110 = scmp.eq.s32.totalorder %s109, 0
      %s112 = sadd.s32 %s111, 1
      %s113 = scalar_select %p110, %s111, %s112
      %p116 = pneg %p110
      %p117 = scmp.eq.s32.totalorder %s12, 1
      %p118 = por %p116, %p117
      %p119 = scmp.ne.s32.totalorder %s111, %s114
      %p120 = scmp.eq.s32.totalorder %s12, 0
      %p121 = por %p119, %p120
      %p122 = scmp.ne.s32.totalorder %s111, %s114
      %p123 = scmp.eq.s32.totalorder %s17, 1
      %p124 = por %p122, %p123
      %p125 = scmp.ne.s32.totalorder %s114, %s115
      %p126 = scmp.eq.s32.totalorder %s17, 0
      %p127 = por %p125, %p126
      %p128 = scmp.ne.s32.totalorder %s114, %s115
      %p129 = scmp.eq.s32.totalorder %s18, 1
      %p130 = por %p128, %p129
      %p132 = scmp.ne.s32.totalorder %s115, %s131
      %p133 = scmp.eq.s32.totalorder %s18, 0
      %p134 = por %p132, %p133
      %p135 = scmp.le.s32.totalorder 1, %s12
      %p136 = scmp.lt.s32.totalorder %s12, 3
      %p137 = pnand %p135, %p136
      %p138 = pneg %p137
      // Predicated region
      $region9: #{fwd.3} parent=5 // pred_check
        _
      $region10: #{fwd.3} parent=5 // pred_check_branch
        %140 = sbr.rel (%p137) target = $region12
      $region11: #{fwd.3} parent=5 // pred_region
        %s141 = ssub.s32 %s12, 1
        // Predicated region
        $region13: #{fwd.3} parent=11 // pred_check
          %p142 = pneg %p99
        $region14: #{fwd.3} parent=11 // pred_check_branch
          %144 = sbr.rel (%p142) target = $region16
        $region15: #{fwd.3} parent=11 // pred_region
          _
        $region16: #{fwd.3} parent=11 // pred_fallthru
          _
      $region12: #{fwd.3} parent=5 // pred_fallthru
        _
      %p145 = scmp.lt.s32.totalorder %s12, 2
      // Predicated region
      $region17: #{fwd.3} parent=5 // pred_check
        %p146 = pneg %p145
      $region18: #{fwd.3} parent=5 // pred_check_branch
        %148 = sbr.rel (%p146) target = $region20
      $region19: #{fwd.3} parent=5 // pred_region
        // Predicated region
        $region21: #{fwd.3} parent=19 // pred_check
          %p149 = pneg %p46
        $region22: #{fwd.3} parent=19 // pred_check_branch
          %151 = sbr.rel (%p149) target = $region24
        $region23: #{fwd.3} parent=19 // pred_region
          %s152 = smul.u32 32, %s20
          %p153 = scmp.lt.s32.totalorder %s19, 1
          %s154 = scalar_select %p153, %s19, 1
          %p155 = scmp.lt.s32.totalorder %s152, 31
          %s156 = scalar_select %p155, %s152, 31
          %s157 = smul.addr %s154, 32
          %s158 = sadd.s32 %s156, %s157
          %s159 = smul.addr %s158, 4
          %s160 = scalar_lea.vmem %s0, %s159
          %s161 = smul.u32 32, %s20
        $region24: #{fwd.3} parent=19 // pred_fallthru
          _
        // Predicated region
        $region25: #{fwd.3} parent=19 // pred_check
          %p162 = pneg %p72
        $region26: #{fwd.3} parent=19 // pred_check_branch
          %164 = sbr.rel (%p162) target = $region28
        $region27: #{fwd.3} parent=19 // pred_region
          %p165 = scmp.lt.s32.totalorder %s19, 1
          %s166 = scalar_select %p165, %s19, 1
          %s167 = smul.addr %s166, 24
          %s168 = smul.addr %s167, 4
          %s169 = scalar_lea.vmem %s1, %s168
        $region28: #{fwd.3} parent=19 // pred_fallthru
          _
      $region20: #{fwd.3} parent=5 // pred_fallthru
        _
      %p170 = scmp.le.s32.totalorder 1, %s12
      %p171 = scmp.lt.s32.totalorder %s12, 3
      %p172 = pnand %p170, %p171
      %p173 = pneg %p172
      // Predicated region
      $region29: #{fwd.3} parent=5 // pred_check
        _
      $region30: #{fwd.3} parent=5 // pred_check_branch
        %175 = sbr.rel (%p172) target = $region32
      $region31: #{fwd.3} parent=5 // pred_region
        %s176 = ssub.s32 %s12, 1
        %s177 = smul.u32 32, %s22
        %p178 = scmp.lt.s32.totalorder %s21, 1
        %s179 = scalar_select %p178, %s21, 1
        %p180 = scmp.lt.s32.totalorder %s177, 31
        %s181 = scalar_select %p180, %s177, 31
        %s182 = smul.addr %s179, 32
        %s183 = sadd.s32 %s181, %s182
        %s184 = smul.addr %s183, 4
        %s185 = scalar_lea.vmem %s0, %s184
        %p186 = pneg %p52
        %p187 = pneg %p49
        %p188 = scmp.lt.s32.totalorder %s21, 1
        %s189 = scalar_select %p188, %s21, 1
        %s190 = smul.addr %s189, 24
        %s191 = smul.addr %s190, 4
        %s192 = scalar_lea.vmem %s1, %s191
        %p193 = pneg %p78
        %p194 = pneg %p75
        %p195 = pneg %p99
        %p196 = pneg %p96
        %p197 = pneg %p127
        %p198 = pneg %p124
        %s199 = sand.u32 %s114, 1
        %s200 = scalar_lea.sflag [#allocation3], %s199
        %s201 = sand.u32 %s114, 1
        %s202 = smul.addr %s201, 256
        %s203 = scalar_lea.vmem [#allocation2], %s202
        %s204 = smul.u32 32, %s22
        %p205 = scmp.lt.s32.totalorder %s21, 1
        %s206 = scalar_select %p205, %s21, 1
        %p207 = scmp.lt.s32.totalorder %s204, 31
        %s208 = scalar_select %p207, %s204, 31
        %s209 = smul.addr %s206, 32
        %s210 = sadd.s32 %s208, %s209
        %s211 = smul.addr %s210, 4
        %s212 = scalar_lea.vmem %s0, %s211
        %s213 = smul.u32 32, %s22
        %p214 = scmp.lt.s32.totalorder %s21, 1
        %s215 = scalar_select %p214, %s21, 1
        %s216 = smul.addr %s215, 24
        %s217 = smul.addr %s216, 4
        %s218 = scalar_lea.vmem %s1, %s217
        %s219 = smul.u32 32, %s22
        %v221 = vld [vmem:[%s212] sm:$0xf]
        %v222 = vld [vmem:[%s212 + $0x4] sm:$0xf]
        %v223 = vld [vmem:[%s212 + $0x8] sm:$0xf]
        %v224 = vld [vmem:[%s212 + $0xc] sm:$0xf]
        %v225 = vld [vmem:[%s212 + $0x10] sm:$0xf]
        %v226 = vld [vmem:[%s212 + $0x14] sm:$0xf]
        %v227 = vld [vmem:[%s212 + $0x18] sm:$0xf]
        %v228 = vld [vmem:[%s212 + $0x1c] sm:$0xf]
        %v229 = vld [vmem:[%s212 + $0x20] sm:$0xf]
        %v230 = vld [vmem:[%s212 + $0x24] sm:$0xf]
        %v231 = vld [vmem:[%s212 + $0x28] sm:$0xf]
        %v232 = vld [vmem:[%s212 + $0x2c] sm:$0xf]
        %v233 = vld [vmem:[%s212 + $0x30] sm:$0xf]
        %v234 = vld [vmem:[%s212 + $0x34] sm:$0xf]
        %v235 = vld [vmem:[%s212 + $0x38] sm:$0xf]
        %v236 = vld [vmem:[%s212 + $0x3c] sm:$0xf]
        %v237 = vld [vmem:[%s212 + $0x40] sm:$0xf]
        %v238 = vld [vmem:[%s212 + $0x44] sm:$0xf]
        %v239 = vld [vmem:[%s212 + $0x48] sm:$0xf]
        %v240 = vld [vmem:[%s212 + $0x4c] sm:$0xf]
        %v241 = vld [vmem:[%s212 + $0x50] sm:$0xf]
        %v242 = vld [vmem:[%s212 + $0x54] sm:$0xf]
        %v243 = vld [vmem:[%s212 + $0x58] sm:$0xf]
        %v244 = vld [vmem:[%s212 + $0x5c] sm:$0xf]
        %v245 = vld [vmem:[%s212 + $0x60] sm:$0xf]
        %v246 = vld [vmem:[%s212 + $0x64] sm:$0xf]
        %v247 = vld [vmem:[%s212 + $0x68] sm:$0xf]
        %v248 = vld [vmem:[%s212 + $0x6c] sm:$0xf]
        %v249 = vld [vmem:[%s212 + $0x70] sm:$0xf]
        %v250 = vld [vmem:[%s212 + $0x74] sm:$0xf]
        %v251 = vld [vmem:[%s212 + $0x78] sm:$0xf]
        %v252 = vld [vmem:[%s212 + $0x7c] sm:$0xf]
        %v253 = vld [vmem:[%s218] sm:$0xf]
        %v254 = vld [vmem:[%s218 + $0xc] sm:$0xf]
        %v255 = vld [vmem:[%s218 + $0x18] sm:$0xf]
        %v256 = vld [vmem:[%s218 + $0x24] sm:$0xf]
        %v257 = vld [vmem:[%s218 + $0x30] sm:$0xf]
        %v258 = vld [vmem:[%s218 + $0x3c] sm:$0xf]
        %v259 = vld [vmem:[%s218 + $0x48] sm:$0xf]
        %v260 = vld [vmem:[%s218 + $0x54] sm:$0xf]
        %v293 = vunpack.c.l.b16 %v221
        %v294 = vunpack.c.l.b16 %v222
        %v295 = vunpack.c.l.b16 %v223
        %v296 = vunpack.c.l.b16 %v224
        %v297 = vunpack.c.l.b16 %v225
        %v298 = vunpack.c.l.b16 %v226
        %v299 = vunpack.c.l.b16 %v227
        %v300 = vunpack.c.l.b16 %v228
        %v301 = vunpack.c.l.b16 %v229
        %v302 = vunpack.c.l.b16 %v230
        %v303 = vunpack.c.l.b16 %v231
        %v304 = vunpack.c.l.b16 %v232
        %v305 = vunpack.c.l.b16 %v233
        %v306 = vunpack.c.l.b16 %v234
        %v307 = vunpack.c.l.b16 %v235
        %v308 = vunpack.c.l.b16 %v236
        %v309 = vunpack.c.l.b16 %v237
        %v310 = vunpack.c.l.b16 %v238
        %v311 = vunpack.c.l.b16 %v239
        %v312 = vunpack.c.l.b16 %v240
        %v313 = vunpack.c.l.b16 %v241
        %v314 = vunpack.c.l.b16 %v242
        %v315 = vunpack.c.l.b16 %v243
        %v316 = vunpack.c.l.b16 %v244
        %v317 = vunpack.c.l.b16 %v245
        %v318 = vunpack.c.l.b16 %v246
        %v319 = vunpack.c.l.b16 %v247
        %v320 = vunpack.c.l.b16 %v248
        %v321 = vunpack.c.l.b16 %v249
        %v322 = vunpack.c.l.b16 %v250
        %v323 = vunpack.c.l.b16 %v251
        %v324 = vunpack.c.l.b16 %v252
        %v325 = vpack.c.b16 %v294, %v293
        %v326 = vpack.c.b16 %v296, %v295
        %v327 = vpack.c.b16 %v298, %v297
        %v328 = vpack.c.b16 %v300, %v299
        %v329 = vpack.c.b16 %v302, %v301
        %v330 = vpack.c.b16 %v304, %v303
        %v331 = vpack.c.b16 %v306, %v305
        %v332 = vpack.c.b16 %v308, %v307
        %v333 = vpack.c.b16 %v310, %v309
        %v334 = vpack.c.b16 %v312, %v311
        %v335 = vpack.c.b16 %v314, %v313
        %v336 = vpack.c.b16 %v316, %v315
        %v337 = vpack.c.b16 %v318, %v317
        %v338 = vpack.c.b16 %v320, %v319
        %v339 = vpack.c.b16 %v322, %v321
        %v340 = vpack.c.b16 %v324, %v323
        %341 = vrot.lane.b32.xlu0 %v325, 64
        %v342 = vpop.permute.xlu0 %341
        %343 = vrot.lane.b32.xlu0 %v326, 64
        %v344 = vpop.permute.xlu0 %343
        %345 = vrot.lane.b32.xlu0 %v327, 64
        %v346 = vpop.permute.xlu0 %345
        %347 = vrot.lane.b32.xlu0 %v328, 64
        %v348 = vpop.permute.xlu0 %347
        %349 = vrot.lane.b32.xlu0 %v329, 64
        %v350 = vpop.permute.xlu0 %349
        %351 = vrot.lane.b32.xlu0 %v330, 64
        %v352 = vpop.permute.xlu0 %351
        %353 = vrot.lane.b32.xlu0 %v331, 64
        %v354 = vpop.permute.xlu0 %353
        %355 = vrot.lane.b32.xlu0 %v332, 64
        %v356 = vpop.permute.xlu0 %355
        %357 = vrot.lane.b32.xlu0 %v333, 64
        %v358 = vpop.permute.xlu0 %357
        %359 = vrot.lane.b32.xlu0 %v334, 64
        %v360 = vpop.permute.xlu0 %359
        %361 = vrot.lane.b32.xlu0 %v335, 64
        %v362 = vpop.permute.xlu0 %361
        %363 = vrot.lane.b32.xlu0 %v336, 64
        %v364 = vpop.permute.xlu0 %363
        %365 = vrot.lane.b32.xlu0 %v337, 64
        %v366 = vpop.permute.xlu0 %365
        %367 = vrot.lane.b32.xlu0 %v338, 64
        %v368 = vpop.permute.xlu0 %367
        %369 = vrot.lane.b32.xlu0 %v339, 64
        %v370 = vpop.permute.xlu0 %369
        %371 = vrot.lane.b32.xlu0 %v340, 64
        %v372 = vpop.permute.xlu0 %371
        %v381 = vunpack.c.l.b16 %v253
        %v382 = vunpack.c.l.b16 %v254
        %v383 = vunpack.c.l.b16 %v255
        %v384 = vunpack.c.l.b16 %v256
        %v385 = vunpack.c.l.b16 %v257
        %v386 = vunpack.c.l.b16 %v258
        %v387 = vunpack.c.l.b16 %v259
        %v388 = vunpack.c.l.b16 %v260
        %v389 = vpack.c.b16 %v382, %v381
        %v390 = vpack.c.b16 %v384, %v383
        %v391 = vpack.c.b16 %v386, %v385
        %v392 = vpack.c.b16 %v388, %v387
        %393 = vrot.lane.b32.xlu0 %v389, 32
        %v394 = vpop.permute.xlu0 %393
        %395 = vrot.lane.b32.xlu0 %v390, 32
        %v396 = vpop.permute.xlu0 %395
        %397 = vrot.lane.b32.xlu0 %v391, 32
        %v398 = vpop.permute.xlu0 %397
        %399 = vrot.lane.b32.xlu0 %v392, 32
        %v400 = vpop.permute.xlu0 %399
        %vm401 = vcmask 130048
        %v403 = vsel %vm401, %v342, 0
        %v406 = vsel %vm401, %v344, 0
        %v409 = vsel %vm401, %v346, 0
        %v412 = vsel %vm401, %v348, 0
        %v415 = vsel %vm401, %v350, 0
        %v418 = vsel %vm401, %v352, 0
        %v421 = vsel %vm401, %v354, 0
        %v424 = vsel %vm401, %v356, 0
        %v427 = vsel %vm401, %v358, 0
        %v430 = vsel %vm401, %v360, 0
        %v433 = vsel %vm401, %v362, 0
        %v436 = vsel %vm401, %v364, 0
        %v439 = vsel %vm401, %v366, 0
        %v442 = vsel %vm401, %v368, 0
        %v445 = vsel %vm401, %v370, 0
        %v448 = vsel %vm401, %v372, 0
        %v451 = vsel %vm401, %v394, 0
        %v454 = vsel %vm401, %v396, 0
        %v457 = vsel %vm401, %v398, 0
        %v460 = vsel %vm401, %v400, 0
        %462 = vmatprep.subr.bf16.mxu0 0
        %463 = vmatpush1.bf16.xpose.msra.mxu0 %v451
        %464 = vmatprep.subr.bf16.mxu0 0
        %465 = vmatpush1.bf16.xpose.msra.mxu0 %v454
        %466 = vmatprep.subr.bf16.mxu0 0
        %467 = vmatpush1.bf16.xpose.msra.mxu0 %v457
        %468 = vmatprep.subr.bf16.mxu0 0
        %469 = vmatpush1.bf16.xpose.msra.mxu0 %v460
        %470 = vmatprep.subr.bf16.mxu0 0
        %471 = vmatpush1.bf16.xpose.msra.mxu0 0
        %472 = vmatprep.subr.bf16.mxu0 0
        %473 = vmatpush1.bf16.xpose.msra.mxu0 0
        %474 = vmatprep.subr.bf16.mxu0 0
        %475 = vmatpush1.bf16.xpose.msra.mxu0 0
        %476 = vmatprep.subr.bf16.mxu0 0
        %477 = vmatpush1.bf16.xpose.msra.mxu0 0
        %478 = vmatprep.subr.bf16.mxu0 0
        %479 = vmatpush1.bf16.xpose.msra.mxu0 0
        %480 = vmatprep.subr.bf16.mxu0 0
        %481 = vmatpush1.bf16.xpose.msra.mxu0 0
        %482 = vmatprep.subr.bf16.mxu0 0
        %483 = vmatpush1.bf16.xpose.msra.mxu0 0
        %484 = vmatprep.subr.bf16.mxu0 0
        %485 = vmatpush1.bf16.xpose.msra.mxu0 0
        %486 = vmatprep.subr.bf16.mxu0 0
        %487 = vmatpush1.bf16.xpose.msra.mxu0 0
        %488 = vmatprep.subr.bf16.mxu0 0
        %489 = vmatpush1.bf16.xpose.msra.mxu0 0
        %490 = vmatprep.subr.bf16.mxu0 0
        %491 = vmatpush1.bf16.xpose.msra.mxu0 0
        %492 = vmatprep.subr.bf16.mxu0 0
        %493 = vmatpush1.bf16.xpose.msra.mxu0 0
        %494 = vmatprep.mubr.bf16.mxu0 0
        %495 = vmatmul.mubr.bf16.gmra.mrb[0].mxu0 %v403
        %v496 = vpop.f32.mrb[0].mxu0
        %v497 = vadd.f32 0.0, %v496
        %v498 = vpop.f32.mrb[0].mxu0
        %v499 = vpop.f32.mrb[0].mxu0
        %v500 = vadd.f32 0.0, %v499
        %v501 = vpop.f32.mrb[0].mxu0
        %502 = vmatprep.mubr.bf16.mxu0 0
        %503 = vmatmul.mubr.bf16.gmra.mrb[0].mxu0 %v406
        %v504 = vpop.f32.mrb[0].mxu0
        %v505 = vadd.f32 0.0, %v504
        %v506 = vpop.f32.mrb[0].mxu0
        %v507 = vpop.f32.mrb[0].mxu0
        %v508 = vadd.f32 0.0, %v507
        %v509 = vpop.f32.mrb[0].mxu0
        %510 = vmatprep.mubr.bf16.mxu0 0
        %511 = vmatmul.mubr.bf16.gmra.mrb[0].mxu0 %v409
        %v512 = vpop.f32.mrb[0].mxu0
        %v513 = vadd.f32 0.0, %v512
        %v514 = vpop.f32.mrb[0].mxu0
        %v515 = vpop.f32.mrb[0].mxu0
        %v516 = vadd.f32 0.0, %v515
        %v517 = vpop.f32.mrb[0].mxu0
        %518 = vmatprep.mubr.bf16.mxu0 0
        %519 = vmatmul.mubr.bf16.gmra.mrb[0].mxu0 %v412
        %v520 = vpop.f32.mrb[0].mxu0
        %v521 = vadd.f32 0.0, %v520
        %v522 = vpop.f32.mrb[0].mxu0
        %v523 = vpop.f32.mrb[0].mxu0
        %v524 = vadd.f32 0.0, %v523
        %v525 = vpop.f32.mrb[0].mxu0
        %526 = vmatprep.mubr.bf16.mxu0 0
        %527 = vmatmul.mubr.bf16.gmra.mrb[0].mxu0 %v415
        %v528 = vpop.f32.mrb[0].mxu0
        %v529 = vadd.f32 0.0, %v528
        %v530 = vpop.f32.mrb[0].mxu0
        %v531 = vpop.f32.mrb[0].mxu0
        %v532 = vadd.f32 0.0, %v531
        %v533 = vpop.f32.mrb[0].mxu0
        %534 = vmatprep.mubr.bf16.mxu0 0
        %535 = vmatmul.mubr.bf16.gmra.mrb[0].mxu0 %v418
        %v536 = vpop.f32.mrb[0].mxu0
        %v537 = vadd.f32 0.0, %v536
        %v538 = vpop.f32.mrb[0].mxu0
        %v539 = vpop.f32.mrb[0].mxu0
        %v540 = vadd.f32 0.0, %v539
        %v541 = vpop.f32.mrb[0].mxu0
        %542 = vmatprep.mubr.bf16.mxu0 0
        %543 = vmatmul.mubr.bf16.gmra.mrb[0].mxu0 %v421
        %v544 = vpop.f32.mrb[0].mxu0
        %v545 = vadd.f32 0.0, %v544
        %v546 = vpop.f32.mrb[0].mxu0
        %v547 = vpop.f32.mrb[0].mxu0
        %v548 = vadd.f32 0.0, %v547
        %v549 = vpop.f32.mrb[0].mxu0
        %550 = vmatprep.mubr.bf16.mxu0 0
        %551 = vmatmul.mubr.bf16.gmra.mrb[0].mxu0 %v424
        %v552 = vpop.f32.mrb[0].mxu0
        %v553 = vadd.f32 0.0, %v552
        %v554 = vpop.f32.mrb[0].mxu0
        %v555 = vpop.f32.mrb[0].mxu0
        %v556 = vadd.f32 0.0, %v555
        %v557 = vpop.f32.mrb[0].mxu0
        %558 = vmatprep.mubr.bf16.mxu0 0
        %559 = vmatmul.mubr.bf16.gmra.mrb[0].mxu0 %v427
        %v560 = vpop.f32.mrb[0].mxu0
        %v561 = vadd.f32 0.0, %v560
        %v562 = vpop.f32.mrb[0].mxu0
        %v563 = vpop.f32.mrb[0].mxu0
        %v564 = vadd.f32 0.0, %v563
        %v565 = vpop.f32.mrb[0].mxu0
        %566 = vmatprep.mubr.bf16.mxu0 0
        %567 = vmatmul.mubr.bf16.gmra.mrb[0].mxu0 %v430
        %v568 = vpop.f32.mrb[0].mxu0
        %v569 = vadd.f32 0.0, %v568
        %v570 = vpop.f32.mrb[0].mxu0
        %v571 = vpop.f32.mrb[0].mxu0
        %v572 = vadd.f32 0.0, %v571
        %v573 = vpop.f32.mrb[0].mxu0
        %574 = vmatprep.mubr.bf16.mxu0 0
        %575 = vmatmul.mubr.bf16.gmra.mrb[0].mxu0 %v433
        %v576 = vpop.f32.mrb[0].mxu0
        %v577 = vadd.f32 0.0, %v576
        %v578 = vpop.f32.mrb[0].mxu0
        %v579 = vpop.f32.mrb[0].mxu0
        %v580 = vadd.f32 0.0, %v579
        %v581 = vpop.f32.mrb[0].mxu0
        %582 = vmatprep.mubr.bf16.mxu0 0
        %583 = vmatmul.mubr.bf16.gmra.mrb[0].mxu0 %v436
        %v584 = vpop.f32.mrb[0].mxu0
        %v585 = vadd.f32 0.0, %v584
        %v586 = vpop.f32.mrb[0].mxu0
        %v587 = vpop.f32.mrb[0].mxu0
        %v588 = vadd.f32 0.0, %v587
        %v589 = vpop.f32.mrb[0].mxu0
        %590 = vmatprep.mubr.bf16.mxu0 0
        %591 = vmatmul.mubr.bf16.gmra.mrb[0].mxu0 %v439
        %v592 = vpop.f32.mrb[0].mxu0
        %v593 = vadd.f32 0.0, %v592
        %v594 = vpop.f32.mrb[0].mxu0
        %v595 = vpop.f32.mrb[0].mxu0
        %v596 = vadd.f32 0.0, %v595
        %v597 = vpop.f32.mrb[0].mxu0
        %598 = vmatprep.mubr.bf16.mxu0 0
        %599 = vmatmul.mubr.bf16.gmra.mrb[0].mxu0 %v442
        %v600 = vpop.f32.mrb[0].mxu0
        %v601 = vadd.f32 0.0, %v600
        %v602 = vpop.f32.mrb[0].mxu0
        %v603 = vpop.f32.mrb[0].mxu0
        %v604 = vadd.f32 0.0, %v603
        %v605 = vpop.f32.mrb[0].mxu0
        %606 = vmatprep.mubr.bf16.mxu0 0
        %607 = vmatmul.mubr.bf16.gmra.mrb[0].mxu0 %v445
        %v608 = vpop.f32.mrb[0].mxu0
        %v609 = vadd.f32 0.0, %v608
        %v610 = vpop.f32.mrb[0].mxu0
        %v611 = vpop.f32.mrb[0].mxu0
        %v612 = vadd.f32 0.0, %v611
        %v613 = vpop.f32.mrb[0].mxu0
        %614 = vmatprep.mubr.bf16.mxu0 0
        %615 = vmatmul.mubr.bf16.gmra.mrb[0].mxu0 %v448
        %v616 = vpop.f32.mrb[0].mxu0
        %v617 = vadd.f32 0.0, %v616
        %v618 = vpop.f32.mrb[0].mxu0
        %v619 = vpop.f32.mrb[0].mxu0
        %v620 = vadd.f32 0.0, %v619
        %v621 = vpop.f32.mrb[0].mxu0
        %622 = vdwg.mxu0
        %v623 = vmul.f32 %v497, 0.25
        %v624 = vmul.f32 %v500, 0.25
        %v625 = vmul.f32 %v505, 0.25
        %v626 = vmul.f32 %v508, 0.25
        %v627 = vmul.f32 %v513, 0.25
        %v628 = vmul.f32 %v516, 0.25
        %v629 = vmul.f32 %v521, 0.25
        %v630 = vmul.f32 %v524, 0.25
        %v631 = vmul.f32 %v529, 0.25
        %v632 = vmul.f32 %v532, 0.25
        %v633 = vmul.f32 %v537, 0.25
        %v634 = vmul.f32 %v540, 0.25
        %v635 = vmul.f32 %v545, 0.25
        %v636 = vmul.f32 %v548, 0.25
        %v637 = vmul.f32 %v553, 0.25
        %v638 = vmul.f32 %v556, 0.25
        %v639 = vmul.f32 %v561, 0.25
        %v640 = vmul.f32 %v564, 0.25
        %v641 = vmul.f32 %v569, 0.25
        %v642 = vmul.f32 %v572, 0.25
        %v643 = vmul.f32 %v577, 0.25
        %v644 = vmul.f32 %v580, 0.25
        %v645 = vmul.f32 %v585, 0.25
        %v646 = vmul.f32 %v588, 0.25
        %v647 = vmul.f32 %v593, 0.25
        %v648 = vmul.f32 %v596, 0.25
        %v649 = vmul.f32 %v601, 0.25
        %v650 = vmul.f32 %v604, 0.25
        %v651 = vmul.f32 %v609, 0.25
        %v652 = vmul.f32 %v612, 0.25
        %v653 = vmul.f32 %v617, 0.25
        %v654 = vmul.f32 %v620, 0.25
        %vm655 = vcmask 523264
        %v656 = vsel %vm655, %v623, -inf
        %657 = vmax.xlane.f32.xlu0 %v656
        %v658 = vpop.xlane.xlu0 %657
        %v659 = vsel %vm655, %v624, -inf
        %660 = vmax.xlane.f32.xlu0 %v659
        %v661 = vpop.xlane.xlu0 %660
        %v662 = vsel %vm655, %v625, -inf
        %663 = vmax.xlane.f32.xlu0 %v662
        %v664 = vpop.xlane.xlu0 %663
        %v665 = vsel %vm655, %v626, -inf
        %666 = vmax.xlane.f32.xlu0 %v665
        %v667 = vpop.xlane.xlu0 %666
        %v668 = vsel %vm655, %v627, -inf
        %669 = vmax.xlane.f32.xlu0 %v668
        %v670 = vpop.xlane.xlu0 %669
        %v671 = vsel %vm655, %v628, -inf
        %672 = vmax.xlane.f32.xlu0 %v671
        %v673 = vpop.xlane.xlu0 %672
        %v674 = vsel %vm655, %v629, -inf
        %675 = vmax.xlane.f32.xlu0 %v674
        %v676 = vpop.xlane.xlu0 %675
        %v677 = vsel %vm655, %v630, -inf
        %678 = vmax.xlane.f32.xlu0 %v677
        %v679 = vpop.xlane.xlu0 %678
        %v680 = vsel %vm655, %v631, -inf
        %681 = vmax.xlane.f32.xlu0 %v680
        %v682 = vpop.xlane.xlu0 %681
        %v683 = vsel %vm655, %v632, -inf
        %684 = vmax.xlane.f32.xlu0 %v683
        %v685 = vpop.xlane.xlu0 %684
        %v686 = vsel %vm655, %v633, -inf
        %687 = vmax.xlane.f32.xlu0 %v686
        %v688 = vpop.xlane.xlu0 %687
        %v689 = vsel %vm655, %v634, -inf
        %690 = vmax.xlane.f32.xlu0 %v689
        %v691 = vpop.xlane.xlu0 %690
        %v692 = vsel %vm655, %v635, -inf
        %693 = vmax.xlane.f32.xlu0 %v692
        %v694 = vpop.xlane.xlu0 %693
        %v695 = vsel %vm655, %v636, -inf
        %696 = vmax.xlane.f32.xlu0 %v695
        %v697 = vpop.xlane.xlu0 %696
        %v698 = vsel %vm655, %v637, -inf
        %699 = vmax.xlane.f32.xlu0 %v698
        %v700 = vpop.xlane.xlu0 %699
        %v701 = vsel %vm655, %v638, -inf
        %702 = vmax.xlane.f32.xlu0 %v701
        %v703 = vpop.xlane.xlu0 %702
        %v704 = vsel %vm655, %v639, -inf
        %705 = vmax.xlane.f32.xlu0 %v704
        %v706 = vpop.xlane.xlu0 %705
        %v707 = vsel %vm655, %v640, -inf
        %708 = vmax.xlane.f32.xlu0 %v707
        %v709 = vpop.xlane.xlu0 %708
        %v710 = vsel %vm655, %v641, -inf
        %711 = vmax.xlane.f32.xlu0 %v710
        %v712 = vpop.xlane.xlu0 %711
        %v713 = vsel %vm655, %v642, -inf
        %714 = vmax.xlane.f32.xlu0 %v713
        %v715 = vpop.xlane.xlu0 %714
        %v716 = vsel %vm655, %v643, -inf
        %717 = vmax.xlane.f32.xlu0 %v716
        %v718 = vpop.xlane.xlu0 %717
        %v719 = vsel %vm655, %v644, -inf
        %720 = vmax.xlane.f32.xlu0 %v719
        %v721 = vpop.xlane.xlu0 %720
        %v722 = vsel %vm655, %v645, -inf
        %723 = vmax.xlane.f32.xlu0 %v722
        %v724 = vpop.xlane.xlu0 %723
        %v725 = vsel %vm655, %v646, -inf
        %726 = vmax.xlane.f32.xlu0 %v725
        %v727 = vpop.xlane.xlu0 %726
        %v728 = vsel %vm655, %v647, -inf
        %729 = vmax.xlane.f32.xlu0 %v728
        %v730 = vpop.xlane.xlu0 %729
        %v731 = vsel %vm655, %v648, -inf
        %732 = vmax.xlane.f32.xlu0 %v731
        %v733 = vpop.xlane.xlu0 %732
        %v734 = vsel %vm655, %v649, -inf
        %735 = vmax.xlane.f32.xlu0 %v734
        %v736 = vpop.xlane.xlu0 %735
        %v737 = vsel %vm655, %v650, -inf
        %738 = vmax.xlane.f32.xlu0 %v737
        %v739 = vpop.xlane.xlu0 %738
        %v740 = vsel %vm655, %v651, -inf
        %741 = vmax.xlane.f32.xlu0 %v740
        %v742 = vpop.xlane.xlu0 %741
        %v743 = vsel %vm655, %v652, -inf
        %744 = vmax.xlane.f32.xlu0 %v743
        %v745 = vpop.xlane.xlu0 %744
        %v746 = vsel %vm655, %v653, -inf
        %747 = vmax.xlane.f32.xlu0 %v746
        %v748 = vpop.xlane.xlu0 %747
        %v749 = vsel %vm655, %v654, -inf
        %750 = vmax.xlane.f32.xlu0 %v749
        %v751 = vpop.xlane.xlu0 %750
        %v752 = vsub.f32 %v623, %v658
        %v753 = vsub.f32 %v624, %v661
        %v754 = vsub.f32 %v625, %v664
        %v755 = vsub.f32 %v626, %v667
        %v756 = vsub.f32 %v627, %v670
        %v757 = vsub.f32 %v628, %v673
        %v758 = vsub.f32 %v629, %v676
        %v759 = vsub.f32 %v630, %v679
        %v760 = vsub.f32 %v631, %v682
        %v761 = vsub.f32 %v632, %v685
        %v762 = vsub.f32 %v633, %v688
        %v763 = vsub.f32 %v634, %v691
        %v764 = vsub.f32 %v635, %v694
        %v765 = vsub.f32 %v636, %v697
        %v766 = vsub.f32 %v637, %v700
        %v767 = vsub.f32 %v638, %v703
        %v768 = vsub.f32 %v639, %v706
        %v769 = vsub.f32 %v640, %v709
        %v770 = vsub.f32 %v641, %v712
        %v771 = vsub.f32 %v642, %v715
        %v772 = vsub.f32 %v643, %v718
        %v773 = vsub.f32 %v644, %v721
        %v774 = vsub.f32 %v645, %v724
        %v775 = vsub.f32 %v646, %v727
        %v776 = vsub.f32 %v647, %v730
        %v777 = vsub.f32 %v648, %v733
        %v778 = vsub.f32 %v649, %v736
        %v779 = vsub.f32 %v650, %v739
        %v780 = vsub.f32 %v651, %v742
        %v781 = vsub.f32 %v652, %v745
        %v782 = vsub.f32 %v653, %v748
        %v783 = vsub.f32 %v654, %v751
        %v784 = vmul.f32 %v752, 1.442695
        %v785 = vpow.pop %v784
        %v786 = vmul.f32 %v753, 1.442695
        %v787 = vpow.pop %v786
        %v788 = vmul.f32 %v754, 1.442695
        %v789 = vpow.pop %v788
        %v790 = vmul.f32 %v755, 1.442695
        %v791 = vpow.pop %v790
        %v792 = vmul.f32 %v756, 1.442695
        %v793 = vpow.pop %v792
        %v794 = vmul.f32 %v757, 1.442695
        %v795 = vpow.pop %v794
        %v796 = vmul.f32 %v758, 1.442695
        %v797 = vpow.pop %v796
        %v798 = vmul.f32 %v759, 1.442695
        %v799 = vpow.pop %v798
        %v800 = vmul.f32 %v760, 1.442695
        %v801 = vpow.pop %v800
        %v802 = vmul.f32 %v761, 1.442695
        %v803 = vpow.pop %v802
        %v804 = vmul.f32 %v762, 1.442695
        %v805 = vpow.pop %v804
        %v806 = vmul.f32 %v763, 1.442695
        %v807 = vpow.pop %v806
        %v808 = vmul.f32 %v764, 1.442695
        %v809 = vpow.pop %v808
        %v810 = vmul.f32 %v765, 1.442695
        %v811 = vpow.pop %v810
        %v812 = vmul.f32 %v766, 1.442695
        %v813 = vpow.pop %v812
        %v814 = vmul.f32 %v767, 1.442695
        %v815 = vpow.pop %v814
        %v816 = vmul.f32 %v768, 1.442695
        %v817 = vpow.pop %v816
        %v818 = vmul.f32 %v769, 1.442695
        %v819 = vpow.pop %v818
        %v820 = vmul.f32 %v770, 1.442695
        %v821 = vpow.pop %v820
        %v822 = vmul.f32 %v771, 1.442695
        %v823 = vpow.pop %v822
        %v824 = vmul.f32 %v772, 1.442695
        %v825 = vpow.pop %v824
        %v826 = vmul.f32 %v773, 1.442695
        %v827 = vpow.pop %v826
        %v828 = vmul.f32 %v774, 1.442695
        %v829 = vpow.pop %v828
        %v830 = vmul.f32 %v775, 1.442695
        %v831 = vpow.pop %v830
        %v832 = vmul.f32 %v776, 1.442695
        %v833 = vpow.pop %v832
        %v834 = vmul.f32 %v777, 1.442695
        %v835 = vpow.pop %v834
        %v836 = vmul.f32 %v778, 1.442695
        %v837 = vpow.pop %v836
        %v838 = vmul.f32 %v779, 1.442695
        %v839 = vpow.pop %v838
        %v840 = vmul.f32 %v780, 1.442695
        %v841 = vpow.pop %v840
        %v842 = vmul.f32 %v781, 1.442695
        %v843 = vpow.pop %v842
        %v844 = vmul.f32 %v782, 1.442695
        %v845 = vpow.pop %v844
        %v846 = vmul.f32 %v783, 1.442695
        %v847 = vpow.pop %v846
        %v848 = vsel %vm655, %v785, 0.0
        %849 = vadd.xlane.f32.xlu0 %v848
        %v850 = vpop.xlane.xlu0 %849
        %v851 = vsel %vm655, %v787, 0.0
        %852 = vadd.xlane.f32.xlu0 %v851
        %v853 = vpop.xlane.xlu0 %852
        %v854 = vsel %vm655, %v789, 0.0
        %855 = vadd.xlane.f32.xlu0 %v854
        %v856 = vpop.xlane.xlu0 %855
        %v857 = vsel %vm655, %v791, 0.0
        %858 = vadd.xlane.f32.xlu0 %v857
        %v859 = vpop.xlane.xlu0 %858
        %v860 = vsel %vm655, %v793, 0.0
        %861 = vadd.xlane.f32.xlu0 %v860
        %v862 = vpop.xlane.xlu0 %861
        %v863 = vsel %vm655, %v795, 0.0
        %864 = vadd.xlane.f32.xlu0 %v863
        %v865 = vpop.xlane.xlu0 %864
        %v866 = vsel %vm655, %v797, 0.0
        %867 = vadd.xlane.f32.xlu0 %v866
        %v868 = vpop.xlane.xlu0 %867
        %v869 = vsel %vm655, %v799, 0.0
        %870 = vadd.xlane.f32.xlu0 %v869
        %v871 = vpop.xlane.xlu0 %870
        %v872 = vsel %vm655, %v801, 0.0
        %873 = vadd.xlane.f32.xlu0 %v872
        %v874 = vpop.xlane.xlu0 %873
        %v875 = vsel %vm655, %v803, 0.0
        %876 = vadd.xlane.f32.xlu0 %v875
        %v877 = vpop.xlane.xlu0 %876
        %v878 = vsel %vm655, %v805, 0.0
        %879 = vadd.xlane.f32.xlu0 %v878
        %v880 = vpop.xlane.xlu0 %879
        %v881 = vsel %vm655, %v807, 0.0
        %882 = vadd.xlane.f32.xlu0 %v881
        %v883 = vpop.xlane.xlu0 %882
        %v884 = vsel %vm655, %v809, 0.0
        %885 = vadd.xlane.f32.xlu0 %v884
        %v886 = vpop.xlane.xlu0 %885
        %v887 = vsel %vm655, %v811, 0.0
        %888 = vadd.xlane.f32.xlu0 %v887
        %v889 = vpop.xlane.xlu0 %888
        %v890 = vsel %vm655, %v813, 0.0
        %891 = vadd.xlane.f32.xlu0 %v890
        %v892 = vpop.xlane.xlu0 %891
        %v893 = vsel %vm655, %v815, 0.0
        %894 = vadd.xlane.f32.xlu0 %v893
        %v895 = vpop.xlane.xlu0 %894
        %v896 = vsel %vm655, %v817, 0.0
        %897 = vadd.xlane.f32.xlu0 %v896
        %v898 = vpop.xlane.xlu0 %897
        %v899 = vsel %vm655, %v819, 0.0
        %900 = vadd.xlane.f32.xlu0 %v899
        %v901 = vpop.xlane.xlu0 %900
        %v902 = vsel %vm655, %v821, 0.0
        %903 = vadd.xlane.f32.xlu0 %v902
        %v904 = vpop.xlane.xlu0 %903
        %v905 = vsel %vm655, %v823, 0.0
        %906 = vadd.xlane.f32.xlu0 %v905
        %v907 = vpop.xlane.xlu0 %906
        %v908 = vsel %vm655, %v825, 0.0
        %909 = vadd.xlane.f32.xlu0 %v908
        %v910 = vpop.xlane.xlu0 %909
        %v911 = vsel %vm655, %v827, 0.0
        %912 = vadd.xlane.f32.xlu0 %v911
        %v913 = vpop.xlane.xlu0 %912
        %v914 = vsel %vm655, %v829, 0.0
        %915 = vadd.xlane.f32.xlu0 %v914
        %v916 = vpop.xlane.xlu0 %915
        %v917 = vsel %vm655, %v831, 0.0
        %918 = vadd.xlane.f32.xlu0 %v917
        %v919 = vpop.xlane.xlu0 %918
        %v920 = vsel %vm655, %v833, 0.0
        %921 = vadd.xlane.f32.xlu0 %v920
        %v922 = vpop.xlane.xlu0 %921
        %v923 = vsel %vm655, %v835, 0.0
        %924 = vadd.xlane.f32.xlu0 %v923
        %v925 = vpop.xlane.xlu0 %924
        %v926 = vsel %vm655, %v837, 0.0
        %927 = vadd.xlane.f32.xlu0 %v926
        %v928 = vpop.xlane.xlu0 %927
        %v929 = vsel %vm655, %v839, 0.0
        %930 = vadd.xlane.f32.xlu0 %v929
        %v931 = vpop.xlane.xlu0 %930
        %v932 = vsel %vm655, %v841, 0.0
        %933 = vadd.xlane.f32.xlu0 %v932
        %v934 = vpop.xlane.xlu0 %933
        %v935 = vsel %vm655, %v843, 0.0
        %936 = vadd.xlane.f32.xlu0 %v935
        %v937 = vpop.xlane.xlu0 %936
        %v938 = vsel %vm655, %v845, 0.0
        %939 = vadd.xlane.f32.xlu0 %v938
        %v940 = vpop.xlane.xlu0 %939
        %v941 = vsel %vm655, %v847, 0.0
        %942 = vadd.xlane.f32.xlu0 %v941
        %v943 = vpop.xlane.xlu0 %942
        %v944 = vrcp.pop %v850
        %v945 = vrcp.pop %v853
        %v946 = vrcp.pop %v856
        %v947 = vrcp.pop %v859
        %v948 = vrcp.pop %v862
        %v949 = vrcp.pop %v865
        %v950 = vrcp.pop %v868
        %v951 = vrcp.pop %v871
        %v952 = vrcp.pop %v874
        %v953 = vrcp.pop %v877
        %v954 = vrcp.pop %v880
        %v955 = vrcp.pop %v883
        %v956 = vrcp.pop %v886
        %v957 = vrcp.pop %v889
        %v958 = vrcp.pop %v892
        %v959 = vrcp.pop %v895
        %v960 = vrcp.pop %v898
        %v961 = vrcp.pop %v901
        %v962 = vrcp.pop %v904
        %v963 = vrcp.pop %v907
        %v964 = vrcp.pop %v910
        %v965 = vrcp.pop %v913
        %v966 = vrcp.pop %v916
        %v967 = vrcp.pop %v919
        %v968 = vrcp.pop %v922
        %v969 = vrcp.pop %v925
        %v970 = vrcp.pop %v928
        %v971 = vrcp.pop %v931
        %v972 = vrcp.pop %v934
        %v973 = vrcp.pop %v937
        %v974 = vrcp.pop %v940
        %v975 = vrcp.pop %v943
        %v976 = vmul.f32 %v785, %v944
        %v977 = vmul.f32 %v787, %v945
        %v978 = vmul.f32 %v789, %v946
        %v979 = vmul.f32 %v791, %v947
        %v980 = vmul.f32 %v793, %v948
        %v981 = vmul.f32 %v795, %v949
        %v982 = vmul.f32 %v797, %v950
        %v983 = vmul.f32 %v799, %v951
        %v984 = vmul.f32 %v801, %v952
        %v985 = vmul.f32 %v803, %v953
        %v986 = vmul.f32 %v805, %v954
        %v987 = vmul.f32 %v807, %v955
        %v988 = vmul.f32 %v809, %v956
        %v989 = vmul.f32 %v811, %v957
        %v990 = vmul.f32 %v813, %v958
        %v991 = vmul.f32 %v815, %v959
        %v992 = vmul.f32 %v817, %v960
        %v993 = vmul.f32 %v819, %v961
        %v994 = vmul.f32 %v821, %v962
        %v995 = vmul.f32 %v823, %v963
        %v996 = vmul.f32 %v825, %v964
        %v997 = vmul.f32 %v827, %v965
        %v998 = vmul.f32 %v829, %v966
        %v999 = vmul.f32 %v831, %v967
        %v1000 = vmul.f32 %v833, %v968
        %v1001 = vmul.f32 %v835, %v969
        %v1002 = vmul.f32 %v837, %v970
        %v1003 = vmul.f32 %v839, %v971
        %v1004 = vmul.f32 %v841, %v972
        %v1005 = vmul.f32 %v843, %v973
        %v1006 = vmul.f32 %v845, %v974
        %v1007 = vmul.f32 %v847, %v975
        %v1008 = vpack.c.bf16 %v977, %v976
        %v1009 = vpack.c.bf16 %v979, %v978
        %v1010 = vpack.c.bf16 %v981, %v980
        %v1011 = vpack.c.bf16 %v983, %v982
        %v1012 = vpack.c.bf16 %v985, %v984
        %v1013 = vpack.c.bf16 %v987, %v986
        %v1014 = vpack.c.bf16 %v989, %v988
        %v1015 = vpack.c.bf16 %v991, %v990
        %v1016 = vpack.c.bf16 %v993, %v992
        %v1017 = vpack.c.bf16 %v995, %v994
        %v1018 = vpack.c.bf16 %v997, %v996
        %v1019 = vpack.c.bf16 %v999, %v998
        %v1020 = vpack.c.bf16 %v1001, %v1000
        %v1021 = vpack.c.bf16 %v1003, %v1002
        %v1022 = vpack.c.bf16 %v1005, %v1004
        %v1023 = vpack.c.bf16 %v1007, %v1006
        %1024 = vrot.lane.b32.xlu0 %v325, 48
        %v1025 = vpop.permute.xlu0 %1024
        %1026 = vrot.lane.b32.xlu0 %v326, 48
        %v1027 = vpop.permute.xlu0 %1026
        %1028 = vrot.lane.b32.xlu0 %v327, 48
        %v1029 = vpop.permute.xlu0 %1028
        %1030 = vrot.lane.b32.xlu0 %v328, 48
        %v1031 = vpop.permute.xlu0 %1030
        %1032 = vrot.lane.b32.xlu0 %v329, 48
        %v1033 = vpop.permute.xlu0 %1032
        %1034 = vrot.lane.b32.xlu0 %v330, 48
        %v1035 = vpop.permute.xlu0 %1034
        %1036 = vrot.lane.b32.xlu0 %v331, 48
        %v1037 = vpop.permute.xlu0 %1036
        %1038 = vrot.lane.b32.xlu0 %v332, 48
        %v1039 = vpop.permute.xlu0 %1038
        %1040 = vrot.lane.b32.xlu0 %v333, 48
        %v1041 = vpop.permute.xlu0 %1040
        %1042 = vrot.lane.b32.xlu0 %v334, 48
        %v1043 = vpop.permute.xlu0 %1042
        %1044 = vrot.lane.b32.xlu0 %v335, 48
        %v1045 = vpop.permute.xlu0 %1044
        %1046 = vrot.lane.b32.xlu0 %v336, 48
        %v1047 = vpop.permute.xlu0 %1046
        %1048 = vrot.lane.b32.xlu0 %v337, 48
        %v1049 = vpop.permute.xlu0 %1048
        %1050 = vrot.lane.b32.xlu0 %v338, 48
        %v1051 = vpop.permute.xlu0 %1050
        %1052 = vrot.lane.b32.xlu0 %v339, 48
        %v1053 = vpop.permute.xlu0 %1052
        %1054 = vrot.lane.b32.xlu0 %v340, 48
        %v1055 = vpop.permute.xlu0 %1054
        %1056 = vrot.lane.b32.xlu0 %v389, 16
        %v1057 = vpop.permute.xlu0 %1056
        %1058 = vrot.lane.b32.xlu0 %v390, 16
        %v1059 = vpop.permute.xlu0 %1058
        %1060 = vrot.lane.b32.xlu0 %v391, 16
        %v1061 = vpop.permute.xlu0 %1060
        %1062 = vrot.lane.b32.xlu0 %v392, 16
        %v1063 = vpop.permute.xlu0 %1062
        %v1065 = vsel %vm401, %v1025, 0
        %v1068 = vsel %vm401, %v1027, 0
        %v1071 = vsel %vm401, %v1029, 0
        %v1074 = vsel %vm401, %v1031, 0
        %v1077 = vsel %vm401, %v1033, 0
        %v1080 = vsel %vm401, %v1035, 0
        %v1083 = vsel %vm401, %v1037, 0
        %v1086 = vsel %vm401, %v1039, 0
        %v1089 = vsel %vm401, %v1041, 0
        %v1092 = vsel %vm401, %v1043, 0
        %v1095 = vsel %vm401, %v1045, 0
        %v1098 = vsel %vm401, %v1047, 0
        %v1101 = vsel %vm401, %v1049, 0
        %v1104 = vsel %vm401, %v1051, 0
        %v1107 = vsel %vm401, %v1053, 0
        %v1110 = vsel %vm401, %v1055, 0
        %v1113 = vsel %vm401, %v1057, 0
        %v1116 = vsel %vm401, %v1059, 0
        %v1119 = vsel %vm401, %v1061, 0
        %v1122 = vsel %vm401, %v1063, 0
        %1124 = vmatprep.subr.bf16.mxu0 0
        %1125 = vmatpush1.bf16.xpose.msra.mxu0 %v1113
        %1126 = vmatprep.subr.bf16.mxu0 0
        %1127 = vmatpush1.bf16.xpose.msra.mxu0 %v1116
        %1128 = vmatprep.subr.bf16.mxu0 0
        %1129 = vmatpush1.bf16.xpose.msra.mxu0 %v1119
        %1130 = vmatprep.subr.bf16.mxu0 0
        %1131 = vmatpush1.bf16.xpose.msra.mxu0 %v1122
        %1132 = vmatprep.subr.bf16.mxu0 0
        %1133 = vmatpush1.bf16.xpose.msra.mxu0 0
        %1134 = vmatprep.subr.bf16.mxu0 0
        %1135 = vmatpush1.bf16.xpose.msra.mxu0 0
        %1136 = vmatprep.subr.bf16.mxu0 0
        %1137 = vmatpush1.bf16.xpose.msra.mxu0 0
        %1138 = vmatprep.subr.bf16.mxu0 0
        %1139 = vmatpush1.bf16.xpose.msra.mxu0 0
        %1140 = vmatprep.subr.bf16.mxu0 0
        %1141 = vmatpush1.bf16.xpose.msra.mxu0 0
        %1142 = vmatprep.subr.bf16.mxu0 0
        %1143 = vmatpush1.bf16.xpose.msra.mxu0 0
        %1144 = vmatprep.subr.bf16.mxu0 0
        %1145 = vmatpush1.bf16.xpose.msra.mxu0 0
        %1146 = vmatprep.subr.bf16.mxu0 0
        %1147 = vmatpush1.bf16.xpose.msra.mxu0 0
        %1148 = vmatprep.subr.bf16.mxu0 0
        %1149 = vmatpush1.bf16.xpose.msra.mxu0 0
        %1150 = vmatprep.subr.bf16.mxu0 0
        %1151 = vmatpush1.bf16.xpose.msra.mxu0 0
        %1152 = vmatprep.subr.bf16.mxu0 0
        %1153 = vmatpush1.bf16.xpose.msra.mxu0 0
        %1154 = vmatprep.subr.bf16.mxu0 0
        %1155 = vmatpush1.bf16.xpose.msra.mxu0 0
        %1156 = vmatprep.mubr.bf16.mxu0 0
        %1157 = vmatmul.mubr.bf16.gmra.mrb[0].mxu0 %v1065
        %v1158 = vpop.f32.mrb[0].mxu0
        %v1159 = vadd.f32 0.0, %v1158
        %v1160 = vpop.f32.mrb[0].mxu0
        %v1161 = vpop.f32.mrb[0].mxu0
        %v1162 = vadd.f32 0.0, %v1161
        %v1163 = vpop.f32.mrb[0].mxu0
        %1164 = vmatprep.mubr.bf16.mxu0 0
        %1165 = vmatmul.mubr.bf16.gmra.mrb[0].mxu0 %v1068
        %v1166 = vpop.f32.mrb[0].mxu0
        %v1167 = vadd.f32 0.0, %v1166
        %v1168 = vpop.f32.mrb[0].mxu0
        %v1169 = vpop.f32.mrb[0].mxu0
        %v1170 = vadd.f32 0.0, %v1169
        %v1171 = vpop.f32.mrb[0].mxu0
        %1172 = vmatprep.mubr.bf16.mxu0 0
        %1173 = vmatmul.mubr.bf16.gmra.mrb[0].mxu0 %v1071
        %v1174 = vpop.f32.mrb[0].mxu0
        %v1175 = vadd.f32 0.0, %v1174
        %v1176 = vpop.f32.mrb[0].mxu0
        %v1177 = vpop.f32.mrb[0].mxu0
        %v1178 = vadd.f32 0.0, %v1177
        %v1179 = vpop.f32.mrb[0].mxu0
        %1180 = vmatprep.mubr.bf16.mxu0 0
        %1181 = vmatmul.mubr.bf16.gmra.mrb[0].mxu0 %v1074
        %v1182 = vpop.f32.mrb[0].mxu0
        %v1183 = vadd.f32 0.0, %v1182
        %v1184 = vpop.f32.mrb[0].mxu0
        %v1185 = vpop.f32.mrb[0].mxu0
        %v1186 = vadd.f32 0.0, %v1185
        %v1187 = vpop.f32.mrb[0].mxu0
        %1188 = vmatprep.mubr.bf16.mxu0 0
        %1189 = vmatmul.mubr.bf16.gmra.mrb[0].mxu0 %v1077
        %v1190 = vpop.f32.mrb[0].mxu0
        %v1191 = vadd.f32 0.0, %v1190
        %v1192 = vpop.f32.mrb[0].mxu0
        %v1193 = vpop.f32.mrb[0].mxu0
        %v1194 = vadd.f32 0.0, %v1193
        %v1195 = vpop.f32.mrb[0].mxu0
        %1196 = vmatprep.mubr.bf16.mxu0 0
        %1197 = vmatmul.mubr.bf16.gmra.mrb[0].mxu0 %v1080
        %v1198 = vpop.f32.mrb[0].mxu0
        %v1199 = vadd.f32 0.0, %v1198
        %v1200 = vpop.f32.mrb[0].mxu0
        %v1201 = vpop.f32.mrb[0].mxu0
        %v1202 = vadd.f32 0.0, %v1201
        %v1203 = vpop.f32.mrb[0].mxu0
        %1204 = vmatprep.mubr.bf16.mxu0 0
        %1205 = vmatmul.mubr.bf16.gmra.mrb[0].mxu0 %v1083
        %v1206 = vpop.f32.mrb[0].mxu0
        %v1207 = vadd.f32 0.0, %v1206
        %v1208 = vpop.f32.mrb[0].mxu0
        %v1209 = vpop.f32.mrb[0].mxu0
        %v1210 = vadd.f32 0.0, %v1209
        %v1211 = vpop.f32.mrb[0].mxu0
        %1212 = vmatprep.mubr.bf16.mxu0 0
        %1213 = vmatmul.mubr.bf16.gmra.mrb[0].mxu0 %v1086
        %v1214 = vpop.f32.mrb[0].mxu0
        %v1215 = vadd.f32 0.0, %v1214
        %v1216 = vpop.f32.mrb[0].mxu0
        %v1217 = vpop.f32.mrb[0].mxu0
        %v1218 = vadd.f32 0.0, %v1217
        %v1219 = vpop.f32.mrb[0].mxu0
        %1220 = vmatprep.mubr.bf16.mxu0 0
        %1221 = vmatmul.mubr.bf16.gmra.mrb[0].mxu0 %v1089
        %v1222 = vpop.f32.mrb[0].mxu0
        %v1223 = vadd.f32 0.0, %v1222
        %v1224 = vpop.f32.mrb[0].mxu0
        %v1225 = vpop.f32.mrb[0].mxu0
        %v1226 = vadd.f32 0.0, %v1225
        %v1227 = vpop.f32.mrb[0].mxu0
        %1228 = vmatprep.mubr.bf16.mxu0 0
        %1229 = vmatmul.mubr.bf16.gmra.mrb[0].mxu0 %v1092
        %v1230 = vpop.f32.mrb[0].mxu0
        %v1231 = vadd.f32 0.0, %v1230
        %v1232 = vpop.f32.mrb[0].mxu0
        %v1233 = vpop.f32.mrb[0].mxu0
        %v1234 = vadd.f32 0.0, %v1233
        %v1235 = vpop.f32.mrb[0].mxu0
        %1236 = vmatprep.mubr.bf16.mxu0 0
        %1237 = vmatmul.mubr.bf16.gmra.mrb[0].mxu0 %v1095
        %v1238 = vpop.f32.mrb[0].mxu0
        %v1239 = vadd.f32 0.0, %v1238
        %v1240 = vpop.f32.mrb[0].mxu0
        %v1241 = vpop.f32.mrb[0].mxu0
        %v1242 = vadd.f32 0.0, %v1241
        %v1243 = vpop.f32.mrb[0].mxu0
        %1244 = vmatprep.mubr.bf16.mxu0 0
        %1245 = vmatmul.mubr.bf16.gmra.mrb[0].mxu0 %v1098
        %v1246 = vpop.f32.mrb[0].mxu0
        %v1247 = vadd.f32 0.0, %v1246
        %v1248 = vpop.f32.mrb[0].mxu0
        %v1249 = vpop.f32.mrb[0].mxu0
        %v1250 = vadd.f32 0.0, %v1249
        %v1251 = vpop.f32.mrb[0].mxu0
        %1252 = vmatprep.mubr.bf16.mxu0 0
        %1253 = vmatmul.mubr.bf16.gmra.mrb[0].mxu0 %v1101
        %v1254 = vpop.f32.mrb[0].mxu0
        %v1255 = vadd.f32 0.0, %v1254
        %v1256 = vpop.f32.mrb[0].mxu0
        %v1257 = vpop.f32.mrb[0].mxu0
        %v1258 = vadd.f32 0.0, %v1257
        %v1259 = vpop.f32.mrb[0].mxu0
        %1260 = vmatprep.mubr.bf16.mxu0 0
        %1261 = vmatmul.mubr.bf16.gmra.mrb[0].mxu0 %v1104
        %v1262 = vpop.f32.mrb[0].mxu0
        %v1263 = vadd.f32 0.0, %v1262
        %v1264 = vpop.f32.mrb[0].mxu0
        %v1265 = vpop.f32.mrb[0].mxu0
        %v1266 = vadd.f32 0.0, %v1265
        %v1267 = vpop.f32.mrb[0].mxu0
        %1268 = vmatprep.mubr.bf16.mxu0 0
        %1269 = vmatmul.mubr.bf16.gmra.mrb[0].mxu0 %v1107
        %v1270 = vpop.f32.mrb[0].mxu0
        %v1271 = vadd.f32 0.0, %v1270
        %v1272 = vpop.f32.mrb[0].mxu0
        %v1273 = vpop.f32.mrb[0].mxu0
        %v1274 = vadd.f32 0.0, %v1273
        %v1275 = vpop.f32.mrb[0].mxu0
        %1276 = vmatprep.mubr.bf16.mxu0 0
        %1277 = vmatmul.mubr.bf16.gmra.mrb[0].mxu0 %v1110
        %v1278 = vpop.f32.mrb[0].mxu0
        %v1279 = vadd.f32 0.0, %v1278
        %v1280 = vpop.f32.mrb[0].mxu0
        %v1281 = vpop.f32.mrb[0].mxu0
        %v1282 = vadd.f32 0.0, %v1281
        %v1283 = vpop.f32.mrb[0].mxu0
        %1284 = vdwg.mxu0
        %v1285 = vmul.f32 %v1159, 0.25
        %v1286 = vmul.f32 %v1162, 0.25
        %v1287 = vmul.f32 %v1167, 0.25
        %v1288 = vmul.f32 %v1170, 0.25
        %v1289 = vmul.f32 %v1175, 0.25
        %v1290 = vmul.f32 %v1178, 0.25
        %v1291 = vmul.f32 %v1183, 0.25
        %v1292 = vmul.f32 %v1186, 0.25
        %v1293 = vmul.f32 %v1191, 0.25
        %v1294 = vmul.f32 %v1194, 0.25
        %v1295 = vmul.f32 %v1199, 0.25
        %v1296 = vmul.f32 %v1202, 0.25
        %v1297 = vmul.f32 %v1207, 0.25
        %v1298 = vmul.f32 %v1210, 0.25
        %v1299 = vmul.f32 %v1215, 0.25
        %v1300 = vmul.f32 %v1218, 0.25
        %v1301 = vmul.f32 %v1223, 0.25
        %v1302 = vmul.f32 %v1226, 0.25
        %v1303 = vmul.f32 %v1231, 0.25
        %v1304 = vmul.f32 %v1234, 0.25
        %v1305 = vmul.f32 %v1239, 0.25
        %v1306 = vmul.f32 %v1242, 0.25
        %v1307 = vmul.f32 %v1247, 0.25
        %v1308 = vmul.f32 %v1250, 0.25
        %v1309 = vmul.f32 %v1255, 0.25
        %v1310 = vmul.f32 %v1258, 0.25
        %v1311 = vmul.f32 %v1263, 0.25
        %v1312 = vmul.f32 %v1266, 0.25
        %v1313 = vmul.f32 %v1271, 0.25
        %v1314 = vmul.f32 %v1274, 0.25
        %v1315 = vmul.f32 %v1279, 0.25
        %v1316 = vmul.f32 %v1282, 0.25
        %v1317 = vsel %vm655, %v1285, -inf
        %1318 = vmax.xlane.f32.xlu0 %v1317
        %v1319 = vpop.xlane.xlu0 %1318
        %v1320 = vsel %vm655, %v1286, -inf
        %1321 = vmax.xlane.f32.xlu0 %v1320
        %v1322 = vpop.xlane.xlu0 %1321
        %v1323 = vsel %vm655, %v1287, -inf
        %1324 = vmax.xlane.f32.xlu0 %v1323
        %v1325 = vpop.xlane.xlu0 %1324
        %v1326 = vsel %vm655, %v1288, -inf
        %1327 = vmax.xlane.f32.xlu0 %v1326
        %v1328 = vpop.xlane.xlu0 %1327
        %v1329 = vsel %vm655, %v1289, -inf
        %1330 = vmax.xlane.f32.xlu0 %v1329
        %v1331 = vpop.xlane.xlu0 %1330
        %v1332 = vsel %vm655, %v1290, -inf
        %1333 = vmax.xlane.f32.xlu0 %v1332
        %v1334 = vpop.xlane.xlu0 %1333
        %v1335 = vsel %vm655, %v1291, -inf
        %1336 = vmax.xlane.f32.xlu0 %v1335
        %v1337 = vpop.xlane.xlu0 %1336
        %v1338 = vsel %vm655, %v1292, -inf
        %1339 = vmax.xlane.f32.xlu0 %v1338
        %v1340 = vpop.xlane.xlu0 %1339
        %v1341 = vsel %vm655, %v1293, -inf
        %1342 = vmax.xlane.f32.xlu0 %v1341
        %v1343 = vpop.xlane.xlu0 %1342
        %v1344 = vsel %vm655, %v1294, -inf
        %1345 = vmax.xlane.f32.xlu0 %v1344
        %v1346 = vpop.xlane.xlu0 %1345
        %v1347 = vsel %vm655, %v1295, -inf
        %1348 = vmax.xlane.f32.xlu0 %v1347
        %v1349 = vpop.xlane.xlu0 %1348
        %v1350 = vsel %vm655, %v1296, -inf
        %1351 = vmax.xlane.f32.xlu0 %v1350
        %v1352 = vpop.xlane.xlu0 %1351
        %v1353 = vsel %vm655, %v1297, -inf
        %1354 = vmax.xlane.f32.xlu0 %v1353
        %v1355 = vpop.xlane.xlu0 %1354
        %v1356 = vsel %vm655, %v1298, -inf
        %1357 = vmax.xlane.f32.xlu0 %v1356
        %v1358 = vpop.xlane.xlu0 %1357
        %v1359 = vsel %vm655, %v1299, -inf
        %1360 = vmax.xlane.f32.xlu0 %v1359
        %v1361 = vpop.xlane.xlu0 %1360
        %v1362 = vsel %vm655, %v1300, -inf
        %1363 = vmax.xlane.f32.xlu0 %v1362
        %v1364 = vpop.xlane.xlu0 %1363
        %v1365 = vsel %vm655, %v1301, -inf
        %1366 = vmax.xlane.f32.xlu0 %v1365
        %v1367 = vpop.xlane.xlu0 %1366
        %v1368 = vsel %vm655, %v1302, -inf
        %1369 = vmax.xlane.f32.xlu0 %v1368
        %v1370 = vpop.xlane.xlu0 %1369
        %v1371 = vsel %vm655, %v1303, -inf
        %1372 = vmax.xlane.f32.xlu0 %v1371
        %v1373 = vpop.xlane.xlu0 %1372
        %v1374 = vsel %vm655, %v1304, -inf
        %1375 = vmax.xlane.f32.xlu0 %v1374
        %v1376 = vpop.xlane.xlu0 %1375
        %v1377 = vsel %vm655, %v1305, -inf
        %1378 = vmax.xlane.f32.xlu0 %v1377
        %v1379 = vpop.xlane.xlu0 %1378
        %v1380 = vsel %vm655, %v1306, -inf
        %1381 = vmax.xlane.f32.xlu0 %v1380
        %v1382 = vpop.xlane.xlu0 %1381
        %v1383 = vsel %vm655, %v1307, -inf
        %1384 = vmax.xlane.f32.xlu0 %v1383
        %v1385 = vpop.xlane.xlu0 %1384
        %v1386 = vsel %vm655, %v1308, -inf
        %1387 = vmax.xlane.f32.xlu0 %v1386
        %v1388 = vpop.xlane.xlu0 %1387
        %v1389 = vsel %vm655, %v1309, -inf
        %1390 = vmax.xlane.f32.xlu0 %v1389
        %v1391 = vpop.xlane.xlu0 %1390
        %v1392 = vsel %vm655, %v1310, -inf
        %1393 = vmax.xlane.f32.xlu0 %v1392
        %v1394 = vpop.xlane.xlu0 %1393
        %v1395 = vsel %vm655, %v1311, -inf
        %1396 = vmax.xlane.f32.xlu0 %v1395
        %v1397 = vpop.xlane.xlu0 %1396
        %v1398 = vsel %vm655, %v1312, -inf
        %1399 = vmax.xlane.f32.xlu0 %v1398
        %v1400 = vpop.xlane.xlu0 %1399
        %v1401 = vsel %vm655, %v1313, -inf
        %1402 = vmax.xlane.f32.xlu0 %v1401
        %v1403 = vpop.xlane.xlu0 %1402
        %v1404 = vsel %vm655, %v1314, -inf
        %1405 = vmax.xlane.f32.xlu0 %v1404
        %v1406 = vpop.xlane.xlu0 %1405
        %v1407 = vsel %vm655, %v1315, -inf
        %1408 = vmax.xlane.f32.xlu0 %v1407
        %v1409 = vpop.xlane.xlu0 %1408
        %v1410 = vsel %vm655, %v1316, -inf
        %1411 = vmax.xlane.f32.xlu0 %v1410
        %v1412 = vpop.xlane.xlu0 %1411
        %v1413 = vsub.f32 %v1285, %v1319
        %v1414 = vsub.f32 %v1286, %v1322
        %v1415 = vsub.f32 %v1287, %v1325
        %v1416 = vsub.f32 %v1288, %v1328
        %v1417 = vsub.f32 %v1289, %v1331
        %v1418 = vsub.f32 %v1290, %v1334
        %v1419 = vsub.f32 %v1291, %v1337
        %v1420 = vsub.f32 %v1292, %v1340
        %v1421 = vsub.f32 %v1293, %v1343
        %v1422 = vsub.f32 %v1294, %v1346
        %v1423 = vsub.f32 %v1295, %v1349
        %v1424 = vsub.f32 %v1296, %v1352
        %v1425 = vsub.f32 %v1297, %v1355
        %v1426 = vsub.f32 %v1298, %v1358
        %v1427 = vsub.f32 %v1299, %v1361
        %v1428 = vsub.f32 %v1300, %v1364
        %v1429 = vsub.f32 %v1301, %v1367
        %v1430 = vsub.f32 %v1302, %v1370
        %v1431 = vsub.f32 %v1303, %v1373
        %v1432 = vsub.f32 %v1304, %v1376
        %v1433 = vsub.f32 %v1305, %v1379
        %v1434 = vsub.f32 %v1306, %v1382
        %v1435 = vsub.f32 %v1307, %v1385
        %v1436 = vsub.f32 %v1308, %v1388
        %v1437 = vsub.f32 %v1309, %v1391
        %v1438 = vsub.f32 %v1310, %v1394
        %v1439 = vsub.f32 %v1311, %v1397
        %v1440 = vsub.f32 %v1312, %v1400
        %v1441 = vsub.f32 %v1313, %v1403
        %v1442 = vsub.f32 %v1314, %v1406
        %v1443 = vsub.f32 %v1315, %v1409
        %v1444 = vsub.f32 %v1316, %v1412
        %v1445 = vmul.f32 %v1413, 1.442695
        %v1446 = vpow.pop %v1445
        %v1447 = vmul.f32 %v1414, 1.442695
        %v1448 = vpow.pop %v1447
        %v1449 = vmul.f32 %v1415, 1.442695
        %v1450 = vpow.pop %v1449
        %v1451 = vmul.f32 %v1416, 1.442695
        %v1452 = vpow.pop %v1451
        %v1453 = vmul.f32 %v1417, 1.442695
        %v1454 = vpow.pop %v1453
        %v1455 = vmul.f32 %v1418, 1.442695
        %v1456 = vpow.pop %v1455
        %v1457 = vmul.f32 %v1419, 1.442695
        %v1458 = vpow.pop %v1457
        %v1459 = vmul.f32 %v1420, 1.442695
        %v1460 = vpow.pop %v1459
        %v1461 = vmul.f32 %v1421, 1.442695
        %v1462 = vpow.pop %v1461
        %v1463 = vmul.f32 %v1422, 1.442695
        %v1464 = vpow.pop %v1463
        %v1465 = vmul.f32 %v1423, 1.442695
        %v1466 = vpow.pop %v1465
        %v1467 = vmul.f32 %v1424, 1.442695
        %v1468 = vpow.pop %v1467
        %v1469 = vmul.f32 %v1425, 1.442695
        %v1470 = vpow.pop %v1469
        %v1471 = vmul.f32 %v1426, 1.442695
        %v1472 = vpow.pop %v1471
        %v1473 = vmul.f32 %v1427, 1.442695
        %v1474 = vpow.pop %v1473
        %v1475 = vmul.f32 %v1428, 1.442695
        %v1476 = vpow.pop %v1475
        %v1477 = vmul.f32 %v1429, 1.442695
        %v1478 = vpow.pop %v1477
        %v1479 = vmul.f32 %v1430, 1.442695
        %v1480 = vpow.pop %v1479
        %v1481 = vmul.f32 %v1431, 1.442695
        %v1482 = vpow.pop %v1481
        %v1483 = vmul.f32 %v1432, 1.442695
        %v1484 = vpow.pop %v1483
        %v1485 = vmul.f32 %v1433, 1.442695
        %v1486 = vpow.pop %v1485
        %v1487 = vmul.f32 %v1434, 1.442695
        %v1488 = vpow.pop %v1487
        %v1489 = vmul.f32 %v1435, 1.442695
        %v1490 = vpow.pop %v1489
        %v1491 = vmul.f32 %v1436, 1.442695
        %v1492 = vpow.pop %v1491
        %v1493 = vmul.f32 %v1437, 1.442695
        %v1494 = vpow.pop %v1493
        %v1495 = vmul.f32 %v1438, 1.442695
        %v1496 = vpow.pop %v1495
        %v1497 = vmul.f32 %v1439, 1.442695
        %v1498 = vpow.pop %v1497
        %v1499 = vmul.f32 %v1440, 1.442695
        %v1500 = vpow.pop %v1499
        %v1501 = vmul.f32 %v1441, 1.442695
        %v1502 = vpow.pop %v1501
        %v1503 = vmul.f32 %v1442, 1.442695
        %v1504 = vpow.pop %v1503
        %v1505 = vmul.f32 %v1443, 1.442695
        %v1506 = vpow.pop %v1505
        %v1507 = vmul.f32 %v1444, 1.442695
        %v1508 = vpow.pop %v1507
        %v1509 = vsel %vm655, %v1446, 0.0
        %1510 = vadd.xlane.f32.xlu0 %v1509
        %v1511 = vpop.xlane.xlu0 %1510
        %v1512 = vsel %vm655, %v1448, 0.0
        %1513 = vadd.xlane.f32.xlu0 %v1512
        %v1514 = vpop.xlane.xlu0 %1513
        %v1515 = vsel %vm655, %v1450, 0.0
        %1516 = vadd.xlane.f32.xlu0 %v1515
        %v1517 = vpop.xlane.xlu0 %1516
        %v1518 = vsel %vm655, %v1452, 0.0
        %1519 = vadd.xlane.f32.xlu0 %v1518
        %v1520 = vpop.xlane.xlu0 %1519
        %v1521 = vsel %vm655, %v1454, 0.0
        %1522 = vadd.xlane.f32.xlu0 %v1521
        %v1523 = vpop.xlane.xlu0 %1522
        %v1524 = vsel %vm655, %v1456, 0.0
        %1525 = vadd.xlane.f32.xlu0 %v1524
        %v1526 = vpop.xlane.xlu0 %1525
        %v1527 = vsel %vm655, %v1458, 0.0
        %1528 = vadd.xlane.f32.xlu0 %v1527
        %v1529 = vpop.xlane.xlu0 %1528
        %v1530 = vsel %vm655, %v1460, 0.0
        %1531 = vadd.xlane.f32.xlu0 %v1530
        %v1532 = vpop.xlane.xlu0 %1531
        %v1533 = vsel %vm655, %v1462, 0.0
        %1534 = vadd.xlane.f32.xlu0 %v1533
        %v1535 = vpop.xlane.xlu0 %1534
        %v1536 = vsel %vm655, %v1464, 0.0
        %1537 = vadd.xlane.f32.xlu0 %v1536
        %v1538 = vpop.xlane.xlu0 %1537
        %v1539 = vsel %vm655, %v1466, 0.0
        %1540 = vadd.xlane.f32.xlu0 %v1539
        %v1541 = vpop.xlane.xlu0 %1540
        %v1542 = vsel %vm655, %v1468, 0.0
        %1543 = vadd.xlane.f32.xlu0 %v1542
        %v1544 = vpop.xlane.xlu0 %1543
        %v1545 = vsel %vm655, %v1470, 0.0
        %1546 = vadd.xlane.f32.xlu0 %v1545
        %v1547 = vpop.xlane.xlu0 %1546
        %v1548 = vsel %vm655, %v1472, 0.0
        %1549 = vadd.xlane.f32.xlu0 %v1548
        %v1550 = vpop.xlane.xlu0 %1549
        %v1551 = vsel %vm655, %v1474, 0.0
        %1552 = vadd.xlane.f32.xlu0 %v1551
        %v1553 = vpop.xlane.xlu0 %1552
        %v1554 = vsel %vm655, %v1476, 0.0
        %1555 = vadd.xlane.f32.xlu0 %v1554
        %v1556 = vpop.xlane.xlu0 %1555
        %v1557 = vsel %vm655, %v1478, 0.0
        %1558 = vadd.xlane.f32.xlu0 %v1557
        %v1559 = vpop.xlane.xlu0 %1558
        %v1560 = vsel %vm655, %v1480, 0.0
        %1561 = vadd.xlane.f32.xlu0 %v1560
        %v1562 = vpop.xlane.xlu0 %1561
        %v1563 = vsel %vm655, %v1482, 0.0
        %1564 = vadd.xlane.f32.xlu0 %v1563
        %v1565 = vpop.xlane.xlu0 %1564
        %v1566 = vsel %vm655, %v1484, 0.0
        %1567 = vadd.xlane.f32.xlu0 %v1566
        %v1568 = vpop.xlane.xlu0 %1567
        %v1569 = vsel %vm655, %v1486, 0.0
        %1570 = vadd.xlane.f32.xlu0 %v1569
        %v1571 = vpop.xlane.xlu0 %1570
        %v1572 = vsel %vm655, %v1488, 0.0
        %1573 = vadd.xlane.f32.xlu0 %v1572
        %v1574 = vpop.xlane.xlu0 %1573
        %v1575 = vsel %vm655, %v1490, 0.0
        %1576 = vadd.xlane.f32.xlu0 %v1575
        %v1577 = vpop.xlane.xlu0 %1576
        %v1578 = vsel %vm655, %v1492, 0.0
        %1579 = vadd.xlane.f32.xlu0 %v1578
        %v1580 = vpop.xlane.xlu0 %1579
        %v1581 = vsel %vm655, %v1494, 0.0
        %1582 = vadd.xlane.f32.xlu0 %v1581
        %v1583 = vpop.xlane.xlu0 %1582
        %v1584 = vsel %vm655, %v1496, 0.0
        %1585 = vadd.xlane.f32.xlu0 %v1584
        %v1586 = vpop.xlane.xlu0 %1585
        %v1587 = vsel %vm655, %v1498, 0.0
        %1588 = vadd.xlane.f32.xlu0 %v1587
        %v1589 = vpop.xlane.xlu0 %1588
        %v1590 = vsel %vm655, %v1500, 0.0
        %1591 = vadd.xlane.f32.xlu0 %v1590
        %v1592 = vpop.xlane.xlu0 %1591
        %v1593 = vsel %vm655, %v1502, 0.0
        %1594 = vadd.xlane.f32.xlu0 %v1593
        %v1595 = vpop.xlane.xlu0 %1594
        %v1596 = vsel %vm655, %v1504, 0.0
        %1597 = vadd.xlane.f32.xlu0 %v1596
        %v1598 = vpop.xlane.xlu0 %1597
        %v1599 = vsel %vm655, %v1506, 0.0
        %1600 = vadd.xlane.f32.xlu0 %v1599
        %v1601 = vpop.xlane.xlu0 %1600
        %v1602 = vsel %vm655, %v1508, 0.0
        %1603 = vadd.xlane.f32.xlu0 %v1602
        %v1604 = vpop.xlane.xlu0 %1603
        %v1605 = vrcp.pop %v1511
        %v1606 = vrcp.pop %v1514
        %v1607 = vrcp.pop %v1517
        %v1608 = vrcp.pop %v1520
        %v1609 = vrcp.pop %v1523
        %v1610 = vrcp.pop %v1526
        %v1611 = vrcp.pop %v1529
        %v1612 = vrcp.pop %v1532
        %v1613 = vrcp.pop %v1535
        %v1614 = vrcp.pop %v1538
        %v1615 = vrcp.pop %v1541
        %v1616 = vrcp.pop %v1544
        %v1617 = vrcp.pop %v1547
        %v1618 = vrcp.pop %v1550
        %v1619 = vrcp.pop %v1553
        %v1620 = vrcp.pop %v1556
        %v1621 = vrcp.pop %v1559
        %v1622 = vrcp.pop %v1562
        %v1623 = vrcp.pop %v1565
        %v1624 = vrcp.pop %v1568
        %v1625 = vrcp.pop %v1571
        %v1626 = vrcp.pop %v1574
        %v1627 = vrcp.pop %v1577
        %v1628 = vrcp.pop %v1580
        %v1629 = vrcp.pop %v1583
        %v1630 = vrcp.pop %v1586
        %v1631 = vrcp.pop %v1589
        %v1632 = vrcp.pop %v1592
        %v1633 = vrcp.pop %v1595
        %v1634 = vrcp.pop %v1598
        %v1635 = vrcp.pop %v1601
        %v1636 = vrcp.pop %v1604
        %v1637 = vmul.f32 %v1446, %v1605
        %v1638 = vmul.f32 %v1448, %v1606
        %v1639 = vmul.f32 %v1450, %v1607
        %v1640 = vmul.f32 %v1452, %v1608
        %v1641 = vmul.f32 %v1454, %v1609
        %v1642 = vmul.f32 %v1456, %v1610
        %v1643 = vmul.f32 %v1458, %v1611
        %v1644 = vmul.f32 %v1460, %v1612
        %v1645 = vmul.f32 %v1462, %v1613
        %v1646 = vmul.f32 %v1464, %v1614
        %v1647 = vmul.f32 %v1466, %v1615
        %v1648 = vmul.f32 %v1468, %v1616
        %v1649 = vmul.f32 %v1470, %v1617
        %v1650 = vmul.f32 %v1472, %v1618
        %v1651 = vmul.f32 %v1474, %v1619
        %v1652 = vmul.f32 %v1476, %v1620
        %v1653 = vmul.f32 %v1478, %v1621
        %v1654 = vmul.f32 %v1480, %v1622
        %v1655 = vmul.f32 %v1482, %v1623
        %v1656 = vmul.f32 %v1484, %v1624
        %v1657 = vmul.f32 %v1486, %v1625
        %v1658 = vmul.f32 %v1488, %v1626
        %v1659 = vmul.f32 %v1490, %v1627
        %v1660 = vmul.f32 %v1492, %v1628
        %v1661 = vmul.f32 %v1494, %v1629
        %v1662 = vmul.f32 %v1496, %v1630
        %v1663 = vmul.f32 %v1498, %v1631
        %v1664 = vmul.f32 %v1500, %v1632
        %v1665 = vmul.f32 %v1502, %v1633
        %v1666 = vmul.f32 %v1504, %v1634
        %v1667 = vmul.f32 %v1506, %v1635
        %v1668 = vmul.f32 %v1508, %v1636
        %v1669 = vpack.c.bf16 %v1638, %v1637
        %v1670 = vpack.c.bf16 %v1640, %v1639
        %v1671 = vpack.c.bf16 %v1642, %v1641
        %v1672 = vpack.c.bf16 %v1644, %v1643
        %v1673 = vpack.c.bf16 %v1646, %v1645
        %v1674 = vpack.c.bf16 %v1648, %v1647
        %v1675 = vpack.c.bf16 %v1650, %v1649
        %v1676 = vpack.c.bf16 %v1652, %v1651
        %v1677 = vpack.c.bf16 %v1654, %v1653
        %v1678 = vpack.c.bf16 %v1656, %v1655
        %v1679 = vpack.c.bf16 %v1658, %v1657
        %v1680 = vpack.c.bf16 %v1660, %v1659
        %v1681 = vpack.c.bf16 %v1662, %v1661
        %v1682 = vpack.c.bf16 %v1664, %v1663
        %v1683 = vpack.c.bf16 %v1666, %v1665
        %v1684 = vpack.c.bf16 %v1668, %v1667
        %1685 = vrot.lane.b32.xlu0 %v389, 64
        %v1686 = vpop.permute.xlu0 %1685
        %1687 = vrot.lane.b32.xlu0 %v390, 64
        %v1688 = vpop.permute.xlu0 %1687
        %1689 = vrot.lane.b32.xlu0 %v391, 64
        %v1690 = vpop.permute.xlu0 %1689
        %1691 = vrot.lane.b32.xlu0 %v392, 64
        %v1692 = vpop.permute.xlu0 %1691
        %v1698 = vsel %vm655, %v1669, 0
        %v1701 = vsel %vm655, %v1670, 0
        %v1704 = vsel %vm655, %v1671, 0
        %v1707 = vsel %vm655, %v1672, 0
        %v1710 = vsel %vm655, %v1673, 0
        %v1713 = vsel %vm655, %v1674, 0
        %v1716 = vsel %vm655, %v1675, 0
        %v1719 = vsel %vm655, %v1676, 0
        %v1722 = vsel %vm655, %v1677, 0
        %v1725 = vsel %vm655, %v1678, 0
        %v1728 = vsel %vm655, %v1679, 0
        %v1731 = vsel %vm655, %v1680, 0
        %v1734 = vsel %vm655, %v1681, 0
        %v1737 = vsel %vm655, %v1682, 0
        %v1740 = vsel %vm655, %v1683, 0
        %v1743 = vsel %vm655, %v1684, 0
        %1745 = vmatprep.subr.bf16.mxu0 0
        %1746 = vmatpush1.bf16.msra.mxu0 %v1686
        %1747 = vmatprep.subr.bf16.mxu0 0
        %1748 = vmatpush1.bf16.msra.mxu0 %v1688
        %1749 = vmatprep.subr.bf16.mxu0 0
        %1750 = vmatpush1.bf16.msra.mxu0 %v1690
        %1751 = vmatprep.subr.bf16.mxu0 0
        %1752 = vmatpush1.bf16.msra.mxu0 %v1692
        %1753 = vmatprep.subr.bf16.mxu0 0
        %1754 = vmatpush1.bf16.msra.mxu0 0
        %1755 = vmatprep.subr.bf16.mxu0 0
        %1756 = vmatpush1.bf16.msra.mxu0 0
        %1757 = vmatprep.subr.bf16.mxu0 0
        %1758 = vmatpush1.bf16.msra.mxu0 0
        %1759 = vmatprep.subr.bf16.mxu0 0
        %1760 = vmatpush1.bf16.msra.mxu0 0
        %1761 = vmatprep.subr.bf16.mxu0 0
        %1762 = vmatpush1.bf16.msra.mxu0 0
        %1763 = vmatprep.subr.bf16.mxu0 0
        %1764 = vmatpush1.bf16.msra.mxu0 0
        %1765 = vmatprep.subr.bf16.mxu0 0
        %1766 = vmatpush1.bf16.msra.mxu0 0
        %1767 = vmatprep.subr.bf16.mxu0 0
        %1768 = vmatpush1.bf16.msra.mxu0 0
        %1769 = vmatprep.subr.bf16.mxu0 0
        %1770 = vmatpush1.bf16.msra.mxu0 0
        %1771 = vmatprep.subr.bf16.mxu0 0
        %1772 = vmatpush1.bf16.msra.mxu0 0
        %1773 = vmatprep.subr.bf16.mxu0 0
        %1774 = vmatpush1.bf16.msra.mxu0 0
        %1775 = vmatprep.subr.bf16.mxu0 0
        %1776 = vmatpush1.bf16.msra.mxu0 0
        %1777 = vmatprep.mubr.bf16.mxu0 0
        %1778 = vmatmul.mubr.bf16.gmra.mrb[0].mxu0 %v1698
        %v1779 = vpop.f32.mrb[0].mxu0
        %v1780 = vadd.f32 0.0, %v1779
        %v1781 = vpop.f32.mrb[0].mxu0
        %v1782 = vpop.f32.mrb[0].mxu0
        %v1783 = vadd.f32 0.0, %v1782
        %v1784 = vpop.f32.mrb[0].mxu0
        %1785 = vmatprep.mubr.bf16.mxu0 0
        %1786 = vmatmul.mubr.bf16.gmra.mrb[0].mxu0 %v1701
        %v1787 = vpop.f32.mrb[0].mxu0
        %v1788 = vadd.f32 0.0, %v1787
        %v1789 = vpop.f32.mrb[0].mxu0
        %v1790 = vpop.f32.mrb[0].mxu0
        %v1791 = vadd.f32 0.0, %v1790
        %v1792 = vpop.f32.mrb[0].mxu0
        %1793 = vmatprep.mubr.bf16.mxu0 0
        %1794 = vmatmul.mubr.bf16.gmra.mrb[0].mxu0 %v1704
        %v1795 = vpop.f32.mrb[0].mxu0
        %v1796 = vadd.f32 0.0, %v1795
        %v1797 = vpop.f32.mrb[0].mxu0
        %v1798 = vpop.f32.mrb[0].mxu0
        %v1799 = vadd.f32 0.0, %v1798
        %v1800 = vpop.f32.mrb[0].mxu0
        %1801 = vmatprep.mubr.bf16.mxu0 0
        %1802 = vmatmul.mubr.bf16.gmra.mrb[0].mxu0 %v1707
        %v1803 = vpop.f32.mrb[0].mxu0
        %v1804 = vadd.f32 0.0, %v1803
        %v1805 = vpop.f32.mrb[0].mxu0
        %v1806 = vpop.f32.mrb[0].mxu0
        %v1807 = vadd.f32 0.0, %v1806
        %v1808 = vpop.f32.mrb[0].mxu0
        %1809 = vmatprep.mubr.bf16.mxu0 0
        %1810 = vmatmul.mubr.bf16.gmra.mrb[0].mxu0 %v1710
        %v1811 = vpop.f32.mrb[0].mxu0
        %v1812 = vadd.f32 0.0, %v1811
        %v1813 = vpop.f32.mrb[0].mxu0
        %v1814 = vpop.f32.mrb[0].mxu0
        %v1815 = vadd.f32 0.0, %v1814
        %v1816 = vpop.f32.mrb[0].mxu0
        %1817 = vmatprep.mubr.bf16.mxu0 0
        %1818 = vmatmul.mubr.bf16.gmra.mrb[0].mxu0 %v1713
        %v1819 = vpop.f32.mrb[0].mxu0
        %v1820 = vadd.f32 0.0, %v1819
        %v1821 = vpop.f32.mrb[0].mxu0
        %v1822 = vpop.f32.mrb[0].mxu0
        %v1823 = vadd.f32 0.0, %v1822
        %v1824 = vpop.f32.mrb[0].mxu0
        %1825 = vmatprep.mubr.bf16.mxu0 0
        %1826 = vmatmul.mubr.bf16.gmra.mrb[0].mxu0 %v1716
        %v1827 = vpop.f32.mrb[0].mxu0
        %v1828 = vadd.f32 0.0, %v1827
        %v1829 = vpop.f32.mrb[0].mxu0
        %v1830 = vpop.f32.mrb[0].mxu0
        %v1831 = vadd.f32 0.0, %v1830
        %v1832 = vpop.f32.mrb[0].mxu0
        %1833 = vmatprep.mubr.bf16.mxu0 0
        %1834 = vmatmul.mubr.bf16.gmra.mrb[0].mxu0 %v1719
        %v1835 = vpop.f32.mrb[0].mxu0
        %v1836 = vadd.f32 0.0, %v1835
        %v1837 = vpop.f32.mrb[0].mxu0
        %v1838 = vpop.f32.mrb[0].mxu0
        %v1839 = vadd.f32 0.0, %v1838
        %v1840 = vpop.f32.mrb[0].mxu0
        %1841 = vmatprep.mubr.bf16.mxu0 0
        %1842 = vmatmul.mubr.bf16.gmra.mrb[0].mxu0 %v1722
        %v1843 = vpop.f32.mrb[0].mxu0
        %v1844 = vadd.f32 0.0, %v1843
        %v1845 = vpop.f32.mrb[0].mxu0
        %v1846 = vpop.f32.mrb[0].mxu0
        %v1847 = vadd.f32 0.0, %v1846
        %v1848 = vpop.f32.mrb[0].mxu0
        %1849 = vmatprep.mubr.bf16.mxu0 0
        %1850 = vmatmul.mubr.bf16.gmra.mrb[0].mxu0 %v1725
        %v1851 = vpop.f32.mrb[0].mxu0
        %v1852 = vadd.f32 0.0, %v1851
        %v1853 = vpop.f32.mrb[0].mxu0
        %v1854 = vpop.f32.mrb[0].mxu0
        %v1855 = vadd.f32 0.0, %v1854
        %v1856 = vpop.f32.mrb[0].mxu0
        %1857 = vmatprep.mubr.bf16.mxu0 0
        %1858 = vmatmul.mubr.bf16.gmra.mrb[0].mxu0 %v1728
        %v1859 = vpop.f32.mrb[0].mxu0
        %v1860 = vadd.f32 0.0, %v1859
        %v1861 = vpop.f32.mrb[0].mxu0
        %v1862 = vpop.f32.mrb[0].mxu0
        %v1863 = vadd.f32 0.0, %v1862
        %v1864 = vpop.f32.mrb[0].mxu0
        %1865 = vmatprep.mubr.bf16.mxu0 0
        %1866 = vmatmul.mubr.bf16.gmra.mrb[0].mxu0 %v1731
        %v1867 = vpop.f32.mrb[0].mxu0
        %v1868 = vadd.f32 0.0, %v1867
        %v1869 = vpop.f32.mrb[0].mxu0
        %v1870 = vpop.f32.mrb[0].mxu0
        %v1871 = vadd.f32 0.0, %v1870
        %v1872 = vpop.f32.mrb[0].mxu0
        %1873 = vmatprep.mubr.bf16.mxu0 0
        %1874 = vmatmul.mubr.bf16.gmra.mrb[0].mxu0 %v1734
        %v1875 = vpop.f32.mrb[0].mxu0
        %v1876 = vadd.f32 0.0, %v1875
        %v1877 = vpop.f32.mrb[0].mxu0
        %v1878 = vpop.f32.mrb[0].mxu0
        %v1879 = vadd.f32 0.0, %v1878
        %v1880 = vpop.f32.mrb[0].mxu0
        %1881 = vmatprep.mubr.bf16.mxu0 0
        %1882 = vmatmul.mubr.bf16.gmra.mrb[0].mxu0 %v1737
        %v1883 = vpop.f32.mrb[0].mxu0
        %v1884 = vadd.f32 0.0, %v1883
        %v1885 = vpop.f32.mrb[0].mxu0
        %v1886 = vpop.f32.mrb[0].mxu0
        %v1887 = vadd.f32 0.0, %v1886
        %v1888 = vpop.f32.mrb[0].mxu0
        %1889 = vmatprep.mubr.bf16.mxu0 0
        %1890 = vmatmul.mubr.bf16.gmra.mrb[0].mxu0 %v1740
        %v1891 = vpop.f32.mrb[0].mxu0
        %v1892 = vadd.f32 0.0, %v1891
        %v1893 = vpop.f32.mrb[0].mxu0
        %v1894 = vpop.f32.mrb[0].mxu0
        %v1895 = vadd.f32 0.0, %v1894
        %v1896 = vpop.f32.mrb[0].mxu0
        %1897 = vmatprep.mubr.bf16.mxu0 0
        %1898 = vmatmul.mubr.bf16.gmra.mrb[0].mxu0 %v1743
        %v1899 = vpop.f32.mrb[0].mxu0
        %v1900 = vadd.f32 0.0, %v1899
        %v1901 = vpop.f32.mrb[0].mxu0
        %v1902 = vpop.f32.mrb[0].mxu0
        %v1903 = vadd.f32 0.0, %v1902
        %v1904 = vpop.f32.mrb[0].mxu0
        %1905 = vdwg.mxu0
        %1906 = vrot.lane.b32.xlu0 %v389, 96
        %v1907 = vpop.permute.xlu0 %1906
        %1908 = vrot.lane.b32.xlu0 %v390, 96
        %v1909 = vpop.permute.xlu0 %1908
        %1910 = vrot.lane.b32.xlu0 %v391, 96
        %v1911 = vpop.permute.xlu0 %1910
        %1912 = vrot.lane.b32.xlu0 %v392, 96
        %v1913 = vpop.permute.xlu0 %1912
        %v1919 = vsel %vm655, %v1008, 0
        %v1922 = vsel %vm655, %v1009, 0
        %v1925 = vsel %vm655, %v1010, 0
        %v1928 = vsel %vm655, %v1011, 0
        %v1931 = vsel %vm655, %v1012, 0
        %v1934 = vsel %vm655, %v1013, 0
        %v1937 = vsel %vm655, %v1014, 0
        %v1940 = vsel %vm655, %v1015, 0
        %v1943 = vsel %vm655, %v1016, 0
        %v1946 = vsel %vm655, %v1017, 0
        %v1949 = vsel %vm655, %v1018, 0
        %v1952 = vsel %vm655, %v1019, 0
        %v1955 = vsel %vm655, %v1020, 0
        %v1958 = vsel %vm655, %v1021, 0
        %v1961 = vsel %vm655, %v1022, 0
        %v1964 = vsel %vm655, %v1023, 0
        %1966 = vmatprep.subr.bf16.mxu0 0
        %1967 = vmatpush1.bf16.msra.mxu0 %v1907
        %1968 = vmatprep.subr.bf16.mxu0 0
        %1969 = vmatpush1.bf16.msra.mxu0 %v1909
        %1970 = vmatprep.subr.bf16.mxu0 0
        %1971 = vmatpush1.bf16.msra.mxu0 %v1911
        %1972 = vmatprep.subr.bf16.mxu0 0
        %1973 = vmatpush1.bf16.msra.mxu0 %v1913
        %1974 = vmatprep.subr.bf16.mxu0 0
        %1975 = vmatpush1.bf16.msra.mxu0 0
        %1976 = vmatprep.subr.bf16.mxu0 0
        %1977 = vmatpush1.bf16.msra.mxu0 0
        %1978 = vmatprep.subr.bf16.mxu0 0
        %1979 = vmatpush1.bf16.msra.mxu0 0
        %1980 = vmatprep.subr.bf16.mxu0 0
        %1981 = vmatpush1.bf16.msra.mxu0 0
        %1982 = vmatprep.subr.bf16.mxu0 0
        %1983 = vmatpush1.bf16.msra.mxu0 0
        %1984 = vmatprep.subr.bf16.mxu0 0
        %1985 = vmatpush1.bf16.msra.mxu0 0
        %1986 = vmatprep.subr.bf16.mxu0 0
        %1987 = vmatpush1.bf16.msra.mxu0 0
        %1988 = vmatprep.subr.bf16.mxu0 0
        %1989 = vmatpush1.bf16.msra.mxu0 0
        %1990 = vmatprep.subr.bf16.mxu0 0
        %1991 = vmatpush1.bf16.msra.mxu0 0
        %1992 = vmatprep.subr.bf16.mxu0 0
        %1993 = vmatpush1.bf16.msra.mxu0 0
        %1994 = vmatprep.subr.bf16.mxu0 0
        %1995 = vmatpush1.bf16.msra.mxu0 0
        %1996 = vmatprep.subr.bf16.mxu0 0
        %1997 = vmatpush1.bf16.msra.mxu0 0
        %1998 = vmatprep.mubr.bf16.mxu0 0
        %1999 = vmatmul.mubr.bf16.gmra.mrb[0].mxu0 %v1919
        %v2000 = vpop.f32.mrb[0].mxu0
        %v2001 = vadd.f32 %v1780, %v2000
        %v2002 = vpop.f32.mrb[0].mxu0
        %v2003 = vpop.f32.mrb[0].mxu0
        %v2004 = vadd.f32 %v1783, %v2003
        %v2005 = vpop.f32.mrb[0].mxu0
        %2006 = vmatprep.mubr.bf16.mxu0 0
        %2007 = vmatmul.mubr.bf16.gmra.mrb[0].mxu0 %v1922
        %v2008 = vpop.f32.mrb[0].mxu0
        %v2009 = vadd.f32 %v1788, %v2008
        %v2010 = vpop.f32.mrb[0].mxu0
        %v2011 = vpop.f32.mrb[0].mxu0
        %v2012 = vadd.f32 %v1791, %v2011
        %v2013 = vpop.f32.mrb[0].mxu0
        %2014 = vmatprep.mubr.bf16.mxu0 0
        %2015 = vmatmul.mubr.bf16.gmra.mrb[0].mxu0 %v1925
        %v2016 = vpop.f32.mrb[0].mxu0
        %v2017 = vadd.f32 %v1796, %v2016
        %v2018 = vpop.f32.mrb[0].mxu0
        %v2019 = vpop.f32.mrb[0].mxu0
        %v2020 = vadd.f32 %v1799, %v2019
        %v2021 = vpop.f32.mrb[0].mxu0
        %2022 = vmatprep.mubr.bf16.mxu0 0
        %2023 = vmatmul.mubr.bf16.gmra.mrb[0].mxu0 %v1928
        %v2024 = vpop.f32.mrb[0].mxu0
        %v2025 = vadd.f32 %v1804, %v2024
        %v2026 = vpop.f32.mrb[0].mxu0
        %v2027 = vpop.f32.mrb[0].mxu0
        %v2028 = vadd.f32 %v1807, %v2027
        %v2029 = vpop.f32.mrb[0].mxu0
        %2030 = vmatprep.mubr.bf16.mxu0 0
        %2031 = vmatmul.mubr.bf16.gmra.mrb[0].mxu0 %v1931
        %v2032 = vpop.f32.mrb[0].mxu0
        %v2033 = vadd.f32 %v1812, %v2032
        %v2034 = vpop.f32.mrb[0].mxu0
        %v2035 = vpop.f32.mrb[0].mxu0
        %v2036 = vadd.f32 %v1815, %v2035
        %v2037 = vpop.f32.mrb[0].mxu0
        %2038 = vmatprep.mubr.bf16.mxu0 0
        %2039 = vmatmul.mubr.bf16.gmra.mrb[0].mxu0 %v1934
        %v2040 = vpop.f32.mrb[0].mxu0
        %v2041 = vadd.f32 %v1820, %v2040
        %v2042 = vpop.f32.mrb[0].mxu0
        %v2043 = vpop.f32.mrb[0].mxu0
        %v2044 = vadd.f32 %v1823, %v2043
        %v2045 = vpop.f32.mrb[0].mxu0
        %2046 = vmatprep.mubr.bf16.mxu0 0
        %2047 = vmatmul.mubr.bf16.gmra.mrb[0].mxu0 %v1937
        %v2048 = vpop.f32.mrb[0].mxu0
        %v2049 = vadd.f32 %v1828, %v2048
        %v2050 = vpop.f32.mrb[0].mxu0
        %v2051 = vpop.f32.mrb[0].mxu0
        %v2052 = vadd.f32 %v1831, %v2051
        %v2053 = vpop.f32.mrb[0].mxu0
        %2054 = vmatprep.mubr.bf16.mxu0 0
        %2055 = vmatmul.mubr.bf16.gmra.mrb[0].mxu0 %v1940
        %v2056 = vpop.f32.mrb[0].mxu0
        %v2057 = vadd.f32 %v1836, %v2056
        %v2058 = vpop.f32.mrb[0].mxu0
        %v2059 = vpop.f32.mrb[0].mxu0
        %v2060 = vadd.f32 %v1839, %v2059
        %v2061 = vpop.f32.mrb[0].mxu0
        %2062 = vmatprep.mubr.bf16.mxu0 0
        %2063 = vmatmul.mubr.bf16.gmra.mrb[0].mxu0 %v1943
        %v2064 = vpop.f32.mrb[0].mxu0
        %v2065 = vadd.f32 %v1844, %v2064
        %v2066 = vpop.f32.mrb[0].mxu0
        %v2067 = vpop.f32.mrb[0].mxu0
        %v2068 = vadd.f32 %v1847, %v2067
        %v2069 = vpop.f32.mrb[0].mxu0
        %2070 = vmatprep.mubr.bf16.mxu0 0
        %2071 = vmatmul.mubr.bf16.gmra.mrb[0].mxu0 %v1946
        %v2072 = vpop.f32.mrb[0].mxu0
        %v2073 = vadd.f32 %v1852, %v2072
        %v2074 = vpop.f32.mrb[0].mxu0
        %v2075 = vpop.f32.mrb[0].mxu0
        %v2076 = vadd.f32 %v1855, %v2075
        %v2077 = vpop.f32.mrb[0].mxu0
        %2078 = vmatprep.mubr.bf16.mxu0 0
        %2079 = vmatmul.mubr.bf16.gmra.mrb[0].mxu0 %v1949
        %v2080 = vpop.f32.mrb[0].mxu0
        %v2081 = vadd.f32 %v1860, %v2080
        %v2082 = vpop.f32.mrb[0].mxu0
        %v2083 = vpop.f32.mrb[0].mxu0
        %v2084 = vadd.f32 %v1863, %v2083
        %v2085 = vpop.f32.mrb[0].mxu0
        %2086 = vmatprep.mubr.bf16.mxu0 0
        %2087 = vmatmul.mubr.bf16.gmra.mrb[0].mxu0 %v1952
        %v2088 = vpop.f32.mrb[0].mxu0
        %v2089 = vadd.f32 %v1868, %v2088
        %v2090 = vpop.f32.mrb[0].mxu0
        %v2091 = vpop.f32.mrb[0].mxu0
        %v2092 = vadd.f32 %v1871, %v2091
        %v2093 = vpop.f32.mrb[0].mxu0
        %2094 = vmatprep.mubr.bf16.mxu0 0
        %2095 = vmatmul.mubr.bf16.gmra.mrb[0].mxu0 %v1955
        %v2096 = vpop.f32.mrb[0].mxu0
        %v2097 = vadd.f32 %v1876, %v2096
        %v2098 = vpop.f32.mrb[0].mxu0
        %v2099 = vpop.f32.mrb[0].mxu0
        %v2100 = vadd.f32 %v1879, %v2099
        %v2101 = vpop.f32.mrb[0].mxu0
        %2102 = vmatprep.mubr.bf16.mxu0 0
        %2103 = vmatmul.mubr.bf16.gmra.mrb[0].mxu0 %v1958
        %v2104 = vpop.f32.mrb[0].mxu0
        %v2105 = vadd.f32 %v1884, %v2104
        %v2106 = vpop.f32.mrb[0].mxu0
        %v2107 = vpop.f32.mrb[0].mxu0
        %v2108 = vadd.f32 %v1887, %v2107
        %v2109 = vpop.f32.mrb[0].mxu0
        %2110 = vmatprep.mubr.bf16.mxu0 0
        %2111 = vmatmul.mubr.bf16.gmra.mrb[0].mxu0 %v1961
        %v2112 = vpop.f32.mrb[0].mxu0
        %v2113 = vadd.f32 %v1892, %v2112
        %v2114 = vpop.f32.mrb[0].mxu0
        %v2115 = vpop.f32.mrb[0].mxu0
        %v2116 = vadd.f32 %v1895, %v2115
        %v2117 = vpop.f32.mrb[0].mxu0
        %2118 = vmatprep.mubr.bf16.mxu0 0
        %2119 = vmatmul.mubr.bf16.gmra.mrb[0].mxu0 %v1964
        %v2120 = vpop.f32.mrb[0].mxu0
        %v2121 = vadd.f32 %v1900, %v2120
        %v2122 = vpop.f32.mrb[0].mxu0
        %v2123 = vpop.f32.mrb[0].mxu0
        %v2124 = vadd.f32 %v1903, %v2123
        %v2125 = vpop.f32.mrb[0].mxu0
        %2126 = vdwg.mxu0
        %v2127 = vld [vmem:[%s218 + $0x4] sm:$0xf]
        %v2128 = vld [vmem:[%s218 + $0x10] sm:$0xf]
        %v2129 = vld [vmem:[%s218 + $0x1c] sm:$0xf]
        %v2130 = vld [vmem:[%s218 + $0x28] sm:$0xf]
        %v2131 = vld [vmem:[%s218 + $0x34] sm:$0xf]
        %v2132 = vld [vmem:[%s218 + $0x40] sm:$0xf]
        %v2133 = vld [vmem:[%s218 + $0x4c] sm:$0xf]
        %v2134 = vld [vmem:[%s218 + $0x58] sm:$0xf]
        %v2143 = vunpack.c.l.b16 %v2127
        %v2144 = vunpack.c.l.b16 %v2128
        %v2145 = vunpack.c.l.b16 %v2129
        %v2146 = vunpack.c.l.b16 %v2130
        %v2147 = vunpack.c.l.b16 %v2131
        %v2148 = vunpack.c.l.b16 %v2132
        %v2149 = vunpack.c.l.b16 %v2133
        %v2150 = vunpack.c.l.b16 %v2134
        %v2151 = vpack.c.b16 %v2144, %v2143
        %v2152 = vpack.c.b16 %v2146, %v2145
        %v2153 = vpack.c.b16 %v2148, %v2147
        %v2154 = vpack.c.b16 %v2150, %v2149
        %2155 = vrot.lane.b32.xlu0 %v2151, 64
        %v2156 = vpop.permute.xlu0 %2155
        %2157 = vrot.lane.b32.xlu0 %v2152, 64
        %v2158 = vpop.permute.xlu0 %2157
        %2159 = vrot.lane.b32.xlu0 %v2153, 64
        %v2160 = vpop.permute.xlu0 %2159
        %2161 = vrot.lane.b32.xlu0 %v2154, 64
        %v2162 = vpop.permute.xlu0 %2161
        %v2164 = vsel %vm401, %v325, 0
        %v2167 = vsel %vm401, %v326, 0
        %v2170 = vsel %vm401, %v327, 0
        %v2173 = vsel %vm401, %v328, 0
        %v2176 = vsel %vm401, %v329, 0
        %v2179 = vsel %vm401, %v330, 0
        %v2182 = vsel %vm401, %v331, 0
        %v2185 = vsel %vm401, %v332, 0
        %v2188 = vsel %vm401, %v333, 0
        %v2191 = vsel %vm401, %v334, 0
        %v2194 = vsel %vm401, %v335, 0
        %v2197 = vsel %vm401, %v336, 0
        %v2200 = vsel %vm401, %v337, 0
        %v2203 = vsel %vm401, %v338, 0
        %v2206 = vsel %vm401, %v339, 0
        %v2209 = vsel %vm401, %v340, 0
        %v2212 = vsel %vm401, %v2156, 0
        %v2215 = vsel %vm401, %v2158, 0
        %v2218 = vsel %vm401, %v2160, 0
        %v2221 = vsel %vm401, %v2162, 0
        %2223 = vmatprep.subr.bf16.mxu0 0
        %2224 = vmatpush1.bf16.xpose.msra.mxu0 %v2212
        %2225 = vmatprep.subr.bf16.mxu0 0
        %2226 = vmatpush1.bf16.xpose.msra.mxu0 %v2215
        %2227 = vmatprep.subr.bf16.mxu0 0
        %2228 = vmatpush1.bf16.xpose.msra.mxu0 %v2218
        %2229 = vmatprep.subr.bf16.mxu0 0
        %2230 = vmatpush1.bf16.xpose.msra.mxu0 %v2221
        %2231 = vmatprep.subr.bf16.mxu0 0
        %2232 = vmatpush1.bf16.xpose.msra.mxu0 0
        %2233 = vmatprep.subr.bf16.mxu0 0
        %2234 = vmatpush1.bf16.xpose.msra.mxu0 0
        %2235 = vmatprep.subr.bf16.mxu0 0
        %2236 = vmatpush1.bf16.xpose.msra.mxu0 0
        %2237 = vmatprep.subr.bf16.mxu0 0
        %2238 = vmatpush1.bf16.xpose.msra.mxu0 0
        %2239 = vmatprep.subr.bf16.mxu0 0
        %2240 = vmatpush1.bf16.xpose.msra.mxu0 0
        %2241 = vmatprep.subr.bf16.mxu0 0
        %2242 = vmatpush1.bf16.xpose.msra.mxu0 0
        %2243 = vmatprep.subr.bf16.mxu0 0
        %2244 = vmatpush1.bf16.xpose.msra.mxu0 0
        %2245 = vmatprep.subr.bf16.mxu0 0
        %2246 = vmatpush1.bf16.xpose.msra.mxu0 0
        %2247 = vmatprep.subr.bf16.mxu0 0
        %2248 = vmatpush1.bf16.xpose.msra.mxu0 0
        %2249 = vmatprep.subr.bf16.mxu0 0
        %2250 = vmatpush1.bf16.xpose.msra.mxu0 0
        %2251 = vmatprep.subr.bf16.mxu0 0
        %2252 = vmatpush1.bf16.xpose.msra.mxu0 0
        %2253 = vmatprep.subr.bf16.mxu0 0
        %2254 = vmatpush1.bf16.xpose.msra.mxu0 0
        %2255 = vmatprep.mubr.bf16.mxu0 0
        %2256 = vmatmul.mubr.bf16.gmra.mrb[0].mxu0 %v2164
        %v2257 = vpop.f32.mrb[0].mxu0
        %v2258 = vadd.f32 0.0, %v2257
        %v2259 = vpop.f32.mrb[0].mxu0
        %v2260 = vpop.f32.mrb[0].mxu0
        %v2261 = vadd.f32 0.0, %v2260
        %v2262 = vpop.f32.mrb[0].mxu0
        %2263 = vmatprep.mubr.bf16.mxu0 0
        %2264 = vmatmul.mubr.bf16.gmra.mrb[0].mxu0 %v2167
        %v2265 = vpop.f32.mrb[0].mxu0
        %v2266 = vadd.f32 0.0, %v2265
        %v2267 = vpop.f32.mrb[0].mxu0
        %v2268 = vpop.f32.mrb[0].mxu0
        %v2269 = vadd.f32 0.0, %v2268
        %v2270 = vpop.f32.mrb[0].mxu0
        %2271 = vmatprep.mubr.bf16.mxu0 0
        %2272 = vmatmul.mubr.bf16.gmra.mrb[0].mxu0 %v2170
        %v2273 = vpop.f32.mrb[0].mxu0
        %v2274 = vadd.f32 0.0, %v2273
        %v2275 = vpop.f32.mrb[0].mxu0
        %v2276 = vpop.f32.mrb[0].mxu0
        %v2277 = vadd.f32 0.0, %v2276
        %v2278 = vpop.f32.mrb[0].mxu0
        %2279 = vmatprep.mubr.bf16.mxu0 0
        %2280 = vmatmul.mubr.bf16.gmra.mrb[0].mxu0 %v2173
        %v2281 = vpop.f32.mrb[0].mxu0
        %v2282 = vadd.f32 0.0, %v2281
        %v2283 = vpop.f32.mrb[0].mxu0
        %v2284 = vpop.f32.mrb[0].mxu0
        %v2285 = vadd.f32 0.0, %v2284
        %v2286 = vpop.f32.mrb[0].mxu0
        %2287 = vmatprep.mubr.bf16.mxu0 0
        %2288 = vmatmul.mubr.bf16.gmra.mrb[0].mxu0 %v2176
        %v2289 = vpop.f32.mrb[0].mxu0
        %v2290 = vadd.f32 0.0, %v2289
        %v2291 = vpop.f32.mrb[0].mxu0
        %v2292 = vpop.f32.mrb[0].mxu0
        %v2293 = vadd.f32 0.0, %v2292
        %v2294 = vpop.f32.mrb[0].mxu0
        %2295 = vmatprep.mubr.bf16.mxu0 0
        %2296 = vmatmul.mubr.bf16.gmra.mrb[0].mxu0 %v2179
        %v2297 = vpop.f32.mrb[0].mxu0
        %v2298 = vadd.f32 0.0, %v2297
        %v2299 = vpop.f32.mrb[0].mxu0
        %v2300 = vpop.f32.mrb[0].mxu0
        %v2301 = vadd.f32 0.0, %v2300
        %v2302 = vpop.f32.mrb[0].mxu0
        %2303 = vmatprep.mubr.bf16.mxu0 0
        %2304 = vmatmul.mubr.bf16.gmra.mrb[0].mxu0 %v2182
        %v2305 = vpop.f32.mrb[0].mxu0
        %v2306 = vadd.f32 0.0, %v2305
        %v2307 = vpop.f32.mrb[0].mxu0
        %v2308 = vpop.f32.mrb[0].mxu0
        %v2309 = vadd.f32 0.0, %v2308
        %v2310 = vpop.f32.mrb[0].mxu0
        %2311 = vmatprep.mubr.bf16.mxu0 0
        %2312 = vmatmul.mubr.bf16.gmra.mrb[0].mxu0 %v2185
        %v2313 = vpop.f32.mrb[0].mxu0
        %v2314 = vadd.f32 0.0, %v2313
        %v2315 = vpop.f32.mrb[0].mxu0
        %v2316 = vpop.f32.mrb[0].mxu0
        %v2317 = vadd.f32 0.0, %v2316
        %v2318 = vpop.f32.mrb[0].mxu0
        %2319 = vmatprep.mubr.bf16.mxu0 0
        %2320 = vmatmul.mubr.bf16.gmra.mrb[0].mxu0 %v2188
        %v2321 = vpop.f32.mrb[0].mxu0
        %v2322 = vadd.f32 0.0, %v2321
        %v2323 = vpop.f32.mrb[0].mxu0
        %v2324 = vpop.f32.mrb[0].mxu0
        %v2325 = vadd.f32 0.0, %v2324
        %v2326 = vpop.f32.mrb[0].mxu0
        %2327 = vmatprep.mubr.bf16.mxu0 0
        %2328 = vmatmul.mubr.bf16.gmra.mrb[0].mxu0 %v2191
        %v2329 = vpop.f32.mrb[0].mxu0
        %v2330 = vadd.f32 0.0, %v2329
        %v2331 = vpop.f32.mrb[0].mxu0
        %v2332 = vpop.f32.mrb[0].mxu0
        %v2333 = vadd.f32 0.0, %v2332
        %v2334 = vpop.f32.mrb[0].mxu0
        %2335 = vmatprep.mubr.bf16.mxu0 0
        %2336 = vmatmul.mubr.bf16.gmra.mrb[0].mxu0 %v2194
        %v2337 = vpop.f32.mrb[0].mxu0
        %v2338 = vadd.f32 0.0, %v2337
        %v2339 = vpop.f32.mrb[0].mxu0
        %v2340 = vpop.f32.mrb[0].mxu0
        %v2341 = vadd.f32 0.0, %v2340
        %v2342 = vpop.f32.mrb[0].mxu0
        %2343 = vmatprep.mubr.bf16.mxu0 0
        %2344 = vmatmul.mubr.bf16.gmra.mrb[0].mxu0 %v2197
        %v2345 = vpop.f32.mrb[0].mxu0
        %v2346 = vadd.f32 0.0, %v2345
        %v2347 = vpop.f32.mrb[0].mxu0
        %v2348 = vpop.f32.mrb[0].mxu0
        %v2349 = vadd.f32 0.0, %v2348
        %v2350 = vpop.f32.mrb[0].mxu0
        %2351 = vmatprep.mubr.bf16.mxu0 0
        %2352 = vmatmul.mubr.bf16.gmra.mrb[0].mxu0 %v2200
        %v2353 = vpop.f32.mrb[0].mxu0
        %v2354 = vadd.f32 0.0, %v2353
        %v2355 = vpop.f32.mrb[0].mxu0
        %v2356 = vpop.f32.mrb[0].mxu0
        %v2357 = vadd.f32 0.0, %v2356
        %v2358 = vpop.f32.mrb[0].mxu0
        %2359 = vmatprep.mubr.bf16.mxu0 0
        %2360 = vmatmul.mubr.bf16.gmra.mrb[0].mxu0 %v2203
        %v2361 = vpop.f32.mrb[0].mxu0
        %v2362 = vadd.f32 0.0, %v2361
        %v2363 = vpop.f32.mrb[0].mxu0
        %v2364 = vpop.f32.mrb[0].mxu0
        %v2365 = vadd.f32 0.0, %v2364
        %v2366 = vpop.f32.mrb[0].mxu0
        %2367 = vmatprep.mubr.bf16.mxu0 0
        %2368 = vmatmul.mubr.bf16.gmra.mrb[0].mxu0 %v2206
        %v2369 = vpop.f32.mrb[0].mxu0
        %v2370 = vadd.f32 0.0, %v2369
        %v2371 = vpop.f32.mrb[0].mxu0
        %v2372 = vpop.f32.mrb[0].mxu0
        %v2373 = vadd.f32 0.0, %v2372
        %v2374 = vpop.f32.mrb[0].mxu0
        %2375 = vmatprep.mubr.bf16.mxu0 0
        %2376 = vmatmul.mubr.bf16.gmra.mrb[0].mxu0 %v2209
        %v2377 = vpop.f32.mrb[0].mxu0
        %v2378 = vadd.f32 0.0, %v2377
        %v2379 = vpop.f32.mrb[0].mxu0
        %v2380 = vpop.f32.mrb[0].mxu0
        %v2381 = vadd.f32 0.0, %v2380
        %v2382 = vpop.f32.mrb[0].mxu0
        %2383 = vdwg.mxu0
        %v2384 = vmul.f32 %v2258, 0.25
        %v2385 = vmul.f32 %v2261, 0.25
        %v2386 = vmul.f32 %v2266, 0.25
        %v2387 = vmul.f32 %v2269, 0.25
        %v2388 = vmul.f32 %v2274, 0.25
        %v2389 = vmul.f32 %v2277, 0.25
        %v2390 = vmul.f32 %v2282, 0.25
        %v2391 = vmul.f32 %v2285, 0.25
        %v2392 = vmul.f32 %v2290, 0.25
        %v2393 = vmul.f32 %v2293, 0.25
        %v2394 = vmul.f32 %v2298, 0.25
        %v2395 = vmul.f32 %v2301, 0.25
        %v2396 = vmul.f32 %v2306, 0.25
        %v2397 = vmul.f32 %v2309, 0.25
        %v2398 = vmul.f32 %v2314, 0.25
        %v2399 = vmul.f32 %v2317, 0.25
        %v2400 = vmul.f32 %v2322, 0.25
        %v2401 = vmul.f32 %v2325, 0.25
        %v2402 = vmul.f32 %v2330, 0.25
        %v2403 = vmul.f32 %v2333, 0.25
        %v2404 = vmul.f32 %v2338, 0.25
        %v2405 = vmul.f32 %v2341, 0.25
        %v2406 = vmul.f32 %v2346, 0.25
        %v2407 = vmul.f32 %v2349, 0.25
        %v2408 = vmul.f32 %v2354, 0.25
        %v2409 = vmul.f32 %v2357, 0.25
        %v2410 = vmul.f32 %v2362, 0.25
        %v2411 = vmul.f32 %v2365, 0.25
        %v2412 = vmul.f32 %v2370, 0.25
        %v2413 = vmul.f32 %v2373, 0.25
        %v2414 = vmul.f32 %v2378, 0.25
        %v2415 = vmul.f32 %v2381, 0.25
        %v2416 = vsel %vm655, %v2384, -inf
        %2417 = vmax.xlane.f32.xlu0 %v2416
        %v2418 = vpop.xlane.xlu0 %2417
        %v2419 = vsel %vm655, %v2385, -inf
        %2420 = vmax.xlane.f32.xlu0 %v2419
        %v2421 = vpop.xlane.xlu0 %2420
        %v2422 = vsel %vm655, %v2386, -inf
        %2423 = vmax.xlane.f32.xlu0 %v2422
        %v2424 = vpop.xlane.xlu0 %2423
        %v2425 = vsel %vm655, %v2387, -inf
        %2426 = vmax.xlane.f32.xlu0 %v2425
        %v2427 = vpop.xlane.xlu0 %2426
        %v2428 = vsel %vm655, %v2388, -inf
        %2429 = vmax.xlane.f32.xlu0 %v2428
        %v2430 = vpop.xlane.xlu0 %2429
        %v2431 = vsel %vm655, %v2389, -inf
        %2432 = vmax.xlane.f32.xlu0 %v2431
        %v2433 = vpop.xlane.xlu0 %2432
        %v2434 = vsel %vm655, %v2390, -inf
        %2435 = vmax.xlane.f32.xlu0 %v2434
        %v2436 = vpop.xlane.xlu0 %2435
        %v2437 = vsel %vm655, %v2391, -inf
        %2438 = vmax.xlane.f32.xlu0 %v2437
        %v2439 = vpop.xlane.xlu0 %2438
        %v2440 = vsel %vm655, %v2392, -inf
        %2441 = vmax.xlane.f32.xlu0 %v2440
        %v2442 = vpop.xlane.xlu0 %2441
        %v2443 = vsel %vm655, %v2393, -inf
        %2444 = vmax.xlane.f32.xlu0 %v2443
        %v2445 = vpop.xlane.xlu0 %2444
        %v2446 = vsel %vm655, %v2394, -inf
        %2447 = vmax.xlane.f32.xlu0 %v2446
        %v2448 = vpop.xlane.xlu0 %2447
        %v2449 = vsel %vm655, %v2395, -inf
        %2450 = vmax.xlane.f32.xlu0 %v2449
        %v2451 = vpop.xlane.xlu0 %2450
        %v2452 = vsel %vm655, %v2396, -inf
        %2453 = vmax.xlane.f32.xlu0 %v2452
        %v2454 = vpop.xlane.xlu0 %2453
        %v2455 = vsel %vm655, %v2397, -inf
        %2456 = vmax.xlane.f32.xlu0 %v2455
        %v2457 = vpop.xlane.xlu0 %2456
        %v2458 = vsel %vm655, %v2398, -inf
        %2459 = vmax.xlane.f32.xlu0 %v2458
        %v2460 = vpop.xlane.xlu0 %2459
        %v2461 = vsel %vm655, %v2399, -inf
        %2462 = vmax.xlane.f32.xlu0 %v2461
        %v2463 = vpop.xlane.xlu0 %2462
        %v2464 = vsel %vm655, %v2400, -inf
        %2465 = vmax.xlane.f32.xlu0 %v2464
        %v2466 = vpop.xlane.xlu0 %2465
        %v2467 = vsel %vm655, %v2401, -inf
        %2468 = vmax.xlane.f32.xlu0 %v2467
        %v2469 = vpop.xlane.xlu0 %2468
        %v2470 = vsel %vm655, %v2402, -inf
        %2471 = vmax.xlane.f32.xlu0 %v2470
        %v2472 = vpop.xlane.xlu0 %2471
        %v2473 = vsel %vm655, %v2403, -inf
        %2474 = vmax.xlane.f32.xlu0 %v2473
        %v2475 = vpop.xlane.xlu0 %2474
        %v2476 = vsel %vm655, %v2404, -inf
        %2477 = vmax.xlane.f32.xlu0 %v2476
        %v2478 = vpop.xlane.xlu0 %2477
        %v2479 = vsel %vm655, %v2405, -inf
        %2480 = vmax.xlane.f32.xlu0 %v2479
        %v2481 = vpop.xlane.xlu0 %2480
        %v2482 = vsel %vm655, %v2406, -inf
        %2483 = vmax.xlane.f32.xlu0 %v2482
        %v2484 = vpop.xlane.xlu0 %2483
        %v2485 = vsel %vm655, %v2407, -inf
        %2486 = vmax.xlane.f32.xlu0 %v2485
        %v2487 = vpop.xlane.xlu0 %2486
        %v2488 = vsel %vm655, %v2408, -inf
        %2489 = vmax.xlane.f32.xlu0 %v2488
        %v2490 = vpop.xlane.xlu0 %2489
        %v2491 = vsel %vm655, %v2409, -inf
        %2492 = vmax.xlane.f32.xlu0 %v2491
        %v2493 = vpop.xlane.xlu0 %2492
        %v2494 = vsel %vm655, %v2410, -inf
        %2495 = vmax.xlane.f32.xlu0 %v2494
        %v2496 = vpop.xlane.xlu0 %2495
        %v2497 = vsel %vm655, %v2411, -inf
        %2498 = vmax.xlane.f32.xlu0 %v2497
        %v2499 = vpop.xlane.xlu0 %2498
        %v2500 = vsel %vm655, %v2412, -inf
        %2501 = vmax.xlane.f32.xlu0 %v2500
        %v2502 = vpop.xlane.xlu0 %2501
        %v2503 = vsel %vm655, %v2413, -inf
        %2504 = vmax.xlane.f32.xlu0 %v2503
        %v2505 = vpop.xlane.xlu0 %2504
        %v2506 = vsel %vm655, %v2414, -inf
        %2507 = vmax.xlane.f32.xlu0 %v2506
        %v2508 = vpop.xlane.xlu0 %2507
        %v2509 = vsel %vm655, %v2415, -inf
        %2510 = vmax.xlane.f32.xlu0 %v2509
        %v2511 = vpop.xlane.xlu0 %2510
        %v2512 = vsub.f32 %v2384, %v2418
        %v2513 = vsub.f32 %v2385, %v2421
        %v2514 = vsub.f32 %v2386, %v2424
        %v2515 = vsub.f32 %v2387, %v2427
        %v2516 = vsub.f32 %v2388, %v2430
        %v2517 = vsub.f32 %v2389, %v2433
        %v2518 = vsub.f32 %v2390, %v2436
        %v2519 = vsub.f32 %v2391, %v2439
        %v2520 = vsub.f32 %v2392, %v2442
        %v2521 = vsub.f32 %v2393, %v2445
        %v2522 = vsub.f32 %v2394, %v2448
        %v2523 = vsub.f32 %v2395, %v2451
        %v2524 = vsub.f32 %v2396, %v2454
        %v2525 = vsub.f32 %v2397, %v2457
        %v2526 = vsub.f32 %v2398, %v2460
        %v2527 = vsub.f32 %v2399, %v2463
        %v2528 = vsub.f32 %v2400, %v2466
        %v2529 = vsub.f32 %v2401, %v2469
        %v2530 = vsub.f32 %v2402, %v2472
        %v2531 = vsub.f32 %v2403, %v2475
        %v2532 = vsub.f32 %v2404, %v2478
        %v2533 = vsub.f32 %v2405, %v2481
        %v2534 = vsub.f32 %v2406, %v2484
        %v2535 = vsub.f32 %v2407, %v2487
        %v2536 = vsub.f32 %v2408, %v2490
        %v2537 = vsub.f32 %v2409, %v2493
        %v2538 = vsub.f32 %v2410, %v2496
        %v2539 = vsub.f32 %v2411, %v2499
        %v2540 = vsub.f32 %v2412, %v2502
        %v2541 = vsub.f32 %v2413, %v2505
        %v2542 = vsub.f32 %v2414, %v2508
        %v2543 = vsub.f32 %v2415, %v2511
        %v2544 = vmul.f32 %v2512, 1.442695
        %v2545 = vpow.pop %v2544
        %v2546 = vmul.f32 %v2513, 1.442695
        %v2547 = vpow.pop %v2546
        %v2548 = vmul.f32 %v2514, 1.442695
        %v2549 = vpow.pop %v2548
        %v2550 = vmul.f32 %v2515, 1.442695
        %v2551 = vpow.pop %v2550
        %v2552 = vmul.f32 %v2516, 1.442695
        %v2553 = vpow.pop %v2552
        %v2554 = vmul.f32 %v2517, 1.442695
        %v2555 = vpow.pop %v2554
        %v2556 = vmul.f32 %v2518, 1.442695
        %v2557 = vpow.pop %v2556
        %v2558 = vmul.f32 %v2519, 1.442695
        %v2559 = vpow.pop %v2558
        %v2560 = vmul.f32 %v2520, 1.442695
        %v2561 = vpow.pop %v2560
        %v2562 = vmul.f32 %v2521, 1.442695
        %v2563 = vpow.pop %v2562
        %v2564 = vmul.f32 %v2522, 1.442695
        %v2565 = vpow.pop %v2564
        %v2566 = vmul.f32 %v2523, 1.442695
        %v2567 = vpow.pop %v2566
        %v2568 = vmul.f32 %v2524, 1.442695
        %v2569 = vpow.pop %v2568
        %v2570 = vmul.f32 %v2525, 1.442695
        %v2571 = vpow.pop %v2570
        %v2572 = vmul.f32 %v2526, 1.442695
        %v2573 = vpow.pop %v2572
        %v2574 = vmul.f32 %v2527, 1.442695
        %v2575 = vpow.pop %v2574
        %v2576 = vmul.f32 %v2528, 1.442695
        %v2577 = vpow.pop %v2576
        %v2578 = vmul.f32 %v2529, 1.442695
        %v2579 = vpow.pop %v2578
        %v2580 = vmul.f32 %v2530, 1.442695
        %v2581 = vpow.pop %v2580
        %v2582 = vmul.f32 %v2531, 1.442695
        %v2583 = vpow.pop %v2582
        %v2584 = vmul.f32 %v2532, 1.442695
        %v2585 = vpow.pop %v2584
        %v2586 = vmul.f32 %v2533, 1.442695
        %v2587 = vpow.pop %v2586
        %v2588 = vmul.f32 %v2534, 1.442695
        %v2589 = vpow.pop %v2588
        %v2590 = vmul.f32 %v2535, 1.442695
        %v2591 = vpow.pop %v2590
        %v2592 = vmul.f32 %v2536, 1.442695
        %v2593 = vpow.pop %v2592
        %v2594 = vmul.f32 %v2537, 1.442695
        %v2595 = vpow.pop %v2594
        %v2596 = vmul.f32 %v2538, 1.442695
        %v2597 = vpow.pop %v2596
        %v2598 = vmul.f32 %v2539, 1.442695
        %v2599 = vpow.pop %v2598
        %v2600 = vmul.f32 %v2540, 1.442695
        %v2601 = vpow.pop %v2600
        %v2602 = vmul.f32 %v2541, 1.442695
        %v2603 = vpow.pop %v2602
        %v2604 = vmul.f32 %v2542, 1.442695
        %v2605 = vpow.pop %v2604
        %v2606 = vmul.f32 %v2543, 1.442695
        %v2607 = vpow.pop %v2606
        %v2608 = vsel %vm655, %v2545, 0.0
        %2609 = vadd.xlane.f32.xlu0 %v2608
        %v2610 = vpop.xlane.xlu0 %2609
        %v2611 = vsel %vm655, %v2547, 0.0
        %2612 = vadd.xlane.f32.xlu0 %v2611
        %v2613 = vpop.xlane.xlu0 %2612
        %v2614 = vsel %vm655, %v2549, 0.0
        %2615 = vadd.xlane.f32.xlu0 %v2614
        %v2616 = vpop.xlane.xlu0 %2615
        %v2617 = vsel %vm655, %v2551, 0.0
        %2618 = vadd.xlane.f32.xlu0 %v2617
        %v2619 = vpop.xlane.xlu0 %2618
        %v2620 = vsel %vm655, %v2553, 0.0
        %2621 = vadd.xlane.f32.xlu0 %v2620
        %v2622 = vpop.xlane.xlu0 %2621
        %v2623 = vsel %vm655, %v2555, 0.0
        %2624 = vadd.xlane.f32.xlu0 %v2623
        %v2625 = vpop.xlane.xlu0 %2624
        %v2626 = vsel %vm655, %v2557, 0.0
        %2627 = vadd.xlane.f32.xlu0 %v2626
        %v2628 = vpop.xlane.xlu0 %2627
        %v2629 = vsel %vm655, %v2559, 0.0
        %2630 = vadd.xlane.f32.xlu0 %v2629
        %v2631 = vpop.xlane.xlu0 %2630
        %v2632 = vsel %vm655, %v2561, 0.0
        %2633 = vadd.xlane.f32.xlu0 %v2632
        %v2634 = vpop.xlane.xlu0 %2633
        %v2635 = vsel %vm655, %v2563, 0.0
        %2636 = vadd.xlane.f32.xlu0 %v2635
        %v2637 = vpop.xlane.xlu0 %2636
        %v2638 = vsel %vm655, %v2565, 0.0
        %2639 = vadd.xlane.f32.xlu0 %v2638
        %v2640 = vpop.xlane.xlu0 %2639
        %v2641 = vsel %vm655, %v2567, 0.0
        %2642 = vadd.xlane.f32.xlu0 %v2641
        %v2643 = vpop.xlane.xlu0 %2642
        %v2644 = vsel %vm655, %v2569, 0.0
        %2645 = vadd.xlane.f32.xlu0 %v2644
        %v2646 = vpop.xlane.xlu0 %2645
        %v2647 = vsel %vm655, %v2571, 0.0
        %2648 = vadd.xlane.f32.xlu0 %v2647
        %v2649 = vpop.xlane.xlu0 %2648
        %v2650 = vsel %vm655, %v2573, 0.0
        %2651 = vadd.xlane.f32.xlu0 %v2650
        %v2652 = vpop.xlane.xlu0 %2651
        %v2653 = vsel %vm655, %v2575, 0.0
        %2654 = vadd.xlane.f32.xlu0 %v2653
        %v2655 = vpop.xlane.xlu0 %2654
        %v2656 = vsel %vm655, %v2577, 0.0
        %2657 = vadd.xlane.f32.xlu0 %v2656
        %v2658 = vpop.xlane.xlu0 %2657
        %v2659 = vsel %vm655, %v2579, 0.0
        %2660 = vadd.xlane.f32.xlu0 %v2659
        %v2661 = vpop.xlane.xlu0 %2660
        %v2662 = vsel %vm655, %v2581, 0.0
        %2663 = vadd.xlane.f32.xlu0 %v2662
        %v2664 = vpop.xlane.xlu0 %2663
        %v2665 = vsel %vm655, %v2583, 0.0
        %2666 = vadd.xlane.f32.xlu0 %v2665
        %v2667 = vpop.xlane.xlu0 %2666
        %v2668 = vsel %vm655, %v2585, 0.0
        %2669 = vadd.xlane.f32.xlu0 %v2668
        %v2670 = vpop.xlane.xlu0 %2669
        %v2671 = vsel %vm655, %v2587, 0.0
        %2672 = vadd.xlane.f32.xlu0 %v2671
        %v2673 = vpop.xlane.xlu0 %2672
        %v2674 = vsel %vm655, %v2589, 0.0
        %2675 = vadd.xlane.f32.xlu0 %v2674
        %v2676 = vpop.xlane.xlu0 %2675
        %v2677 = vsel %vm655, %v2591, 0.0
        %2678 = vadd.xlane.f32.xlu0 %v2677
        %v2679 = vpop.xlane.xlu0 %2678
        %v2680 = vsel %vm655, %v2593, 0.0
        %2681 = vadd.xlane.f32.xlu0 %v2680
        %v2682 = vpop.xlane.xlu0 %2681
        %v2683 = vsel %vm655, %v2595, 0.0
        %2684 = vadd.xlane.f32.xlu0 %v2683
        %v2685 = vpop.xlane.xlu0 %2684
        %v2686 = vsel %vm655, %v2597, 0.0
        %2687 = vadd.xlane.f32.xlu0 %v2686
        %v2688 = vpop.xlane.xlu0 %2687
        %v2689 = vsel %vm655, %v2599, 0.0
        %2690 = vadd.xlane.f32.xlu0 %v2689
        %v2691 = vpop.xlane.xlu0 %2690
        %v2692 = vsel %vm655, %v2601, 0.0
        %2693 = vadd.xlane.f32.xlu0 %v2692
        %v2694 = vpop.xlane.xlu0 %2693
        %v2695 = vsel %vm655, %v2603, 0.0
        %2696 = vadd.xlane.f32.xlu0 %v2695
        %v2697 = vpop.xlane.xlu0 %2696
        %v2698 = vsel %vm655, %v2605, 0.0
        %2699 = vadd.xlane.f32.xlu0 %v2698
        %v2700 = vpop.xlane.xlu0 %2699
        %v2701 = vsel %vm655, %v2607, 0.0
        %2702 = vadd.xlane.f32.xlu0 %v2701
        %v2703 = vpop.xlane.xlu0 %2702
        %v2704 = vrcp.pop %v2610
        %v2705 = vrcp.pop %v2613
        %v2706 = vrcp.pop %v2616
        %v2707 = vrcp.pop %v2619
        %v2708 = vrcp.pop %v2622
        %v2709 = vrcp.pop %v2625
        %v2710 = vrcp.pop %v2628
        %v2711 = vrcp.pop %v2631
        %v2712 = vrcp.pop %v2634
        %v2713 = vrcp.pop %v2637
        %v2714 = vrcp.pop %v2640
        %v2715 = vrcp.pop %v2643
        %v2716 = vrcp.pop %v2646
        %v2717 = vrcp.pop %v2649
        %v2718 = vrcp.pop %v2652
        %v2719 = vrcp.pop %v2655
        %v2720 = vrcp.pop %v2658
        %v2721 = vrcp.pop %v2661
        %v2722 = vrcp.pop %v2664
        %v2723 = vrcp.pop %v2667
        %v2724 = vrcp.pop %v2670
        %v2725 = vrcp.pop %v2673
        %v2726 = vrcp.pop %v2676
        %v2727 = vrcp.pop %v2679
        %v2728 = vrcp.pop %v2682
        %v2729 = vrcp.pop %v2685
        %v2730 = vrcp.pop %v2688
        %v2731 = vrcp.pop %v2691
        %v2732 = vrcp.pop %v2694
        %v2733 = vrcp.pop %v2697
        %v2734 = vrcp.pop %v2700
        %v2735 = vrcp.pop %v2703
        %v2736 = vmul.f32 %v2545, %v2704
        %v2737 = vmul.f32 %v2547, %v2705
        %v2738 = vmul.f32 %v2549, %v2706
        %v2739 = vmul.f32 %v2551, %v2707
        %v2740 = vmul.f32 %v2553, %v2708
        %v2741 = vmul.f32 %v2555, %v2709
        %v2742 = vmul.f32 %v2557, %v2710
        %v2743 = vmul.f32 %v2559, %v2711
        %v2744 = vmul.f32 %v2561, %v2712
        %v2745 = vmul.f32 %v2563, %v2713
        %v2746 = vmul.f32 %v2565, %v2714
        %v2747 = vmul.f32 %v2567, %v2715
        %v2748 = vmul.f32 %v2569, %v2716
        %v2749 = vmul.f32 %v2571, %v2717
        %v2750 = vmul.f32 %v2573, %v2718
        %v2751 = vmul.f32 %v2575, %v2719
        %v2752 = vmul.f32 %v2577, %v2720
        %v2753 = vmul.f32 %v2579, %v2721
        %v2754 = vmul.f32 %v2581, %v2722
        %v2755 = vmul.f32 %v2583, %v2723
        %v2756 = vmul.f32 %v2585, %v2724
        %v2757 = vmul.f32 %v2587, %v2725
        %v2758 = vmul.f32 %v2589, %v2726
        %v2759 = vmul.f32 %v2591, %v2727
        %v2760 = vmul.f32 %v2593, %v2728
        %v2761 = vmul.f32 %v2595, %v2729
        %v2762 = vmul.f32 %v2597, %v2730
        %v2763 = vmul.f32 %v2599, %v2731
        %v2764 = vmul.f32 %v2601, %v2732
        %v2765 = vmul.f32 %v2603, %v2733
        %v2766 = vmul.f32 %v2605, %v2734
        %v2767 = vmul.f32 %v2607, %v2735
        %v2768 = vpack.c.bf16 %v2737, %v2736
        %v2769 = vpack.c.bf16 %v2739, %v2738
        %v2770 = vpack.c.bf16 %v2741, %v2740
        %v2771 = vpack.c.bf16 %v2743, %v2742
        %v2772 = vpack.c.bf16 %v2745, %v2744
        %v2773 = vpack.c.bf16 %v2747, %v2746
        %v2774 = vpack.c.bf16 %v2749, %v2748
        %v2775 = vpack.c.bf16 %v2751, %v2750
        %v2776 = vpack.c.bf16 %v2753, %v2752
        %v2777 = vpack.c.bf16 %v2755, %v2754
        %v2778 = vpack.c.bf16 %v2757, %v2756
        %v2779 = vpack.c.bf16 %v2759, %v2758
        %v2780 = vpack.c.bf16 %v2761, %v2760
        %v2781 = vpack.c.bf16 %v2763, %v2762
        %v2782 = vpack.c.bf16 %v2765, %v2764
        %v2783 = vpack.c.bf16 %v2767, %v2766
        %v2789 = vsel %vm655, %v2768, 0
        %v2792 = vsel %vm655, %v2769, 0
        %v2795 = vsel %vm655, %v2770, 0
        %v2798 = vsel %vm655, %v2771, 0
        %v2801 = vsel %vm655, %v2772, 0
        %v2804 = vsel %vm655, %v2773, 0
        %v2807 = vsel %vm655, %v2774, 0
        %v2810 = vsel %vm655, %v2775, 0
        %v2813 = vsel %vm655, %v2776, 0
        %v2816 = vsel %vm655, %v2777, 0
        %v2819 = vsel %vm655, %v2778, 0
        %v2822 = vsel %vm655, %v2779, 0
        %v2825 = vsel %vm655, %v2780, 0
        %v2828 = vsel %vm655, %v2781, 0
        %v2831 = vsel %vm655, %v2782, 0
        %v2834 = vsel %vm655, %v2783, 0
        %2836 = vmatprep.subr.bf16.mxu0 0
        %2837 = vmatpush1.bf16.msra.mxu0 %v2151
        %2838 = vmatprep.subr.bf16.mxu0 0
        %2839 = vmatpush1.bf16.msra.mxu0 %v2152
        %2840 = vmatprep.subr.bf16.mxu0 0
        %2841 = vmatpush1.bf16.msra.mxu0 %v2153
        %2842 = vmatprep.subr.bf16.mxu0 0
        %2843 = vmatpush1.bf16.msra.mxu0 %v2154
        %2844 = vmatprep.subr.bf16.mxu0 0
        %2845 = vmatpush1.bf16.msra.mxu0 0
        %2846 = vmatprep.subr.bf16.mxu0 0
        %2847 = vmatpush1.bf16.msra.mxu0 0
        %2848 = vmatprep.subr.bf16.mxu0 0
        %2849 = vmatpush1.bf16.msra.mxu0 0
        %2850 = vmatprep.subr.bf16.mxu0 0
        %2851 = vmatpush1.bf16.msra.mxu0 0
        %2852 = vmatprep.subr.bf16.mxu0 0
        %2853 = vmatpush1.bf16.msra.mxu0 0
        %2854 = vmatprep.subr.bf16.mxu0 0
        %2855 = vmatpush1.bf16.msra.mxu0 0
        %2856 = vmatprep.subr.bf16.mxu0 0
        %2857 = vmatpush1.bf16.msra.mxu0 0
        %2858 = vmatprep.subr.bf16.mxu0 0
        %2859 = vmatpush1.bf16.msra.mxu0 0
        %2860 = vmatprep.subr.bf16.mxu0 0
        %2861 = vmatpush1.bf16.msra.mxu0 0
        %2862 = vmatprep.subr.bf16.mxu0 0
        %2863 = vmatpush1.bf16.msra.mxu0 0
        %2864 = vmatprep.subr.bf16.mxu0 0
        %2865 = vmatpush1.bf16.msra.mxu0 0
        %2866 = vmatprep.subr.bf16.mxu0 0
        %2867 = vmatpush1.bf16.msra.mxu0 0
        %2868 = vmatprep.mubr.bf16.mxu0 0
        %2869 = vmatmul.mubr.bf16.gmra.mrb[0].mxu0 %v2789
        %v2870 = vpop.f32.mrb[0].mxu0
        %v2871 = vadd.f32 0.0, %v2870
        %v2872 = vpop.f32.mrb[0].mxu0
        %v2873 = vpop.f32.mrb[0].mxu0
        %v2874 = vadd.f32 0.0, %v2873
        %v2875 = vpop.f32.mrb[0].mxu0
        %2876 = vmatprep.mubr.bf16.mxu0 0
        %2877 = vmatmul.mubr.bf16.gmra.mrb[0].mxu0 %v2792
        %v2878 = vpop.f32.mrb[0].mxu0
        %v2879 = vadd.f32 0.0, %v2878
        %v2880 = vpop.f32.mrb[0].mxu0
        %v2881 = vpop.f32.mrb[0].mxu0
        %v2882 = vadd.f32 0.0, %v2881
        %v2883 = vpop.f32.mrb[0].mxu0
        %2884 = vmatprep.mubr.bf16.mxu0 0
        %2885 = vmatmul.mubr.bf16.gmra.mrb[0].mxu0 %v2795
        %v2886 = vpop.f32.mrb[0].mxu0
        %v2887 = vadd.f32 0.0, %v2886
        %v2888 = vpop.f32.mrb[0].mxu0
        %v2889 = vpop.f32.mrb[0].mxu0
        %v2890 = vadd.f32 0.0, %v2889
        %v2891 = vpop.f32.mrb[0].mxu0
        %2892 = vmatprep.mubr.bf16.mxu0 0
        %2893 = vmatmul.mubr.bf16.gmra.mrb[0].mxu0 %v2798
        %v2894 = vpop.f32.mrb[0].mxu0
        %v2895 = vadd.f32 0.0, %v2894
        %v2896 = vpop.f32.mrb[0].mxu0
        %v2897 = vpop.f32.mrb[0].mxu0
        %v2898 = vadd.f32 0.0, %v2897
        %v2899 = vpop.f32.mrb[0].mxu0
        %2900 = vmatprep.mubr.bf16.mxu0 0
        %2901 = vmatmul.mubr.bf16.gmra.mrb[0].mxu0 %v2801
        %v2902 = vpop.f32.mrb[0].mxu0
        %v2903 = vadd.f32 0.0, %v2902
        %v2904 = vpop.f32.mrb[0].mxu0
        %v2905 = vpop.f32.mrb[0].mxu0
        %v2906 = vadd.f32 0.0, %v2905
        %v2907 = vpop.f32.mrb[0].mxu0
        %2908 = vmatprep.mubr.bf16.mxu0 0
        %2909 = vmatmul.mubr.bf16.gmra.mrb[0].mxu0 %v2804
        %v2910 = vpop.f32.mrb[0].mxu0
        %v2911 = vadd.f32 0.0, %v2910
        %v2912 = vpop.f32.mrb[0].mxu0
        %v2913 = vpop.f32.mrb[0].mxu0
        %v2914 = vadd.f32 0.0, %v2913
        %v2915 = vpop.f32.mrb[0].mxu0
        %2916 = vmatprep.mubr.bf16.mxu0 0
        %2917 = vmatmul.mubr.bf16.gmra.mrb[0].mxu0 %v2807
        %v2918 = vpop.f32.mrb[0].mxu0
        %v2919 = vadd.f32 0.0, %v2918
        %v2920 = vpop.f32.mrb[0].mxu0
        %v2921 = vpop.f32.mrb[0].mxu0
        %v2922 = vadd.f32 0.0, %v2921
        %v2923 = vpop.f32.mrb[0].mxu0
        %2924 = vmatprep.mubr.bf16.mxu0 0
        %2925 = vmatmul.mubr.bf16.gmra.mrb[0].mxu0 %v2810
        %v2926 = vpop.f32.mrb[0].mxu0
        %v2927 = vadd.f32 0.0, %v2926
        %v2928 = vpop.f32.mrb[0].mxu0
        %v2929 = vpop.f32.mrb[0].mxu0
        %v2930 = vadd.f32 0.0, %v2929
        %v2931 = vpop.f32.mrb[0].mxu0
        %2932 = vmatprep.mubr.bf16.mxu0 0
        %2933 = vmatmul.mubr.bf16.gmra.mrb[0].mxu0 %v2813
        %v2934 = vpop.f32.mrb[0].mxu0
        %v2935 = vadd.f32 0.0, %v2934
        %v2936 = vpop.f32.mrb[0].mxu0
        %v2937 = vpop.f32.mrb[0].mxu0
        %v2938 = vadd.f32 0.0, %v2937
        %v2939 = vpop.f32.mrb[0].mxu0
        %2940 = vmatprep.mubr.bf16.mxu0 0
        %2941 = vmatmul.mubr.bf16.gmra.mrb[0].mxu0 %v2816
        %v2942 = vpop.f32.mrb[0].mxu0
        %v2943 = vadd.f32 0.0, %v2942
        %v2944 = vpop.f32.mrb[0].mxu0
        %v2945 = vpop.f32.mrb[0].mxu0
        %v2946 = vadd.f32 0.0, %v2945
        %v2947 = vpop.f32.mrb[0].mxu0
        %2948 = vmatprep.mubr.bf16.mxu0 0
        %2949 = vmatmul.mubr.bf16.gmra.mrb[0].mxu0 %v2819
        %v2950 = vpop.f32.mrb[0].mxu0
        %v2951 = vadd.f32 0.0, %v2950
        %v2952 = vpop.f32.mrb[0].mxu0
        %v2953 = vpop.f32.mrb[0].mxu0
        %v2954 = vadd.f32 0.0, %v2953
        %v2955 = vpop.f32.mrb[0].mxu0
        %2956 = vmatprep.mubr.bf16.mxu0 0
        %2957 = vmatmul.mubr.bf16.gmra.mrb[0].mxu0 %v2822
        %v2958 = vpop.f32.mrb[0].mxu0
        %v2959 = vadd.f32 0.0, %v2958
        %v2960 = vpop.f32.mrb[0].mxu0
        %v2961 = vpop.f32.mrb[0].mxu0
        %v2962 = vadd.f32 0.0, %v2961
        %v2963 = vpop.f32.mrb[0].mxu0
        %2964 = vmatprep.mubr.bf16.mxu0 0
        %2965 = vmatmul.mubr.bf16.gmra.mrb[0].mxu0 %v2825
        %v2966 = vpop.f32.mrb[0].mxu0
        %v2967 = vadd.f32 0.0, %v2966
        %v2968 = vpop.f32.mrb[0].mxu0
        %v2969 = vpop.f32.mrb[0].mxu0
        %v2970 = vadd.f32 0.0, %v2969
        %v2971 = vpop.f32.mrb[0].mxu0
        %2972 = vmatprep.mubr.bf16.mxu0 0
        %2973 = vmatmul.mubr.bf16.gmra.mrb[0].mxu0 %v2828
        %v2974 = vpop.f32.mrb[0].mxu0
        %v2975 = vadd.f32 0.0, %v2974
        %v2976 = vpop.f32.mrb[0].mxu0
        %v2977 = vpop.f32.mrb[0].mxu0
        %v2978 = vadd.f32 0.0, %v2977
        %v2979 = vpop.f32.mrb[0].mxu0
        %2980 = vmatprep.mubr.bf16.mxu0 0
        %2981 = vmatmul.mubr.bf16.gmra.mrb[0].mxu0 %v2831
        %v2982 = vpop.f32.mrb[0].mxu0
        %v2983 = vadd.f32 0.0, %v2982
        %v2984 = vpop.f32.mrb[0].mxu0
        %v2985 = vpop.f32.mrb[0].mxu0
        %v2986 = vadd.f32 0.0, %v2985
        %v2987 = vpop.f32.mrb[0].mxu0
        %2988 = vmatprep.mubr.bf16.mxu0 0
        %2989 = vmatmul.mubr.bf16.gmra.mrb[0].mxu0 %v2834
        %v2990 = vpop.f32.mrb[0].mxu0
        %v2991 = vadd.f32 0.0, %v2990
        %v2992 = vpop.f32.mrb[0].mxu0
        %v2993 = vpop.f32.mrb[0].mxu0
        %v2994 = vadd.f32 0.0, %v2993
        %v2995 = vpop.f32.mrb[0].mxu0
        %2996 = vdwg.mxu0
        %v2997 = vadd.f32 %v2001, %v2871
        %v2998 = vadd.f32 %v2004, %v2874
        %v2999 = vadd.f32 %v2009, %v2879
        %v3000 = vadd.f32 %v2012, %v2882
        %v3001 = vadd.f32 %v2017, %v2887
        %v3002 = vadd.f32 %v2020, %v2890
        %v3003 = vadd.f32 %v2025, %v2895
        %v3004 = vadd.f32 %v2028, %v2898
        %v3005 = vadd.f32 %v2033, %v2903
        %v3006 = vadd.f32 %v2036, %v2906
        %v3007 = vadd.f32 %v2041, %v2911
        %v3008 = vadd.f32 %v2044, %v2914
        %v3009 = vadd.f32 %v2049, %v2919
        %v3010 = vadd.f32 %v2052, %v2922
        %v3011 = vadd.f32 %v2057, %v2927
        %v3012 = vadd.f32 %v2060, %v2930
        %v3013 = vadd.f32 %v2065, %v2935
        %v3014 = vadd.f32 %v2068, %v2938
        %v3015 = vadd.f32 %v2073, %v2943
        %v3016 = vadd.f32 %v2076, %v2946
        %v3017 = vadd.f32 %v2081, %v2951
        %v3018 = vadd.f32 %v2084, %v2954
        %v3019 = vadd.f32 %v2089, %v2959
        %v3020 = vadd.f32 %v2092, %v2962
        %v3021 = vadd.f32 %v2097, %v2967
        %v3022 = vadd.f32 %v2100, %v2970
        %v3023 = vadd.f32 %v2105, %v2975
        %v3024 = vadd.f32 %v2108, %v2978
        %v3025 = vadd.f32 %v2113, %v2983
        %v3026 = vadd.f32 %v2116, %v2986
        %v3027 = vadd.f32 %v2121, %v2991
        %v3028 = vadd.f32 %v2124, %v2994
        %3029 = vrot.lane.b32.xlu0 %v325, 112
        %v3030 = vpop.permute.xlu0 %3029
        %3031 = vrot.lane.b32.xlu0 %v326, 112
        %v3032 = vpop.permute.xlu0 %3031
        %3033 = vrot.lane.b32.xlu0 %v327, 112
        %v3034 = vpop.permute.xlu0 %3033
        %3035 = vrot.lane.b32.xlu0 %v328, 112
        %v3036 = vpop.permute.xlu0 %3035
        %3037 = vrot.lane.b32.xlu0 %v329, 112
        %v3038 = vpop.permute.xlu0 %3037
        %3039 = vrot.lane.b32.xlu0 %v330, 112
        %v3040 = vpop.permute.xlu0 %3039
        %3041 = vrot.lane.b32.xlu0 %v331, 112
        %v3042 = vpop.permute.xlu0 %3041
        %3043 = vrot.lane.b32.xlu0 %v332, 112
        %v3044 = vpop.permute.xlu0 %3043
        %3045 = vrot.lane.b32.xlu0 %v333, 112
        %v3046 = vpop.permute.xlu0 %3045
        %3047 = vrot.lane.b32.xlu0 %v334, 112
        %v3048 = vpop.permute.xlu0 %3047
        %3049 = vrot.lane.b32.xlu0 %v335, 112
        %v3050 = vpop.permute.xlu0 %3049
        %3051 = vrot.lane.b32.xlu0 %v336, 112
        %v3052 = vpop.permute.xlu0 %3051
        %3053 = vrot.lane.b32.xlu0 %v337, 112
        %v3054 = vpop.permute.xlu0 %3053
        %3055 = vrot.lane.b32.xlu0 %v338, 112
        %v3056 = vpop.permute.xlu0 %3055
        %3057 = vrot.lane.b32.xlu0 %v339, 112
        %v3058 = vpop.permute.xlu0 %3057
        %3059 = vrot.lane.b32.xlu0 %v340, 112
        %v3060 = vpop.permute.xlu0 %3059
        %3061 = vrot.lane.b32.xlu0 %v2151, 48
        %v3062 = vpop.permute.xlu0 %3061
        %3063 = vrot.lane.b32.xlu0 %v2152, 48
        %v3064 = vpop.permute.xlu0 %3063
        %3065 = vrot.lane.b32.xlu0 %v2153, 48
        %v3066 = vpop.permute.xlu0 %3065
        %3067 = vrot.lane.b32.xlu0 %v2154, 48
        %v3068 = vpop.permute.xlu0 %3067
        %v3070 = vsel %vm401, %v3030, 0
        %v3073 = vsel %vm401, %v3032, 0
        %v3076 = vsel %vm401, %v3034, 0
        %v3079 = vsel %vm401, %v3036, 0
        %v3082 = vsel %vm401, %v3038, 0
        %v3085 = vsel %vm401, %v3040, 0
        %v3088 = vsel %vm401, %v3042, 0
        %v3091 = vsel %vm401, %v3044, 0
        %v3094 = vsel %vm401, %v3046, 0
        %v3097 = vsel %vm401, %v3048, 0
        %v3100 = vsel %vm401, %v3050, 0
        %v3103 = vsel %vm401, %v3052, 0
        %v3106 = vsel %vm401, %v3054, 0
        %v3109 = vsel %vm401, %v3056, 0
        %v3112 = vsel %vm401, %v3058, 0
        %v3115 = vsel %vm401, %v3060, 0
        %v3118 = vsel %vm401, %v3062, 0
        %v3121 = vsel %vm401, %v3064, 0
        %v3124 = vsel %vm401, %v3066, 0
        %v3127 = vsel %vm401, %v3068, 0
        %3129 = vmatprep.subr.bf16.mxu0 0
        %3130 = vmatpush1.bf16.xpose.msra.mxu0 %v3118
        %3131 = vmatprep.subr.bf16.mxu0 0
        %3132 = vmatpush1.bf16.xpose.msra.mxu0 %v3121
        %3133 = vmatprep.subr.bf16.mxu0 0
        %3134 = vmatpush1.bf16.xpose.msra.mxu0 %v3124
        %3135 = vmatprep.subr.bf16.mxu0 0
        %3136 = vmatpush1.bf16.xpose.msra.mxu0 %v3127
        %3137 = vmatprep.subr.bf16.mxu0 0
        %3138 = vmatpush1.bf16.xpose.msra.mxu0 0
        %3139 = vmatprep.subr.bf16.mxu0 0
        %3140 = vmatpush1.bf16.xpose.msra.mxu0 0
        %3141 = vmatprep.subr.bf16.mxu0 0
        %3142 = vmatpush1.bf16.xpose.msra.mxu0 0
        %3143 = vmatprep.subr.bf16.mxu0 0
        %3144 = vmatpush1.bf16.xpose.msra.mxu0 0
        %3145 = vmatprep.subr.bf16.mxu0 0
        %3146 = vmatpush1.bf16.xpose.msra.mxu0 0
        %3147 = vmatprep.subr.bf16.mxu0 0
        %3148 = vmatpush1.bf16.xpose.msra.mxu0 0
        %3149 = vmatprep.subr.bf16.mxu0 0
        %3150 = vmatpush1.bf16.xpose.msra.mxu0 0
        %3151 = vmatprep.subr.bf16.mxu0 0
        %3152 = vmatpush1.bf16.xpose.msra.mxu0 0
        %3153 = vmatprep.subr.bf16.mxu0 0
        %3154 = vmatpush1.bf16.xpose.msra.mxu0 0
        %3155 = vmatprep.subr.bf16.mxu0 0
        %3156 = vmatpush1.bf16.xpose.msra.mxu0 0
        %3157 = vmatprep.subr.bf16.mxu0 0
        %3158 = vmatpush1.bf16.xpose.msra.mxu0 0
        %3159 = vmatprep.subr.bf16.mxu0 0
        %3160 = vmatpush1.bf16.xpose.msra.mxu0 0
        %3161 = vmatprep.mubr.bf16.mxu0 0
        %3162 = vmatmul.mubr.bf16.gmra.mrb[0].mxu0 %v3070
        %v3163 = vpop.f32.mrb[0].mxu0
        %v3164 = vadd.f32 0.0, %v3163
        %v3165 = vpop.f32.mrb[0].mxu0
        %v3166 = vpop.f32.mrb[0].mxu0
        %v3167 = vadd.f32 0.0, %v3166
        %v3168 = vpop.f32.mrb[0].mxu0
        %3169 = vmatprep.mubr.bf16.mxu0 0
        %3170 = vmatmul.mubr.bf16.gmra.mrb[0].mxu0 %v3073
        %v3171 = vpop.f32.mrb[0].mxu0
        %v3172 = vadd.f32 0.0, %v3171
        %v3173 = vpop.f32.mrb[0].mxu0
        %v3174 = vpop.f32.mrb[0].mxu0
        %v3175 = vadd.f32 0.0, %v3174
        %v3176 = vpop.f32.mrb[0].mxu0
        %3177 = vmatprep.mubr.bf16.mxu0 0
        %3178 = vmatmul.mubr.bf16.gmra.mrb[0].mxu0 %v3076
        %v3179 = vpop.f32.mrb[0].mxu0
        %v3180 = vadd.f32 0.0, %v3179
        %v3181 = vpop.f32.mrb[0].mxu0
        %v3182 = vpop.f32.mrb[0].mxu0
        %v3183 = vadd.f32 0.0, %v3182
        %v3184 = vpop.f32.mrb[0].mxu0
        %3185 = vmatprep.mubr.bf16.mxu0 0
        %3186 = vmatmul.mubr.bf16.gmra.mrb[0].mxu0 %v3079
        %v3187 = vpop.f32.mrb[0].mxu0
        %v3188 = vadd.f32 0.0, %v3187
        %v3189 = vpop.f32.mrb[0].mxu0
        %v3190 = vpop.f32.mrb[0].mxu0
        %v3191 = vadd.f32 0.0, %v3190
        %v3192 = vpop.f32.mrb[0].mxu0
        %3193 = vmatprep.mubr.bf16.mxu0 0
        %3194 = vmatmul.mubr.bf16.gmra.mrb[0].mxu0 %v3082
        %v3195 = vpop.f32.mrb[0].mxu0
        %v3196 = vadd.f32 0.0, %v3195
        %v3197 = vpop.f32.mrb[0].mxu0
        %v3198 = vpop.f32.mrb[0].mxu0
        %v3199 = vadd.f32 0.0, %v3198
        %v3200 = vpop.f32.mrb[0].mxu0
        %3201 = vmatprep.mubr.bf16.mxu0 0
        %3202 = vmatmul.mubr.bf16.gmra.mrb[0].mxu0 %v3085
        %v3203 = vpop.f32.mrb[0].mxu0
        %v3204 = vadd.f32 0.0, %v3203
        %v3205 = vpop.f32.mrb[0].mxu0
        %v3206 = vpop.f32.mrb[0].mxu0
        %v3207 = vadd.f32 0.0, %v3206
        %v3208 = vpop.f32.mrb[0].mxu0
        %3209 = vmatprep.mubr.bf16.mxu0 0
        %3210 = vmatmul.mubr.bf16.gmra.mrb[0].mxu0 %v3088
        %v3211 = vpop.f32.mrb[0].mxu0
        %v3212 = vadd.f32 0.0, %v3211
        %v3213 = vpop.f32.mrb[0].mxu0
        %v3214 = vpop.f32.mrb[0].mxu0
        %v3215 = vadd.f32 0.0, %v3214
        %v3216 = vpop.f32.mrb[0].mxu0
        %3217 = vmatprep.mubr.bf16.mxu0 0
        %3218 = vmatmul.mubr.bf16.gmra.mrb[0].mxu0 %v3091
        %v3219 = vpop.f32.mrb[0].mxu0
        %v3220 = vadd.f32 0.0, %v3219
        %v3221 = vpop.f32.mrb[0].mxu0
        %v3222 = vpop.f32.mrb[0].mxu0
        %v3223 = vadd.f32 0.0, %v3222
        %v3224 = vpop.f32.mrb[0].mxu0
        %3225 = vmatprep.mubr.bf16.mxu0 0
        %3226 = vmatmul.mubr.bf16.gmra.mrb[0].mxu0 %v3094
        %v3227 = vpop.f32.mrb[0].mxu0
        %v3228 = vadd.f32 0.0, %v3227
        %v3229 = vpop.f32.mrb[0].mxu0
        %v3230 = vpop.f32.mrb[0].mxu0
        %v3231 = vadd.f32 0.0, %v3230
        %v3232 = vpop.f32.mrb[0].mxu0
        %3233 = vmatprep.mubr.bf16.mxu0 0
        %3234 = vmatmul.mubr.bf16.gmra.mrb[0].mxu0 %v3097
        %v3235 = vpop.f32.mrb[0].mxu0
        %v3236 = vadd.f32 0.0, %v3235
        %v3237 = vpop.f32.mrb[0].mxu0
        %v3238 = vpop.f32.mrb[0].mxu0
        %v3239 = vadd.f32 0.0, %v3238
        %v3240 = vpop.f32.mrb[0].mxu0
        %3241 = vmatprep.mubr.bf16.mxu0 0
        %3242 = vmatmul.mubr.bf16.gmra.mrb[0].mxu0 %v3100
        %v3243 = vpop.f32.mrb[0].mxu0
        %v3244 = vadd.f32 0.0, %v3243
        %v3245 = vpop.f32.mrb[0].mxu0
        %v3246 = vpop.f32.mrb[0].mxu0
        %v3247 = vadd.f32 0.0, %v3246
        %v3248 = vpop.f32.mrb[0].mxu0
        %3249 = vmatprep.mubr.bf16.mxu0 0
        %3250 = vmatmul.mubr.bf16.gmra.mrb[0].mxu0 %v3103
        %v3251 = vpop.f32.mrb[0].mxu0
        %v3252 = vadd.f32 0.0, %v3251
        %v3253 = vpop.f32.mrb[0].mxu0
        %v3254 = vpop.f32.mrb[0].mxu0
        %v3255 = vadd.f32 0.0, %v3254
        %v3256 = vpop.f32.mrb[0].mxu0
        %3257 = vmatprep.mubr.bf16.mxu0 0
        %3258 = vmatmul.mubr.bf16.gmra.mrb[0].mxu0 %v3106
        %v3259 = vpop.f32.mrb[0].mxu0
        %v3260 = vadd.f32 0.0, %v3259
        %v3261 = vpop.f32.mrb[0].mxu0
        %v3262 = vpop.f32.mrb[0].mxu0
        %v3263 = vadd.f32 0.0, %v3262
        %v3264 = vpop.f32.mrb[0].mxu0
        %3265 = vmatprep.mubr.bf16.mxu0 0
        %3266 = vmatmul.mubr.bf16.gmra.mrb[0].mxu0 %v3109
        %v3267 = vpop.f32.mrb[0].mxu0
        %v3268 = vadd.f32 0.0, %v3267
        %v3269 = vpop.f32.mrb[0].mxu0
        %v3270 = vpop.f32.mrb[0].mxu0
        %v3271 = vadd.f32 0.0, %v3270
        %v3272 = vpop.f32.mrb[0].mxu0
        %3273 = vmatprep.mubr.bf16.mxu0 0
        %3274 = vmatmul.mubr.bf16.gmra.mrb[0].mxu0 %v3112
        %v3275 = vpop.f32.mrb[0].mxu0
        %v3276 = vadd.f32 0.0, %v3275
        %v3277 = vpop.f32.mrb[0].mxu0
        %v3278 = vpop.f32.mrb[0].mxu0
        %v3279 = vadd.f32 0.0, %v3278
        %v3280 = vpop.f32.mrb[0].mxu0
        %3281 = vmatprep.mubr.bf16.mxu0 0
        %3282 = vmatmul.mubr.bf16.gmra.mrb[0].mxu0 %v3115
        %v3283 = vpop.f32.mrb[0].mxu0
        %v3284 = vadd.f32 0.0, %v3283
        %v3285 = vpop.f32.mrb[0].mxu0
        %v3286 = vpop.f32.mrb[0].mxu0
        %v3287 = vadd.f32 0.0, %v3286
        %v3288 = vpop.f32.mrb[0].mxu0
        %3289 = vdwg.mxu0
        %v3290 = vmul.f32 %v3164, 0.25
        %v3291 = vmul.f32 %v3167, 0.25
        %v3292 = vmul.f32 %v3172, 0.25
        %v3293 = vmul.f32 %v3175, 0.25
        %v3294 = vmul.f32 %v3180, 0.25
        %v3295 = vmul.f32 %v3183, 0.25
        %v3296 = vmul.f32 %v3188, 0.25
        %v3297 = vmul.f32 %v3191, 0.25
        %v3298 = vmul.f32 %v3196, 0.25
        %v3299 = vmul.f32 %v3199, 0.25
        %v3300 = vmul.f32 %v3204, 0.25
        %v3301 = vmul.f32 %v3207, 0.25
        %v3302 = vmul.f32 %v3212, 0.25
        %v3303 = vmul.f32 %v3215, 0.25
        %v3304 = vmul.f32 %v3220, 0.25
        %v3305 = vmul.f32 %v3223, 0.25
        %v3306 = vmul.f32 %v3228, 0.25
        %v3307 = vmul.f32 %v3231, 0.25
        %v3308 = vmul.f32 %v3236, 0.25
        %v3309 = vmul.f32 %v3239, 0.25
        %v3310 = vmul.f32 %v3244, 0.25
        %v3311 = vmul.f32 %v3247, 0.25
        %v3312 = vmul.f32 %v3252, 0.25
        %v3313 = vmul.f32 %v3255, 0.25
        %v3314 = vmul.f32 %v3260, 0.25
        %v3315 = vmul.f32 %v3263, 0.25
        %v3316 = vmul.f32 %v3268, 0.25
        %v3317 = vmul.f32 %v3271, 0.25
        %v3318 = vmul.f32 %v3276, 0.25
        %v3319 = vmul.f32 %v3279, 0.25
        %v3320 = vmul.f32 %v3284, 0.25
        %v3321 = vmul.f32 %v3287, 0.25
        %v3322 = vsel %vm655, %v3290, -inf
        %3323 = vmax.xlane.f32.xlu0 %v3322
        %v3324 = vpop.xlane.xlu0 %3323
        %v3325 = vsel %vm655, %v3291, -inf
        %3326 = vmax.xlane.f32.xlu0 %v3325
        %v3327 = vpop.xlane.xlu0 %3326
        %v3328 = vsel %vm655, %v3292, -inf
        %3329 = vmax.xlane.f32.xlu0 %v3328
        %v3330 = vpop.xlane.xlu0 %3329
        %v3331 = vsel %vm655, %v3293, -inf
        %3332 = vmax.xlane.f32.xlu0 %v3331
        %v3333 = vpop.xlane.xlu0 %3332
        %v3334 = vsel %vm655, %v3294, -inf
        %3335 = vmax.xlane.f32.xlu0 %v3334
        %v3336 = vpop.xlane.xlu0 %3335
        %v3337 = vsel %vm655, %v3295, -inf
        %3338 = vmax.xlane.f32.xlu0 %v3337
        %v3339 = vpop.xlane.xlu0 %3338
        %v3340 = vsel %vm655, %v3296, -inf
        %3341 = vmax.xlane.f32.xlu0 %v3340
        %v3342 = vpop.xlane.xlu0 %3341
        %v3343 = vsel %vm655, %v3297, -inf
        %3344 = vmax.xlane.f32.xlu0 %v3343
        %v3345 = vpop.xlane.xlu0 %3344
        %v3346 = vsel %vm655, %v3298, -inf
        %3347 = vmax.xlane.f32.xlu0 %v3346
        %v3348 = vpop.xlane.xlu0 %3347
        %v3349 = vsel %vm655, %v3299, -inf
        %3350 = vmax.xlane.f32.xlu0 %v3349
        %v3351 = vpop.xlane.xlu0 %3350
        %v3352 = vsel %vm655, %v3300, -inf
        %3353 = vmax.xlane.f32.xlu0 %v3352
        %v3354 = vpop.xlane.xlu0 %3353
        %v3355 = vsel %vm655, %v3301, -inf
        %3356 = vmax.xlane.f32.xlu0 %v3355
        %v3357 = vpop.xlane.xlu0 %3356
        %v3358 = vsel %vm655, %v3302, -inf
        %3359 = vmax.xlane.f32.xlu0 %v3358
        %v3360 = vpop.xlane.xlu0 %3359
        %v3361 = vsel %vm655, %v3303, -inf
        %3362 = vmax.xlane.f32.xlu0 %v3361
        %v3363 = vpop.xlane.xlu0 %3362
        %v3364 = vsel %vm655, %v3304, -inf
        %3365 = vmax.xlane.f32.xlu0 %v3364
        %v3366 = vpop.xlane.xlu0 %3365
        %v3367 = vsel %vm655, %v3305, -inf
        %3368 = vmax.xlane.f32.xlu0 %v3367
        %v3369 = vpop.xlane.xlu0 %3368
        %v3370 = vsel %vm655, %v3306, -inf
        %3371 = vmax.xlane.f32.xlu0 %v3370
        %v3372 = vpop.xlane.xlu0 %3371
        %v3373 = vsel %vm655, %v3307, -inf
        %3374 = vmax.xlane.f32.xlu0 %v3373
        %v3375 = vpop.xlane.xlu0 %3374
        %v3376 = vsel %vm655, %v3308, -inf
        %3377 = vmax.xlane.f32.xlu0 %v3376
        %v3378 = vpop.xlane.xlu0 %3377
        %v3379 = vsel %vm655, %v3309, -inf
        %3380 = vmax.xlane.f32.xlu0 %v3379
        %v3381 = vpop.xlane.xlu0 %3380
        %v3382 = vsel %vm655, %v3310, -inf
        %3383 = vmax.xlane.f32.xlu0 %v3382
        %v3384 = vpop.xlane.xlu0 %3383
        %v3385 = vsel %vm655, %v3311, -inf
        %3386 = vmax.xlane.f32.xlu0 %v3385
        %v3387 = vpop.xlane.xlu0 %3386
        %v3388 = vsel %vm655, %v3312, -inf
        %3389 = vmax.xlane.f32.xlu0 %v3388
        %v3390 = vpop.xlane.xlu0 %3389
        %v3391 = vsel %vm655, %v3313, -inf
        %3392 = vmax.xlane.f32.xlu0 %v3391
        %v3393 = vpop.xlane.xlu0 %3392
        %v3394 = vsel %vm655, %v3314, -inf
        %3395 = vmax.xlane.f32.xlu0 %v3394
        %v3396 = vpop.xlane.xlu0 %3395
        %v3397 = vsel %vm655, %v3315, -inf
        %3398 = vmax.xlane.f32.xlu0 %v3397
        %v3399 = vpop.xlane.xlu0 %3398
        %v3400 = vsel %vm655, %v3316, -inf
        %3401 = vmax.xlane.f32.xlu0 %v3400
        %v3402 = vpop.xlane.xlu0 %3401
        %v3403 = vsel %vm655, %v3317, -inf
        %3404 = vmax.xlane.f32.xlu0 %v3403
        %v3405 = vpop.xlane.xlu0 %3404
        %v3406 = vsel %vm655, %v3318, -inf
        %3407 = vmax.xlane.f32.xlu0 %v3406
        %v3408 = vpop.xlane.xlu0 %3407
        %v3409 = vsel %vm655, %v3319, -inf
        %3410 = vmax.xlane.f32.xlu0 %v3409
        %v3411 = vpop.xlane.xlu0 %3410
        %v3412 = vsel %vm655, %v3320, -inf
        %3413 = vmax.xlane.f32.xlu0 %v3412
        %v3414 = vpop.xlane.xlu0 %3413
        %v3415 = vsel %vm655, %v3321, -inf
        %3416 = vmax.xlane.f32.xlu0 %v3415
        %v3417 = vpop.xlane.xlu0 %3416
        %v3418 = vsub.f32 %v3290, %v3324
        %v3419 = vsub.f32 %v3291, %v3327
        %v3420 = vsub.f32 %v3292, %v3330
        %v3421 = vsub.f32 %v3293, %v3333
        %v3422 = vsub.f32 %v3294, %v3336
        %v3423 = vsub.f32 %v3295, %v3339
        %v3424 = vsub.f32 %v3296, %v3342
        %v3425 = vsub.f32 %v3297, %v3345
        %v3426 = vsub.f32 %v3298, %v3348
        %v3427 = vsub.f32 %v3299, %v3351
        %v3428 = vsub.f32 %v3300, %v3354
        %v3429 = vsub.f32 %v3301, %v3357
        %v3430 = vsub.f32 %v3302, %v3360
        %v3431 = vsub.f32 %v3303, %v3363
        %v3432 = vsub.f32 %v3304, %v3366
        %v3433 = vsub.f32 %v3305, %v3369
        %v3434 = vsub.f32 %v3306, %v3372
        %v3435 = vsub.f32 %v3307, %v3375
        %v3436 = vsub.f32 %v3308, %v3378
        %v3437 = vsub.f32 %v3309, %v3381
        %v3438 = vsub.f32 %v3310, %v3384
        %v3439 = vsub.f32 %v3311, %v3387
        %v3440 = vsub.f32 %v3312, %v3390
        %v3441 = vsub.f32 %v3313, %v3393
        %v3442 = vsub.f32 %v3314, %v3396
        %v3443 = vsub.f32 %v3315, %v3399
        %v3444 = vsub.f32 %v3316, %v3402
        %v3445 = vsub.f32 %v3317, %v3405
        %v3446 = vsub.f32 %v3318, %v3408
        %v3447 = vsub.f32 %v3319, %v3411
        %v3448 = vsub.f32 %v3320, %v3414
        %v3449 = vsub.f32 %v3321, %v3417
        %v3450 = vmul.f32 %v3418, 1.442695
        %v3451 = vpow.pop %v3450
        %v3452 = vmul.f32 %v3419, 1.442695
        %v3453 = vpow.pop %v3452
        %v3454 = vmul.f32 %v3420, 1.442695
        %v3455 = vpow.pop %v3454
        %v3456 = vmul.f32 %v3421, 1.442695
        %v3457 = vpow.pop %v3456
        %v3458 = vmul.f32 %v3422, 1.442695
        %v3459 = vpow.pop %v3458
        %v3460 = vmul.f32 %v3423, 1.442695
        %v3461 = vpow.pop %v3460
        %v3462 = vmul.f32 %v3424, 1.442695
        %v3463 = vpow.pop %v3462
        %v3464 = vmul.f32 %v3425, 1.442695
        %v3465 = vpow.pop %v3464
        %v3466 = vmul.f32 %v3426, 1.442695
        %v3467 = vpow.pop %v3466
        %v3468 = vmul.f32 %v3427, 1.442695
        %v3469 = vpow.pop %v3468
        %v3470 = vmul.f32 %v3428, 1.442695
        %v3471 = vpow.pop %v3470
        %v3472 = vmul.f32 %v3429, 1.442695
        %v3473 = vpow.pop %v3472
        %v3474 = vmul.f32 %v3430, 1.442695
        %v3475 = vpow.pop %v3474
        %v3476 = vmul.f32 %v3431, 1.442695
        %v3477 = vpow.pop %v3476
        %v3478 = vmul.f32 %v3432, 1.442695
        %v3479 = vpow.pop %v3478
        %v3480 = vmul.f32 %v3433, 1.442695
        %v3481 = vpow.pop %v3480
        %v3482 = vmul.f32 %v3434, 1.442695
        %v3483 = vpow.pop %v3482
        %v3484 = vmul.f32 %v3435, 1.442695
        %v3485 = vpow.pop %v3484
        %v3486 = vmul.f32 %v3436, 1.442695
        %v3487 = vpow.pop %v3486
        %v3488 = vmul.f32 %v3437, 1.442695
        %v3489 = vpow.pop %v3488
        %v3490 = vmul.f32 %v3438, 1.442695
        %v3491 = vpow.pop %v3490
        %v3492 = vmul.f32 %v3439, 1.442695
        %v3493 = vpow.pop %v3492
        %v3494 = vmul.f32 %v3440, 1.442695
        %v3495 = vpow.pop %v3494
        %v3496 = vmul.f32 %v3441, 1.442695
        %v3497 = vpow.pop %v3496
        %v3498 = vmul.f32 %v3442, 1.442695
        %v3499 = vpow.pop %v3498
        %v3500 = vmul.f32 %v3443, 1.442695
        %v3501 = vpow.pop %v3500
        %v3502 = vmul.f32 %v3444, 1.442695
        %v3503 = vpow.pop %v3502
        %v3504 = vmul.f32 %v3445, 1.442695
        %v3505 = vpow.pop %v3504
        %v3506 = vmul.f32 %v3446, 1.442695
        %v3507 = vpow.pop %v3506
        %v3508 = vmul.f32 %v3447, 1.442695
        %v3509 = vpow.pop %v3508
        %v3510 = vmul.f32 %v3448, 1.442695
        %v3511 = vpow.pop %v3510
        %v3512 = vmul.f32 %v3449, 1.442695
        %v3513 = vpow.pop %v3512
        %v3514 = vsel %vm655, %v3451, 0.0
        %3515 = vadd.xlane.f32.xlu0 %v3514
        %v3516 = vpop.xlane.xlu0 %3515
        %v3517 = vsel %vm655, %v3453, 0.0
        %3518 = vadd.xlane.f32.xlu0 %v3517
        %v3519 = vpop.xlane.xlu0 %3518
        %v3520 = vsel %vm655, %v3455, 0.0
        %3521 = vadd.xlane.f32.xlu0 %v3520
        %v3522 = vpop.xlane.xlu0 %3521
        %v3523 = vsel %vm655, %v3457, 0.0
        %3524 = vadd.xlane.f32.xlu0 %v3523
        %v3525 = vpop.xlane.xlu0 %3524
        %v3526 = vsel %vm655, %v3459, 0.0
        %3527 = vadd.xlane.f32.xlu0 %v3526
        %v3528 = vpop.xlane.xlu0 %3527
        %v3529 = vsel %vm655, %v3461, 0.0
        %3530 = vadd.xlane.f32.xlu0 %v3529
        %v3531 = vpop.xlane.xlu0 %3530
        %v3532 = vsel %vm655, %v3463, 0.0
        %3533 = vadd.xlane.f32.xlu0 %v3532
        %v3534 = vpop.xlane.xlu0 %3533
        %v3535 = vsel %vm655, %v3465, 0.0
        %3536 = vadd.xlane.f32.xlu0 %v3535
        %v3537 = vpop.xlane.xlu0 %3536
        %v3538 = vsel %vm655, %v3467, 0.0
        %3539 = vadd.xlane.f32.xlu0 %v3538
        %v3540 = vpop.xlane.xlu0 %3539
        %v3541 = vsel %vm655, %v3469, 0.0
        %3542 = vadd.xlane.f32.xlu0 %v3541
        %v3543 = vpop.xlane.xlu0 %3542
        %v3544 = vsel %vm655, %v3471, 0.0
        %3545 = vadd.xlane.f32.xlu0 %v3544
        %v3546 = vpop.xlane.xlu0 %3545
        %v3547 = vsel %vm655, %v3473, 0.0
        %3548 = vadd.xlane.f32.xlu0 %v3547
        %v3549 = vpop.xlane.xlu0 %3548
        %v3550 = vsel %vm655, %v3475, 0.0
        %3551 = vadd.xlane.f32.xlu0 %v3550
        %v3552 = vpop.xlane.xlu0 %3551
        %v3553 = vsel %vm655, %v3477, 0.0
        %3554 = vadd.xlane.f32.xlu0 %v3553
        %v3555 = vpop.xlane.xlu0 %3554
        %v3556 = vsel %vm655, %v3479, 0.0
        %3557 = vadd.xlane.f32.xlu0 %v3556
        %v3558 = vpop.xlane.xlu0 %3557
        %v3559 = vsel %vm655, %v3481, 0.0
        %3560 = vadd.xlane.f32.xlu0 %v3559
        %v3561 = vpop.xlane.xlu0 %3560
        %v3562 = vsel %vm655, %v3483, 0.0
        %3563 = vadd.xlane.f32.xlu0 %v3562
        %v3564 = vpop.xlane.xlu0 %3563
        %v3565 = vsel %vm655, %v3485, 0.0
        %3566 = vadd.xlane.f32.xlu0 %v3565
        %v3567 = vpop.xlane.xlu0 %3566
        %v3568 = vsel %vm655, %v3487, 0.0
        %3569 = vadd.xlane.f32.xlu0 %v3568
        %v3570 = vpop.xlane.xlu0 %3569
        %v3571 = vsel %vm655, %v3489, 0.0
        %3572 = vadd.xlane.f32.xlu0 %v3571
        %v3573 = vpop.xlane.xlu0 %3572
        %v3574 = vsel %vm655, %v3491, 0.0
        %3575 = vadd.xlane.f32.xlu0 %v3574
        %v3576 = vpop.xlane.xlu0 %3575
        %v3577 = vsel %vm655, %v3493, 0.0
        %3578 = vadd.xlane.f32.xlu0 %v3577
        %v3579 = vpop.xlane.xlu0 %3578
        %v3580 = vsel %vm655, %v3495, 0.0
        %3581 = vadd.xlane.f32.xlu0 %v3580
        %v3582 = vpop.xlane.xlu0 %3581
        %v3583 = vsel %vm655, %v3497, 0.0
        %3584 = vadd.xlane.f32.xlu0 %v3583
        %v3585 = vpop.xlane.xlu0 %3584
        %v3586 = vsel %vm655, %v3499, 0.0
        %3587 = vadd.xlane.f32.xlu0 %v3586
        %v3588 = vpop.xlane.xlu0 %3587
        %v3589 = vsel %vm655, %v3501, 0.0
        %3590 = vadd.xlane.f32.xlu0 %v3589
        %v3591 = vpop.xlane.xlu0 %3590
        %v3592 = vsel %vm655, %v3503, 0.0
        %3593 = vadd.xlane.f32.xlu0 %v3592
        %v3594 = vpop.xlane.xlu0 %3593
        %v3595 = vsel %vm655, %v3505, 0.0
        %3596 = vadd.xlane.f32.xlu0 %v3595
        %v3597 = vpop.xlane.xlu0 %3596
        %v3598 = vsel %vm655, %v3507, 0.0
        %3599 = vadd.xlane.f32.xlu0 %v3598
        %v3600 = vpop.xlane.xlu0 %3599
        %v3601 = vsel %vm655, %v3509, 0.0
        %3602 = vadd.xlane.f32.xlu0 %v3601
        %v3603 = vpop.xlane.xlu0 %3602
        %v3604 = vsel %vm655, %v3511, 0.0
        %3605 = vadd.xlane.f32.xlu0 %v3604
        %v3606 = vpop.xlane.xlu0 %3605
        %v3607 = vsel %vm655, %v3513, 0.0
        %3608 = vadd.xlane.f32.xlu0 %v3607
        %v3609 = vpop.xlane.xlu0 %3608
        %v3610 = vrcp.pop %v3516
        %v3611 = vrcp.pop %v3519
        %v3612 = vrcp.pop %v3522
        %v3613 = vrcp.pop %v3525
        %v3614 = vrcp.pop %v3528
        %v3615 = vrcp.pop %v3531
        %v3616 = vrcp.pop %v3534
        %v3617 = vrcp.pop %v3537
        %v3618 = vrcp.pop %v3540
        %v3619 = vrcp.pop %v3543
        %v3620 = vrcp.pop %v3546
        %v3621 = vrcp.pop %v3549
        %v3622 = vrcp.pop %v3552
        %v3623 = vrcp.pop %v3555
        %v3624 = vrcp.pop %v3558
        %v3625 = vrcp.pop %v3561
        %v3626 = vrcp.pop %v3564
        %v3627 = vrcp.pop %v3567
        %v3628 = vrcp.pop %v3570
        %v3629 = vrcp.pop %v3573
        %v3630 = vrcp.pop %v3576
        %v3631 = vrcp.pop %v3579
        %v3632 = vrcp.pop %v3582
        %v3633 = vrcp.pop %v3585
        %v3634 = vrcp.pop %v3588
        %v3635 = vrcp.pop %v3591
        %v3636 = vrcp.pop %v3594
        %v3637 = vrcp.pop %v3597
        %v3638 = vrcp.pop %v3600
        %v3639 = vrcp.pop %v3603
        %v3640 = vrcp.pop %v3606
        %v3641 = vrcp.pop %v3609
        %v3642 = vmul.f32 %v3451, %v3610
        %v3643 = vmul.f32 %v3453, %v3611
        %v3644 = vmul.f32 %v3455, %v3612
        %v3645 = vmul.f32 %v3457, %v3613
        %v3646 = vmul.f32 %v3459, %v3614
        %v3647 = vmul.f32 %v3461, %v3615
        %v3648 = vmul.f32 %v3463, %v3616
        %v3649 = vmul.f32 %v3465, %v3617
        %v3650 = vmul.f32 %v3467, %v3618
        %v3651 = vmul.f32 %v3469, %v3619
        %v3652 = vmul.f32 %v3471, %v3620
        %v3653 = vmul.f32 %v3473, %v3621
        %v3654 = vmul.f32 %v3475, %v3622
        %v3655 = vmul.f32 %v3477, %v3623
        %v3656 = vmul.f32 %v3479, %v3624
        %v3657 = vmul.f32 %v3481, %v3625
        %v3658 = vmul.f32 %v3483, %v3626
        %v3659 = vmul.f32 %v3485, %v3627
        %v3660 = vmul.f32 %v3487, %v3628
        %v3661 = vmul.f32 %v3489, %v3629
        %v3662 = vmul.f32 %v3491, %v3630
        %v3663 = vmul.f32 %v3493, %v3631
        %v3664 = vmul.f32 %v3495, %v3632
        %v3665 = vmul.f32 %v3497, %v3633
        %v3666 = vmul.f32 %v3499, %v3634
        %v3667 = vmul.f32 %v3501, %v3635
        %v3668 = vmul.f32 %v3503, %v3636
        %v3669 = vmul.f32 %v3505, %v3637
        %v3670 = vmul.f32 %v3507, %v3638
        %v3671 = vmul.f32 %v3509, %v3639
        %v3672 = vmul.f32 %v3511, %v3640
        %v3673 = vmul.f32 %v3513, %v3641
        %v3674 = vpack.c.bf16 %v3643, %v3642
        %v3675 = vpack.c.bf16 %v3645, %v3644
        %v3676 = vpack.c.bf16 %v3647, %v3646
        %v3677 = vpack.c.bf16 %v3649, %v3648
        %v3678 = vpack.c.bf16 %v3651, %v3650
        %v3679 = vpack.c.bf16 %v3653, %v3652
        %v3680 = vpack.c.bf16 %v3655, %v3654
        %v3681 = vpack.c.bf16 %v3657, %v3656
        %v3682 = vpack.c.bf16 %v3659, %v3658
        %v3683 = vpack.c.bf16 %v3661, %v3660
        %v3684 = vpack.c.bf16 %v3663, %v3662
        %v3685 = vpack.c.bf16 %v3665, %v3664
        %v3686 = vpack.c.bf16 %v3667, %v3666
        %v3687 = vpack.c.bf16 %v3669, %v3668
        %v3688 = vpack.c.bf16 %v3671, %v3670
        %v3689 = vpack.c.bf16 %v3673, %v3672
        %3690 = vrot.lane.b32.xlu0 %v2151, 96
        %v3691 = vpop.permute.xlu0 %3690
        %3692 = vrot.lane.b32.xlu0 %v2152, 96
        %v3693 = vpop.permute.xlu0 %3692
        %3694 = vrot.lane.b32.xlu0 %v2153, 96
        %v3695 = vpop.permute.xlu0 %3694
        %3696 = vrot.lane.b32.xlu0 %v2154, 96
        %v3697 = vpop.permute.xlu0 %3696
        %v3703 = vsel %vm655, %v3674, 0
        %v3706 = vsel %vm655, %v3675, 0
        %v3709 = vsel %vm655, %v3676, 0
        %v3712 = vsel %vm655, %v3677, 0
        %v3715 = vsel %vm655, %v3678, 0
        %v3718 = vsel %vm655, %v3679, 0
        %v3721 = vsel %vm655, %v3680, 0
        %v3724 = vsel %vm655, %v3681, 0
        %v3727 = vsel %vm655, %v3682, 0
        %v3730 = vsel %vm655, %v3683, 0
        %v3733 = vsel %vm655, %v3684, 0
        %v3736 = vsel %vm655, %v3685, 0
        %v3739 = vsel %vm655, %v3686, 0
        %v3742 = vsel %vm655, %v3687, 0
        %v3745 = vsel %vm655, %v3688, 0
        %v3748 = vsel %vm655, %v3689, 0
        %3750 = vmatprep.subr.bf16.mxu0 0
        %3751 = vmatpush1.bf16.msra.mxu0 %v3691
        %3752 = vmatprep.subr.bf16.mxu0 0
        %3753 = vmatpush1.bf16.msra.mxu0 %v3693
        %3754 = vmatprep.subr.bf16.mxu0 0
        %3755 = vmatpush1.bf16.msra.mxu0 %v3695
        %3756 = vmatprep.subr.bf16.mxu0 0
        %3757 = vmatpush1.bf16.msra.mxu0 %v3697
        %3758 = vmatprep.subr.bf16.mxu0 0
        %3759 = vmatpush1.bf16.msra.mxu0 0
        %3760 = vmatprep.subr.bf16.mxu0 0
        %3761 = vmatpush1.bf16.msra.mxu0 0
        %3762 = vmatprep.subr.bf16.mxu0 0
        %3763 = vmatpush1.bf16.msra.mxu0 0
        %3764 = vmatprep.subr.bf16.mxu0 0
        %3765 = vmatpush1.bf16.msra.mxu0 0
        %3766 = vmatprep.subr.bf16.mxu0 0
        %3767 = vmatpush1.bf16.msra.mxu0 0
        %3768 = vmatprep.subr.bf16.mxu0 0
        %3769 = vmatpush1.bf16.msra.mxu0 0
        %3770 = vmatprep.subr.bf16.mxu0 0
        %3771 = vmatpush1.bf16.msra.mxu0 0
        %3772 = vmatprep.subr.bf16.mxu0 0
        %3773 = vmatpush1.bf16.msra.mxu0 0
        %3774 = vmatprep.subr.bf16.mxu0 0
        %3775 = vmatpush1.bf16.msra.mxu0 0
        %3776 = vmatprep.subr.bf16.mxu0 0
        %3777 = vmatpush1.bf16.msra.mxu0 0
        %3778 = vmatprep.subr.bf16.mxu0 0
        %3779 = vmatpush1.bf16.msra.mxu0 0
        %3780 = vmatprep.subr.bf16.mxu0 0
        %3781 = vmatpush1.bf16.msra.mxu0 0
        %3782 = vmatprep.mubr.bf16.mxu0 0
        %3783 = vmatmul.mubr.bf16.gmra.mrb[0].mxu0 %v3703
        %v3784 = vpop.f32.mrb[0].mxu0
        %v3785 = vadd.f32 0.0, %v3784
        %v3786 = vpop.f32.mrb[0].mxu0
        %v3787 = vpop.f32.mrb[0].mxu0
        %v3788 = vadd.f32 0.0, %v3787
        %v3789 = vpop.f32.mrb[0].mxu0
        %3790 = vmatprep.mubr.bf16.mxu0 0
        %3791 = vmatmul.mubr.bf16.gmra.mrb[0].mxu0 %v3706
        %v3792 = vpop.f32.mrb[0].mxu0
        %v3793 = vadd.f32 0.0, %v3792
        %v3794 = vpop.f32.mrb[0].mxu0
        %v3795 = vpop.f32.mrb[0].mxu0
        %v3796 = vadd.f32 0.0, %v3795
        %v3797 = vpop.f32.mrb[0].mxu0
        %3798 = vmatprep.mubr.bf16.mxu0 0
        %3799 = vmatmul.mubr.bf16.gmra.mrb[0].mxu0 %v3709
        %v3800 = vpop.f32.mrb[0].mxu0
        %v3801 = vadd.f32 0.0, %v3800
        %v3802 = vpop.f32.mrb[0].mxu0
        %v3803 = vpop.f32.mrb[0].mxu0
        %v3804 = vadd.f32 0.0, %v3803
        %v3805 = vpop.f32.mrb[0].mxu0
        %3806 = vmatprep.mubr.bf16.mxu0 0
        %3807 = vmatmul.mubr.bf16.gmra.mrb[0].mxu0 %v3712
        %v3808 = vpop.f32.mrb[0].mxu0
        %v3809 = vadd.f32 0.0, %v3808
        %v3810 = vpop.f32.mrb[0].mxu0
        %v3811 = vpop.f32.mrb[0].mxu0
        %v3812 = vadd.f32 0.0, %v3811
        %v3813 = vpop.f32.mrb[0].mxu0
        %3814 = vmatprep.mubr.bf16.mxu0 0
        %3815 = vmatmul.mubr.bf16.gmra.mrb[0].mxu0 %v3715
        %v3816 = vpop.f32.mrb[0].mxu0
        %v3817 = vadd.f32 0.0, %v3816
        %v3818 = vpop.f32.mrb[0].mxu0
        %v3819 = vpop.f32.mrb[0].mxu0
        %v3820 = vadd.f32 0.0, %v3819
        %v3821 = vpop.f32.mrb[0].mxu0
        %3822 = vmatprep.mubr.bf16.mxu0 0
        %3823 = vmatmul.mubr.bf16.gmra.mrb[0].mxu0 %v3718
        %v3824 = vpop.f32.mrb[0].mxu0
        %v3825 = vadd.f32 0.0, %v3824
        %v3826 = vpop.f32.mrb[0].mxu0
        %v3827 = vpop.f32.mrb[0].mxu0
        %v3828 = vadd.f32 0.0, %v3827
        %v3829 = vpop.f32.mrb[0].mxu0
        %3830 = vmatprep.mubr.bf16.mxu0 0
        %3831 = vmatmul.mubr.bf16.gmra.mrb[0].mxu0 %v3721
        %v3832 = vpop.f32.mrb[0].mxu0
        %v3833 = vadd.f32 0.0, %v3832
        %v3834 = vpop.f32.mrb[0].mxu0
        %v3835 = vpop.f32.mrb[0].mxu0
        %v3836 = vadd.f32 0.0, %v3835
        %v3837 = vpop.f32.mrb[0].mxu0
        %3838 = vmatprep.mubr.bf16.mxu0 0
        %3839 = vmatmul.mubr.bf16.gmra.mrb[0].mxu0 %v3724
        %v3840 = vpop.f32.mrb[0].mxu0
        %v3841 = vadd.f32 0.0, %v3840
        %v3842 = vpop.f32.mrb[0].mxu0
        %v3843 = vpop.f32.mrb[0].mxu0
        %v3844 = vadd.f32 0.0, %v3843
        %v3845 = vpop.f32.mrb[0].mxu0
        %3846 = vmatprep.mubr.bf16.mxu0 0
        %3847 = vmatmul.mubr.bf16.gmra.mrb[0].mxu0 %v3727
        %v3848 = vpop.f32.mrb[0].mxu0
        %v3849 = vadd.f32 0.0, %v3848
        %v3850 = vpop.f32.mrb[0].mxu0
        %v3851 = vpop.f32.mrb[0].mxu0
        %v3852 = vadd.f32 0.0, %v3851
        %v3853 = vpop.f32.mrb[0].mxu0
        %3854 = vmatprep.mubr.bf16.mxu0 0
        %3855 = vmatmul.mubr.bf16.gmra.mrb[0].mxu0 %v3730
        %v3856 = vpop.f32.mrb[0].mxu0
        %v3857 = vadd.f32 0.0, %v3856
        %v3858 = vpop.f32.mrb[0].mxu0
        %v3859 = vpop.f32.mrb[0].mxu0
        %v3860 = vadd.f32 0.0, %v3859
        %v3861 = vpop.f32.mrb[0].mxu0
        %3862 = vmatprep.mubr.bf16.mxu0 0
        %3863 = vmatmul.mubr.bf16.gmra.mrb[0].mxu0 %v3733
        %v3864 = vpop.f32.mrb[0].mxu0
        %v3865 = vadd.f32 0.0, %v3864
        %v3866 = vpop.f32.mrb[0].mxu0
        %v3867 = vpop.f32.mrb[0].mxu0
        %v3868 = vadd.f32 0.0, %v3867
        %v3869 = vpop.f32.mrb[0].mxu0
        %3870 = vmatprep.mubr.bf16.mxu0 0
        %3871 = vmatmul.mubr.bf16.gmra.mrb[0].mxu0 %v3736
        %v3872 = vpop.f32.mrb[0].mxu0
        %v3873 = vadd.f32 0.0, %v3872
        %v3874 = vpop.f32.mrb[0].mxu0
        %v3875 = vpop.f32.mrb[0].mxu0
        %v3876 = vadd.f32 0.0, %v3875
        %v3877 = vpop.f32.mrb[0].mxu0
        %3878 = vmatprep.mubr.bf16.mxu0 0
        %3879 = vmatmul.mubr.bf16.gmra.mrb[0].mxu0 %v3739
        %v3880 = vpop.f32.mrb[0].mxu0
        %v3881 = vadd.f32 0.0, %v3880
        %v3882 = vpop.f32.mrb[0].mxu0
        %v3883 = vpop.f32.mrb[0].mxu0
        %v3884 = vadd.f32 0.0, %v3883
        %v3885 = vpop.f32.mrb[0].mxu0
        %3886 = vmatprep.mubr.bf16.mxu0 0
        %3887 = vmatmul.mubr.bf16.gmra.mrb[0].mxu0 %v3742
        %v3888 = vpop.f32.mrb[0].mxu0
        %v3889 = vadd.f32 0.0, %v3888
        %v3890 = vpop.f32.mrb[0].mxu0
        %v3891 = vpop.f32.mrb[0].mxu0
        %v3892 = vadd.f32 0.0, %v3891
        %v3893 = vpop.f32.mrb[0].mxu0
        %3894 = vmatprep.mubr.bf16.mxu0 0
        %3895 = vmatmul.mubr.bf16.gmra.mrb[0].mxu0 %v3745
        %v3896 = vpop.f32.mrb[0].mxu0
        %v3897 = vadd.f32 0.0, %v3896
        %v3898 = vpop.f32.mrb[0].mxu0
        %v3899 = vpop.f32.mrb[0].mxu0
        %v3900 = vadd.f32 0.0, %v3899
        %v3901 = vpop.f32.mrb[0].mxu0
        %3902 = vmatprep.mubr.bf16.mxu0 0
        %3903 = vmatmul.mubr.bf16.gmra.mrb[0].mxu0 %v3748
        %v3904 = vpop.f32.mrb[0].mxu0
        %v3905 = vadd.f32 0.0, %v3904
        %v3906 = vpop.f32.mrb[0].mxu0
        %v3907 = vpop.f32.mrb[0].mxu0
        %v3908 = vadd.f32 0.0, %v3907
        %v3909 = vpop.f32.mrb[0].mxu0
        %3910 = vdwg.mxu0
        %v3911 = vadd.f32 %v2997, %v3785
        %v3912 = vadd.f32 %v2998, %v3788
        %v3913 = vadd.f32 %v2999, %v3793
        %v3914 = vadd.f32 %v3000, %v3796
        %v3915 = vadd.f32 %v3001, %v3801
        %v3916 = vadd.f32 %v3002, %v3804
        %v3917 = vadd.f32 %v3003, %v3809
        %v3918 = vadd.f32 %v3004, %v3812
        %v3919 = vadd.f32 %v3005, %v3817
        %v3920 = vadd.f32 %v3006, %v3820
        %v3921 = vadd.f32 %v3007, %v3825
        %v3922 = vadd.f32 %v3008, %v3828
        %v3923 = vadd.f32 %v3009, %v3833
        %v3924 = vadd.f32 %v3010, %v3836
        %v3925 = vadd.f32 %v3011, %v3841
        %v3926 = vadd.f32 %v3012, %v3844
        %v3927 = vadd.f32 %v3013, %v3849
        %v3928 = vadd.f32 %v3014, %v3852
        %v3929 = vadd.f32 %v3015, %v3857
        %v3930 = vadd.f32 %v3016, %v3860
        %v3931 = vadd.f32 %v3017, %v3865
        %v3932 = vadd.f32 %v3018, %v3868
        %v3933 = vadd.f32 %v3019, %v3873
        %v3934 = vadd.f32 %v3020, %v3876
        %v3935 = vadd.f32 %v3021, %v3881
        %v3936 = vadd.f32 %v3022, %v3884
        %v3937 = vadd.f32 %v3023, %v3889
        %v3938 = vadd.f32 %v3024, %v3892
        %v3939 = vadd.f32 %v3025, %v3897
        %v3940 = vadd.f32 %v3026, %v3900
        %v3941 = vadd.f32 %v3027, %v3905
        %v3942 = vadd.f32 %v3028, %v3908
        %3943 = vrot.lane.b32.xlu0 %v325, 96
        %v3944 = vpop.permute.xlu0 %3943
        %3945 = vrot.lane.b32.xlu0 %v326, 96
        %v3946 = vpop.permute.xlu0 %3945
        %3947 = vrot.lane.b32.xlu0 %v327, 96
        %v3948 = vpop.permute.xlu0 %3947
        %3949 = vrot.lane.b32.xlu0 %v328, 96
        %v3950 = vpop.permute.xlu0 %3949
        %3951 = vrot.lane.b32.xlu0 %v329, 96
        %v3952 = vpop.permute.xlu0 %3951
        %3953 = vrot.lane.b32.xlu0 %v330, 96
        %v3954 = vpop.permute.xlu0 %3953
        %3955 = vrot.lane.b32.xlu0 %v331, 96
        %v3956 = vpop.permute.xlu0 %3955
        %3957 = vrot.lane.b32.xlu0 %v332, 96
        %v3958 = vpop.permute.xlu0 %3957
        %3959 = vrot.lane.b32.xlu0 %v333, 96
        %v3960 = vpop.permute.xlu0 %3959
        %3961 = vrot.lane.b32.xlu0 %v334, 96
        %v3962 = vpop.permute.xlu0 %3961
        %3963 = vrot.lane.b32.xlu0 %v335, 96
        %v3964 = vpop.permute.xlu0 %3963
        %3965 = vrot.lane.b32.xlu0 %v336, 96
        %v3966 = vpop.permute.xlu0 %3965
        %3967 = vrot.lane.b32.xlu0 %v337, 96
        %v3968 = vpop.permute.xlu0 %3967
        %3969 = vrot.lane.b32.xlu0 %v338, 96
        %v3970 = vpop.permute.xlu0 %3969
        %3971 = vrot.lane.b32.xlu0 %v339, 96
        %v3972 = vpop.permute.xlu0 %3971
        %3973 = vrot.lane.b32.xlu0 %v340, 96
        %v3974 = vpop.permute.xlu0 %3973
        %v3976 = vsel %vm401, %v3944, 0
        %v3979 = vsel %vm401, %v3946, 0
        %v3982 = vsel %vm401, %v3948, 0
        %v3985 = vsel %vm401, %v3950, 0
        %v3988 = vsel %vm401, %v3952, 0
        %v3991 = vsel %vm401, %v3954, 0
        %v3994 = vsel %vm401, %v3956, 0
        %v3997 = vsel %vm401, %v3958, 0
        %v4000 = vsel %vm401, %v3960, 0
        %v4003 = vsel %vm401, %v3962, 0
        %v4006 = vsel %vm401, %v3964, 0
        %v4009 = vsel %vm401, %v3966, 0
        %v4012 = vsel %vm401, %v3968, 0
        %v4015 = vsel %vm401, %v3970, 0
        %v4018 = vsel %vm401, %v3972, 0
        %v4021 = vsel %vm401, %v3974, 0
        %v4024 = vsel %vm401, %v389, 0
        %v4027 = vsel %vm401, %v390, 0
        %v4030 = vsel %vm401, %v391, 0
        %v4033 = vsel %vm401, %v392, 0
        %4035 = vmatprep.subr.bf16.mxu0 0
        %4036 = vmatpush1.bf16.xpose.msra.mxu0 %v4024
        %4037 = vmatprep.subr.bf16.mxu0 0
        %4038 = vmatpush1.bf16.xpose.msra.mxu0 %v4027
        %4039 = vmatprep.subr.bf16.mxu0 0
        %4040 = vmatpush1.bf16.xpose.msra.mxu0 %v4030
        %4041 = vmatprep.subr.bf16.mxu0 0
        %4042 = vmatpush1.bf16.xpose.msra.mxu0 %v4033
        %4043 = vmatprep.subr.bf16.mxu0 0
        %4044 = vmatpush1.bf16.xpose.msra.mxu0 0
        %4045 = vmatprep.subr.bf16.mxu0 0
        %4046 = vmatpush1.bf16.xpose.msra.mxu0 0
        %4047 = vmatprep.subr.bf16.mxu0 0
        %4048 = vmatpush1.bf16.xpose.msra.mxu0 0
        %4049 = vmatprep.subr.bf16.mxu0 0
        %4050 = vmatpush1.bf16.xpose.msra.mxu0 0
        %4051 = vmatprep.subr.bf16.mxu0 0
        %4052 = vmatpush1.bf16.xpose.msra.mxu0 0
        %4053 = vmatprep.subr.bf16.mxu0 0
        %4054 = vmatpush1.bf16.xpose.msra.mxu0 0
        %4055 = vmatprep.subr.bf16.mxu0 0
        %4056 = vmatpush1.bf16.xpose.msra.mxu0 0
        %4057 = vmatprep.subr.bf16.mxu0 0
        %4058 = vmatpush1.bf16.xpose.msra.mxu0 0
        %4059 = vmatprep.subr.bf16.mxu0 0
        %4060 = vmatpush1.bf16.xpose.msra.mxu0 0
        %4061 = vmatprep.subr.bf16.mxu0 0
        %4062 = vmatpush1.bf16.xpose.msra.mxu0 0
        %4063 = vmatprep.subr.bf16.mxu0 0
        %4064 = vmatpush1.bf16.xpose.msra.mxu0 0
        %4065 = vmatprep.subr.bf16.mxu0 0
        %4066 = vmatpush1.bf16.xpose.msra.mxu0 0
        %4067 = vmatprep.mubr.bf16.mxu0 0
        %4068 = vmatmul.mubr.bf16.gmra.mrb[0].mxu0 %v3976
        %v4069 = vpop.f32.mrb[0].mxu0
        %v4070 = vadd.f32 0.0, %v4069
        %v4071 = vpop.f32.mrb[0].mxu0
        %v4072 = vpop.f32.mrb[0].mxu0
        %v4073 = vadd.f32 0.0, %v4072
        %v4074 = vpop.f32.mrb[0].mxu0
        %4075 = vmatprep.mubr.bf16.mxu0 0
        %4076 = vmatmul.mubr.bf16.gmra.mrb[0].mxu0 %v3979
        %v4077 = vpop.f32.mrb[0].mxu0
        %v4078 = vadd.f32 0.0, %v4077
        %v4079 = vpop.f32.mrb[0].mxu0
        %v4080 = vpop.f32.mrb[0].mxu0
        %v4081 = vadd.f32 0.0, %v4080
        %v4082 = vpop.f32.mrb[0].mxu0
        %4083 = vmatprep.mubr.bf16.mxu0 0
        %4084 = vmatmul.mubr.bf16.gmra.mrb[0].mxu0 %v3982
        %v4085 = vpop.f32.mrb[0].mxu0
        %v4086 = vadd.f32 0.0, %v4085
        %v4087 = vpop.f32.mrb[0].mxu0
        %v4088 = vpop.f32.mrb[0].mxu0
        %v4089 = vadd.f32 0.0, %v4088
        %v4090 = vpop.f32.mrb[0].mxu0
        %4091 = vmatprep.mubr.bf16.mxu0 0
        %4092 = vmatmul.mubr.bf16.gmra.mrb[0].mxu0 %v3985
        %v4093 = vpop.f32.mrb[0].mxu0
        %v4094 = vadd.f32 0.0, %v4093
        %v4095 = vpop.f32.mrb[0].mxu0
        %v4096 = vpop.f32.mrb[0].mxu0
        %v4097 = vadd.f32 0.0, %v4096
        %v4098 = vpop.f32.mrb[0].mxu0
        %4099 = vmatprep.mubr.bf16.mxu0 0
        %4100 = vmatmul.mubr.bf16.gmra.mrb[0].mxu0 %v3988
        %v4101 = vpop.f32.mrb[0].mxu0
        %v4102 = vadd.f32 0.0, %v4101
        %v4103 = vpop.f32.mrb[0].mxu0
        %v4104 = vpop.f32.mrb[0].mxu0
        %v4105 = vadd.f32 0.0, %v4104
        %v4106 = vpop.f32.mrb[0].mxu0
        %4107 = vmatprep.mubr.bf16.mxu0 0
        %4108 = vmatmul.mubr.bf16.gmra.mrb[0].mxu0 %v3991
        %v4109 = vpop.f32.mrb[0].mxu0
        %v4110 = vadd.f32 0.0, %v4109
        %v4111 = vpop.f32.mrb[0].mxu0
        %v4112 = vpop.f32.mrb[0].mxu0
        %v4113 = vadd.f32 0.0, %v4112
        %v4114 = vpop.f32.mrb[0].mxu0
        %4115 = vmatprep.mubr.bf16.mxu0 0
        %4116 = vmatmul.mubr.bf16.gmra.mrb[0].mxu0 %v3994
        %v4117 = vpop.f32.mrb[0].mxu0
        %v4118 = vadd.f32 0.0, %v4117
        %v4119 = vpop.f32.mrb[0].mxu0
        %v4120 = vpop.f32.mrb[0].mxu0
        %v4121 = vadd.f32 0.0, %v4120
        %v4122 = vpop.f32.mrb[0].mxu0
        %4123 = vmatprep.mubr.bf16.mxu0 0
        %4124 = vmatmul.mubr.bf16.gmra.mrb[0].mxu0 %v3997
        %v4125 = vpop.f32.mrb[0].mxu0
        %v4126 = vadd.f32 0.0, %v4125
        %v4127 = vpop.f32.mrb[0].mxu0
        %v4128 = vpop.f32.mrb[0].mxu0
        %v4129 = vadd.f32 0.0, %v4128
        %v4130 = vpop.f32.mrb[0].mxu0
        %4131 = vmatprep.mubr.bf16.mxu0 0
        %4132 = vmatmul.mubr.bf16.gmra.mrb[0].mxu0 %v4000
        %v4133 = vpop.f32.mrb[0].mxu0
        %v4134 = vadd.f32 0.0, %v4133
        %v4135 = vpop.f32.mrb[0].mxu0
        %v4136 = vpop.f32.mrb[0].mxu0
        %v4137 = vadd.f32 0.0, %v4136
        %v4138 = vpop.f32.mrb[0].mxu0
        %4139 = vmatprep.mubr.bf16.mxu0 0
        %4140 = vmatmul.mubr.bf16.gmra.mrb[0].mxu0 %v4003
        %v4141 = vpop.f32.mrb[0].mxu0
        %v4142 = vadd.f32 0.0, %v4141
        %v4143 = vpop.f32.mrb[0].mxu0
        %v4144 = vpop.f32.mrb[0].mxu0
        %v4145 = vadd.f32 0.0, %v4144
        %v4146 = vpop.f32.mrb[0].mxu0
        %4147 = vmatprep.mubr.bf16.mxu0 0
        %4148 = vmatmul.mubr.bf16.gmra.mrb[0].mxu0 %v4006
        %v4149 = vpop.f32.mrb[0].mxu0
        %v4150 = vadd.f32 0.0, %v4149
        %v4151 = vpop.f32.mrb[0].mxu0
        %v4152 = vpop.f32.mrb[0].mxu0
        %v4153 = vadd.f32 0.0, %v4152
        %v4154 = vpop.f32.mrb[0].mxu0
        %4155 = vmatprep.mubr.bf16.mxu0 0
        %4156 = vmatmul.mubr.bf16.gmra.mrb[0].mxu0 %v4009
        %v4157 = vpop.f32.mrb[0].mxu0
        %v4158 = vadd.f32 0.0, %v4157
        %v4159 = vpop.f32.mrb[0].mxu0
        %v4160 = vpop.f32.mrb[0].mxu0
        %v4161 = vadd.f32 0.0, %v4160
        %v4162 = vpop.f32.mrb[0].mxu0
        %4163 = vmatprep.mubr.bf16.mxu0 0
        %4164 = vmatmul.mubr.bf16.gmra.mrb[0].mxu0 %v4012
        %v4165 = vpop.f32.mrb[0].mxu0
        %v4166 = vadd.f32 0.0, %v4165
        %v4167 = vpop.f32.mrb[0].mxu0
        %v4168 = vpop.f32.mrb[0].mxu0
        %v4169 = vadd.f32 0.0, %v4168
        %v4170 = vpop.f32.mrb[0].mxu0
        %4171 = vmatprep.mubr.bf16.mxu0 0
        %4172 = vmatmul.mubr.bf16.gmra.mrb[0].mxu0 %v4015
        %v4173 = vpop.f32.mrb[0].mxu0
        %v4174 = vadd.f32 0.0, %v4173
        %v4175 = vpop.f32.mrb[0].mxu0
        %v4176 = vpop.f32.mrb[0].mxu0
        %v4177 = vadd.f32 0.0, %v4176
        %v4178 = vpop.f32.mrb[0].mxu0
        %4179 = vmatprep.mubr.bf16.mxu0 0
        %4180 = vmatmul.mubr.bf16.gmra.mrb[0].mxu0 %v4018
        %v4181 = vpop.f32.mrb[0].mxu0
        %v4182 = vadd.f32 0.0, %v4181
        %v4183 = vpop.f32.mrb[0].mxu0
        %v4184 = vpop.f32.mrb[0].mxu0
        %v4185 = vadd.f32 0.0, %v4184
        %v4186 = vpop.f32.mrb[0].mxu0
        %4187 = vmatprep.mubr.bf16.mxu0 0
        %4188 = vmatmul.mubr.bf16.gmra.mrb[0].mxu0 %v4021
        %v4189 = vpop.f32.mrb[0].mxu0
        %v4190 = vadd.f32 0.0, %v4189
        %v4191 = vpop.f32.mrb[0].mxu0
        %v4192 = vpop.f32.mrb[0].mxu0
        %v4193 = vadd.f32 0.0, %v4192
        %v4194 = vpop.f32.mrb[0].mxu0
        %4195 = vdwg.mxu0
        %v4196 = vmul.f32 %v4070, 0.25
        %v4197 = vmul.f32 %v4073, 0.25
        %v4198 = vmul.f32 %v4078, 0.25
        %v4199 = vmul.f32 %v4081, 0.25
        %v4200 = vmul.f32 %v4086, 0.25
        %v4201 = vmul.f32 %v4089, 0.25
        %v4202 = vmul.f32 %v4094, 0.25
        %v4203 = vmul.f32 %v4097, 0.25
        %v4204 = vmul.f32 %v4102, 0.25
        %v4205 = vmul.f32 %v4105, 0.25
        %v4206 = vmul.f32 %v4110, 0.25
        %v4207 = vmul.f32 %v4113, 0.25
        %v4208 = vmul.f32 %v4118, 0.25
        %v4209 = vmul.f32 %v4121, 0.25
        %v4210 = vmul.f32 %v4126, 0.25
        %v4211 = vmul.f32 %v4129, 0.25
        %v4212 = vmul.f32 %v4134, 0.25
        %v4213 = vmul.f32 %v4137, 0.25
        %v4214 = vmul.f32 %v4142, 0.25
        %v4215 = vmul.f32 %v4145, 0.25
        %v4216 = vmul.f32 %v4150, 0.25
        %v4217 = vmul.f32 %v4153, 0.25
        %v4218 = vmul.f32 %v4158, 0.25
        %v4219 = vmul.f32 %v4161, 0.25
        %v4220 = vmul.f32 %v4166, 0.25
        %v4221 = vmul.f32 %v4169, 0.25
        %v4222 = vmul.f32 %v4174, 0.25
        %v4223 = vmul.f32 %v4177, 0.25
        %v4224 = vmul.f32 %v4182, 0.25
        %v4225 = vmul.f32 %v4185, 0.25
        %v4226 = vmul.f32 %v4190, 0.25
        %v4227 = vmul.f32 %v4193, 0.25
        %v4228 = vsel %vm655, %v4196, -inf
        %4229 = vmax.xlane.f32.xlu0 %v4228
        %v4230 = vpop.xlane.xlu0 %4229
        %v4231 = vsel %vm655, %v4197, -inf
        %4232 = vmax.xlane.f32.xlu0 %v4231
        %v4233 = vpop.xlane.xlu0 %4232
        %v4234 = vsel %vm655, %v4198, -inf
        %4235 = vmax.xlane.f32.xlu0 %v4234
        %v4236 = vpop.xlane.xlu0 %4235
        %v4237 = vsel %vm655, %v4199, -inf
        %4238 = vmax.xlane.f32.xlu0 %v4237
        %v4239 = vpop.xlane.xlu0 %4238
        %v4240 = vsel %vm655, %v4200, -inf
        %4241 = vmax.xlane.f32.xlu0 %v4240
        %v4242 = vpop.xlane.xlu0 %4241
        %v4243 = vsel %vm655, %v4201, -inf
        %4244 = vmax.xlane.f32.xlu0 %v4243
        %v4245 = vpop.xlane.xlu0 %4244
        %v4246 = vsel %vm655, %v4202, -inf
        %4247 = vmax.xlane.f32.xlu0 %v4246
        %v4248 = vpop.xlane.xlu0 %4247
        %v4249 = vsel %vm655, %v4203, -inf
        %4250 = vmax.xlane.f32.xlu0 %v4249
        %v4251 = vpop.xlane.xlu0 %4250
        %v4252 = vsel %vm655, %v4204, -inf
        %4253 = vmax.xlane.f32.xlu0 %v4252
        %v4254 = vpop.xlane.xlu0 %4253
        %v4255 = vsel %vm655, %v4205, -inf
        %4256 = vmax.xlane.f32.xlu0 %v4255
        %v4257 = vpop.xlane.xlu0 %4256
        %v4258 = vsel %vm655, %v4206, -inf
        %4259 = vmax.xlane.f32.xlu0 %v4258
        %v4260 = vpop.xlane.xlu0 %4259
        %v4261 = vsel %vm655, %v4207, -inf
        %4262 = vmax.xlane.f32.xlu0 %v4261
        %v4263 = vpop.xlane.xlu0 %4262
        %v4264 = vsel %vm655, %v4208, -inf
        %4265 = vmax.xlane.f32.xlu0 %v4264
        %v4266 = vpop.xlane.xlu0 %4265
        %v4267 = vsel %vm655, %v4209, -inf
        %4268 = vmax.xlane.f32.xlu0 %v4267
        %v4269 = vpop.xlane.xlu0 %4268
        %v4270 = vsel %vm655, %v4210, -inf
        %4271 = vmax.xlane.f32.xlu0 %v4270
        %v4272 = vpop.xlane.xlu0 %4271
        %v4273 = vsel %vm655, %v4211, -inf
        %4274 = vmax.xlane.f32.xlu0 %v4273
        %v4275 = vpop.xlane.xlu0 %4274
        %v4276 = vsel %vm655, %v4212, -inf
        %4277 = vmax.xlane.f32.xlu0 %v4276
        %v4278 = vpop.xlane.xlu0 %4277
        %v4279 = vsel %vm655, %v4213, -inf
        %4280 = vmax.xlane.f32.xlu0 %v4279
        %v4281 = vpop.xlane.xlu0 %4280
        %v4282 = vsel %vm655, %v4214, -inf
        %4283 = vmax.xlane.f32.xlu0 %v4282
        %v4284 = vpop.xlane.xlu0 %4283
        %v4285 = vsel %vm655, %v4215, -inf
        %4286 = vmax.xlane.f32.xlu0 %v4285
        %v4287 = vpop.xlane.xlu0 %4286
        %v4288 = vsel %vm655, %v4216, -inf
        %4289 = vmax.xlane.f32.xlu0 %v4288
        %v4290 = vpop.xlane.xlu0 %4289
        %v4291 = vsel %vm655, %v4217, -inf
        %4292 = vmax.xlane.f32.xlu0 %v4291
        %v4293 = vpop.xlane.xlu0 %4292
        %v4294 = vsel %vm655, %v4218, -inf
        %4295 = vmax.xlane.f32.xlu0 %v4294
        %v4296 = vpop.xlane.xlu0 %4295
        %v4297 = vsel %vm655, %v4219, -inf
        %4298 = vmax.xlane.f32.xlu0 %v4297
        %v4299 = vpop.xlane.xlu0 %4298
        %v4300 = vsel %vm655, %v4220, -inf
        %4301 = vmax.xlane.f32.xlu0 %v4300
        %v4302 = vpop.xlane.xlu0 %4301
        %v4303 = vsel %vm655, %v4221, -inf
        %4304 = vmax.xlane.f32.xlu0 %v4303
        %v4305 = vpop.xlane.xlu0 %4304
        %v4306 = vsel %vm655, %v4222, -inf
        %4307 = vmax.xlane.f32.xlu0 %v4306
        %v4308 = vpop.xlane.xlu0 %4307
        %v4309 = vsel %vm655, %v4223, -inf
        %4310 = vmax.xlane.f32.xlu0 %v4309
        %v4311 = vpop.xlane.xlu0 %4310
        %v4312 = vsel %vm655, %v4224, -inf
        %4313 = vmax.xlane.f32.xlu0 %v4312
        %v4314 = vpop.xlane.xlu0 %4313
        %v4315 = vsel %vm655, %v4225, -inf
        %4316 = vmax.xlane.f32.xlu0 %v4315
        %v4317 = vpop.xlane.xlu0 %4316
        %v4318 = vsel %vm655, %v4226, -inf
        %4319 = vmax.xlane.f32.xlu0 %v4318
        %v4320 = vpop.xlane.xlu0 %4319
        %v4321 = vsel %vm655, %v4227, -inf
        %4322 = vmax.xlane.f32.xlu0 %v4321
        %v4323 = vpop.xlane.xlu0 %4322
        %v4324 = vsub.f32 %v4196, %v4230
        %v4325 = vsub.f32 %v4197, %v4233
        %v4326 = vsub.f32 %v4198, %v4236
        %v4327 = vsub.f32 %v4199, %v4239
        %v4328 = vsub.f32 %v4200, %v4242
        %v4329 = vsub.f32 %v4201, %v4245
        %v4330 = vsub.f32 %v4202, %v4248
        %v4331 = vsub.f32 %v4203, %v4251
        %v4332 = vsub.f32 %v4204, %v4254
        %v4333 = vsub.f32 %v4205, %v4257
        %v4334 = vsub.f32 %v4206, %v4260
        %v4335 = vsub.f32 %v4207, %v4263
        %v4336 = vsub.f32 %v4208, %v4266
        %v4337 = vsub.f32 %v4209, %v4269
        %v4338 = vsub.f32 %v4210, %v4272
        %v4339 = vsub.f32 %v4211, %v4275
        %v4340 = vsub.f32 %v4212, %v4278
        %v4341 = vsub.f32 %v4213, %v4281
        %v4342 = vsub.f32 %v4214, %v4284
        %v4343 = vsub.f32 %v4215, %v4287
        %v4344 = vsub.f32 %v4216, %v4290
        %v4345 = vsub.f32 %v4217, %v4293
        %v4346 = vsub.f32 %v4218, %v4296
        %v4347 = vsub.f32 %v4219, %v4299
        %v4348 = vsub.f32 %v4220, %v4302
        %v4349 = vsub.f32 %v4221, %v4305
        %v4350 = vsub.f32 %v4222, %v4308
        %v4351 = vsub.f32 %v4223, %v4311
        %v4352 = vsub.f32 %v4224, %v4314
        %v4353 = vsub.f32 %v4225, %v4317
        %v4354 = vsub.f32 %v4226, %v4320
        %v4355 = vsub.f32 %v4227, %v4323
        %v4356 = vmul.f32 %v4324, 1.442695
        %v4357 = vpow.pop %v4356
        %v4358 = vmul.f32 %v4325, 1.442695
        %v4359 = vpow.pop %v4358
        %v4360 = vmul.f32 %v4326, 1.442695
        %v4361 = vpow.pop %v4360
        %v4362 = vmul.f32 %v4327, 1.442695
        %v4363 = vpow.pop %v4362
        %v4364 = vmul.f32 %v4328, 1.442695
        %v4365 = vpow.pop %v4364
        %v4366 = vmul.f32 %v4329, 1.442695
        %v4367 = vpow.pop %v4366
        %v4368 = vmul.f32 %v4330, 1.442695
        %v4369 = vpow.pop %v4368
        %v4370 = vmul.f32 %v4331, 1.442695
        %v4371 = vpow.pop %v4370
        %v4372 = vmul.f32 %v4332, 1.442695
        %v4373 = vpow.pop %v4372
        %v4374 = vmul.f32 %v4333, 1.442695
        %v4375 = vpow.pop %v4374
        %v4376 = vmul.f32 %v4334, 1.442695
        %v4377 = vpow.pop %v4376
        %v4378 = vmul.f32 %v4335, 1.442695
        %v4379 = vpow.pop %v4378
        %v4380 = vmul.f32 %v4336, 1.442695
        %v4381 = vpow.pop %v4380
        %v4382 = vmul.f32 %v4337, 1.442695
        %v4383 = vpow.pop %v4382
        %v4384 = vmul.f32 %v4338, 1.442695
        %v4385 = vpow.pop %v4384
        %v4386 = vmul.f32 %v4339, 1.442695
        %v4387 = vpow.pop %v4386
        %v4388 = vmul.f32 %v4340, 1.442695
        %v4389 = vpow.pop %v4388
        %v4390 = vmul.f32 %v4341, 1.442695
        %v4391 = vpow.pop %v4390
        %v4392 = vmul.f32 %v4342, 1.442695
        %v4393 = vpow.pop %v4392
        %v4394 = vmul.f32 %v4343, 1.442695
        %v4395 = vpow.pop %v4394
        %v4396 = vmul.f32 %v4344, 1.442695
        %v4397 = vpow.pop %v4396
        %v4398 = vmul.f32 %v4345, 1.442695
        %v4399 = vpow.pop %v4398
        %v4400 = vmul.f32 %v4346, 1.442695
        %v4401 = vpow.pop %v4400
        %v4402 = vmul.f32 %v4347, 1.442695
        %v4403 = vpow.pop %v4402
        %v4404 = vmul.f32 %v4348, 1.442695
        %v4405 = vpow.pop %v4404
        %v4406 = vmul.f32 %v4349, 1.442695
        %v4407 = vpow.pop %v4406
        %v4408 = vmul.f32 %v4350, 1.442695
        %v4409 = vpow.pop %v4408
        %v4410 = vmul.f32 %v4351, 1.442695
        %v4411 = vpow.pop %v4410
        %v4412 = vmul.f32 %v4352, 1.442695
        %v4413 = vpow.pop %v4412
        %v4414 = vmul.f32 %v4353, 1.442695
        %v4415 = vpow.pop %v4414
        %v4416 = vmul.f32 %v4354, 1.442695
        %v4417 = vpow.pop %v4416
        %v4418 = vmul.f32 %v4355, 1.442695
        %v4419 = vpow.pop %v4418
        %v4420 = vsel %vm655, %v4357, 0.0
        %4421 = vadd.xlane.f32.xlu0 %v4420
        %v4422 = vpop.xlane.xlu0 %4421
        %v4423 = vsel %vm655, %v4359, 0.0
        %4424 = vadd.xlane.f32.xlu0 %v4423
        %v4425 = vpop.xlane.xlu0 %4424
        %v4426 = vsel %vm655, %v4361, 0.0
        %4427 = vadd.xlane.f32.xlu0 %v4426
        %v4428 = vpop.xlane.xlu0 %4427
        %v4429 = vsel %vm655, %v4363, 0.0
        %4430 = vadd.xlane.f32.xlu0 %v4429
        %v4431 = vpop.xlane.xlu0 %4430
        %v4432 = vsel %vm655, %v4365, 0.0
        %4433 = vadd.xlane.f32.xlu0 %v4432
        %v4434 = vpop.xlane.xlu0 %4433
        %v4435 = vsel %vm655, %v4367, 0.0
        %4436 = vadd.xlane.f32.xlu0 %v4435
        %v4437 = vpop.xlane.xlu0 %4436
        %v4438 = vsel %vm655, %v4369, 0.0
        %4439 = vadd.xlane.f32.xlu0 %v4438
        %v4440 = vpop.xlane.xlu0 %4439
        %v4441 = vsel %vm655, %v4371, 0.0
        %4442 = vadd.xlane.f32.xlu0 %v4441
        %v4443 = vpop.xlane.xlu0 %4442
        %v4444 = vsel %vm655, %v4373, 0.0
        %4445 = vadd.xlane.f32.xlu0 %v4444
        %v4446 = vpop.xlane.xlu0 %4445
        %v4447 = vsel %vm655, %v4375, 0.0
        %4448 = vadd.xlane.f32.xlu0 %v4447
        %v4449 = vpop.xlane.xlu0 %4448
        %v4450 = vsel %vm655, %v4377, 0.0
        %4451 = vadd.xlane.f32.xlu0 %v4450
        %v4452 = vpop.xlane.xlu0 %4451
        %v4453 = vsel %vm655, %v4379, 0.0
        %4454 = vadd.xlane.f32.xlu0 %v4453
        %v4455 = vpop.xlane.xlu0 %4454
        %v4456 = vsel %vm655, %v4381, 0.0
        %4457 = vadd.xlane.f32.xlu0 %v4456
        %v4458 = vpop.xlane.xlu0 %4457
        %v4459 = vsel %vm655, %v4383, 0.0
        %4460 = vadd.xlane.f32.xlu0 %v4459
        %v4461 = vpop.xlane.xlu0 %4460
        %v4462 = vsel %vm655, %v4385, 0.0
        %4463 = vadd.xlane.f32.xlu0 %v4462
        %v4464 = vpop.xlane.xlu0 %4463
        %v4465 = vsel %vm655, %v4387, 0.0
        %4466 = vadd.xlane.f32.xlu0 %v4465
        %v4467 = vpop.xlane.xlu0 %4466
        %v4468 = vsel %vm655, %v4389, 0.0
        %4469 = vadd.xlane.f32.xlu0 %v4468
        %v4470 = vpop.xlane.xlu0 %4469
        %v4471 = vsel %vm655, %v4391, 0.0
        %4472 = vadd.xlane.f32.xlu0 %v4471
        %v4473 = vpop.xlane.xlu0 %4472
        %v4474 = vsel %vm655, %v4393, 0.0
        %4475 = vadd.xlane.f32.xlu0 %v4474
        %v4476 = vpop.xlane.xlu0 %4475
        %v4477 = vsel %vm655, %v4395, 0.0
        %4478 = vadd.xlane.f32.xlu0 %v4477
        %v4479 = vpop.xlane.xlu0 %4478
        %v4480 = vsel %vm655, %v4397, 0.0
        %4481 = vadd.xlane.f32.xlu0 %v4480
        %v4482 = vpop.xlane.xlu0 %4481
        %v4483 = vsel %vm655, %v4399, 0.0
        %4484 = vadd.xlane.f32.xlu0 %v4483
        %v4485 = vpop.xlane.xlu0 %4484
        %v4486 = vsel %vm655, %v4401, 0.0
        %4487 = vadd.xlane.f32.xlu0 %v4486
        %v4488 = vpop.xlane.xlu0 %4487
        %v4489 = vsel %vm655, %v4403, 0.0
        %4490 = vadd.xlane.f32.xlu0 %v4489
        %v4491 = vpop.xlane.xlu0 %4490
        %v4492 = vsel %vm655, %v4405, 0.0
        %4493 = vadd.xlane.f32.xlu0 %v4492
        %v4494 = vpop.xlane.xlu0 %4493
        %v4495 = vsel %vm655, %v4407, 0.0
        %4496 = vadd.xlane.f32.xlu0 %v4495
        %v4497 = vpop.xlane.xlu0 %4496
        %v4498 = vsel %vm655, %v4409, 0.0
        %4499 = vadd.xlane.f32.xlu0 %v4498
        %v4500 = vpop.xlane.xlu0 %4499
        %v4501 = vsel %vm655, %v4411, 0.0
        %4502 = vadd.xlane.f32.xlu0 %v4501
        %v4503 = vpop.xlane.xlu0 %4502
        %v4504 = vsel %vm655, %v4413, 0.0
        %4505 = vadd.xlane.f32.xlu0 %v4504
        %v4506 = vpop.xlane.xlu0 %4505
        %v4507 = vsel %vm655, %v4415, 0.0
        %4508 = vadd.xlane.f32.xlu0 %v4507
        %v4509 = vpop.xlane.xlu0 %4508
        %v4510 = vsel %vm655, %v4417, 0.0
        %4511 = vadd.xlane.f32.xlu0 %v4510
        %v4512 = vpop.xlane.xlu0 %4511
        %v4513 = vsel %vm655, %v4419, 0.0
        %4514 = vadd.xlane.f32.xlu0 %v4513
        %v4515 = vpop.xlane.xlu0 %4514
        %v4516 = vrcp.pop %v4422
        %v4517 = vrcp.pop %v4425
        %v4518 = vrcp.pop %v4428
        %v4519 = vrcp.pop %v4431
        %v4520 = vrcp.pop %v4434
        %v4521 = vrcp.pop %v4437
        %v4522 = vrcp.pop %v4440
        %v4523 = vrcp.pop %v4443
        %v4524 = vrcp.pop %v4446
        %v4525 = vrcp.pop %v4449
        %v4526 = vrcp.pop %v4452
        %v4527 = vrcp.pop %v4455
        %v4528 = vrcp.pop %v4458
        %v4529 = vrcp.pop %v4461
        %v4530 = vrcp.pop %v4464
        %v4531 = vrcp.pop %v4467
        %v4532 = vrcp.pop %v4470
        %v4533 = vrcp.pop %v4473
        %v4534 = vrcp.pop %v4476
        %v4535 = vrcp.pop %v4479
        %v4536 = vrcp.pop %v4482
        %v4537 = vrcp.pop %v4485
        %v4538 = vrcp.pop %v4488
        %v4539 = vrcp.pop %v4491
        %v4540 = vrcp.pop %v4494
        %v4541 = vrcp.pop %v4497
        %v4542 = vrcp.pop %v4500
        %v4543 = vrcp.pop %v4503
        %v4544 = vrcp.pop %v4506
        %v4545 = vrcp.pop %v4509
        %v4546 = vrcp.pop %v4512
        %v4547 = vrcp.pop %v4515
        %v4548 = vmul.f32 %v4357, %v4516
        %v4549 = vmul.f32 %v4359, %v4517
        %v4550 = vmul.f32 %v4361, %v4518
        %v4551 = vmul.f32 %v4363, %v4519
        %v4552 = vmul.f32 %v4365, %v4520
        %v4553 = vmul.f32 %v4367, %v4521
        %v4554 = vmul.f32 %v4369, %v4522
        %v4555 = vmul.f32 %v4371, %v4523
        %v4556 = vmul.f32 %v4373, %v4524
        %v4557 = vmul.f32 %v4375, %v4525
        %v4558 = vmul.f32 %v4377, %v4526
        %v4559 = vmul.f32 %v4379, %v4527
        %v4560 = vmul.f32 %v4381, %v4528
        %v4561 = vmul.f32 %v4383, %v4529
        %v4562 = vmul.f32 %v4385, %v4530
        %v4563 = vmul.f32 %v4387, %v4531
        %v4564 = vmul.f32 %v4389, %v4532
        %v4565 = vmul.f32 %v4391, %v4533
        %v4566 = vmul.f32 %v4393, %v4534
        %v4567 = vmul.f32 %v4395, %v4535
        %v4568 = vmul.f32 %v4397, %v4536
        %v4569 = vmul.f32 %v4399, %v4537
        %v4570 = vmul.f32 %v4401, %v4538
        %v4571 = vmul.f32 %v4403, %v4539
        %v4572 = vmul.f32 %v4405, %v4540
        %v4573 = vmul.f32 %v4407, %v4541
        %v4574 = vmul.f32 %v4409, %v4542
        %v4575 = vmul.f32 %v4411, %v4543
        %v4576 = vmul.f32 %v4413, %v4544
        %v4577 = vmul.f32 %v4415, %v4545
        %v4578 = vmul.f32 %v4417, %v4546
        %v4579 = vmul.f32 %v4419, %v4547
        %v4580 = vpack.c.bf16 %v4549, %v4548
        %v4581 = vpack.c.bf16 %v4551, %v4550
        %v4582 = vpack.c.bf16 %v4553, %v4552
        %v4583 = vpack.c.bf16 %v4555, %v4554
        %v4584 = vpack.c.bf16 %v4557, %v4556
        %v4585 = vpack.c.bf16 %v4559, %v4558
        %v4586 = vpack.c.bf16 %v4561, %v4560
        %v4587 = vpack.c.bf16 %v4563, %v4562
        %v4588 = vpack.c.bf16 %v4565, %v4564
        %v4589 = vpack.c.bf16 %v4567, %v4566
        %v4590 = vpack.c.bf16 %v4569, %v4568
        %v4591 = vpack.c.bf16 %v4571, %v4570
        %v4592 = vpack.c.bf16 %v4573, %v4572
        %v4593 = vpack.c.bf16 %v4575, %v4574
        %v4594 = vpack.c.bf16 %v4577, %v4576
        %v4595 = vpack.c.bf16 %v4579, %v4578
        %4596 = vrot.lane.b32.xlu0 %v2151, 32
        %v4597 = vpop.permute.xlu0 %4596
        %4598 = vrot.lane.b32.xlu0 %v2152, 32
        %v4599 = vpop.permute.xlu0 %4598
        %4600 = vrot.lane.b32.xlu0 %v2153, 32
        %v4601 = vpop.permute.xlu0 %4600
        %4602 = vrot.lane.b32.xlu0 %v2154, 32
        %v4603 = vpop.permute.xlu0 %4602
        %v4609 = vsel %vm655, %v4580, 0
        %v4612 = vsel %vm655, %v4581, 0
        %v4615 = vsel %vm655, %v4582, 0
        %v4618 = vsel %vm655, %v4583, 0
        %v4621 = vsel %vm655, %v4584, 0
        %v4624 = vsel %vm655, %v4585, 0
        %v4627 = vsel %vm655, %v4586, 0
        %v4630 = vsel %vm655, %v4587, 0
        %v4633 = vsel %vm655, %v4588, 0
        %v4636 = vsel %vm655, %v4589, 0
        %v4639 = vsel %vm655, %v4590, 0
        %v4642 = vsel %vm655, %v4591, 0
        %v4645 = vsel %vm655, %v4592, 0
        %v4648 = vsel %vm655, %v4593, 0
        %v4651 = vsel %vm655, %v4594, 0
        %v4654 = vsel %vm655, %v4595, 0
        %4656 = vmatprep.subr.bf16.mxu0 0
        %4657 = vmatpush1.bf16.msra.mxu0 %v4597
        %4658 = vmatprep.subr.bf16.mxu0 0
        %4659 = vmatpush1.bf16.msra.mxu0 %v4599
        %4660 = vmatprep.subr.bf16.mxu0 0
        %4661 = vmatpush1.bf16.msra.mxu0 %v4601
        %4662 = vmatprep.subr.bf16.mxu0 0
        %4663 = vmatpush1.bf16.msra.mxu0 %v4603
        %4664 = vmatprep.subr.bf16.mxu0 0
        %4665 = vmatpush1.bf16.msra.mxu0 0
        %4666 = vmatprep.subr.bf16.mxu0 0
        %4667 = vmatpush1.bf16.msra.mxu0 0
        %4668 = vmatprep.subr.bf16.mxu0 0
        %4669 = vmatpush1.bf16.msra.mxu0 0
        %4670 = vmatprep.subr.bf16.mxu0 0
        %4671 = vmatpush1.bf16.msra.mxu0 0
        %4672 = vmatprep.subr.bf16.mxu0 0
        %4673 = vmatpush1.bf16.msra.mxu0 0
        %4674 = vmatprep.subr.bf16.mxu0 0
        %4675 = vmatpush1.bf16.msra.mxu0 0
        %4676 = vmatprep.subr.bf16.mxu0 0
        %4677 = vmatpush1.bf16.msra.mxu0 0
        %4678 = vmatprep.subr.bf16.mxu0 0
        %4679 = vmatpush1.bf16.msra.mxu0 0
        %4680 = vmatprep.subr.bf16.mxu0 0
        %4681 = vmatpush1.bf16.msra.mxu0 0
        %4682 = vmatprep.subr.bf16.mxu0 0
        %4683 = vmatpush1.bf16.msra.mxu0 0
        %4684 = vmatprep.subr.bf16.mxu0 0
        %4685 = vmatpush1.bf16.msra.mxu0 0
        %4686 = vmatprep.subr.bf16.mxu0 0
        %4687 = vmatpush1.bf16.msra.mxu0 0
        %4688 = vmatprep.mubr.bf16.mxu0 0
        %4689 = vmatmul.mubr.bf16.gmra.mrb[0].mxu0 %v4609
        %v4690 = vpop.f32.mrb[0].mxu0
        %v4691 = vadd.f32 0.0, %v4690
        %v4692 = vpop.f32.mrb[0].mxu0
        %v4693 = vpop.f32.mrb[0].mxu0
        %v4694 = vadd.f32 0.0, %v4693
        %v4695 = vpop.f32.mrb[0].mxu0
        %4696 = vmatprep.mubr.bf16.mxu0 0
        %4697 = vmatmul.mubr.bf16.gmra.mrb[0].mxu0 %v4612
        %v4698 = vpop.f32.mrb[0].mxu0
        %v4699 = vadd.f32 0.0, %v4698
        %v4700 = vpop.f32.mrb[0].mxu0
        %v4701 = vpop.f32.mrb[0].mxu0
        %v4702 = vadd.f32 0.0, %v4701
        %v4703 = vpop.f32.mrb[0].mxu0
        %4704 = vmatprep.mubr.bf16.mxu0 0
        %4705 = vmatmul.mubr.bf16.gmra.mrb[0].mxu0 %v4615
        %v4706 = vpop.f32.mrb[0].mxu0
        %v4707 = vadd.f32 0.0, %v4706
        %v4708 = vpop.f32.mrb[0].mxu0
        %v4709 = vpop.f32.mrb[0].mxu0
        %v4710 = vadd.f32 0.0, %v4709
        %v4711 = vpop.f32.mrb[0].mxu0
        %4712 = vmatprep.mubr.bf16.mxu0 0
        %4713 = vmatmul.mubr.bf16.gmra.mrb[0].mxu0 %v4618
        %v4714 = vpop.f32.mrb[0].mxu0
        %v4715 = vadd.f32 0.0, %v4714
        %v4716 = vpop.f32.mrb[0].mxu0
        %v4717 = vpop.f32.mrb[0].mxu0
        %v4718 = vadd.f32 0.0, %v4717
        %v4719 = vpop.f32.mrb[0].mxu0
        %4720 = vmatprep.mubr.bf16.mxu0 0
        %4721 = vmatmul.mubr.bf16.gmra.mrb[0].mxu0 %v4621
        %v4722 = vpop.f32.mrb[0].mxu0
        %v4723 = vadd.f32 0.0, %v4722
        %v4724 = vpop.f32.mrb[0].mxu0
        %v4725 = vpop.f32.mrb[0].mxu0
        %v4726 = vadd.f32 0.0, %v4725
        %v4727 = vpop.f32.mrb[0].mxu0
        %4728 = vmatprep.mubr.bf16.mxu0 0
        %4729 = vmatmul.mubr.bf16.gmra.mrb[0].mxu0 %v4624
        %v4730 = vpop.f32.mrb[0].mxu0
        %v4731 = vadd.f32 0.0, %v4730
        %v4732 = vpop.f32.mrb[0].mxu0
        %v4733 = vpop.f32.mrb[0].mxu0
        %v4734 = vadd.f32 0.0, %v4733
        %v4735 = vpop.f32.mrb[0].mxu0
        %4736 = vmatprep.mubr.bf16.mxu0 0
        %4737 = vmatmul.mubr.bf16.gmra.mrb[0].mxu0 %v4627
        %v4738 = vpop.f32.mrb[0].mxu0
        %v4739 = vadd.f32 0.0, %v4738
        %v4740 = vpop.f32.mrb[0].mxu0
        %v4741 = vpop.f32.mrb[0].mxu0
        %v4742 = vadd.f32 0.0, %v4741
        %v4743 = vpop.f32.mrb[0].mxu0
        %4744 = vmatprep.mubr.bf16.mxu0 0
        %4745 = vmatmul.mubr.bf16.gmra.mrb[0].mxu0 %v4630
        %v4746 = vpop.f32.mrb[0].mxu0
        %v4747 = vadd.f32 0.0, %v4746
        %v4748 = vpop.f32.mrb[0].mxu0
        %v4749 = vpop.f32.mrb[0].mxu0
        %v4750 = vadd.f32 0.0, %v4749
        %v4751 = vpop.f32.mrb[0].mxu0
        %4752 = vmatprep.mubr.bf16.mxu0 0
        %4753 = vmatmul.mubr.bf16.gmra.mrb[0].mxu0 %v4633
        %v4754 = vpop.f32.mrb[0].mxu0
        %v4755 = vadd.f32 0.0, %v4754
        %v4756 = vpop.f32.mrb[0].mxu0
        %v4757 = vpop.f32.mrb[0].mxu0
        %v4758 = vadd.f32 0.0, %v4757
        %v4759 = vpop.f32.mrb[0].mxu0
        %4760 = vmatprep.mubr.bf16.mxu0 0
        %4761 = vmatmul.mubr.bf16.gmra.mrb[0].mxu0 %v4636
        %v4762 = vpop.f32.mrb[0].mxu0
        %v4763 = vadd.f32 0.0, %v4762
        %v4764 = vpop.f32.mrb[0].mxu0
        %v4765 = vpop.f32.mrb[0].mxu0
        %v4766 = vadd.f32 0.0, %v4765
        %v4767 = vpop.f32.mrb[0].mxu0
        %4768 = vmatprep.mubr.bf16.mxu0 0
        %4769 = vmatmul.mubr.bf16.gmra.mrb[0].mxu0 %v4639
        %v4770 = vpop.f32.mrb[0].mxu0
        %v4771 = vadd.f32 0.0, %v4770
        %v4772 = vpop.f32.mrb[0].mxu0
        %v4773 = vpop.f32.mrb[0].mxu0
        %v4774 = vadd.f32 0.0, %v4773
        %v4775 = vpop.f32.mrb[0].mxu0
        %4776 = vmatprep.mubr.bf16.mxu0 0
        %4777 = vmatmul.mubr.bf16.gmra.mrb[0].mxu0 %v4642
        %v4778 = vpop.f32.mrb[0].mxu0
        %v4779 = vadd.f32 0.0, %v4778
        %v4780 = vpop.f32.mrb[0].mxu0
        %v4781 = vpop.f32.mrb[0].mxu0
        %v4782 = vadd.f32 0.0, %v4781
        %v4783 = vpop.f32.mrb[0].mxu0
        %4784 = vmatprep.mubr.bf16.mxu0 0
        %4785 = vmatmul.mubr.bf16.gmra.mrb[0].mxu0 %v4645
        %v4786 = vpop.f32.mrb[0].mxu0
        %v4787 = vadd.f32 0.0, %v4786
        %v4788 = vpop.f32.mrb[0].mxu0
        %v4789 = vpop.f32.mrb[0].mxu0
        %v4790 = vadd.f32 0.0, %v4789
        %v4791 = vpop.f32.mrb[0].mxu0
        %4792 = vmatprep.mubr.bf16.mxu0 0
        %4793 = vmatmul.mubr.bf16.gmra.mrb[0].mxu0 %v4648
        %v4794 = vpop.f32.mrb[0].mxu0
        %v4795 = vadd.f32 0.0, %v4794
        %v4796 = vpop.f32.mrb[0].mxu0
        %v4797 = vpop.f32.mrb[0].mxu0
        %v4798 = vadd.f32 0.0, %v4797
        %v4799 = vpop.f32.mrb[0].mxu0
        %4800 = vmatprep.mubr.bf16.mxu0 0
        %4801 = vmatmul.mubr.bf16.gmra.mrb[0].mxu0 %v4651
        %v4802 = vpop.f32.mrb[0].mxu0
        %v4803 = vadd.f32 0.0, %v4802
        %v4804 = vpop.f32.mrb[0].mxu0
        %v4805 = vpop.f32.mrb[0].mxu0
        %v4806 = vadd.f32 0.0, %v4805
        %v4807 = vpop.f32.mrb[0].mxu0
        %4808 = vmatprep.mubr.bf16.mxu0 0
        %4809 = vmatmul.mubr.bf16.gmra.mrb[0].mxu0 %v4654
        %v4810 = vpop.f32.mrb[0].mxu0
        %v4811 = vadd.f32 0.0, %v4810
        %v4812 = vpop.f32.mrb[0].mxu0
        %v4813 = vpop.f32.mrb[0].mxu0
        %v4814 = vadd.f32 0.0, %v4813
        %v4815 = vpop.f32.mrb[0].mxu0
        %4816 = vdwg.mxu0
        %v4817 = vadd.f32 %v3911, %v4691
        %v4818 = vadd.f32 %v3912, %v4694
        %v4819 = vadd.f32 %v3913, %v4699
        %v4820 = vadd.f32 %v3914, %v4702
        %v4821 = vadd.f32 %v3915, %v4707
        %v4822 = vadd.f32 %v3916, %v4710
        %v4823 = vadd.f32 %v3917, %v4715
        %v4824 = vadd.f32 %v3918, %v4718
        %v4825 = vadd.f32 %v3919, %v4723
        %v4826 = vadd.f32 %v3920, %v4726
        %v4827 = vadd.f32 %v3921, %v4731
        %v4828 = vadd.f32 %v3922, %v4734
        %v4829 = vadd.f32 %v3923, %v4739
        %v4830 = vadd.f32 %v3924, %v4742
        %v4831 = vadd.f32 %v3925, %v4747
        %v4832 = vadd.f32 %v3926, %v4750
        %v4833 = vadd.f32 %v3927, %v4755
        %v4834 = vadd.f32 %v3928, %v4758
        %v4835 = vadd.f32 %v3929, %v4763
        %v4836 = vadd.f32 %v3930, %v4766
        %v4837 = vadd.f32 %v3931, %v4771
        %v4838 = vadd.f32 %v3932, %v4774
        %v4839 = vadd.f32 %v3933, %v4779
        %v4840 = vadd.f32 %v3934, %v4782
        %v4841 = vadd.f32 %v3935, %v4787
        %v4842 = vadd.f32 %v3936, %v4790
        %v4843 = vadd.f32 %v3937, %v4795
        %v4844 = vadd.f32 %v3938, %v4798
        %v4845 = vadd.f32 %v3939, %v4803
        %v4846 = vadd.f32 %v3940, %v4806
        %v4847 = vadd.f32 %v3941, %v4811
        %v4848 = vadd.f32 %v3942, %v4814
        %v4849 = vld [vmem:[%s218 + $0x8] sm:$0xf]
        %v4850 = vld [vmem:[%s218 + $0x14] sm:$0xf]
        %v4851 = vld [vmem:[%s218 + $0x20] sm:$0xf]
        %v4852 = vld [vmem:[%s218 + $0x2c] sm:$0xf]
        %v4853 = vld [vmem:[%s218 + $0x38] sm:$0xf]
        %v4854 = vld [vmem:[%s218 + $0x44] sm:$0xf]
        %v4855 = vld [vmem:[%s218 + $0x50] sm:$0xf]
        %v4856 = vld [vmem:[%s218 + $0x5c] sm:$0xf]
        %4857 = vrot.lane.b32.xlu0 %v325, 80
        %v4858 = vpop.permute.xlu0 %4857
        %4859 = vrot.lane.b32.xlu0 %v326, 80
        %v4860 = vpop.permute.xlu0 %4859
        %4861 = vrot.lane.b32.xlu0 %v327, 80
        %v4862 = vpop.permute.xlu0 %4861
        %4863 = vrot.lane.b32.xlu0 %v328, 80
        %v4864 = vpop.permute.xlu0 %4863
        %4865 = vrot.lane.b32.xlu0 %v329, 80
        %v4866 = vpop.permute.xlu0 %4865
        %4867 = vrot.lane.b32.xlu0 %v330, 80
        %v4868 = vpop.permute.xlu0 %4867
        %4869 = vrot.lane.b32.xlu0 %v331, 80
        %v4870 = vpop.permute.xlu0 %4869
        %4871 = vrot.lane.b32.xlu0 %v332, 80
        %v4872 = vpop.permute.xlu0 %4871
        %4873 = vrot.lane.b32.xlu0 %v333, 80
        %v4874 = vpop.permute.xlu0 %4873
        %4875 = vrot.lane.b32.xlu0 %v334, 80
        %v4876 = vpop.permute.xlu0 %4875
        %4877 = vrot.lane.b32.xlu0 %v335, 80
        %v4878 = vpop.permute.xlu0 %4877
        %4879 = vrot.lane.b32.xlu0 %v336, 80
        %v4880 = vpop.permute.xlu0 %4879
        %4881 = vrot.lane.b32.xlu0 %v337, 80
        %v4882 = vpop.permute.xlu0 %4881
        %4883 = vrot.lane.b32.xlu0 %v338, 80
        %v4884 = vpop.permute.xlu0 %4883
        %4885 = vrot.lane.b32.xlu0 %v339, 80
        %v4886 = vpop.permute.xlu0 %4885
        %4887 = vrot.lane.b32.xlu0 %v340, 80
        %v4888 = vpop.permute.xlu0 %4887
        %4889 = vrot.lane.b32.xlu0 %v389, 112
        %v4890 = vpop.permute.xlu0 %4889
        %4891 = vrot.lane.b32.xlu0 %v390, 112
        %v4892 = vpop.permute.xlu0 %4891
        %4893 = vrot.lane.b32.xlu0 %v391, 112
        %v4894 = vpop.permute.xlu0 %4893
        %4895 = vrot.lane.b32.xlu0 %v392, 112
        %v4896 = vpop.permute.xlu0 %4895
        %v4898 = vsel %vm401, %v4858, 0
        %v4901 = vsel %vm401, %v4860, 0
        %v4904 = vsel %vm401, %v4862, 0
        %v4907 = vsel %vm401, %v4864, 0
        %v4910 = vsel %vm401, %v4866, 0
        %v4913 = vsel %vm401, %v4868, 0
        %v4916 = vsel %vm401, %v4870, 0
        %v4919 = vsel %vm401, %v4872, 0
        %v4922 = vsel %vm401, %v4874, 0
        %v4925 = vsel %vm401, %v4876, 0
        %v4928 = vsel %vm401, %v4878, 0
        %v4931 = vsel %vm401, %v4880, 0
        %v4934 = vsel %vm401, %v4882, 0
        %v4937 = vsel %vm401, %v4884, 0
        %v4940 = vsel %vm401, %v4886, 0
        %v4943 = vsel %vm401, %v4888, 0
        %v4946 = vsel %vm401, %v4890, 0
        %v4949 = vsel %vm401, %v4892, 0
        %v4952 = vsel %vm401, %v4894, 0
        %v4955 = vsel %vm401, %v4896, 0
        %4957 = vmatprep.subr.bf16.mxu0 0
        %4958 = vmatpush1.bf16.xpose.msra.mxu0 %v4946
        %4959 = vmatprep.subr.bf16.mxu0 0
        %4960 = vmatpush1.bf16.xpose.msra.mxu0 %v4949
        %4961 = vmatprep.subr.bf16.mxu0 0
        %4962 = vmatpush1.bf16.xpose.msra.mxu0 %v4952
        %4963 = vmatprep.subr.bf16.mxu0 0
        %4964 = vmatpush1.bf16.xpose.msra.mxu0 %v4955
        %4965 = vmatprep.subr.bf16.mxu0 0
        %4966 = vmatpush1.bf16.xpose.msra.mxu0 0
        %4967 = vmatprep.subr.bf16.mxu0 0
        %4968 = vmatpush1.bf16.xpose.msra.mxu0 0
        %4969 = vmatprep.subr.bf16.mxu0 0
        %4970 = vmatpush1.bf16.xpose.msra.mxu0 0
        %4971 = vmatprep.subr.bf16.mxu0 0
        %4972 = vmatpush1.bf16.xpose.msra.mxu0 0
        %4973 = vmatprep.subr.bf16.mxu0 0
        %4974 = vmatpush1.bf16.xpose.msra.mxu0 0
        %4975 = vmatprep.subr.bf16.mxu0 0
        %4976 = vmatpush1.bf16.xpose.msra.mxu0 0
        %4977 = vmatprep.subr.bf16.mxu0 0
        %4978 = vmatpush1.bf16.xpose.msra.mxu0 0
        %4979 = vmatprep.subr.bf16.mxu0 0
        %4980 = vmatpush1.bf16.xpose.msra.mxu0 0
        %4981 = vmatprep.subr.bf16.mxu0 0
        %4982 = vmatpush1.bf16.xpose.msra.mxu0 0
        %4983 = vmatprep.subr.bf16.mxu0 0
        %4984 = vmatpush1.bf16.xpose.msra.mxu0 0
        %4985 = vmatprep.subr.bf16.mxu0 0
        %4986 = vmatpush1.bf16.xpose.msra.mxu0 0
        %4987 = vmatprep.subr.bf16.mxu0 0
        %4988 = vmatpush1.bf16.xpose.msra.mxu0 0
        %4989 = vmatprep.mubr.bf16.mxu0 0
        %4990 = vmatmul.mubr.bf16.gmra.mrb[0].mxu0 %v4898
        %v4991 = vpop.f32.mrb[0].mxu0
        %v4992 = vadd.f32 0.0, %v4991
        %v4993 = vpop.f32.mrb[0].mxu0
        %v4994 = vpop.f32.mrb[0].mxu0
        %v4995 = vadd.f32 0.0, %v4994
        %v4996 = vpop.f32.mrb[0].mxu0
        %4997 = vmatprep.mubr.bf16.mxu0 0
        %4998 = vmatmul.mubr.bf16.gmra.mrb[0].mxu0 %v4901
        %v4999 = vpop.f32.mrb[0].mxu0
        %v5000 = vadd.f32 0.0, %v4999
        %v5001 = vpop.f32.mrb[0].mxu0
        %v5002 = vpop.f32.mrb[0].mxu0
        %v5003 = vadd.f32 0.0, %v5002
        %v5004 = vpop.f32.mrb[0].mxu0
        %5005 = vmatprep.mubr.bf16.mxu0 0
        %5006 = vmatmul.mubr.bf16.gmra.mrb[0].mxu0 %v4904
        %v5007 = vpop.f32.mrb[0].mxu0
        %v5008 = vadd.f32 0.0, %v5007
        %v5009 = vpop.f32.mrb[0].mxu0
        %v5010 = vpop.f32.mrb[0].mxu0
        %v5011 = vadd.f32 0.0, %v5010
        %v5012 = vpop.f32.mrb[0].mxu0
        %5013 = vmatprep.mubr.bf16.mxu0 0
        %5014 = vmatmul.mubr.bf16.gmra.mrb[0].mxu0 %v4907
        %v5015 = vpop.f32.mrb[0].mxu0
        %v5016 = vadd.f32 0.0, %v5015
        %v5017 = vpop.f32.mrb[0].mxu0
        %v5018 = vpop.f32.mrb[0].mxu0
        %v5019 = vadd.f32 0.0, %v5018
        %v5020 = vpop.f32.mrb[0].mxu0
        %5021 = vmatprep.mubr.bf16.mxu0 0
        %5022 = vmatmul.mubr.bf16.gmra.mrb[0].mxu0 %v4910
        %v5023 = vpop.f32.mrb[0].mxu0
        %v5024 = vadd.f32 0.0, %v5023
        %v5025 = vpop.f32.mrb[0].mxu0
        %v5026 = vpop.f32.mrb[0].mxu0
        %v5027 = vadd.f32 0.0, %v5026
        %v5028 = vpop.f32.mrb[0].mxu0
        %5029 = vmatprep.mubr.bf16.mxu0 0
        %5030 = vmatmul.mubr.bf16.gmra.mrb[0].mxu0 %v4913
        %v5031 = vpop.f32.mrb[0].mxu0
        %v5032 = vadd.f32 0.0, %v5031
        %v5033 = vpop.f32.mrb[0].mxu0
        %v5034 = vpop.f32.mrb[0].mxu0
        %v5035 = vadd.f32 0.0, %v5034
        %v5036 = vpop.f32.mrb[0].mxu0
        %5037 = vmatprep.mubr.bf16.mxu0 0
        %5038 = vmatmul.mubr.bf16.gmra.mrb[0].mxu0 %v4916
        %v5039 = vpop.f32.mrb[0].mxu0
        %v5040 = vadd.f32 0.0, %v5039
        %v5041 = vpop.f32.mrb[0].mxu0
        %v5042 = vpop.f32.mrb[0].mxu0
        %v5043 = vadd.f32 0.0, %v5042
        %v5044 = vpop.f32.mrb[0].mxu0
        %5045 = vmatprep.mubr.bf16.mxu0 0
        %5046 = vmatmul.mubr.bf16.gmra.mrb[0].mxu0 %v4919
        %v5047 = vpop.f32.mrb[0].mxu0
        %v5048 = vadd.f32 0.0, %v5047
        %v5049 = vpop.f32.mrb[0].mxu0
        %v5050 = vpop.f32.mrb[0].mxu0
        %v5051 = vadd.f32 0.0, %v5050
        %v5052 = vpop.f32.mrb[0].mxu0
        %5053 = vmatprep.mubr.bf16.mxu0 0
        %5054 = vmatmul.mubr.bf16.gmra.mrb[0].mxu0 %v4922
        %v5055 = vpop.f32.mrb[0].mxu0
        %v5056 = vadd.f32 0.0, %v5055
        %v5057 = vpop.f32.mrb[0].mxu0
        %v5058 = vpop.f32.mrb[0].mxu0
        %v5059 = vadd.f32 0.0, %v5058
        %v5060 = vpop.f32.mrb[0].mxu0
        %5061 = vmatprep.mubr.bf16.mxu0 0
        %5062 = vmatmul.mubr.bf16.gmra.mrb[0].mxu0 %v4925
        %v5063 = vpop.f32.mrb[0].mxu0
        %v5064 = vadd.f32 0.0, %v5063
        %v5065 = vpop.f32.mrb[0].mxu0
        %v5066 = vpop.f32.mrb[0].mxu0
        %v5067 = vadd.f32 0.0, %v5066
        %v5068 = vpop.f32.mrb[0].mxu0
        %5069 = vmatprep.mubr.bf16.mxu0 0
        %5070 = vmatmul.mubr.bf16.gmra.mrb[0].mxu0 %v4928
        %v5071 = vpop.f32.mrb[0].mxu0
        %v5072 = vadd.f32 0.0, %v5071
        %v5073 = vpop.f32.mrb[0].mxu0
        %v5074 = vpop.f32.mrb[0].mxu0
        %v5075 = vadd.f32 0.0, %v5074
        %v5076 = vpop.f32.mrb[0].mxu0
        %5077 = vmatprep.mubr.bf16.mxu0 0
        %5078 = vmatmul.mubr.bf16.gmra.mrb[0].mxu0 %v4931
        %v5079 = vpop.f32.mrb[0].mxu0
        %v5080 = vadd.f32 0.0, %v5079
        %v5081 = vpop.f32.mrb[0].mxu0
        %v5082 = vpop.f32.mrb[0].mxu0
        %v5083 = vadd.f32 0.0, %v5082
        %v5084 = vpop.f32.mrb[0].mxu0
        %5085 = vmatprep.mubr.bf16.mxu0 0
        %5086 = vmatmul.mubr.bf16.gmra.mrb[0].mxu0 %v4934
        %v5087 = vpop.f32.mrb[0].mxu0
        %v5088 = vadd.f32 0.0, %v5087
        %v5089 = vpop.f32.mrb[0].mxu0
        %v5090 = vpop.f32.mrb[0].mxu0
        %v5091 = vadd.f32 0.0, %v5090
        %v5092 = vpop.f32.mrb[0].mxu0
        %5093 = vmatprep.mubr.bf16.mxu0 0
        %5094 = vmatmul.mubr.bf16.gmra.mrb[0].mxu0 %v4937
        %v5095 = vpop.f32.mrb[0].mxu0
        %v5096 = vadd.f32 0.0, %v5095
        %v5097 = vpop.f32.mrb[0].mxu0
        %v5098 = vpop.f32.mrb[0].mxu0
        %v5099 = vadd.f32 0.0, %v5098
        %v5100 = vpop.f32.mrb[0].mxu0
        %5101 = vmatprep.mubr.bf16.mxu0 0
        %5102 = vmatmul.mubr.bf16.gmra.mrb[0].mxu0 %v4940
        %v5103 = vpop.f32.mrb[0].mxu0
        %v5104 = vadd.f32 0.0, %v5103
        %v5105 = vpop.f32.mrb[0].mxu0
        %v5106 = vpop.f32.mrb[0].mxu0
        %v5107 = vadd.f32 0.0, %v5106
        %v5108 = vpop.f32.mrb[0].mxu0
        %5109 = vmatprep.mubr.bf16.mxu0 0
        %5110 = vmatmul.mubr.bf16.gmra.mrb[0].mxu0 %v4943
        %v5111 = vpop.f32.mrb[0].mxu0
        %v5112 = vadd.f32 0.0, %v5111
        %v5113 = vpop.f32.mrb[0].mxu0
        %v5114 = vpop.f32.mrb[0].mxu0
        %v5115 = vadd.f32 0.0, %v5114
        %v5116 = vpop.f32.mrb[0].mxu0
        %5117 = vdwg.mxu0
        %v5118 = vmul.f32 %v4992, 0.25
        %v5119 = vmul.f32 %v4995, 0.25
        %v5120 = vmul.f32 %v5000, 0.25
        %v5121 = vmul.f32 %v5003, 0.25
        %v5122 = vmul.f32 %v5008, 0.25
        %v5123 = vmul.f32 %v5011, 0.25
        %v5124 = vmul.f32 %v5016, 0.25
        %v5125 = vmul.f32 %v5019, 0.25
        %v5126 = vmul.f32 %v5024, 0.25
        %v5127 = vmul.f32 %v5027, 0.25
        %v5128 = vmul.f32 %v5032, 0.25
        %v5129 = vmul.f32 %v5035, 0.25
        %v5130 = vmul.f32 %v5040, 0.25
        %v5131 = vmul.f32 %v5043, 0.25
        %v5132 = vmul.f32 %v5048, 0.25
        %v5133 = vmul.f32 %v5051, 0.25
        %v5134 = vmul.f32 %v5056, 0.25
        %v5135 = vmul.f32 %v5059, 0.25
        %v5136 = vmul.f32 %v5064, 0.25
        %v5137 = vmul.f32 %v5067, 0.25
        %v5138 = vmul.f32 %v5072, 0.25
        %v5139 = vmul.f32 %v5075, 0.25
        %v5140 = vmul.f32 %v5080, 0.25
        %v5141 = vmul.f32 %v5083, 0.25
        %v5142 = vmul.f32 %v5088, 0.25
        %v5143 = vmul.f32 %v5091, 0.25
        %v5144 = vmul.f32 %v5096, 0.25
        %v5145 = vmul.f32 %v5099, 0.25
        %v5146 = vmul.f32 %v5104, 0.25
        %v5147 = vmul.f32 %v5107, 0.25
        %v5148 = vmul.f32 %v5112, 0.25
        %v5149 = vmul.f32 %v5115, 0.25
        %v5150 = vsel %vm655, %v5118, -inf
        %5151 = vmax.xlane.f32.xlu0 %v5150
        %v5152 = vpop.xlane.xlu0 %5151
        %v5153 = vsel %vm655, %v5119, -inf
        %5154 = vmax.xlane.f32.xlu0 %v5153
        %v5155 = vpop.xlane.xlu0 %5154
        %v5156 = vsel %vm655, %v5120, -inf
        %5157 = vmax.xlane.f32.xlu0 %v5156
        %v5158 = vpop.xlane.xlu0 %5157
        %v5159 = vsel %vm655, %v5121, -inf
        %5160 = vmax.xlane.f32.xlu0 %v5159
        %v5161 = vpop.xlane.xlu0 %5160
        %v5162 = vsel %vm655, %v5122, -inf
        %5163 = vmax.xlane.f32.xlu0 %v5162
        %v5164 = vpop.xlane.xlu0 %5163
        %v5165 = vsel %vm655, %v5123, -inf
        %5166 = vmax.xlane.f32.xlu0 %v5165
        %v5167 = vpop.xlane.xlu0 %5166
        %v5168 = vsel %vm655, %v5124, -inf
        %5169 = vmax.xlane.f32.xlu0 %v5168
        %v5170 = vpop.xlane.xlu0 %5169
        %v5171 = vsel %vm655, %v5125, -inf
        %5172 = vmax.xlane.f32.xlu0 %v5171
        %v5173 = vpop.xlane.xlu0 %5172
        %v5174 = vsel %vm655, %v5126, -inf
        %5175 = vmax.xlane.f32.xlu0 %v5174
        %v5176 = vpop.xlane.xlu0 %5175
        %v5177 = vsel %vm655, %v5127, -inf
        %5178 = vmax.xlane.f32.xlu0 %v5177
        %v5179 = vpop.xlane.xlu0 %5178
        %v5180 = vsel %vm655, %v5128, -inf
        %5181 = vmax.xlane.f32.xlu0 %v5180
        %v5182 = vpop.xlane.xlu0 %5181
        %v5183 = vsel %vm655, %v5129, -inf
        %5184 = vmax.xlane.f32.xlu0 %v5183
        %v5185 = vpop.xlane.xlu0 %5184
        %v5186 = vsel %vm655, %v5130, -inf
        %5187 = vmax.xlane.f32.xlu0 %v5186
        %v5188 = vpop.xlane.xlu0 %5187
        %v5189 = vsel %vm655, %v5131, -inf
        %5190 = vmax.xlane.f32.xlu0 %v5189
        %v5191 = vpop.xlane.xlu0 %5190
        %v5192 = vsel %vm655, %v5132, -inf
        %5193 = vmax.xlane.f32.xlu0 %v5192
        %v5194 = vpop.xlane.xlu0 %5193
        %v5195 = vsel %vm655, %v5133, -inf
        %5196 = vmax.xlane.f32.xlu0 %v5195
        %v5197 = vpop.xlane.xlu0 %5196
        %v5198 = vsel %vm655, %v5134, -inf
        %5199 = vmax.xlane.f32.xlu0 %v5198
        %v5200 = vpop.xlane.xlu0 %5199
        %v5201 = vsel %vm655, %v5135, -inf
        %5202 = vmax.xlane.f32.xlu0 %v5201
        %v5203 = vpop.xlane.xlu0 %5202
        %v5204 = vsel %vm655, %v5136, -inf
        %5205 = vmax.xlane.f32.xlu0 %v5204
        %v5206 = vpop.xlane.xlu0 %5205
        %v5207 = vsel %vm655, %v5137, -inf
        %5208 = vmax.xlane.f32.xlu0 %v5207
        %v5209 = vpop.xlane.xlu0 %5208
        %v5210 = vsel %vm655, %v5138, -inf
        %5211 = vmax.xlane.f32.xlu0 %v5210
        %v5212 = vpop.xlane.xlu0 %5211
        %v5213 = vsel %vm655, %v5139, -inf
        %5214 = vmax.xlane.f32.xlu0 %v5213
        %v5215 = vpop.xlane.xlu0 %5214
        %v5216 = vsel %vm655, %v5140, -inf
        %5217 = vmax.xlane.f32.xlu0 %v5216
        %v5218 = vpop.xlane.xlu0 %5217
        %v5219 = vsel %vm655, %v5141, -inf
        %5220 = vmax.xlane.f32.xlu0 %v5219
        %v5221 = vpop.xlane.xlu0 %5220
        %v5222 = vsel %vm655, %v5142, -inf
        %5223 = vmax.xlane.f32.xlu0 %v5222
        %v5224 = vpop.xlane.xlu0 %5223
        %v5225 = vsel %vm655, %v5143, -inf
        %5226 = vmax.xlane.f32.xlu0 %v5225
        %v5227 = vpop.xlane.xlu0 %5226
        %v5228 = vsel %vm655, %v5144, -inf
        %5229 = vmax.xlane.f32.xlu0 %v5228
        %v5230 = vpop.xlane.xlu0 %5229
        %v5231 = vsel %vm655, %v5145, -inf
        %5232 = vmax.xlane.f32.xlu0 %v5231
        %v5233 = vpop.xlane.xlu0 %5232
        %v5234 = vsel %vm655, %v5146, -inf
        %5235 = vmax.xlane.f32.xlu0 %v5234
        %v5236 = vpop.xlane.xlu0 %5235
        %v5237 = vsel %vm655, %v5147, -inf
        %5238 = vmax.xlane.f32.xlu0 %v5237
        %v5239 = vpop.xlane.xlu0 %5238
        %v5240 = vsel %vm655, %v5148, -inf
        %5241 = vmax.xlane.f32.xlu0 %v5240
        %v5242 = vpop.xlane.xlu0 %5241
        %v5243 = vsel %vm655, %v5149, -inf
        %5244 = vmax.xlane.f32.xlu0 %v5243
        %v5245 = vpop.xlane.xlu0 %5244
        %v5246 = vsub.f32 %v5118, %v5152
        %v5247 = vsub.f32 %v5119, %v5155
        %v5248 = vsub.f32 %v5120, %v5158
        %v5249 = vsub.f32 %v5121, %v5161
        %v5250 = vsub.f32 %v5122, %v5164
        %v5251 = vsub.f32 %v5123, %v5167
        %v5252 = vsub.f32 %v5124, %v5170
        %v5253 = vsub.f32 %v5125, %v5173
        %v5254 = vsub.f32 %v5126, %v5176
        %v5255 = vsub.f32 %v5127, %v5179
        %v5256 = vsub.f32 %v5128, %v5182
        %v5257 = vsub.f32 %v5129, %v5185
        %v5258 = vsub.f32 %v5130, %v5188
        %v5259 = vsub.f32 %v5131, %v5191
        %v5260 = vsub.f32 %v5132, %v5194
        %v5261 = vsub.f32 %v5133, %v5197
        %v5262 = vsub.f32 %v5134, %v5200
        %v5263 = vsub.f32 %v5135, %v5203
        %v5264 = vsub.f32 %v5136, %v5206
        %v5265 = vsub.f32 %v5137, %v5209
        %v5266 = vsub.f32 %v5138, %v5212
        %v5267 = vsub.f32 %v5139, %v5215
        %v5268 = vsub.f32 %v5140, %v5218
        %v5269 = vsub.f32 %v5141, %v5221
        %v5270 = vsub.f32 %v5142, %v5224
        %v5271 = vsub.f32 %v5143, %v5227
        %v5272 = vsub.f32 %v5144, %v5230
        %v5273 = vsub.f32 %v5145, %v5233
        %v5274 = vsub.f32 %v5146, %v5236
        %v5275 = vsub.f32 %v5147, %v5239
        %v5276 = vsub.f32 %v5148, %v5242
        %v5277 = vsub.f32 %v5149, %v5245
        %v5278 = vmul.f32 %v5246, 1.442695
        %v5279 = vpow.pop %v5278
        %v5280 = vmul.f32 %v5247, 1.442695
        %v5281 = vpow.pop %v5280
        %v5282 = vmul.f32 %v5248, 1.442695
        %v5283 = vpow.pop %v5282
        %v5284 = vmul.f32 %v5249, 1.442695
        %v5285 = vpow.pop %v5284
        %v5286 = vmul.f32 %v5250, 1.442695
        %v5287 = vpow.pop %v5286
        %v5288 = vmul.f32 %v5251, 1.442695
        %v5289 = vpow.pop %v5288
        %v5290 = vmul.f32 %v5252, 1.442695
        %v5291 = vpow.pop %v5290
        %v5292 = vmul.f32 %v5253, 1.442695
        %v5293 = vpow.pop %v5292
        %v5294 = vmul.f32 %v5254, 1.442695
        %v5295 = vpow.pop %v5294
        %v5296 = vmul.f32 %v5255, 1.442695
        %v5297 = vpow.pop %v5296
        %v5298 = vmul.f32 %v5256, 1.442695
        %v5299 = vpow.pop %v5298
        %v5300 = vmul.f32 %v5257, 1.442695
        %v5301 = vpow.pop %v5300
        %v5302 = vmul.f32 %v5258, 1.442695
        %v5303 = vpow.pop %v5302
        %v5304 = vmul.f32 %v5259, 1.442695
        %v5305 = vpow.pop %v5304
        %v5306 = vmul.f32 %v5260, 1.442695
        %v5307 = vpow.pop %v5306
        %v5308 = vmul.f32 %v5261, 1.442695
        %v5309 = vpow.pop %v5308
        %v5310 = vmul.f32 %v5262, 1.442695
        %v5311 = vpow.pop %v5310
        %v5312 = vmul.f32 %v5263, 1.442695
        %v5313 = vpow.pop %v5312
        %v5314 = vmul.f32 %v5264, 1.442695
        %v5315 = vpow.pop %v5314
        %v5316 = vmul.f32 %v5265, 1.442695
        %v5317 = vpow.pop %v5316
        %v5318 = vmul.f32 %v5266, 1.442695
        %v5319 = vpow.pop %v5318
        %v5320 = vmul.f32 %v5267, 1.442695
        %v5321 = vpow.pop %v5320
        %v5322 = vmul.f32 %v5268, 1.442695
        %v5323 = vpow.pop %v5322
        %v5324 = vmul.f32 %v5269, 1.442695
        %v5325 = vpow.pop %v5324
        %v5326 = vmul.f32 %v5270, 1.442695
        %v5327 = vpow.pop %v5326
        %v5328 = vmul.f32 %v5271, 1.442695
        %v5329 = vpow.pop %v5328
        %v5330 = vmul.f32 %v5272, 1.442695
        %v5331 = vpow.pop %v5330
        %v5332 = vmul.f32 %v5273, 1.442695
        %v5333 = vpow.pop %v5332
        %v5334 = vmul.f32 %v5274, 1.442695
        %v5335 = vpow.pop %v5334
        %v5336 = vmul.f32 %v5275, 1.442695
        %v5337 = vpow.pop %v5336
        %v5338 = vmul.f32 %v5276, 1.442695
        %v5339 = vpow.pop %v5338
        %v5340 = vmul.f32 %v5277, 1.442695
        %v5341 = vpow.pop %v5340
        %v5342 = vsel %vm655, %v5279, 0.0
        %5343 = vadd.xlane.f32.xlu0 %v5342
        %v5344 = vpop.xlane.xlu0 %5343
        %v5345 = vsel %vm655, %v5281, 0.0
        %5346 = vadd.xlane.f32.xlu0 %v5345
        %v5347 = vpop.xlane.xlu0 %5346
        %v5348 = vsel %vm655, %v5283, 0.0
        %5349 = vadd.xlane.f32.xlu0 %v5348
        %v5350 = vpop.xlane.xlu0 %5349
        %v5351 = vsel %vm655, %v5285, 0.0
        %5352 = vadd.xlane.f32.xlu0 %v5351
        %v5353 = vpop.xlane.xlu0 %5352
        %v5354 = vsel %vm655, %v5287, 0.0
        %5355 = vadd.xlane.f32.xlu0 %v5354
        %v5356 = vpop.xlane.xlu0 %5355
        %v5357 = vsel %vm655, %v5289, 0.0
        %5358 = vadd.xlane.f32.xlu0 %v5357
        %v5359 = vpop.xlane.xlu0 %5358
        %v5360 = vsel %vm655, %v5291, 0.0
        %5361 = vadd.xlane.f32.xlu0 %v5360
        %v5362 = vpop.xlane.xlu0 %5361
        %v5363 = vsel %vm655, %v5293, 0.0
        %5364 = vadd.xlane.f32.xlu0 %v5363
        %v5365 = vpop.xlane.xlu0 %5364
        %v5366 = vsel %vm655, %v5295, 0.0
        %5367 = vadd.xlane.f32.xlu0 %v5366
        %v5368 = vpop.xlane.xlu0 %5367
        %v5369 = vsel %vm655, %v5297, 0.0
        %5370 = vadd.xlane.f32.xlu0 %v5369
        %v5371 = vpop.xlane.xlu0 %5370
        %v5372 = vsel %vm655, %v5299, 0.0
        %5373 = vadd.xlane.f32.xlu0 %v5372
        %v5374 = vpop.xlane.xlu0 %5373
        %v5375 = vsel %vm655, %v5301, 0.0
        %5376 = vadd.xlane.f32.xlu0 %v5375
        %v5377 = vpop.xlane.xlu0 %5376
        %v5378 = vsel %vm655, %v5303, 0.0
        %5379 = vadd.xlane.f32.xlu0 %v5378
        %v5380 = vpop.xlane.xlu0 %5379
        %v5381 = vsel %vm655, %v5305, 0.0
        %5382 = vadd.xlane.f32.xlu0 %v5381
        %v5383 = vpop.xlane.xlu0 %5382
        %v5384 = vsel %vm655, %v5307, 0.0
        %5385 = vadd.xlane.f32.xlu0 %v5384
        %v5386 = vpop.xlane.xlu0 %5385
        %v5387 = vsel %vm655, %v5309, 0.0
        %5388 = vadd.xlane.f32.xlu0 %v5387
        %v5389 = vpop.xlane.xlu0 %5388
        %v5390 = vsel %vm655, %v5311, 0.0
        %5391 = vadd.xlane.f32.xlu0 %v5390
        %v5392 = vpop.xlane.xlu0 %5391
        %v5393 = vsel %vm655, %v5313, 0.0
        %5394 = vadd.xlane.f32.xlu0 %v5393
        %v5395 = vpop.xlane.xlu0 %5394
        %v5396 = vsel %vm655, %v5315, 0.0
        %5397 = vadd.xlane.f32.xlu0 %v5396
        %v5398 = vpop.xlane.xlu0 %5397
        %v5399 = vsel %vm655, %v5317, 0.0
        %5400 = vadd.xlane.f32.xlu0 %v5399
        %v5401 = vpop.xlane.xlu0 %5400
        %v5402 = vsel %vm655, %v5319, 0.0
        %5403 = vadd.xlane.f32.xlu0 %v5402
        %v5404 = vpop.xlane.xlu0 %5403
        %v5405 = vsel %vm655, %v5321, 0.0
        %5406 = vadd.xlane.f32.xlu0 %v5405
        %v5407 = vpop.xlane.xlu0 %5406
        %v5408 = vsel %vm655, %v5323, 0.0
        %5409 = vadd.xlane.f32.xlu0 %v5408
        %v5410 = vpop.xlane.xlu0 %5409
        %v5411 = vsel %vm655, %v5325, 0.0
        %5412 = vadd.xlane.f32.xlu0 %v5411
        %v5413 = vpop.xlane.xlu0 %5412
        %v5414 = vsel %vm655, %v5327, 0.0
        %5415 = vadd.xlane.f32.xlu0 %v5414
        %v5416 = vpop.xlane.xlu0 %5415
        %v5417 = vsel %vm655, %v5329, 0.0
        %5418 = vadd.xlane.f32.xlu0 %v5417
        %v5419 = vpop.xlane.xlu0 %5418
        %v5420 = vsel %vm655, %v5331, 0.0
        %5421 = vadd.xlane.f32.xlu0 %v5420
        %v5422 = vpop.xlane.xlu0 %5421
        %v5423 = vsel %vm655, %v5333, 0.0
        %5424 = vadd.xlane.f32.xlu0 %v5423
        %v5425 = vpop.xlane.xlu0 %5424
        %v5426 = vsel %vm655, %v5335, 0.0
        %5427 = vadd.xlane.f32.xlu0 %v5426
        %v5428 = vpop.xlane.xlu0 %5427
        %v5429 = vsel %vm655, %v5337, 0.0
        %5430 = vadd.xlane.f32.xlu0 %v5429
        %v5431 = vpop.xlane.xlu0 %5430
        %v5432 = vsel %vm655, %v5339, 0.0
        %5433 = vadd.xlane.f32.xlu0 %v5432
        %v5434 = vpop.xlane.xlu0 %5433
        %v5435 = vsel %vm655, %v5341, 0.0
        %5436 = vadd.xlane.f32.xlu0 %v5435
        %v5437 = vpop.xlane.xlu0 %5436
        %v5438 = vrcp.pop %v5344
        %v5439 = vrcp.pop %v5347
        %v5440 = vrcp.pop %v5350
        %v5441 = vrcp.pop %v5353
        %v5442 = vrcp.pop %v5356
        %v5443 = vrcp.pop %v5359
        %v5444 = vrcp.pop %v5362
        %v5445 = vrcp.pop %v5365
        %v5446 = vrcp.pop %v5368
        %v5447 = vrcp.pop %v5371
        %v5448 = vrcp.pop %v5374
        %v5449 = vrcp.pop %v5377
        %v5450 = vrcp.pop %v5380
        %v5451 = vrcp.pop %v5383
        %v5452 = vrcp.pop %v5386
        %v5453 = vrcp.pop %v5389
        %v5454 = vrcp.pop %v5392
        %v5455 = vrcp.pop %v5395
        %v5456 = vrcp.pop %v5398
        %v5457 = vrcp.pop %v5401
        %v5458 = vrcp.pop %v5404
        %v5459 = vrcp.pop %v5407
        %v5460 = vrcp.pop %v5410
        %v5461 = vrcp.pop %v5413
        %v5462 = vrcp.pop %v5416
        %v5463 = vrcp.pop %v5419
        %v5464 = vrcp.pop %v5422
        %v5465 = vrcp.pop %v5425
        %v5466 = vrcp.pop %v5428
        %v5467 = vrcp.pop %v5431
        %v5468 = vrcp.pop %v5434
        %v5469 = vrcp.pop %v5437
        %v5470 = vmul.f32 %v5279, %v5438
        %v5471 = vmul.f32 %v5281, %v5439
        %v5472 = vmul.f32 %v5283, %v5440
        %v5473 = vmul.f32 %v5285, %v5441
        %v5474 = vmul.f32 %v5287, %v5442
        %v5475 = vmul.f32 %v5289, %v5443
        %v5476 = vmul.f32 %v5291, %v5444
        %v5477 = vmul.f32 %v5293, %v5445
        %v5478 = vmul.f32 %v5295, %v5446
        %v5479 = vmul.f32 %v5297, %v5447
        %v5480 = vmul.f32 %v5299, %v5448
        %v5481 = vmul.f32 %v5301, %v5449
        %v5482 = vmul.f32 %v5303, %v5450
        %v5483 = vmul.f32 %v5305, %v5451
        %v5484 = vmul.f32 %v5307, %v5452
        %v5485 = vmul.f32 %v5309, %v5453
        %v5486 = vmul.f32 %v5311, %v5454
        %v5487 = vmul.f32 %v5313, %v5455
        %v5488 = vmul.f32 %v5315, %v5456
        %v5489 = vmul.f32 %v5317, %v5457
        %v5490 = vmul.f32 %v5319, %v5458
        %v5491 = vmul.f32 %v5321, %v5459
        %v5492 = vmul.f32 %v5323, %v5460
        %v5493 = vmul.f32 %v5325, %v5461
        %v5494 = vmul.f32 %v5327, %v5462
        %v5495 = vmul.f32 %v5329, %v5463
        %v5496 = vmul.f32 %v5331, %v5464
        %v5497 = vmul.f32 %v5333, %v5465
        %v5498 = vmul.f32 %v5335, %v5466
        %v5499 = vmul.f32 %v5337, %v5467
        %v5500 = vmul.f32 %v5339, %v5468
        %v5501 = vmul.f32 %v5341, %v5469
        %v5502 = vpack.c.bf16 %v5471, %v5470
        %v5503 = vpack.c.bf16 %v5473, %v5472
        %v5504 = vpack.c.bf16 %v5475, %v5474
        %v5505 = vpack.c.bf16 %v5477, %v5476
        %v5506 = vpack.c.bf16 %v5479, %v5478
        %v5507 = vpack.c.bf16 %v5481, %v5480
        %v5508 = vpack.c.bf16 %v5483, %v5482
        %v5509 = vpack.c.bf16 %v5485, %v5484
        %v5510 = vpack.c.bf16 %v5487, %v5486
        %v5511 = vpack.c.bf16 %v5489, %v5488
        %v5512 = vpack.c.bf16 %v5491, %v5490
        %v5513 = vpack.c.bf16 %v5493, %v5492
        %v5514 = vpack.c.bf16 %v5495, %v5494
        %v5515 = vpack.c.bf16 %v5497, %v5496
        %v5516 = vpack.c.bf16 %v5499, %v5498
        %v5517 = vpack.c.bf16 %v5501, %v5500
        %v5526 = vunpack.c.l.b16 %v4849
        %v5527 = vunpack.c.l.b16 %v4850
        %v5528 = vunpack.c.l.b16 %v4851
        %v5529 = vunpack.c.l.b16 %v4852
        %v5530 = vunpack.c.l.b16 %v4853
        %v5531 = vunpack.c.l.b16 %v4854
        %v5532 = vunpack.c.l.b16 %v4855
        %v5533 = vunpack.c.l.b16 %v4856
        %v5534 = vpack.c.b16 %v5527, %v5526
        %v5535 = vpack.c.b16 %v5529, %v5528
        %v5536 = vpack.c.b16 %v5531, %v5530
        %v5537 = vpack.c.b16 %v5533, %v5532
        %v5543 = vsel %vm655, %v5502, 0
        %v5546 = vsel %vm655, %v5503, 0
        %v5549 = vsel %vm655, %v5504, 0
        %v5552 = vsel %vm655, %v5505, 0
        %v5555 = vsel %vm655, %v5506, 0
        %v5558 = vsel %vm655, %v5507, 0
        %v5561 = vsel %vm655, %v5508, 0
        %v5564 = vsel %vm655, %v5509, 0
        %v5567 = vsel %vm655, %v5510, 0
        %v5570 = vsel %vm655, %v5511, 0
        %v5573 = vsel %vm655, %v5512, 0
        %v5576 = vsel %vm655, %v5513, 0
        %v5579 = vsel %vm655, %v5514, 0
        %v5582 = vsel %vm655, %v5515, 0
        %v5585 = vsel %vm655, %v5516, 0
        %v5588 = vsel %vm655, %v5517, 0
        %5590 = vmatprep.subr.bf16.mxu0 0
        %5591 = vmatpush1.bf16.msra.mxu0 %v5534
        %5592 = vmatprep.subr.bf16.mxu0 0
        %5593 = vmatpush1.bf16.msra.mxu0 %v5535
        %5594 = vmatprep.subr.bf16.mxu0 0
        %5595 = vmatpush1.bf16.msra.mxu0 %v5536
        %5596 = vmatprep.subr.bf16.mxu0 0
        %5597 = vmatpush1.bf16.msra.mxu0 %v5537
        %5598 = vmatprep.subr.bf16.mxu0 0
        %5599 = vmatpush1.bf16.msra.mxu0 0
        %5600 = vmatprep.subr.bf16.mxu0 0
        %5601 = vmatpush1.bf16.msra.mxu0 0
        %5602 = vmatprep.subr.bf16.mxu0 0
        %5603 = vmatpush1.bf16.msra.mxu0 0
        %5604 = vmatprep.subr.bf16.mxu0 0
        %5605 = vmatpush1.bf16.msra.mxu0 0
        %5606 = vmatprep.subr.bf16.mxu0 0
        %5607 = vmatpush1.bf16.msra.mxu0 0
        %5608 = vmatprep.subr.bf16.mxu0 0
        %5609 = vmatpush1.bf16.msra.mxu0 0
        %5610 = vmatprep.subr.bf16.mxu0 0
        %5611 = vmatpush1.bf16.msra.mxu0 0
        %5612 = vmatprep.subr.bf16.mxu0 0
        %5613 = vmatpush1.bf16.msra.mxu0 0
        %5614 = vmatprep.subr.bf16.mxu0 0
        %5615 = vmatpush1.bf16.msra.mxu0 0
        %5616 = vmatprep.subr.bf16.mxu0 0
        %5617 = vmatpush1.bf16.msra.mxu0 0
        %5618 = vmatprep.subr.bf16.mxu0 0
        %5619 = vmatpush1.bf16.msra.mxu0 0
        %5620 = vmatprep.subr.bf16.mxu0 0
        %5621 = vmatpush1.bf16.msra.mxu0 0
        %5622 = vmatprep.mubr.bf16.mxu0 0
        %5623 = vmatmul.mubr.bf16.gmra.mrb[0].mxu0 %v5543
        %v5624 = vpop.f32.mrb[0].mxu0
        %v5625 = vadd.f32 0.0, %v5624
        %v5626 = vpop.f32.mrb[0].mxu0
        %v5627 = vpop.f32.mrb[0].mxu0
        %v5628 = vadd.f32 0.0, %v5627
        %v5629 = vpop.f32.mrb[0].mxu0
        %5630 = vmatprep.mubr.bf16.mxu0 0
        %5631 = vmatmul.mubr.bf16.gmra.mrb[0].mxu0 %v5546
        %v5632 = vpop.f32.mrb[0].mxu0
        %v5633 = vadd.f32 0.0, %v5632
        %v5634 = vpop.f32.mrb[0].mxu0
        %v5635 = vpop.f32.mrb[0].mxu0
        %v5636 = vadd.f32 0.0, %v5635
        %v5637 = vpop.f32.mrb[0].mxu0
        %5638 = vmatprep.mubr.bf16.mxu0 0
        %5639 = vmatmul.mubr.bf16.gmra.mrb[0].mxu0 %v5549
        %v5640 = vpop.f32.mrb[0].mxu0
        %v5641 = vadd.f32 0.0, %v5640
        %v5642 = vpop.f32.mrb[0].mxu0
        %v5643 = vpop.f32.mrb[0].mxu0
        %v5644 = vadd.f32 0.0, %v5643
        %v5645 = vpop.f32.mrb[0].mxu0
        %5646 = vmatprep.mubr.bf16.mxu0 0
        %5647 = vmatmul.mubr.bf16.gmra.mrb[0].mxu0 %v5552
        %v5648 = vpop.f32.mrb[0].mxu0
        %v5649 = vadd.f32 0.0, %v5648
        %v5650 = vpop.f32.mrb[0].mxu0
        %v5651 = vpop.f32.mrb[0].mxu0
        %v5652 = vadd.f32 0.0, %v5651
        %v5653 = vpop.f32.mrb[0].mxu0
        %5654 = vmatprep.mubr.bf16.mxu0 0
        %5655 = vmatmul.mubr.bf16.gmra.mrb[0].mxu0 %v5555
        %v5656 = vpop.f32.mrb[0].mxu0
        %v5657 = vadd.f32 0.0, %v5656
        %v5658 = vpop.f32.mrb[0].mxu0
        %v5659 = vpop.f32.mrb[0].mxu0
        %v5660 = vadd.f32 0.0, %v5659
        %v5661 = vpop.f32.mrb[0].mxu0
        %5662 = vmatprep.mubr.bf16.mxu0 0
        %5663 = vmatmul.mubr.bf16.gmra.mrb[0].mxu0 %v5558
        %v5664 = vpop.f32.mrb[0].mxu0
        %v5665 = vadd.f32 0.0, %v5664
        %v5666 = vpop.f32.mrb[0].mxu0
        %v5667 = vpop.f32.mrb[0].mxu0
        %v5668 = vadd.f32 0.0, %v5667
        %v5669 = vpop.f32.mrb[0].mxu0
        %5670 = vmatprep.mubr.bf16.mxu0 0
        %5671 = vmatmul.mubr.bf16.gmra.mrb[0].mxu0 %v5561
        %v5672 = vpop.f32.mrb[0].mxu0
        %v5673 = vadd.f32 0.0, %v5672
        %v5674 = vpop.f32.mrb[0].mxu0
        %v5675 = vpop.f32.mrb[0].mxu0
        %v5676 = vadd.f32 0.0, %v5675
        %v5677 = vpop.f32.mrb[0].mxu0
        %5678 = vmatprep.mubr.bf16.mxu0 0
        %5679 = vmatmul.mubr.bf16.gmra.mrb[0].mxu0 %v5564
        %v5680 = vpop.f32.mrb[0].mxu0
        %v5681 = vadd.f32 0.0, %v5680
        %v5682 = vpop.f32.mrb[0].mxu0
        %v5683 = vpop.f32.mrb[0].mxu0
        %v5684 = vadd.f32 0.0, %v5683
        %v5685 = vpop.f32.mrb[0].mxu0
        %5686 = vmatprep.mubr.bf16.mxu0 0
        %5687 = vmatmul.mubr.bf16.gmra.mrb[0].mxu0 %v5567
        %v5688 = vpop.f32.mrb[0].mxu0
        %v5689 = vadd.f32 0.0, %v5688
        %v5690 = vpop.f32.mrb[0].mxu0
        %v5691 = vpop.f32.mrb[0].mxu0
        %v5692 = vadd.f32 0.0, %v5691
        %v5693 = vpop.f32.mrb[0].mxu0
        %5694 = vmatprep.mubr.bf16.mxu0 0
        %5695 = vmatmul.mubr.bf16.gmra.mrb[0].mxu0 %v5570
        %v5696 = vpop.f32.mrb[0].mxu0
        %v5697 = vadd.f32 0.0, %v5696
        %v5698 = vpop.f32.mrb[0].mxu0
        %v5699 = vpop.f32.mrb[0].mxu0
        %v5700 = vadd.f32 0.0, %v5699
        %v5701 = vpop.f32.mrb[0].mxu0
        %5702 = vmatprep.mubr.bf16.mxu0 0
        %5703 = vmatmul.mubr.bf16.gmra.mrb[0].mxu0 %v5573
        %v5704 = vpop.f32.mrb[0].mxu0
        %v5705 = vadd.f32 0.0, %v5704
        %v5706 = vpop.f32.mrb[0].mxu0
        %v5707 = vpop.f32.mrb[0].mxu0
        %v5708 = vadd.f32 0.0, %v5707
        %v5709 = vpop.f32.mrb[0].mxu0
        %5710 = vmatprep.mubr.bf16.mxu0 0
        %5711 = vmatmul.mubr.bf16.gmra.mrb[0].mxu0 %v5576
        %v5712 = vpop.f32.mrb[0].mxu0
        %v5713 = vadd.f32 0.0, %v5712
        %v5714 = vpop.f32.mrb[0].mxu0
        %v5715 = vpop.f32.mrb[0].mxu0
        %v5716 = vadd.f32 0.0, %v5715
        %v5717 = vpop.f32.mrb[0].mxu0
        %5718 = vmatprep.mubr.bf16.mxu0 0
        %5719 = vmatmul.mubr.bf16.gmra.mrb[0].mxu0 %v5579
        %v5720 = vpop.f32.mrb[0].mxu0
        %v5721 = vadd.f32 0.0, %v5720
        %v5722 = vpop.f32.mrb[0].mxu0
        %v5723 = vpop.f32.mrb[0].mxu0
        %v5724 = vadd.f32 0.0, %v5723
        %v5725 = vpop.f32.mrb[0].mxu0
        %5726 = vmatprep.mubr.bf16.mxu0 0
        %5727 = vmatmul.mubr.bf16.gmra.mrb[0].mxu0 %v5582
        %v5728 = vpop.f32.mrb[0].mxu0
        %v5729 = vadd.f32 0.0, %v5728
        %v5730 = vpop.f32.mrb[0].mxu0
        %v5731 = vpop.f32.mrb[0].mxu0
        %v5732 = vadd.f32 0.0, %v5731
        %v5733 = vpop.f32.mrb[0].mxu0
        %5734 = vmatprep.mubr.bf16.mxu0 0
        %5735 = vmatmul.mubr.bf16.gmra.mrb[0].mxu0 %v5585
        %v5736 = vpop.f32.mrb[0].mxu0
        %v5737 = vadd.f32 0.0, %v5736
        %v5738 = vpop.f32.mrb[0].mxu0
        %v5739 = vpop.f32.mrb[0].mxu0
        %v5740 = vadd.f32 0.0, %v5739
        %v5741 = vpop.f32.mrb[0].mxu0
        %5742 = vmatprep.mubr.bf16.mxu0 0
        %5743 = vmatmul.mubr.bf16.gmra.mrb[0].mxu0 %v5588
        %v5744 = vpop.f32.mrb[0].mxu0
        %v5745 = vadd.f32 0.0, %v5744
        %v5746 = vpop.f32.mrb[0].mxu0
        %v5747 = vpop.f32.mrb[0].mxu0
        %v5748 = vadd.f32 0.0, %v5747
        %v5749 = vpop.f32.mrb[0].mxu0
        %5750 = vdwg.mxu0
        %v5751 = vadd.f32 %v4817, %v5625
        %v5752 = vadd.f32 %v4818, %v5628
        %v5753 = vadd.f32 %v4819, %v5633
        %v5754 = vadd.f32 %v4820, %v5636
        %v5755 = vadd.f32 %v4821, %v5641
        %v5756 = vadd.f32 %v4822, %v5644
        %v5757 = vadd.f32 %v4823, %v5649
        %v5758 = vadd.f32 %v4824, %v5652
        %v5759 = vadd.f32 %v4825, %v5657
        %v5760 = vadd.f32 %v4826, %v5660
        %v5761 = vadd.f32 %v4827, %v5665
        %v5762 = vadd.f32 %v4828, %v5668
        %v5763 = vadd.f32 %v4829, %v5673
        %v5764 = vadd.f32 %v4830, %v5676
        %v5765 = vadd.f32 %v4831, %v5681
        %v5766 = vadd.f32 %v4832, %v5684
        %v5767 = vadd.f32 %v4833, %v5689
        %v5768 = vadd.f32 %v4834, %v5692
        %v5769 = vadd.f32 %v4835, %v5697
        %v5770 = vadd.f32 %v4836, %v5700
        %v5771 = vadd.f32 %v4837, %v5705
        %v5772 = vadd.f32 %v4838, %v5708
        %v5773 = vadd.f32 %v4839, %v5713
        %v5774 = vadd.f32 %v4840, %v5716
        %v5775 = vadd.f32 %v4841, %v5721
        %v5776 = vadd.f32 %v4842, %v5724
        %v5777 = vadd.f32 %v4843, %v5729
        %v5778 = vadd.f32 %v4844, %v5732
        %v5779 = vadd.f32 %v4845, %v5737
        %v5780 = vadd.f32 %v4846, %v5740
        %v5781 = vadd.f32 %v4847, %v5745
        %v5782 = vadd.f32 %v4848, %v5748
        %v5783 = vld [vmem:[%s2] sm:$0x1]
        %v5785 = vlaneseq
        %v5786 = vshrl.u32 %v5785, 7
        %v5787 = vsub.s32 0, %v5786
        %v5788 = vrot.slane %v5783, %v5787
        %v5790 = vadd.f32 %v5751, %v5788
        %v5791 = vadd.f32 %v5752, %v5788
        %v5792 = vadd.f32 %v5753, %v5788
        %v5793 = vadd.f32 %v5754, %v5788
        %v5794 = vadd.f32 %v5755, %v5788
        %v5795 = vadd.f32 %v5756, %v5788
        %v5796 = vadd.f32 %v5757, %v5788
        %v5797 = vadd.f32 %v5758, %v5788
        %v5798 = vadd.f32 %v5759, %v5788
        %v5799 = vadd.f32 %v5760, %v5788
        %v5800 = vadd.f32 %v5761, %v5788
        %v5801 = vadd.f32 %v5762, %v5788
        %v5802 = vadd.f32 %v5763, %v5788
        %v5803 = vadd.f32 %v5764, %v5788
        %v5804 = vadd.f32 %v5765, %v5788
        %v5805 = vadd.f32 %v5766, %v5788
        %v5806 = vadd.f32 %v5767, %v5788
        %v5807 = vadd.f32 %v5768, %v5788
        %v5808 = vadd.f32 %v5769, %v5788
        %v5809 = vadd.f32 %v5770, %v5788
        %v5810 = vadd.f32 %v5771, %v5788
        %v5811 = vadd.f32 %v5772, %v5788
        %v5812 = vadd.f32 %v5773, %v5788
        %v5813 = vadd.f32 %v5774, %v5788
        %v5814 = vadd.f32 %v5775, %v5788
        %v5815 = vadd.f32 %v5776, %v5788
        %v5816 = vadd.f32 %v5777, %v5788
        %v5817 = vadd.f32 %v5778, %v5788
        %v5818 = vadd.f32 %v5779, %v5788
        %v5819 = vadd.f32 %v5780, %v5788
        %v5820 = vadd.f32 %v5781, %v5788
        %v5821 = vadd.f32 %v5782, %v5788
        %vm5822 = vcmask 261120
        %5823 = vst.msk [vmem:[%s203] sm:$0xff] %vm5822, %v5790
        %5824 = vst.msk [vmem:[%s203 + $0x8] sm:$0xff] %vm5822, %v5791
        %5825 = vst.msk [vmem:[%s203 + $0x10] sm:$0xff] %vm5822, %v5792
        %5826 = vst.msk [vmem:[%s203 + $0x18] sm:$0xff] %vm5822, %v5793
        %5827 = vst.msk [vmem:[%s203 + $0x20] sm:$0xff] %vm5822, %v5794
        %5828 = vst.msk [vmem:[%s203 + $0x28] sm:$0xff] %vm5822, %v5795
        %5829 = vst.msk [vmem:[%s203 + $0x30] sm:$0xff] %vm5822, %v5796
        %5830 = vst.msk [vmem:[%s203 + $0x38] sm:$0xff] %vm5822, %v5797
        %5831 = vst.msk [vmem:[%s203 + $0x40] sm:$0xff] %vm5822, %v5798
        %5832 = vst.msk [vmem:[%s203 + $0x48] sm:$0xff] %vm5822, %v5799
        %5833 = vst.msk [vmem:[%s203 + $0x50] sm:$0xff] %vm5822, %v5800
        %5834 = vst.msk [vmem:[%s203 + $0x58] sm:$0xff] %vm5822, %v5801
        %5835 = vst.msk [vmem:[%s203 + $0x60] sm:$0xff] %vm5822, %v5802
        %5836 = vst.msk [vmem:[%s203 + $0x68] sm:$0xff] %vm5822, %v5803
        %5837 = vst.msk [vmem:[%s203 + $0x70] sm:$0xff] %vm5822, %v5804
        %5838 = vst.msk [vmem:[%s203 + $0x78] sm:$0xff] %vm5822, %v5805
        %5839 = vst.msk [vmem:[%s203 + $0x80] sm:$0xff] %vm5822, %v5806
        %5840 = vst.msk [vmem:[%s203 + $0x88] sm:$0xff] %vm5822, %v5807
        %5841 = vst.msk [vmem:[%s203 + $0x90] sm:$0xff] %vm5822, %v5808
        %5842 = vst.msk [vmem:[%s203 + $0x98] sm:$0xff] %vm5822, %v5809
        %5843 = vst.msk [vmem:[%s203 + $0xa0] sm:$0xff] %vm5822, %v5810
        %5844 = vst.msk [vmem:[%s203 + $0xa8] sm:$0xff] %vm5822, %v5811
        %5845 = vst.msk [vmem:[%s203 + $0xb0] sm:$0xff] %vm5822, %v5812
        %5846 = vst.msk [vmem:[%s203 + $0xb8] sm:$0xff] %vm5822, %v5813
        %5847 = vst.msk [vmem:[%s203 + $0xc0] sm:$0xff] %vm5822, %v5814
        %5848 = vst.msk [vmem:[%s203 + $0xc8] sm:$0xff] %vm5822, %v5815
        %5849 = vst.msk [vmem:[%s203 + $0xd0] sm:$0xff] %vm5822, %v5816
        %5850 = vst.msk [vmem:[%s203 + $0xd8] sm:$0xff] %vm5822, %v5817
        %5851 = vst.msk [vmem:[%s203 + $0xe0] sm:$0xff] %vm5822, %v5818
        %5852 = vst.msk [vmem:[%s203 + $0xe8] sm:$0xff] %vm5822, %v5819
        %5853 = vst.msk [vmem:[%s203 + $0xf0] sm:$0xff] %vm5822, %v5820
        %5854 = vst.msk [vmem:[%s203 + $0xf8] sm:$0xff] %vm5822, %v5821
        %s5855 = sand.u32 %s114, 1
        %s5856 = scalar_lea.sflag [#allocation3], %s5855
        %s5857 = sand.u32 %s114, 1
        %s5858 = smul.addr %s5857, 256
        %s5859 = scalar_lea.vmem [#allocation2], %s5858
        // Predicated region
        $region33: #{fwd.3} parent=31 // pred_check
          %p5860 = pneg %p124
        $region34: #{fwd.3} parent=31 // pred_check_branch
          %5862 = sbr.rel (%p5860) target = $region36
        $region35: #{fwd.3} parent=31 // pred_region
          %s5863 = smul.u32 32, %s22
          %s5865 = ssub.s32 4096, 4096
          %5866 = vsyncadd %s5856, %s5865
          %s5867 = smul.addr %s21, 32
          %s5868 = sadd.s32 %s5863, %s5867
          %s5869 = smul.addr %s5868, 128
          %s5870 = scalar_lea.hbm %s3, %s5869
          %s5871 = sshll.u32 %s5859, 4
          %s5872 = int_to_ptr.vmem [resolvable:$true] %s5871
          %5877 = dma.vmem_to_hbm [thread:$0]  %s5872, 4096, %s5870, %s5856, 128, 128, 8
        $region36: #{fwd.3} parent=31 // pred_fallthru
          _
      $region32: #{fwd.3} parent=5 // pred_fallthru
        _
      %p5878 = scmp.le.s32.totalorder 2, %s12
      // Predicated region
      $region37: #{fwd.3} parent=5 // pred_check
        %p5879 = pneg %p5878
      $region38: #{fwd.3} parent=5 // pred_check_branch
        %5881 = sbr.rel (%p5879) target = $region40
      $region39: #{fwd.3} parent=5 // pred_region
        %s5882 = ssub.s32 %s12, 2
        // Predicated region
        $region41: #{fwd.3} parent=39 // pred_check
          %p5883 = pneg %p130
        $region42: #{fwd.3} parent=39 // pred_check_branch
          %5885 = sbr.rel (%p5883) target = $region44
        $region43: #{fwd.3} parent=39 // pred_region
          %s5886 = sand.u32 %s115, 1
          %s5887 = scalar_lea.sflag [#allocation3], %s5886
          %s5888 = sand.u32 %s115, 1
          %s5889 = smul.addr %s5888, 256
          %s5890 = scalar_lea.vmem [#allocation2], %s5889
          %5891 = dma.done %s5887, 4096
        $region44: #{fwd.3} parent=39 // pred_fallthru
          _
      $region40: #{fwd.3} parent=5 // pred_fallthru
        _
    $region6: #{fwd.3} parent=1 // loop_footer
      %s16 = sadd.s32 1, %s12
    $region7: #{fwd.3} parent=1 // loop_footer_branch
      %11 = sbr.rel target = $region3
    $region8: #{fwd.3} parent=1 // loop_exit
      _
    %5892 = vsyncpa [#allocation3], 1
    %s5893 = scalar_lea.sflag [#allocation3], 1
    %5894 = vsyncpa %s5893, 1

</llo_original>
